<compile_context>
chip_gen: v7x
topology: tpu7x:2x2x1
jax: 0.10.0
libtpu: 0.0.40
codegen_flags: <defaults>
</compile_context>

<pallas_src>
import functools

import jax
import jax.numpy as jnp
from jax.experimental import pallas as pl
from jax.experimental.pallas import tpu as pltpu

D_IN = 28 * 28     # 784 true feature dim
D_PAD = 896        # 784 padded to a lane multiple (7 * 128)
LANES = 128


def _pad_to(n, mult=128):
    return ((n + mult - 1) // mult) * mult


def _sae_kernel(x_ref,
                w1_ref, b1_ref, w2_ref, b2_ref, w3_ref, b3_ref,
                w4_ref, b4_ref, w5_ref, b5_ref, w6_ref, b6_ref,
                part_ref,
                *, tm, n_valid):
    # bf16 activations into the MXU, f32 accumulation.
    h = x_ref[...].astype(jnp.bfloat16)                      # (tm, D_PAD)

    def layer(a, w_ref, b_ref):
        acc = jnp.dot(a, w_ref[...], preferred_element_type=jnp.float32)
        return (acc + b_ref[...]).astype(jnp.bfloat16)

    # encoder (Identity activations)
    h = layer(h, w1_ref, b1_ref)
    h = layer(h, w2_ref, b2_ref)
    h = layer(h, w3_ref, b3_ref)
    # decoder (Identity activations); keep the final f32 accumulator for MSE
    h = layer(h, w4_ref, b4_ref)
    h = layer(h, w5_ref, b5_ref)
    o = jnp.dot(h, w6_ref[...], preferred_element_type=jnp.float32) + b6_ref[...]

    # Re-read x (f32) here instead of holding it live across the matmul chain
    # (keeps vreg pressure down at large TM).
    diff = x_ref[...] - o                                     # (tm, D_PAD) f32
    se = diff * diff

    # Mask rows past the true batch size (ragged / zero-padded last tile).
    i = pl.program_id(0)
    row = jax.lax.broadcasted_iota(jnp.int32, (tm, 1), 0) + i * tm
    se = jnp.where(row < n_valid, se, 0.0)

    # Per-tile, per-lane partial sums -> one lane-dense (1, 128) row.
    col = jnp.sum(se, axis=0, keepdims=True)                  # (1, D_PAD)
    part = col[:, 0:LANES]
    for g in range(1, D_PAD // LANES):
        part = part + col[:, g * LANES:(g + 1) * LANES]
    part_ref[...] = part


def make_params(key, hidden):
    """PyTorch nn.Linear default init, pre-transposed to (in,out), zero-padded
    to lane multiples. Weights stored bf16, biases f32."""
    dims = [(D_IN, 500), (500, 250), (250, hidden),
            (hidden, 250), (250, 500), (500, D_IN)]
    keys = jax.random.split(key, len(dims))
    params = []
    for k, (fi, fo) in zip(keys, dims):
        kw, kb = jax.random.split(k)
        bound = 1.0 / float(fi) ** 0.5
        w = jax.random.uniform(kw, (fi, fo), jnp.float32, -bound, bound)
        b = jax.random.uniform(kb, (1, fo), jnp.float32, -bound, bound)
        fi_p, fo_p = _pad_to(fi), _pad_to(fo)
        w_p = jnp.zeros((fi_p, fo_p), jnp.float32).at[:fi, :fo].set(w)
        b_p = jnp.zeros((1, fo_p), jnp.float32).at[:, :fo].set(b)
        params.extend([w_p.astype(jnp.bfloat16), b_p])
    return params  # [w1,b1, ..., w6,b6], padded


def stack_autoencoder_loss(x_nchw, params, *, tm=256):
    # tm=256 matches the v6e/v7x MXU; use tm=128 on v5e.
    n = x_nchw.shape[0]
    x2d = x_nchw.reshape(n, D_IN).astype(jnp.float32)   # torch .view equivalent

    g = (n + tm - 1) // tm
    n_pad = g * tm
    x_p = jnp.zeros((n_pad, D_PAD), jnp.float32).at[:n, :D_IN].set(x2d)

    x_spec = pl.BlockSpec((tm, D_PAD), lambda i: (i, 0))
    const_specs = [pl.BlockSpec(p.shape, lambda i: (0, 0)) for p in params]
    out_spec = pl.BlockSpec((1, LANES), lambda i: (i, 0))

    flops = 2 * n_pad * sum(int(w.shape[0]) * int(w.shape[1])
                            for w in params[0::2])
    bytes_accessed = (int(x_p.size) * 4
                      + sum(int(p.size) * p.dtype.itemsize for p in params)
                      + g * LANES * 4)

    kernel = functools.partial(_sae_kernel, tm=tm, n_valid=n)
    partials = pl.pallas_call(
        kernel,
        out_shape=jax.ShapeDtypeStruct((g, LANES), jnp.float32),
        grid=(g,),
        in_specs=[x_spec] + const_specs,
        out_specs=out_spec,
        compiler_params=pltpu.CompilerParams(
            dimension_semantics=("parallel",),
            vmem_limit_bytes=32 * 1024 * 1024),
        cost_estimate=pl.CostEstimate(flops=flops, transcendentals=0,
                                      bytes_accessed=bytes_accessed),
    )(x_p, *params)

    # Final mean over true elements only (padded rows masked, padded cols zero).
    return jnp.sum(partials) / jnp.float32(n * D_IN)


if __name__ == "__main__":
    key = jax.random.PRNGKey(0)
    k_x, k_p = jax.random.split(key)

    hidden = 32
    batch = 8
    # NCHW MNIST-style input like the PyTorch module receives.
    x = jax.random.normal(k_x, (batch, 1, 28, 28), dtype=jnp.float32)
    params = make_params(k_p, hidden)

    loss = stack_autoencoder_loss(x, params, tm=128)
    jax.block_until_ready(loss)

    # Pure-JAX reference with the same precision recipe (bf16 matmuls,
    # f32 accumulation / bias add, f32 MSE).
    x2d = x.reshape(batch, D_IN).astype(jnp.float32)
    x_ref = jnp.zeros((batch, D_PAD), jnp.float32).at[:, :D_IN].set(x2d)
    h = x_ref.astype(jnp.bfloat16)
    for idx in range(0, len(params), 2):
        w, b = params[idx], params[idx + 1]
        acc = jnp.dot(h, w, preferred_element_type=jnp.float32) + b
        h = acc.astype(jnp.bfloat16) if idx < len(params) - 2 else acc
    ref = jnp.sum((x_ref - h) ** 2) / jnp.float32(batch * D_IN)

    assert jnp.allclose(loss, ref, rtol=1e-2, atol=1e-2), (loss, ref)
    print("KERNEL_OK")
</pallas_src>

<mosaic_0001>
module attributes {stable_mosaic.version = 11 : i64} {
  func.func @_sae_kernel(%arg0: i32, %arg1: memref<128x896xf32, #tpu.memory_space<vmem>>, %arg2: memref<896x512xbf16, #tpu.memory_space<vmem>>, %arg3: memref<1x512xf32, #tpu.memory_space<vmem>>, %arg4: memref<512x256xbf16, #tpu.memory_space<vmem>>, %arg5: memref<1x256xf32, #tpu.memory_space<vmem>>, %arg6: memref<256x128xbf16, #tpu.memory_space<vmem>>, %arg7: memref<1x128xf32, #tpu.memory_space<vmem>>, %arg8: memref<128x256xbf16, #tpu.memory_space<vmem>>, %arg9: memref<1x256xf32, #tpu.memory_space<vmem>>, %arg10: memref<256x512xbf16, #tpu.memory_space<vmem>>, %arg11: memref<1x512xf32, #tpu.memory_space<vmem>>, %arg12: memref<512x896xbf16, #tpu.memory_space<vmem>>, %arg13: memref<1x896xf32, #tpu.memory_space<vmem>>, %arg14: memref<1x128xf32, #tpu.memory_space<vmem>>) attributes {dimension_semantics = [#tpu.dimension_semantics<parallel>], iteration_bounds = array<i64: 1>, scalar_prefetch = 0 : i64, scratch_operands = 0 : i64, tpu.core_type = #tpu.core_type<tc>, window_params = [{transform_indices = @transform_0, window_bounds = array<i64: 128, 896>}, {pipeline_mode = #tpu.pipeline_mode<synchronous>, transform_indices = @transform_1, window_bounds = array<i64: 896, 512>}, {pipeline_mode = #tpu.pipeline_mode<synchronous>, transform_indices = @transform_2, window_bounds = array<i64: 1, 512>}, {pipeline_mode = #tpu.pipeline_mode<synchronous>, transform_indices = @transform_3, window_bounds = array<i64: 512, 256>}, {pipeline_mode = #tpu.pipeline_mode<synchronous>, transform_indices = @transform_4, window_bounds = array<i64: 1, 256>}, {pipeline_mode = #tpu.pipeline_mode<synchronous>, transform_indices = @transform_5, window_bounds = array<i64: 256, 128>}, {pipeline_mode = #tpu.pipeline_mode<synchronous>, transform_indices = @transform_6, window_bounds = array<i64: 1, 128>}, {pipeline_mode = #tpu.pipeline_mode<synchronous>, transform_indices = @transform_7, window_bounds = array<i64: 128, 256>}, {pipeline_mode = #tpu.pipeline_mode<synchronous>, transform_indices = @transform_8, window_bounds = array<i64: 1, 256>}, {pipeline_mode = #tpu.pipeline_mode<synchronous>, transform_indices = @transform_9, window_bounds = array<i64: 256, 512>}, {pipeline_mode = #tpu.pipeline_mode<synchronous>, transform_indices = @transform_10, window_bounds = array<i64: 1, 512>}, {pipeline_mode = #tpu.pipeline_mode<synchronous>, transform_indices = @transform_11, window_bounds = array<i64: 512, 896>}, {pipeline_mode = #tpu.pipeline_mode<synchronous>, transform_indices = @transform_12, window_bounds = array<i64: 1, 896>}, {transform_indices = @transform_13, window_bounds = array<i64: 1, 128>}]} {
    %c0 = arith.constant 0 : index
    %c0_0 = arith.constant 0 : index
    %0 = vector.load %arg1[%c0, %c0_0] : memref<128x896xf32, #tpu.memory_space<vmem>>, vector<128x896xf32>
    %1 = arith.truncf %0 : vector<128x896xf32> to vector<128x896xbf16>
    %c0_1 = arith.constant 0 : index
    %c0_2 = arith.constant 0 : index
    %2 = vector.load %arg2[%c0_1, %c0_2] : memref<896x512xbf16, #tpu.memory_space<vmem>>, vector<896x512xbf16>
    %cst = arith.constant dense<0.000000e+00> : vector<128x512xf32>
    %3 = tpu.matmul %1, %2, %cst {dimension_numbers = #tpu.dot_dimension_numbers<[1], [0], [0], [1], [0, 0, 1, 1], [], []>} : vector<128x896xbf16>, vector<896x512xbf16>, vector<128x512xf32> -> vector<128x512xf32>
    %c0_3 = arith.constant 0 : index
    %c0_4 = arith.constant 0 : index
    %4 = vector.load %arg3[%c0_3, %c0_4] : memref<1x512xf32, #tpu.memory_space<vmem>>, vector<1x512xf32>
    %5 = vector.broadcast %4 : vector<1x512xf32> to vector<128x512xf32>
    %6 = arith.addf %3, %5 : vector<128x512xf32>
    %7 = arith.truncf %6 : vector<128x512xf32> to vector<128x512xbf16>
    %c0_5 = arith.constant 0 : index
    %c0_6 = arith.constant 0 : index
    %8 = vector.load %arg4[%c0_5, %c0_6] : memref<512x256xbf16, #tpu.memory_space<vmem>>, vector<512x256xbf16>
    %cst_7 = arith.constant dense<0.000000e+00> : vector<128x256xf32>
    %9 = tpu.matmul %7, %8, %cst_7 {dimension_numbers = #tpu.dot_dimension_numbers<[1], [0], [0], [1], [0, 0, 1, 1], [], []>} : vector<128x512xbf16>, vector<512x256xbf16>, vector<128x256xf32> -> vector<128x256xf32>
    %c0_8 = arith.constant 0 : index
    %c0_9 = arith.constant 0 : index
    %10 = vector.load %arg5[%c0_8, %c0_9] : memref<1x256xf32, #tpu.memory_space<vmem>>, vector<1x256xf32>
    %11 = vector.broadcast %10 : vector<1x256xf32> to vector<128x256xf32>
    %12 = arith.addf %9, %11 : vector<128x256xf32>
    %13 = arith.truncf %12 : vector<128x256xf32> to vector<128x256xbf16>
    %c0_10 = arith.constant 0 : index
    %c0_11 = arith.constant 0 : index
    %14 = vector.load %arg6[%c0_10, %c0_11] : memref<256x128xbf16, #tpu.memory_space<vmem>>, vector<256x128xbf16>
    %cst_12 = arith.constant dense<0.000000e+00> : vector<128x128xf32>
    %15 = tpu.matmul %13, %14, %cst_12 {dimension_numbers = #tpu.dot_dimension_numbers<[1], [0], [0], [1], [0, 0, 1, 1], [], []>} : vector<128x256xbf16>, vector<256x128xbf16>, vector<128x128xf32> -> vector<128x128xf32>
    %c0_13 = arith.constant 0 : index
    %c0_14 = arith.constant 0 : index
    %16 = vector.load %arg7[%c0_13, %c0_14] : memref<1x128xf32, #tpu.memory_space<vmem>>, vector<1x128xf32>
    %17 = vector.broadcast %16 : vector<1x128xf32> to vector<128x128xf32>
    %18 = arith.addf %15, %17 : vector<128x128xf32>
    %19 = arith.truncf %18 : vector<128x128xf32> to vector<128x128xbf16>
    %c0_15 = arith.constant 0 : index
    %c0_16 = arith.constant 0 : index
    %20 = vector.load %arg8[%c0_15, %c0_16] : memref<128x256xbf16, #tpu.memory_space<vmem>>, vector<128x256xbf16>
    %cst_17 = arith.constant dense<0.000000e+00> : vector<128x256xf32>
    %21 = tpu.matmul %19, %20, %cst_17 {dimension_numbers = #tpu.dot_dimension_numbers<[1], [0], [0], [1], [0, 0, 1, 1], [], []>} : vector<128x128xbf16>, vector<128x256xbf16>, vector<128x256xf32> -> vector<128x256xf32>
    %c0_18 = arith.constant 0 : index
    %c0_19 = arith.constant 0 : index
    %22 = vector.load %arg9[%c0_18, %c0_19] : memref<1x256xf32, #tpu.memory_space<vmem>>, vector<1x256xf32>
    %23 = vector.broadcast %22 : vector<1x256xf32> to vector<128x256xf32>
    %24 = arith.addf %21, %23 : vector<128x256xf32>
    %25 = arith.truncf %24 : vector<128x256xf32> to vector<128x256xbf16>
    %c0_20 = arith.constant 0 : index
    %c0_21 = arith.constant 0 : index
    %26 = vector.load %arg10[%c0_20, %c0_21] : memref<256x512xbf16, #tpu.memory_space<vmem>>, vector<256x512xbf16>
    %cst_22 = arith.constant dense<0.000000e+00> : vector<128x512xf32>
    %27 = tpu.matmul %25, %26, %cst_22 {dimension_numbers = #tpu.dot_dimension_numbers<[1], [0], [0], [1], [0, 0, 1, 1], [], []>} : vector<128x256xbf16>, vector<256x512xbf16>, vector<128x512xf32> -> vector<128x512xf32>
    %c0_23 = arith.constant 0 : index
    %c0_24 = arith.constant 0 : index
    %28 = vector.load %arg11[%c0_23, %c0_24] : memref<1x512xf32, #tpu.memory_space<vmem>>, vector<1x512xf32>
    %29 = vector.broadcast %28 : vector<1x512xf32> to vector<128x512xf32>
    %30 = arith.addf %27, %29 : vector<128x512xf32>
    %31 = arith.truncf %30 : vector<128x512xf32> to vector<128x512xbf16>
    %c0_25 = arith.constant 0 : index
    %c0_26 = arith.constant 0 : index
    %32 = vector.load %arg12[%c0_25, %c0_26] : memref<512x896xbf16, #tpu.memory_space<vmem>>, vector<512x896xbf16>
    %cst_27 = arith.constant dense<0.000000e+00> : vector<128x896xf32>
    %33 = tpu.matmul %31, %32, %cst_27 {dimension_numbers = #tpu.dot_dimension_numbers<[1], [0], [0], [1], [0, 0, 1, 1], [], []>} : vector<128x512xbf16>, vector<512x896xbf16>, vector<128x896xf32> -> vector<128x896xf32>
    %c0_28 = arith.constant 0 : index
    %c0_29 = arith.constant 0 : index
    %34 = vector.load %arg13[%c0_28, %c0_29] : memref<1x896xf32, #tpu.memory_space<vmem>>, vector<1x896xf32>
    %35 = vector.broadcast %34 : vector<1x896xf32> to vector<128x896xf32>
    %36 = arith.addf %33, %35 : vector<128x896xf32>
    %c0_30 = arith.constant 0 : index
    %c0_31 = arith.constant 0 : index
    %37 = vector.load %arg1[%c0_30, %c0_31] : memref<128x896xf32, #tpu.memory_space<vmem>>, vector<128x896xf32>
    %38 = arith.subf %37, %36 : vector<128x896xf32>
    %39 = arith.mulf %38, %38 : vector<128x896xf32>
    %40 = tpu.iota {dimensions = array<i32: 0>} : vector<128x1xi32>
    %c128_i32 = arith.constant 128 : i32
    %41 = arith.muli %arg0, %c128_i32 : i32
    %42 = vector.broadcast %41 : i32 to vector<128x1xi32>
    %43 = arith.addi %40, %42 : vector<128x1xi32>
    %c8_i32 = arith.constant 8 : i32
    %44 = vector.broadcast %c8_i32 : i32 to vector<128x1xi32>
    %45 = arith.cmpi slt, %43, %44 : vector<128x1xi32>
    %cst_32 = arith.constant 0.000000e+00 : f32
    %46 = vector.shape_cast %45 : vector<128x1xi1> to vector<128x1xi1>
    %47 = vector.broadcast %46 : vector<128x1xi1> to vector<128x896xi1>
    %48 = vector.broadcast %cst_32 : f32 to vector<128x896xf32>
    %49 = arith.select %47, %39, %48 : vector<128x896xi1>, vector<128x896xf32>
    %cst_33 = arith.constant dense<0.000000e+00> : vector<896xf32>
    %50 = vector.multi_reduction <add>, %49, %cst_33 [0] : vector<128x896xf32> to vector<896xf32>
    %51 = vector.shape_cast %50 : vector<896xf32> to vector<1x896xf32>
    %52 = vector.extract_strided_slice %51 {offsets = [0, 0], sizes = [1, 128], strides = [1, 1]} : vector<1x896xf32> to vector<1x128xf32>
    %53 = vector.extract_strided_slice %51 {offsets = [0, 128], sizes = [1, 128], strides = [1, 1]} : vector<1x896xf32> to vector<1x128xf32>
    %54 = arith.addf %52, %53 : vector<1x128xf32>
    %55 = vector.extract_strided_slice %51 {offsets = [0, 256], sizes = [1, 128], strides = [1, 1]} : vector<1x896xf32> to vector<1x128xf32>
    %56 = arith.addf %54, %55 : vector<1x128xf32>
    %57 = vector.extract_strided_slice %51 {offsets = [0, 384], sizes = [1, 128], strides = [1, 1]} : vector<1x896xf32> to vector<1x128xf32>
    %58 = arith.addf %56, %57 : vector<1x128xf32>
    %59 = vector.extract_strided_slice %51 {offsets = [0, 512], sizes = [1, 128], strides = [1, 1]} : vector<1x896xf32> to vector<1x128xf32>
    %60 = arith.addf %58, %59 : vector<1x128xf32>
    %61 = vector.extract_strided_slice %51 {offsets = [0, 640], sizes = [1, 128], strides = [1, 1]} : vector<1x896xf32> to vector<1x128xf32>
    %62 = arith.addf %60, %61 : vector<1x128xf32>
    %63 = vector.extract_strided_slice %51 {offsets = [0, 768], sizes = [1, 128], strides = [1, 1]} : vector<1x896xf32> to vector<1x128xf32>
    %64 = arith.addf %62, %63 : vector<1x128xf32>
    %c0_34 = arith.constant 0 : index
    %c0_35 = arith.constant 0 : index
    %65 = vector.load %arg14[%c0_34, %c0_35] : memref<1x128xf32, #tpu.memory_space<vmem>>, vector<1x128xf32>
    tpu.vector_store %arg14[%c0_34, %c0_35], %64 {strides = array<i32>} : memref<1x128xf32, #tpu.memory_space<vmem>>, vector<1x128xf32>,
    return
  }
  func.func @transform_0(%arg0: i32) -> (i32, i32) {
    %c0_i32 = arith.constant 0 : i32
    %c0_i32_0 = arith.constant 0 : i32
    return %arg0, %c0_i32 : i32, i32
  }
  func.func @transform_1(%arg0: i32) -> (i32, i32) {
    %c0_i32 = arith.constant 0 : i32
    %c0_i32_0 = arith.constant 0 : i32
    %c0_i32_1 = arith.constant 0 : i32
    return %c0_i32, %c0_i32_0 : i32, i32
  }
  func.func @transform_2(%arg0: i32) -> (i32, i32) {
    %c0_i32 = arith.constant 0 : i32
    %c0_i32_0 = arith.constant 0 : i32
    %c0_i32_1 = arith.constant 0 : i32
    return %c0_i32, %c0_i32_0 : i32, i32
  }
  func.func @transform_3(%arg0: i32) -> (i32, i32) {
    %c0_i32 = arith.constant 0 : i32
    %c0_i32_0 = arith.constant 0 : i32
    %c0_i32_1 = arith.constant 0 : i32
    return %c0_i32, %c0_i32_0 : i32, i32
  }
  func.func @transform_4(%arg0: i32) -> (i32, i32) {
    %c0_i32 = arith.constant 0 : i32
    %c0_i32_0 = arith.constant 0 : i32
    %c0_i32_1 = arith.constant 0 : i32
    return %c0_i32, %c0_i32_0 : i32, i32
  }
  func.func @transform_5(%arg0: i32) -> (i32, i32) {
    %c0_i32 = arith.constant 0 : i32
    %c0_i32_0 = arith.constant 0 : i32
    %c0_i32_1 = arith.constant 0 : i32
    return %c0_i32, %c0_i32_0 : i32, i32
  }
  func.func @transform_6(%arg0: i32) -> (i32, i32) {
    %c0_i32 = arith.constant 0 : i32
    %c0_i32_0 = arith.constant 0 : i32
    %c0_i32_1 = arith.constant 0 : i32
    return %c0_i32, %c0_i32_0 : i32, i32
  }
  func.func @transform_7(%arg0: i32) -> (i32, i32) {
    %c0_i32 = arith.constant 0 : i32
    %c0_i32_0 = arith.constant 0 : i32
    %c0_i32_1 = arith.constant 0 : i32
    return %c0_i32, %c0_i32_0 : i32, i32
  }
  func.func @transform_8(%arg0: i32) -> (i32, i32) {
    %c0_i32 = arith.constant 0 : i32
    %c0_i32_0 = arith.constant 0 : i32
    %c0_i32_1 = arith.constant 0 : i32
    return %c0_i32, %c0_i32_0 : i32, i32
  }
  func.func @transform_9(%arg0: i32) -> (i32, i32) {
    %c0_i32 = arith.constant 0 : i32
    %c0_i32_0 = arith.constant 0 : i32
    %c0_i32_1 = arith.constant 0 : i32
    return %c0_i32, %c0_i32_0 : i32, i32
  }
  func.func @transform_10(%arg0: i32) -> (i32, i32) {
    %c0_i32 = arith.constant 0 : i32
    %c0_i32_0 = arith.constant 0 : i32
    %c0_i32_1 = arith.constant 0 : i32
    return %c0_i32, %c0_i32_0 : i32, i32
  }
  func.func @transform_11(%arg0: i32) -> (i32, i32) {
    %c0_i32 = arith.constant 0 : i32
    %c0_i32_0 = arith.constant 0 : i32
    %c0_i32_1 = arith.constant 0 : i32
    return %c0_i32, %c0_i32_0 : i32, i32
  }
  func.func @transform_12(%arg0: i32) -> (i32, i32) {
    %c0_i32 = arith.constant 0 : i32
    %c0_i32_0 = arith.constant 0 : i32
    %c0_i32_1 = arith.constant 0 : i32
    return %c0_i32, %c0_i32_0 : i32, i32
  }
  func.func @transform_13(%arg0: i32) -> (i32, i32) {
    %c0_i32 = arith.constant 0 : i32
    %c0_i32_0 = arith.constant 0 : i32
    return %arg0, %c0_i32 : i32, i32
  }
}

</mosaic_0001>

<llo_original>
// kernel: tpu_custom_call.1
$region0: #{tpu_custom_call.1}
  #allocation0 [shape = 'u32[]', space=smem, size = 0x4, offset = 0x4, fixed_abs, tag = 'smem constant byte address 0x4 - core index']
  #allocation1 [shape = 'u32[144,128]{1,0:T(1,128)}', space=vmem, size = 0x12000, scoped, tag = 'internal scratch']
  %s0 = inlined_call_operand.hbm [shape: f32[128,896], index: 0, kind: input, shape index: {}]
  %s1 = inlined_call_operand.hbm [shape: bf16[896,512], index: 1, kind: input, shape index: {}]
  %s2 = inlined_call_operand.vmem [shape: f32[1,512], index: 2, kind: input, shape index: {}]
  %s3 = inlined_call_operand.hbm [shape: bf16[512,256], index: 3, kind: input, shape index: {}]
  %s4 = inlined_call_operand.hbm [shape: f32[1,256], index: 4, kind: input, shape index: {}]
  %s5 = inlined_call_operand.hbm [shape: bf16[256,128], index: 5, kind: input, shape index: {}]
  %s6 = inlined_call_operand.vmem [shape: f32[1,128], index: 6, kind: input, shape index: {}]
  %s7 = inlined_call_operand.hbm [shape: bf16[128,256], index: 7, kind: input, shape index: {}]
  %s8 = inlined_call_operand.vmem [shape: f32[1,256], index: 8, kind: input, shape index: {}]
  %s9 = inlined_call_operand.hbm [shape: bf16[256,512], index: 9, kind: input, shape index: {}]
  %s10 = inlined_call_operand.vmem [shape: f32[1,512], index: 10, kind: input, shape index: {}]
  %s11 = inlined_call_operand.hbm [shape: bf16[512,896], index: 11, kind: input, shape index: {}]
  %s12 = inlined_call_operand.vmem [shape: f32[1,896], index: 12, kind: input, shape index: {}]
  %s13 = inlined_call_operand.hbm [shape: f32[1,128], index: 13, kind: output, shape index: {}]
  %s14 = sld [smem:[#allocation0]]
  $region94: #{tpu_custom_call.1} parent=0
    _
  %s16 = ssub.s32 1, %s14
  %s17 = scalar_select 0, %s16, %s14
  $region1: #{tpu_custom_call.1} parent=0
    #allocation2 [shape = 'u8[458752]{0}', space=vmem, size = 0x70000, scoped, tag = 'input window, operand 0, single buffered']
    #allocation3 [shape = 's32[1]{0}', space=sflag, size = 0x4, scoped, tag = 'scoped memory for tpu_custom_call.1']
    #allocation4 [shape = 's32[1]{0}', space=sflag, size = 0x4, scoped, tag = 'scoped memory for tpu_custom_call.1']
    #allocation5 [shape = 'u8[917504]{0}', space=vmem, size = 0xe0000, scoped, tag = 'input window, operand 1, single buffered']
    #allocation6 [shape = 's32[1]{0}', space=sflag, size = 0x4, scoped, tag = 'scoped memory for tpu_custom_call.1']
    #allocation7 [shape = 'u8[262144]{0}', space=vmem, size = 0x40000, scoped, tag = 'input window, operand 3, single buffered']
    #allocation8 [shape = 'u8[1024]{0}', space=vmem, size = 0x400, scoped, tag = 'input window, operand 4, single buffered']
    #allocation9 [shape = 's32[1]{0}', space=sflag, size = 0x4, scoped, tag = 'scoped memory for tpu_custom_call.1']
    #allocation10 [shape = 'u8[65536]{0}', space=vmem, size = 0x10000, scoped, tag = 'input window, operand 5, single buffered']
    #allocation11 [shape = 'u8[65536]{0}', space=vmem, size = 0x10000, scoped, tag = 'input window, operand 7, single buffered']
    #allocation12 [shape = 's32[1]{0}', space=sflag, size = 0x4, scoped, tag = 'scoped memory for tpu_custom_call.1']
    #allocation13 [shape = 'u8[262144]{0}', space=vmem, size = 0x40000, scoped, tag = 'input window, operand 9, single buffered']
    #allocation14 [shape = 'u8[917504]{0}', space=vmem, size = 0xe0000, scoped, tag = 'input window, operand 11, single buffered']
    #allocation15 [shape = 's32[1]{0}', space=sflag, size = 0x4, scoped, tag = 'scoped memory for tpu_custom_call.1']
    #allocation16 [shape = 'u8[512]{0}', space=vmem, size = 0x400, scoped, tag = 'output window, operand 0, single buffered']
    %18 = vsyncpa [#allocation3], 0
    %19 = vsyncpa [#allocation6], 0
    %20 = vsyncpa [#allocation9], 0
    %21 = vsyncpa [#allocation12], 0
    %22 = vsyncpa [#allocation15], 0
    %23 = vsyncpa [#allocation4], 0
    // Predicated region
    $region2: #{tpu_custom_call.1} parent=1 // pred_check
      _
    $region3: #{tpu_custom_call.1} parent=1 // pred_check_branch
      %25 = sbr.rel (0) target = $region5
    $region4: #{tpu_custom_call.1} parent=1 // pred_region
      %s27 = ssub.s32 14336, 14336
      %28 = vsyncadd [#allocation3], %s27
      %s29 = sshll.u32 [#allocation2], 4
      %s30 = int_to_ptr.vmem [resolvable:$true] %s29
      %35 = dma.hbm_to_vmem [thread:$0]  %s0, 14336, %s30, [#allocation3], 896, 896, 56
    $region5: #{tpu_custom_call.1} parent=1 // pred_fallthru
      _
    // Predicated region
    $region6: #{tpu_custom_call.1} parent=1 // pred_check
      _
    $region7: #{tpu_custom_call.1} parent=1 // pred_check_branch
      %37 = sbr.rel (0) target = $region9
    $region8: #{tpu_custom_call.1} parent=1 // pred_region
      %s39 = ssub.s32 28672, 28672
      %40 = vsyncadd [#allocation6], %s39
      %s41 = sshll.u32 [#allocation5], 4
      %s42 = int_to_ptr.vmem [resolvable:$true] %s41
      %47 = dma.hbm_to_vmem [thread:$0]  %s1, 28672, %s42, [#allocation6], 256, 256, 16
    $region9: #{tpu_custom_call.1} parent=1 // pred_fallthru
      _
    // Predicated region
    $region10: #{tpu_custom_call.1} parent=1 // pred_check
      _
    $region11: #{tpu_custom_call.1} parent=1 // pred_check_branch
      %49 = sbr.rel (0) target = $region13
    $region12: #{tpu_custom_call.1} parent=1 // pred_region
      _
    $region13: #{tpu_custom_call.1} parent=1 // pred_fallthru
      _
    // Predicated region
    $region14: #{tpu_custom_call.1} parent=1 // pred_check
      _
    $region15: #{tpu_custom_call.1} parent=1 // pred_check_branch
      %51 = sbr.rel (0) target = $region17
    $region16: #{tpu_custom_call.1} parent=1 // pred_region
      %s53 = ssub.s32 8192, 8192
      %54 = vsyncadd [#allocation6], %s53
      %s55 = sshll.u32 [#allocation7], 4
      %s56 = int_to_ptr.vmem [resolvable:$true] %s55
      %61 = dma.hbm_to_vmem [thread:$0]  %s3, 8192, %s56, [#allocation6], 128, 128, 8
    $region17: #{tpu_custom_call.1} parent=1 // pred_fallthru
      _
    // Predicated region
    $region18: #{tpu_custom_call.1} parent=1 // pred_check
      _
    $region19: #{tpu_custom_call.1} parent=1 // pred_check_branch
      %63 = sbr.rel (0) target = $region21
    $region20: #{tpu_custom_call.1} parent=1 // pred_region
      %s65 = ssub.s32 32, 32
      %66 = vsyncadd [#allocation9], %s65
      %s68 = sshll.u32 [#allocation8], 4
      %s69 = int_to_ptr.vmem [resolvable:$true] %s68
      %71 = dma.hbm_to_vmem [thread:$0]  %s4, 32, %s69, [#allocation9]
    $region21: #{tpu_custom_call.1} parent=1 // pred_fallthru
      _
    // Predicated region
    $region22: #{tpu_custom_call.1} parent=1 // pred_check
      _
    $region23: #{tpu_custom_call.1} parent=1 // pred_check_branch
      %73 = sbr.rel (0) target = $region25
    $region24: #{tpu_custom_call.1} parent=1 // pred_region
      %s75 = ssub.s32 2048, 2048
      %76 = vsyncadd [#allocation9], %s75
      %s77 = sshll.u32 [#allocation10], 4
      %s78 = int_to_ptr.vmem [resolvable:$true] %s77
      %83 = dma.hbm_to_vmem [thread:$0]  %s5, 2048, %s78, [#allocation9], 64, 64, 4
    $region25: #{tpu_custom_call.1} parent=1 // pred_fallthru
      _
    // Predicated region
    $region26: #{tpu_custom_call.1} parent=1 // pred_check
      _
    $region27: #{tpu_custom_call.1} parent=1 // pred_check_branch
      %85 = sbr.rel (0) target = $region29
    $region28: #{tpu_custom_call.1} parent=1 // pred_region
      _
    $region29: #{tpu_custom_call.1} parent=1 // pred_fallthru
      _
    // Predicated region
    $region30: #{tpu_custom_call.1} parent=1 // pred_check
      _
    $region31: #{tpu_custom_call.1} parent=1 // pred_check_branch
      %87 = sbr.rel (0) target = $region33
    $region32: #{tpu_custom_call.1} parent=1 // pred_region
      %s89 = ssub.s32 2048, 2048
      %90 = vsyncadd [#allocation12], %s89
      %s91 = sshll.u32 [#allocation11], 4
      %s92 = int_to_ptr.vmem [resolvable:$true] %s91
      %97 = dma.hbm_to_vmem [thread:$0]  %s7, 2048, %s92, [#allocation12], 128, 128, 8
    $region33: #{tpu_custom_call.1} parent=1 // pred_fallthru
      _
    // Predicated region
    $region34: #{tpu_custom_call.1} parent=1 // pred_check
      _
    $region35: #{tpu_custom_call.1} parent=1 // pred_check_branch
      %99 = sbr.rel (0) target = $region37
    $region36: #{tpu_custom_call.1} parent=1 // pred_region
      _
    $region37: #{tpu_custom_call.1} parent=1 // pred_fallthru
      _
    // Predicated region
    $region38: #{tpu_custom_call.1} parent=1 // pred_check
      _
    $region39: #{tpu_custom_call.1} parent=1 // pred_check_branch
      %101 = sbr.rel (0) target = $region41
    $region40: #{tpu_custom_call.1} parent=1 // pred_region
      %s103 = ssub.s32 8192, 8192
      %104 = vsyncadd [#allocation12], %s103
      %s105 = sshll.u32 [#allocation13], 4
      %s106 = int_to_ptr.vmem [resolvable:$true] %s105
      %111 = dma.hbm_to_vmem [thread:$0]  %s9, 8192, %s106, [#allocation12], 256, 256, 16
    $region41: #{tpu_custom_call.1} parent=1 // pred_fallthru
      _
    // Predicated region
    $region42: #{tpu_custom_call.1} parent=1 // pred_check
      _
    $region43: #{tpu_custom_call.1} parent=1 // pred_check_branch
      %113 = sbr.rel (0) target = $region45
    $region44: #{tpu_custom_call.1} parent=1 // pred_region
      _
    $region45: #{tpu_custom_call.1} parent=1 // pred_fallthru
      _
    // Predicated region
    $region46: #{tpu_custom_call.1} parent=1 // pred_check
      _
    $region47: #{tpu_custom_call.1} parent=1 // pred_check_branch
      %115 = sbr.rel (0) target = $region49
    $region48: #{tpu_custom_call.1} parent=1 // pred_region
      %s117 = ssub.s32 28672, 28672
      %118 = vsyncadd [#allocation15], %s117
      %s119 = sshll.u32 [#allocation14], 4
      %s120 = int_to_ptr.vmem [resolvable:$true] %s119
      %125 = dma.hbm_to_vmem [thread:$0]  %s11, 28672, %s120, [#allocation15], 448, 448, 28
    $region49: #{tpu_custom_call.1} parent=1 // pred_fallthru
      _
    // Predicated region
    $region50: #{tpu_custom_call.1} parent=1 // pred_check
      _
    $region51: #{tpu_custom_call.1} parent=1 // pred_check_branch
      %127 = sbr.rel (0) target = $region53
    $region52: #{tpu_custom_call.1} parent=1 // pred_region
      _
    $region53: #{tpu_custom_call.1} parent=1 // pred_fallthru
      _
    // Predicated region
    $region54: #{tpu_custom_call.1} parent=1 // pred_check
      _
    $region55: #{tpu_custom_call.1} parent=1 // pred_check_branch
      %129 = sbr.rel (0) target = $region57
    $region56: #{tpu_custom_call.1} parent=1 // pred_region
      %130 = dma.done [#allocation3], 14336
    $region57: #{tpu_custom_call.1} parent=1 // pred_fallthru
      _
    // Predicated region
    $region58: #{tpu_custom_call.1} parent=1 // pred_check
      _
    $region59: #{tpu_custom_call.1} parent=1 // pred_check_branch
      %132 = sbr.rel (0) target = $region61
    $region60: #{tpu_custom_call.1} parent=1 // pred_region
      %133 = dma.done [#allocation6], 28672
    $region61: #{tpu_custom_call.1} parent=1 // pred_fallthru
      _
    // Predicated region
    $region62: #{tpu_custom_call.1} parent=1 // pred_check
      _
    $region63: #{tpu_custom_call.1} parent=1 // pred_check_branch
      %135 = sbr.rel (0) target = $region65
    $region64: #{tpu_custom_call.1} parent=1 // pred_region
      %136 = dma.done [#allocation6], 8192
    $region65: #{tpu_custom_call.1} parent=1 // pred_fallthru
      _
    // Predicated region
    $region66: #{tpu_custom_call.1} parent=1 // pred_check
      _
    $region67: #{tpu_custom_call.1} parent=1 // pred_check_branch
      %138 = sbr.rel (0) target = $region69
    $region68: #{tpu_custom_call.1} parent=1 // pred_region
      %139 = dma.done [#allocation9], 32
    $region69: #{tpu_custom_call.1} parent=1 // pred_fallthru
      _
    // Predicated region
    $region70: #{tpu_custom_call.1} parent=1 // pred_check
      _
    $region71: #{tpu_custom_call.1} parent=1 // pred_check_branch
      %141 = sbr.rel (0) target = $region73
    $region72: #{tpu_custom_call.1} parent=1 // pred_region
      %142 = dma.done [#allocation9], 2048
    $region73: #{tpu_custom_call.1} parent=1 // pred_fallthru
      _
    // Predicated region
    $region74: #{tpu_custom_call.1} parent=1 // pred_check
      _
    $region75: #{tpu_custom_call.1} parent=1 // pred_check_branch
      %144 = sbr.rel (0) target = $region77
    $region76: #{tpu_custom_call.1} parent=1 // pred_region
      %145 = dma.done [#allocation12], 2048
    $region77: #{tpu_custom_call.1} parent=1 // pred_fallthru
      _
    // Predicated region
    $region78: #{tpu_custom_call.1} parent=1 // pred_check
      _
    $region79: #{tpu_custom_call.1} parent=1 // pred_check_branch
      %147 = sbr.rel (0) target = $region81
    $region80: #{tpu_custom_call.1} parent=1 // pred_region
      %148 = dma.done [#allocation12], 8192
    $region81: #{tpu_custom_call.1} parent=1 // pred_fallthru
      _
    // Predicated region
    $region82: #{tpu_custom_call.1} parent=1 // pred_check
      _
    $region83: #{tpu_custom_call.1} parent=1 // pred_check_branch
      %150 = sbr.rel (0) target = $region85
    $region84: #{tpu_custom_call.1} parent=1 // pred_region
      %151 = dma.done [#allocation15], 28672
    $region85: #{tpu_custom_call.1} parent=1 // pred_fallthru
      _
    %v153 = vld [vmem:[#allocation2] sm:$0xff]
    %v154 = vld [vmem:[#allocation2 + $0x8] sm:$0xff]
    %v155 = vld [vmem:[#allocation2 + $0x10] sm:$0xff]
    %v156 = vld [vmem:[#allocation2 + $0x18] sm:$0xff]
    %v157 = vld [vmem:[#allocation2 + $0x20] sm:$0xff]
    %v158 = vld [vmem:[#allocation2 + $0x28] sm:$0xff]
    %v159 = vld [vmem:[#allocation2 + $0x30] sm:$0xff]
    %v160 = vld [vmem:[#allocation2 + $0x38] sm:$0xff]
    %v161 = vld [vmem:[#allocation2 + $0x40] sm:$0xff]
    %v162 = vld [vmem:[#allocation2 + $0x48] sm:$0xff]
    %v163 = vld [vmem:[#allocation2 + $0x50] sm:$0xff]
    %v164 = vld [vmem:[#allocation2 + $0x58] sm:$0xff]
    %v165 = vld [vmem:[#allocation2 + $0x60] sm:$0xff]
    %v166 = vld [vmem:[#allocation2 + $0x68] sm:$0xff]
    %v167 = vld [vmem:[#allocation2 + $0x70] sm:$0xff]
    %v168 = vld [vmem:[#allocation2 + $0x78] sm:$0xff]
    %v169 = vld [vmem:[#allocation2 + $0x80] sm:$0xff]
    %v170 = vld [vmem:[#allocation2 + $0x88] sm:$0xff]
    %v171 = vld [vmem:[#allocation2 + $0x90] sm:$0xff]
    %v172 = vld [vmem:[#allocation2 + $0x98] sm:$0xff]
    %v173 = vld [vmem:[#allocation2 + $0xa0] sm:$0xff]
    %v174 = vld [vmem:[#allocation2 + $0xa8] sm:$0xff]
    %v175 = vld [vmem:[#allocation2 + $0xb0] sm:$0xff]
    %v176 = vld [vmem:[#allocation2 + $0xb8] sm:$0xff]
    %v177 = vld [vmem:[#allocation2 + $0xc0] sm:$0xff]
    %v178 = vld [vmem:[#allocation2 + $0xc8] sm:$0xff]
    %v179 = vld [vmem:[#allocation2 + $0xd0] sm:$0xff]
    %v180 = vld [vmem:[#allocation2 + $0xd8] sm:$0xff]
    %v181 = vld [vmem:[#allocation2 + $0xe0] sm:$0xff]
    %v182 = vld [vmem:[#allocation2 + $0xe8] sm:$0xff]
    %v183 = vld [vmem:[#allocation2 + $0xf0] sm:$0xff]
    %v184 = vld [vmem:[#allocation2 + $0xf8] sm:$0xff]
    %v185 = vld [vmem:[#allocation2 + $0x100] sm:$0xff]
    %v186 = vld [vmem:[#allocation2 + $0x108] sm:$0xff]
    %v187 = vld [vmem:[#allocation2 + $0x110] sm:$0xff]
    %v188 = vld [vmem:[#allocation2 + $0x118] sm:$0xff]
    %v189 = vld [vmem:[#allocation2 + $0x120] sm:$0xff]
    %v190 = vld [vmem:[#allocation2 + $0x128] sm:$0xff]
    %v191 = vld [vmem:[#allocation2 + $0x130] sm:$0xff]
    %v192 = vld [vmem:[#allocation2 + $0x138] sm:$0xff]
    %v193 = vld [vmem:[#allocation2 + $0x140] sm:$0xff]
    %v194 = vld [vmem:[#allocation2 + $0x148] sm:$0xff]
    %v195 = vld [vmem:[#allocation2 + $0x150] sm:$0xff]
    %v196 = vld [vmem:[#allocation2 + $0x158] sm:$0xff]
    %v197 = vld [vmem:[#allocation2 + $0x160] sm:$0xff]
    %v198 = vld [vmem:[#allocation2 + $0x168] sm:$0xff]
    %v199 = vld [vmem:[#allocation2 + $0x170] sm:$0xff]
    %v200 = vld [vmem:[#allocation2 + $0x178] sm:$0xff]
    %v201 = vld [vmem:[#allocation2 + $0x180] sm:$0xff]
    %v202 = vld [vmem:[#allocation2 + $0x188] sm:$0xff]
    %v203 = vld [vmem:[#allocation2 + $0x190] sm:$0xff]
    %v204 = vld [vmem:[#allocation2 + $0x198] sm:$0xff]
    %v205 = vld [vmem:[#allocation2 + $0x1a0] sm:$0xff]
    %v206 = vld [vmem:[#allocation2 + $0x1a8] sm:$0xff]
    %v207 = vld [vmem:[#allocation2 + $0x1b0] sm:$0xff]
    %v208 = vld [vmem:[#allocation2 + $0x1b8] sm:$0xff]
    %v209 = vld [vmem:[#allocation2 + $0x1c0] sm:$0xff]
    %v210 = vld [vmem:[#allocation2 + $0x1c8] sm:$0xff]
    %v211 = vld [vmem:[#allocation2 + $0x1d0] sm:$0xff]
    %v212 = vld [vmem:[#allocation2 + $0x1d8] sm:$0xff]
    %v213 = vld [vmem:[#allocation2 + $0x1e0] sm:$0xff]
    %v214 = vld [vmem:[#allocation2 + $0x1e8] sm:$0xff]
    %v215 = vld [vmem:[#allocation2 + $0x1f0] sm:$0xff]
    %v216 = vld [vmem:[#allocation2 + $0x1f8] sm:$0xff]
    %v217 = vld [vmem:[#allocation2 + $0x200] sm:$0xff]
    %v218 = vld [vmem:[#allocation2 + $0x208] sm:$0xff]
    %v219 = vld [vmem:[#allocation2 + $0x210] sm:$0xff]
    %v220 = vld [vmem:[#allocation2 + $0x218] sm:$0xff]
    %v221 = vld [vmem:[#allocation2 + $0x220] sm:$0xff]
    %v222 = vld [vmem:[#allocation2 + $0x228] sm:$0xff]
    %v223 = vld [vmem:[#allocation2 + $0x230] sm:$0xff]
    %v224 = vld [vmem:[#allocation2 + $0x238] sm:$0xff]
    %v225 = vld [vmem:[#allocation2 + $0x240] sm:$0xff]
    %v226 = vld [vmem:[#allocation2 + $0x248] sm:$0xff]
    %v227 = vld [vmem:[#allocation2 + $0x250] sm:$0xff]
    %v228 = vld [vmem:[#allocation2 + $0x258] sm:$0xff]
    %v229 = vld [vmem:[#allocation2 + $0x260] sm:$0xff]
    %v230 = vld [vmem:[#allocation2 + $0x268] sm:$0xff]
    %v231 = vld [vmem:[#allocation2 + $0x270] sm:$0xff]
    %v232 = vld [vmem:[#allocation2 + $0x278] sm:$0xff]
    %v233 = vld [vmem:[#allocation2 + $0x280] sm:$0xff]
    %v234 = vld [vmem:[#allocation2 + $0x288] sm:$0xff]
    %v235 = vld [vmem:[#allocation2 + $0x290] sm:$0xff]
    %v236 = vld [vmem:[#allocation2 + $0x298] sm:$0xff]
    %v237 = vld [vmem:[#allocation2 + $0x2a0] sm:$0xff]
    %v238 = vld [vmem:[#allocation2 + $0x2a8] sm:$0xff]
    %v239 = vld [vmem:[#allocation2 + $0x2b0] sm:$0xff]
    %v240 = vld [vmem:[#allocation2 + $0x2b8] sm:$0xff]
    %v241 = vld [vmem:[#allocation2 + $0x2c0] sm:$0xff]
    %v242 = vld [vmem:[#allocation2 + $0x2c8] sm:$0xff]
    %v243 = vld [vmem:[#allocation2 + $0x2d0] sm:$0xff]
    %v244 = vld [vmem:[#allocation2 + $0x2d8] sm:$0xff]
    %v245 = vld [vmem:[#allocation2 + $0x2e0] sm:$0xff]
    %v246 = vld [vmem:[#allocation2 + $0x2e8] sm:$0xff]
    %v247 = vld [vmem:[#allocation2 + $0x2f0] sm:$0xff]
    %v248 = vld [vmem:[#allocation2 + $0x2f8] sm:$0xff]
    %v249 = vld [vmem:[#allocation2 + $0x300] sm:$0xff]
    %v250 = vld [vmem:[#allocation2 + $0x308] sm:$0xff]
    %v251 = vld [vmem:[#allocation2 + $0x310] sm:$0xff]
    %v252 = vld [vmem:[#allocation2 + $0x318] sm:$0xff]
    %v253 = vld [vmem:[#allocation2 + $0x320] sm:$0xff]
    %v254 = vld [vmem:[#allocation2 + $0x328] sm:$0xff]
    %v255 = vld [vmem:[#allocation2 + $0x330] sm:$0xff]
    %v256 = vld [vmem:[#allocation2 + $0x338] sm:$0xff]
    %v257 = vld [vmem:[#allocation2 + $0x340] sm:$0xff]
    %v258 = vld [vmem:[#allocation2 + $0x348] sm:$0xff]
    %v259 = vld [vmem:[#allocation2 + $0x350] sm:$0xff]
    %v260 = vld [vmem:[#allocation2 + $0x358] sm:$0xff]
    %v261 = vld [vmem:[#allocation2 + $0x360] sm:$0xff]
    %v262 = vld [vmem:[#allocation2 + $0x368] sm:$0xff]
    %v263 = vld [vmem:[#allocation2 + $0x370] sm:$0xff]
    %v264 = vld [vmem:[#allocation2 + $0x378] sm:$0xff]
    %v265 = vpack.c.bf16 %v160, %v153
    %v266 = vpack.c.bf16 %v161, %v154
    %v267 = vpack.c.bf16 %v162, %v155
    %v268 = vpack.c.bf16 %v163, %v156
    %v269 = vpack.c.bf16 %v164, %v157
    %v270 = vpack.c.bf16 %v165, %v158
    %v271 = vpack.c.bf16 %v166, %v159
    %v272 = vpack.c.bf16 %v174, %v167
    %v273 = vpack.c.bf16 %v175, %v168
    %v274 = vpack.c.bf16 %v176, %v169
    %v275 = vpack.c.bf16 %v177, %v170
    %v276 = vpack.c.bf16 %v178, %v171
    %v277 = vpack.c.bf16 %v179, %v172
    %v278 = vpack.c.bf16 %v180, %v173
    %v279 = vpack.c.bf16 %v188, %v181
    %v280 = vpack.c.bf16 %v189, %v182
    %v281 = vpack.c.bf16 %v190, %v183
    %v282 = vpack.c.bf16 %v191, %v184
    %v283 = vpack.c.bf16 %v192, %v185
    %v284 = vpack.c.bf16 %v193, %v186
    %v285 = vpack.c.bf16 %v194, %v187
    %v286 = vpack.c.bf16 %v202, %v195
    %v287 = vpack.c.bf16 %v203, %v196
    %v288 = vpack.c.bf16 %v204, %v197
    %v289 = vpack.c.bf16 %v205, %v198
    %v290 = vpack.c.bf16 %v206, %v199
    %v291 = vpack.c.bf16 %v207, %v200
    %v292 = vpack.c.bf16 %v208, %v201
    %v293 = vpack.c.bf16 %v216, %v209
    %v294 = vpack.c.bf16 %v217, %v210
    %v295 = vpack.c.bf16 %v218, %v211
    %v296 = vpack.c.bf16 %v219, %v212
    %v297 = vpack.c.bf16 %v220, %v213
    %v298 = vpack.c.bf16 %v221, %v214
    %v299 = vpack.c.bf16 %v222, %v215
    %v300 = vpack.c.bf16 %v230, %v223
    %v301 = vpack.c.bf16 %v231, %v224
    %v302 = vpack.c.bf16 %v232, %v225
    %v303 = vpack.c.bf16 %v233, %v226
    %v304 = vpack.c.bf16 %v234, %v227
    %v305 = vpack.c.bf16 %v235, %v228
    %v306 = vpack.c.bf16 %v236, %v229
    %v307 = vpack.c.bf16 %v244, %v237
    %v308 = vpack.c.bf16 %v245, %v238
    %v309 = vpack.c.bf16 %v246, %v239
    %v310 = vpack.c.bf16 %v247, %v240
    %v311 = vpack.c.bf16 %v248, %v241
    %v312 = vpack.c.bf16 %v249, %v242
    %v313 = vpack.c.bf16 %v250, %v243
    %v314 = vpack.c.bf16 %v258, %v251
    %v315 = vpack.c.bf16 %v259, %v252
    %v316 = vpack.c.bf16 %v260, %v253
    %v317 = vpack.c.bf16 %v261, %v254
    %v318 = vpack.c.bf16 %v262, %v255
    %v319 = vpack.c.bf16 %v263, %v256
    %v320 = vpack.c.bf16 %v264, %v257
    %v321 = vld [vmem:[#allocation5] sm:$0xff]
    %v322 = vld [vmem:[#allocation5 + $0x8] sm:$0xff]
    %v323 = vld [vmem:[#allocation5 + $0x10] sm:$0xff]
    %v324 = vld [vmem:[#allocation5 + $0x18] sm:$0xff]
    %v325 = vld [vmem:[#allocation5 + $0x20] sm:$0xff]
    %v326 = vld [vmem:[#allocation5 + $0x28] sm:$0xff]
    %v327 = vld [vmem:[#allocation5 + $0x30] sm:$0xff]
    %v328 = vld [vmem:[#allocation5 + $0x38] sm:$0xff]
    %v329 = vld [vmem:[#allocation5 + $0x40] sm:$0xff]
    %v330 = vld [vmem:[#allocation5 + $0x48] sm:$0xff]
    %v331 = vld [vmem:[#allocation5 + $0x50] sm:$0xff]
    %v332 = vld [vmem:[#allocation5 + $0x58] sm:$0xff]
    %v333 = vld [vmem:[#allocation5 + $0x60] sm:$0xff]
    %v334 = vld [vmem:[#allocation5 + $0x68] sm:$0xff]
    %v335 = vld [vmem:[#allocation5 + $0x70] sm:$0xff]
    %v336 = vld [vmem:[#allocation5 + $0x78] sm:$0xff]
    %v337 = vld [vmem:[#allocation5 + $0x80] sm:$0xff]
    %v338 = vld [vmem:[#allocation5 + $0x88] sm:$0xff]
    %v339 = vld [vmem:[#allocation5 + $0x90] sm:$0xff]
    %v340 = vld [vmem:[#allocation5 + $0x98] sm:$0xff]
    %v341 = vld [vmem:[#allocation5 + $0xa0] sm:$0xff]
    %v342 = vld [vmem:[#allocation5 + $0xa8] sm:$0xff]
    %v343 = vld [vmem:[#allocation5 + $0xb0] sm:$0xff]
    %v344 = vld [vmem:[#allocation5 + $0xb8] sm:$0xff]
    %v345 = vld [vmem:[#allocation5 + $0xc0] sm:$0xff]
    %v346 = vld [vmem:[#allocation5 + $0xc8] sm:$0xff]
    %v347 = vld [vmem:[#allocation5 + $0xd0] sm:$0xff]
    %v348 = vld [vmem:[#allocation5 + $0xd8] sm:$0xff]
    %v349 = vld [vmem:[#allocation5 + $0xe0] sm:$0xff]
    %v350 = vld [vmem:[#allocation5 + $0xe8] sm:$0xff]
    %v351 = vld [vmem:[#allocation5 + $0xf0] sm:$0xff]
    %v352 = vld [vmem:[#allocation5 + $0xf8] sm:$0xff]
    %v353 = vld [vmem:[#allocation5 + $0x100] sm:$0xff]
    %v354 = vld [vmem:[#allocation5 + $0x108] sm:$0xff]
    %v355 = vld [vmem:[#allocation5 + $0x110] sm:$0xff]
    %v356 = vld [vmem:[#allocation5 + $0x118] sm:$0xff]
    %v357 = vld [vmem:[#allocation5 + $0x120] sm:$0xff]
    %v358 = vld [vmem:[#allocation5 + $0x128] sm:$0xff]
    %v359 = vld [vmem:[#allocation5 + $0x130] sm:$0xff]
    %v360 = vld [vmem:[#allocation5 + $0x138] sm:$0xff]
    %v361 = vld [vmem:[#allocation5 + $0x140] sm:$0xff]
    %v362 = vld [vmem:[#allocation5 + $0x148] sm:$0xff]
    %v363 = vld [vmem:[#allocation5 + $0x150] sm:$0xff]
    %v364 = vld [vmem:[#allocation5 + $0x158] sm:$0xff]
    %v365 = vld [vmem:[#allocation5 + $0x160] sm:$0xff]
    %v366 = vld [vmem:[#allocation5 + $0x168] sm:$0xff]
    %v367 = vld [vmem:[#allocation5 + $0x170] sm:$0xff]
    %v368 = vld [vmem:[#allocation5 + $0x178] sm:$0xff]
    %v369 = vld [vmem:[#allocation5 + $0x180] sm:$0xff]
    %v370 = vld [vmem:[#allocation5 + $0x188] sm:$0xff]
    %v371 = vld [vmem:[#allocation5 + $0x190] sm:$0xff]
    %v372 = vld [vmem:[#allocation5 + $0x198] sm:$0xff]
    %v373 = vld [vmem:[#allocation5 + $0x1a0] sm:$0xff]
    %v374 = vld [vmem:[#allocation5 + $0x1a8] sm:$0xff]
    %v375 = vld [vmem:[#allocation5 + $0x1b0] sm:$0xff]
    %v376 = vld [vmem:[#allocation5 + $0x1b8] sm:$0xff]
    %v377 = vld [vmem:[#allocation5 + $0x1c0] sm:$0xff]
    %v378 = vld [vmem:[#allocation5 + $0x1c8] sm:$0xff]
    %v379 = vld [vmem:[#allocation5 + $0x1d0] sm:$0xff]
    %v380 = vld [vmem:[#allocation5 + $0x1d8] sm:$0xff]
    %v381 = vld [vmem:[#allocation5 + $0x1e0] sm:$0xff]
    %v382 = vld [vmem:[#allocation5 + $0x1e8] sm:$0xff]
    %v383 = vld [vmem:[#allocation5 + $0x1f0] sm:$0xff]
    %v384 = vld [vmem:[#allocation5 + $0x1f8] sm:$0xff]
    %v385 = vld [vmem:[#allocation5 + $0x200] sm:$0xff]
    %v386 = vld [vmem:[#allocation5 + $0x208] sm:$0xff]
    %v387 = vld [vmem:[#allocation5 + $0x210] sm:$0xff]
    %v388 = vld [vmem:[#allocation5 + $0x218] sm:$0xff]
    %v389 = vld [vmem:[#allocation5 + $0x220] sm:$0xff]
    %v390 = vld [vmem:[#allocation5 + $0x228] sm:$0xff]
    %v391 = vld [vmem:[#allocation5 + $0x230] sm:$0xff]
    %v392 = vld [vmem:[#allocation5 + $0x238] sm:$0xff]
    %v393 = vld [vmem:[#allocation5 + $0x240] sm:$0xff]
    %v394 = vld [vmem:[#allocation5 + $0x248] sm:$0xff]
    %v395 = vld [vmem:[#allocation5 + $0x250] sm:$0xff]
    %v396 = vld [vmem:[#allocation5 + $0x258] sm:$0xff]
    %v397 = vld [vmem:[#allocation5 + $0x260] sm:$0xff]
    %v398 = vld [vmem:[#allocation5 + $0x268] sm:$0xff]
    %v399 = vld [vmem:[#allocation5 + $0x270] sm:$0xff]
    %v400 = vld [vmem:[#allocation5 + $0x278] sm:$0xff]
    %v401 = vld [vmem:[#allocation5 + $0x280] sm:$0xff]
    %v402 = vld [vmem:[#allocation5 + $0x288] sm:$0xff]
    %v403 = vld [vmem:[#allocation5 + $0x290] sm:$0xff]
    %v404 = vld [vmem:[#allocation5 + $0x298] sm:$0xff]
    %v405 = vld [vmem:[#allocation5 + $0x2a0] sm:$0xff]
    %v406 = vld [vmem:[#allocation5 + $0x2a8] sm:$0xff]
    %v407 = vld [vmem:[#allocation5 + $0x2b0] sm:$0xff]
    %v408 = vld [vmem:[#allocation5 + $0x2b8] sm:$0xff]
    %v409 = vld [vmem:[#allocation5 + $0x2c0] sm:$0xff]
    %v410 = vld [vmem:[#allocation5 + $0x2c8] sm:$0xff]
    %v411 = vld [vmem:[#allocation5 + $0x2d0] sm:$0xff]
    %v412 = vld [vmem:[#allocation5 + $0x2d8] sm:$0xff]
    %v413 = vld [vmem:[#allocation5 + $0x2e0] sm:$0xff]
    %v414 = vld [vmem:[#allocation5 + $0x2e8] sm:$0xff]
    %v415 = vld [vmem:[#allocation5 + $0x2f0] sm:$0xff]
    %v416 = vld [vmem:[#allocation5 + $0x2f8] sm:$0xff]
    %v417 = vld [vmem:[#allocation5 + $0x300] sm:$0xff]
    %v418 = vld [vmem:[#allocation5 + $0x308] sm:$0xff]
    %v419 = vld [vmem:[#allocation5 + $0x310] sm:$0xff]
    %v420 = vld [vmem:[#allocation5 + $0x318] sm:$0xff]
    %v421 = vld [vmem:[#allocation5 + $0x320] sm:$0xff]
    %v422 = vld [vmem:[#allocation5 + $0x328] sm:$0xff]
    %v423 = vld [vmem:[#allocation5 + $0x330] sm:$0xff]
    %v424 = vld [vmem:[#allocation5 + $0x338] sm:$0xff]
    %v425 = vld [vmem:[#allocation5 + $0x340] sm:$0xff]
    %v426 = vld [vmem:[#allocation5 + $0x348] sm:$0xff]
    %v427 = vld [vmem:[#allocation5 + $0x350] sm:$0xff]
    %v428 = vld [vmem:[#allocation5 + $0x358] sm:$0xff]
    %v429 = vld [vmem:[#allocation5 + $0x360] sm:$0xff]
    %v430 = vld [vmem:[#allocation5 + $0x368] sm:$0xff]
    %v431 = vld [vmem:[#allocation5 + $0x370] sm:$0xff]
    %v432 = vld [vmem:[#allocation5 + $0x378] sm:$0xff]
    %v433 = vld [vmem:[#allocation5 + $0x380] sm:$0xff]
    %v434 = vld [vmem:[#allocation5 + $0x388] sm:$0xff]
    %v435 = vld [vmem:[#allocation5 + $0x390] sm:$0xff]
    %v436 = vld [vmem:[#allocation5 + $0x398] sm:$0xff]
    %v437 = vld [vmem:[#allocation5 + $0x3a0] sm:$0xff]
    %v438 = vld [vmem:[#allocation5 + $0x3a8] sm:$0xff]
    %v439 = vld [vmem:[#allocation5 + $0x3b0] sm:$0xff]
    %v440 = vld [vmem:[#allocation5 + $0x3b8] sm:$0xff]
    %v441 = vld [vmem:[#allocation5 + $0x3c0] sm:$0xff]
    %v442 = vld [vmem:[#allocation5 + $0x3c8] sm:$0xff]
    %v443 = vld [vmem:[#allocation5 + $0x3d0] sm:$0xff]
    %v444 = vld [vmem:[#allocation5 + $0x3d8] sm:$0xff]
    %v445 = vld [vmem:[#allocation5 + $0x3e0] sm:$0xff]
    %v446 = vld [vmem:[#allocation5 + $0x3e8] sm:$0xff]
    %v447 = vld [vmem:[#allocation5 + $0x3f0] sm:$0xff]
    %v448 = vld [vmem:[#allocation5 + $0x3f8] sm:$0xff]
    %v449 = vld [vmem:[#allocation5 + $0x400] sm:$0xff]
    %v450 = vld [vmem:[#allocation5 + $0x408] sm:$0xff]
    %v451 = vld [vmem:[#allocation5 + $0x410] sm:$0xff]
    %v452 = vld [vmem:[#allocation5 + $0x418] sm:$0xff]
    %v453 = vld [vmem:[#allocation5 + $0x420] sm:$0xff]
    %v454 = vld [vmem:[#allocation5 + $0x428] sm:$0xff]
    %v455 = vld [vmem:[#allocation5 + $0x430] sm:$0xff]
    %v456 = vld [vmem:[#allocation5 + $0x438] sm:$0xff]
    %v457 = vld [vmem:[#allocation5 + $0x440] sm:$0xff]
    %v458 = vld [vmem:[#allocation5 + $0x448] sm:$0xff]
    %v459 = vld [vmem:[#allocation5 + $0x450] sm:$0xff]
    %v460 = vld [vmem:[#allocation5 + $0x458] sm:$0xff]
    %v461 = vld [vmem:[#allocation5 + $0x460] sm:$0xff]
    %v462 = vld [vmem:[#allocation5 + $0x468] sm:$0xff]
    %v463 = vld [vmem:[#allocation5 + $0x470] sm:$0xff]
    %v464 = vld [vmem:[#allocation5 + $0x478] sm:$0xff]
    %v465 = vld [vmem:[#allocation5 + $0x480] sm:$0xff]
    %v466 = vld [vmem:[#allocation5 + $0x488] sm:$0xff]
    %v467 = vld [vmem:[#allocation5 + $0x490] sm:$0xff]
    %v468 = vld [vmem:[#allocation5 + $0x498] sm:$0xff]
    %v469 = vld [vmem:[#allocation5 + $0x4a0] sm:$0xff]
    %v470 = vld [vmem:[#allocation5 + $0x4a8] sm:$0xff]
    %v471 = vld [vmem:[#allocation5 + $0x4b0] sm:$0xff]
    %v472 = vld [vmem:[#allocation5 + $0x4b8] sm:$0xff]
    %v473 = vld [vmem:[#allocation5 + $0x4c0] sm:$0xff]
    %v474 = vld [vmem:[#allocation5 + $0x4c8] sm:$0xff]
    %v475 = vld [vmem:[#allocation5 + $0x4d0] sm:$0xff]
    %v476 = vld [vmem:[#allocation5 + $0x4d8] sm:$0xff]
    %v477 = vld [vmem:[#allocation5 + $0x4e0] sm:$0xff]
    %v478 = vld [vmem:[#allocation5 + $0x4e8] sm:$0xff]
    %v479 = vld [vmem:[#allocation5 + $0x4f0] sm:$0xff]
    %v480 = vld [vmem:[#allocation5 + $0x4f8] sm:$0xff]
    %v481 = vld [vmem:[#allocation5 + $0x500] sm:$0xff]
    %v482 = vld [vmem:[#allocation5 + $0x508] sm:$0xff]
    %v483 = vld [vmem:[#allocation5 + $0x510] sm:$0xff]
    %v484 = vld [vmem:[#allocation5 + $0x518] sm:$0xff]
    %v485 = vld [vmem:[#allocation5 + $0x520] sm:$0xff]
    %v486 = vld [vmem:[#allocation5 + $0x528] sm:$0xff]
    %v487 = vld [vmem:[#allocation5 + $0x530] sm:$0xff]
    %v488 = vld [vmem:[#allocation5 + $0x538] sm:$0xff]
    %v489 = vld [vmem:[#allocation5 + $0x540] sm:$0xff]
    %v490 = vld [vmem:[#allocation5 + $0x548] sm:$0xff]
    %v491 = vld [vmem:[#allocation5 + $0x550] sm:$0xff]
    %v492 = vld [vmem:[#allocation5 + $0x558] sm:$0xff]
    %v493 = vld [vmem:[#allocation5 + $0x560] sm:$0xff]
    %v494 = vld [vmem:[#allocation5 + $0x568] sm:$0xff]
    %v495 = vld [vmem:[#allocation5 + $0x570] sm:$0xff]
    %v496 = vld [vmem:[#allocation5 + $0x578] sm:$0xff]
    %v497 = vld [vmem:[#allocation5 + $0x580] sm:$0xff]
    %v498 = vld [vmem:[#allocation5 + $0x588] sm:$0xff]
    %v499 = vld [vmem:[#allocation5 + $0x590] sm:$0xff]
    %v500 = vld [vmem:[#allocation5 + $0x598] sm:$0xff]
    %v501 = vld [vmem:[#allocation5 + $0x5a0] sm:$0xff]
    %v502 = vld [vmem:[#allocation5 + $0x5a8] sm:$0xff]
    %v503 = vld [vmem:[#allocation5 + $0x5b0] sm:$0xff]
    %v504 = vld [vmem:[#allocation5 + $0x5b8] sm:$0xff]
    %v505 = vld [vmem:[#allocation5 + $0x5c0] sm:$0xff]
    %v506 = vld [vmem:[#allocation5 + $0x5c8] sm:$0xff]
    %v507 = vld [vmem:[#allocation5 + $0x5d0] sm:$0xff]
    %v508 = vld [vmem:[#allocation5 + $0x5d8] sm:$0xff]
    %v509 = vld [vmem:[#allocation5 + $0x5e0] sm:$0xff]
    %v510 = vld [vmem:[#allocation5 + $0x5e8] sm:$0xff]
    %v511 = vld [vmem:[#allocation5 + $0x5f0] sm:$0xff]
    %v512 = vld [vmem:[#allocation5 + $0x5f8] sm:$0xff]
    %v513 = vld [vmem:[#allocation5 + $0x600] sm:$0xff]
    %v514 = vld [vmem:[#allocation5 + $0x608] sm:$0xff]
    %v515 = vld [vmem:[#allocation5 + $0x610] sm:$0xff]
    %v516 = vld [vmem:[#allocation5 + $0x618] sm:$0xff]
    %v517 = vld [vmem:[#allocation5 + $0x620] sm:$0xff]
    %v518 = vld [vmem:[#allocation5 + $0x628] sm:$0xff]
    %v519 = vld [vmem:[#allocation5 + $0x630] sm:$0xff]
    %v520 = vld [vmem:[#allocation5 + $0x638] sm:$0xff]
    %v521 = vld [vmem:[#allocation5 + $0x640] sm:$0xff]
    %v522 = vld [vmem:[#allocation5 + $0x648] sm:$0xff]
    %v523 = vld [vmem:[#allocation5 + $0x650] sm:$0xff]
    %v524 = vld [vmem:[#allocation5 + $0x658] sm:$0xff]
    %v525 = vld [vmem:[#allocation5 + $0x660] sm:$0xff]
    %v526 = vld [vmem:[#allocation5 + $0x668] sm:$0xff]
    %v527 = vld [vmem:[#allocation5 + $0x670] sm:$0xff]
    %v528 = vld [vmem:[#allocation5 + $0x678] sm:$0xff]
    %v529 = vld [vmem:[#allocation5 + $0x680] sm:$0xff]
    %v530 = vld [vmem:[#allocation5 + $0x688] sm:$0xff]
    %v531 = vld [vmem:[#allocation5 + $0x690] sm:$0xff]
    %v532 = vld [vmem:[#allocation5 + $0x698] sm:$0xff]
    %v533 = vld [vmem:[#allocation5 + $0x6a0] sm:$0xff]
    %v534 = vld [vmem:[#allocation5 + $0x6a8] sm:$0xff]
    %v535 = vld [vmem:[#allocation5 + $0x6b0] sm:$0xff]
    %v536 = vld [vmem:[#allocation5 + $0x6b8] sm:$0xff]
    %v537 = vld [vmem:[#allocation5 + $0x6c0] sm:$0xff]
    %v538 = vld [vmem:[#allocation5 + $0x6c8] sm:$0xff]
    %v539 = vld [vmem:[#allocation5 + $0x6d0] sm:$0xff]
    %v540 = vld [vmem:[#allocation5 + $0x6d8] sm:$0xff]
    %v541 = vld [vmem:[#allocation5 + $0x6e0] sm:$0xff]
    %v542 = vld [vmem:[#allocation5 + $0x6e8] sm:$0xff]
    %v543 = vld [vmem:[#allocation5 + $0x6f0] sm:$0xff]
    %v544 = vld [vmem:[#allocation5 + $0x6f8] sm:$0xff]
    %v545 = vld [vmem:[%s2] sm:$0xf]
    %v547 = vlaneseq
    %v548 = vshrl.u32 %v547, 7
    %v549 = vsub.s32 0, %v548
    %v550 = vrot.slane %v545, %v549
    %v551 = vlaneseq
    %v552 = vshrl.u32 %v551, 7
    %v553 = vsub.s32 1, %v552
    %v554 = vrot.slane %v545, %v553
    %v555 = vlaneseq
    %v556 = vshrl.u32 %v555, 7
    %v557 = vsub.s32 2, %v556
    %v558 = vrot.slane %v545, %v557
    %v559 = vlaneseq
    %v560 = vshrl.u32 %v559, 7
    %v561 = vsub.s32 3, %v560
    %v562 = vrot.slane %v545, %v561
    %v791 = vunpack.c.l.b16 %v321
    %v792 = vunpack.c.h.b16 %v321
    %v793 = vunpack.c.l.b16 %v322
    %v794 = vunpack.c.h.b16 %v322
    %v795 = vunpack.c.l.b16 %v323
    %v796 = vunpack.c.h.b16 %v323
    %v797 = vunpack.c.l.b16 %v324
    %v798 = vunpack.c.h.b16 %v324
    %v799 = vunpack.c.l.b16 %v325
    %v800 = vunpack.c.h.b16 %v325
    %v801 = vunpack.c.l.b16 %v326
    %v802 = vunpack.c.h.b16 %v326
    %v803 = vunpack.c.l.b16 %v327
    %v804 = vunpack.c.h.b16 %v327
    %v805 = vunpack.c.l.b16 %v328
    %v806 = vunpack.c.h.b16 %v328
    %v807 = vunpack.c.l.b16 %v329
    %v808 = vunpack.c.h.b16 %v329
    %v809 = vunpack.c.l.b16 %v330
    %v810 = vunpack.c.h.b16 %v330
    %v811 = vunpack.c.l.b16 %v331
    %v812 = vunpack.c.h.b16 %v331
    %v813 = vunpack.c.l.b16 %v332
    %v814 = vunpack.c.h.b16 %v332
    %v815 = vunpack.c.l.b16 %v333
    %v816 = vunpack.c.h.b16 %v333
    %v817 = vunpack.c.l.b16 %v334
    %v818 = vunpack.c.h.b16 %v334
    %v819 = vunpack.c.l.b16 %v335
    %v820 = vunpack.c.h.b16 %v335
    %v821 = vunpack.c.l.b16 %v336
    %v822 = vunpack.c.h.b16 %v336
    %v823 = vunpack.c.l.b16 %v337
    %v824 = vunpack.c.h.b16 %v337
    %v825 = vunpack.c.l.b16 %v338
    %v826 = vunpack.c.h.b16 %v338
    %v827 = vunpack.c.l.b16 %v339
    %v828 = vunpack.c.h.b16 %v339
    %v829 = vunpack.c.l.b16 %v340
    %v830 = vunpack.c.h.b16 %v340
    %v831 = vunpack.c.l.b16 %v341
    %v832 = vunpack.c.h.b16 %v341
    %v833 = vunpack.c.l.b16 %v342
    %v834 = vunpack.c.h.b16 %v342
    %v835 = vunpack.c.l.b16 %v343
    %v836 = vunpack.c.h.b16 %v343
    %v837 = vunpack.c.l.b16 %v344
    %v838 = vunpack.c.h.b16 %v344
    %v839 = vunpack.c.l.b16 %v345
    %v840 = vunpack.c.h.b16 %v345
    %v841 = vunpack.c.l.b16 %v346
    %v842 = vunpack.c.h.b16 %v346
    %v843 = vunpack.c.l.b16 %v347
    %v844 = vunpack.c.h.b16 %v347
    %v845 = vunpack.c.l.b16 %v348
    %v846 = vunpack.c.h.b16 %v348
    %v847 = vunpack.c.l.b16 %v349
    %v848 = vunpack.c.h.b16 %v349
    %v849 = vunpack.c.l.b16 %v350
    %v850 = vunpack.c.h.b16 %v350
    %v851 = vunpack.c.l.b16 %v351
    %v852 = vunpack.c.h.b16 %v351
    %v853 = vunpack.c.l.b16 %v352
    %v854 = vunpack.c.h.b16 %v352
    %v855 = vunpack.c.l.b16 %v353
    %v856 = vunpack.c.h.b16 %v353
    %v857 = vunpack.c.l.b16 %v354
    %v858 = vunpack.c.h.b16 %v354
    %v859 = vunpack.c.l.b16 %v355
    %v860 = vunpack.c.h.b16 %v355
    %v861 = vunpack.c.l.b16 %v356
    %v862 = vunpack.c.h.b16 %v356
    %v863 = vunpack.c.l.b16 %v357
    %v864 = vunpack.c.h.b16 %v357
    %v865 = vunpack.c.l.b16 %v358
    %v866 = vunpack.c.h.b16 %v358
    %v867 = vunpack.c.l.b16 %v359
    %v868 = vunpack.c.h.b16 %v359
    %v869 = vunpack.c.l.b16 %v360
    %v870 = vunpack.c.h.b16 %v360
    %v871 = vunpack.c.l.b16 %v361
    %v872 = vunpack.c.h.b16 %v361
    %v873 = vunpack.c.l.b16 %v362
    %v874 = vunpack.c.h.b16 %v362
    %v875 = vunpack.c.l.b16 %v363
    %v876 = vunpack.c.h.b16 %v363
    %v877 = vunpack.c.l.b16 %v364
    %v878 = vunpack.c.h.b16 %v364
    %v879 = vunpack.c.l.b16 %v365
    %v880 = vunpack.c.h.b16 %v365
    %v881 = vunpack.c.l.b16 %v366
    %v882 = vunpack.c.h.b16 %v366
    %v883 = vunpack.c.l.b16 %v367
    %v884 = vunpack.c.h.b16 %v367
    %v885 = vunpack.c.l.b16 %v368
    %v886 = vunpack.c.h.b16 %v368
    %v887 = vunpack.c.l.b16 %v369
    %v888 = vunpack.c.h.b16 %v369
    %v889 = vunpack.c.l.b16 %v370
    %v890 = vunpack.c.h.b16 %v370
    %v891 = vunpack.c.l.b16 %v371
    %v892 = vunpack.c.h.b16 %v371
    %v893 = vunpack.c.l.b16 %v372
    %v894 = vunpack.c.h.b16 %v372
    %v895 = vunpack.c.l.b16 %v373
    %v896 = vunpack.c.h.b16 %v373
    %v897 = vunpack.c.l.b16 %v374
    %v898 = vunpack.c.h.b16 %v374
    %v899 = vunpack.c.l.b16 %v375
    %v900 = vunpack.c.h.b16 %v375
    %v901 = vunpack.c.l.b16 %v376
    %v902 = vunpack.c.h.b16 %v376
    %v903 = vunpack.c.l.b16 %v377
    %v904 = vunpack.c.h.b16 %v377
    %v905 = vunpack.c.l.b16 %v378
    %v906 = vunpack.c.h.b16 %v378
    %v907 = vunpack.c.l.b16 %v379
    %v908 = vunpack.c.h.b16 %v379
    %v909 = vunpack.c.l.b16 %v380
    %v910 = vunpack.c.h.b16 %v380
    %v911 = vunpack.c.l.b16 %v381
    %v912 = vunpack.c.h.b16 %v381
    %v913 = vunpack.c.l.b16 %v382
    %v914 = vunpack.c.h.b16 %v382
    %v915 = vunpack.c.l.b16 %v383
    %v916 = vunpack.c.h.b16 %v383
    %v917 = vunpack.c.l.b16 %v384
    %v918 = vunpack.c.h.b16 %v384
    %v919 = vunpack.c.l.b16 %v385
    %v920 = vunpack.c.h.b16 %v385
    %v921 = vunpack.c.l.b16 %v386
    %v922 = vunpack.c.h.b16 %v386
    %v923 = vunpack.c.l.b16 %v387
    %v924 = vunpack.c.h.b16 %v387
    %v925 = vunpack.c.l.b16 %v388
    %v926 = vunpack.c.h.b16 %v388
    %v927 = vunpack.c.l.b16 %v389
    %v928 = vunpack.c.h.b16 %v389
    %v929 = vunpack.c.l.b16 %v390
    %v930 = vunpack.c.h.b16 %v390
    %v931 = vunpack.c.l.b16 %v391
    %v932 = vunpack.c.h.b16 %v391
    %v933 = vunpack.c.l.b16 %v392
    %v934 = vunpack.c.h.b16 %v392
    %v935 = vunpack.c.l.b16 %v393
    %v936 = vunpack.c.h.b16 %v393
    %v937 = vunpack.c.l.b16 %v394
    %v938 = vunpack.c.h.b16 %v394
    %v939 = vunpack.c.l.b16 %v395
    %v940 = vunpack.c.h.b16 %v395
    %v941 = vunpack.c.l.b16 %v396
    %v942 = vunpack.c.h.b16 %v396
    %v943 = vunpack.c.l.b16 %v397
    %v944 = vunpack.c.h.b16 %v397
    %v945 = vunpack.c.l.b16 %v398
    %v946 = vunpack.c.h.b16 %v398
    %v947 = vunpack.c.l.b16 %v399
    %v948 = vunpack.c.h.b16 %v399
    %v949 = vunpack.c.l.b16 %v400
    %v950 = vunpack.c.h.b16 %v400
    %v951 = vunpack.c.l.b16 %v401
    %v952 = vunpack.c.h.b16 %v401
    %v953 = vunpack.c.l.b16 %v402
    %v954 = vunpack.c.h.b16 %v402
    %v955 = vunpack.c.l.b16 %v403
    %v956 = vunpack.c.h.b16 %v403
    %v957 = vunpack.c.l.b16 %v404
    %v958 = vunpack.c.h.b16 %v404
    %v959 = vunpack.c.l.b16 %v405
    %v960 = vunpack.c.h.b16 %v405
    %v961 = vunpack.c.l.b16 %v406
    %v962 = vunpack.c.h.b16 %v406
    %v963 = vunpack.c.l.b16 %v407
    %v964 = vunpack.c.h.b16 %v407
    %v965 = vunpack.c.l.b16 %v408
    %v966 = vunpack.c.h.b16 %v408
    %v967 = vunpack.c.l.b16 %v409
    %v968 = vunpack.c.h.b16 %v409
    %v969 = vunpack.c.l.b16 %v410
    %v970 = vunpack.c.h.b16 %v410
    %v971 = vunpack.c.l.b16 %v411
    %v972 = vunpack.c.h.b16 %v411
    %v973 = vunpack.c.l.b16 %v412
    %v974 = vunpack.c.h.b16 %v412
    %v975 = vunpack.c.l.b16 %v413
    %v976 = vunpack.c.h.b16 %v413
    %v977 = vunpack.c.l.b16 %v414
    %v978 = vunpack.c.h.b16 %v414
    %v979 = vunpack.c.l.b16 %v415
    %v980 = vunpack.c.h.b16 %v415
    %v981 = vunpack.c.l.b16 %v416
    %v982 = vunpack.c.h.b16 %v416
    %v983 = vunpack.c.l.b16 %v417
    %v984 = vunpack.c.h.b16 %v417
    %v985 = vunpack.c.l.b16 %v418
    %v986 = vunpack.c.h.b16 %v418
    %v987 = vunpack.c.l.b16 %v419
    %v988 = vunpack.c.h.b16 %v419
    %v989 = vunpack.c.l.b16 %v420
    %v990 = vunpack.c.h.b16 %v420
    %v991 = vunpack.c.l.b16 %v421
    %v992 = vunpack.c.h.b16 %v421
    %v993 = vunpack.c.l.b16 %v422
    %v994 = vunpack.c.h.b16 %v422
    %v995 = vunpack.c.l.b16 %v423
    %v996 = vunpack.c.h.b16 %v423
    %v997 = vunpack.c.l.b16 %v424
    %v998 = vunpack.c.h.b16 %v424
    %v999 = vunpack.c.l.b16 %v425
    %v1000 = vunpack.c.h.b16 %v425
    %v1001 = vunpack.c.l.b16 %v426
    %v1002 = vunpack.c.h.b16 %v426
    %v1003 = vunpack.c.l.b16 %v427
    %v1004 = vunpack.c.h.b16 %v427
    %v1005 = vunpack.c.l.b16 %v428
    %v1006 = vunpack.c.h.b16 %v428
    %v1007 = vunpack.c.l.b16 %v429
    %v1008 = vunpack.c.h.b16 %v429
    %v1009 = vunpack.c.l.b16 %v430
    %v1010 = vunpack.c.h.b16 %v430
    %v1011 = vunpack.c.l.b16 %v431
    %v1012 = vunpack.c.h.b16 %v431
    %v1013 = vunpack.c.l.b16 %v432
    %v1014 = vunpack.c.h.b16 %v432
    %v1015 = vunpack.c.l.b16 %v433
    %v1016 = vunpack.c.h.b16 %v433
    %v1017 = vunpack.c.l.b16 %v434
    %v1018 = vunpack.c.h.b16 %v434
    %v1019 = vunpack.c.l.b16 %v435
    %v1020 = vunpack.c.h.b16 %v435
    %v1021 = vunpack.c.l.b16 %v436
    %v1022 = vunpack.c.h.b16 %v436
    %v1023 = vunpack.c.l.b16 %v437
    %v1024 = vunpack.c.h.b16 %v437
    %v1025 = vunpack.c.l.b16 %v438
    %v1026 = vunpack.c.h.b16 %v438
    %v1027 = vunpack.c.l.b16 %v439
    %v1028 = vunpack.c.h.b16 %v439
    %v1029 = vunpack.c.l.b16 %v440
    %v1030 = vunpack.c.h.b16 %v440
    %v1031 = vunpack.c.l.b16 %v441
    %v1032 = vunpack.c.h.b16 %v441
    %v1033 = vunpack.c.l.b16 %v442
    %v1034 = vunpack.c.h.b16 %v442
    %v1035 = vunpack.c.l.b16 %v443
    %v1036 = vunpack.c.h.b16 %v443
    %v1037 = vunpack.c.l.b16 %v444
    %v1038 = vunpack.c.h.b16 %v444
    %v1039 = vunpack.c.l.b16 %v445
    %v1040 = vunpack.c.h.b16 %v445
    %v1041 = vunpack.c.l.b16 %v446
    %v1042 = vunpack.c.h.b16 %v446
    %v1043 = vunpack.c.l.b16 %v447
    %v1044 = vunpack.c.h.b16 %v447
    %v1045 = vunpack.c.l.b16 %v448
    %v1046 = vunpack.c.h.b16 %v448
    %v1047 = vunpack.c.l.b16 %v449
    %v1048 = vunpack.c.h.b16 %v449
    %v1049 = vunpack.c.l.b16 %v450
    %v1050 = vunpack.c.h.b16 %v450
    %v1051 = vunpack.c.l.b16 %v451
    %v1052 = vunpack.c.h.b16 %v451
    %v1053 = vunpack.c.l.b16 %v452
    %v1054 = vunpack.c.h.b16 %v452
    %v1055 = vunpack.c.l.b16 %v453
    %v1056 = vunpack.c.h.b16 %v453
    %v1057 = vunpack.c.l.b16 %v454
    %v1058 = vunpack.c.h.b16 %v454
    %v1059 = vunpack.c.l.b16 %v455
    %v1060 = vunpack.c.h.b16 %v455
    %v1061 = vunpack.c.l.b16 %v456
    %v1062 = vunpack.c.h.b16 %v456
    %v1063 = vunpack.c.l.b16 %v457
    %v1064 = vunpack.c.h.b16 %v457
    %v1065 = vunpack.c.l.b16 %v458
    %v1066 = vunpack.c.h.b16 %v458
    %v1067 = vunpack.c.l.b16 %v459
    %v1068 = vunpack.c.h.b16 %v459
    %v1069 = vunpack.c.l.b16 %v460
    %v1070 = vunpack.c.h.b16 %v460
    %v1071 = vunpack.c.l.b16 %v461
    %v1072 = vunpack.c.h.b16 %v461
    %v1073 = vunpack.c.l.b16 %v462
    %v1074 = vunpack.c.h.b16 %v462
    %v1075 = vunpack.c.l.b16 %v463
    %v1076 = vunpack.c.h.b16 %v463
    %v1077 = vunpack.c.l.b16 %v464
    %v1078 = vunpack.c.h.b16 %v464
    %v1079 = vunpack.c.l.b16 %v465
    %v1080 = vunpack.c.h.b16 %v465
    %v1081 = vunpack.c.l.b16 %v466
    %v1082 = vunpack.c.h.b16 %v466
    %v1083 = vunpack.c.l.b16 %v467
    %v1084 = vunpack.c.h.b16 %v467
    %v1085 = vunpack.c.l.b16 %v468
    %v1086 = vunpack.c.h.b16 %v468
    %v1087 = vunpack.c.l.b16 %v469
    %v1088 = vunpack.c.h.b16 %v469
    %v1089 = vunpack.c.l.b16 %v470
    %v1090 = vunpack.c.h.b16 %v470
    %v1091 = vunpack.c.l.b16 %v471
    %v1092 = vunpack.c.h.b16 %v471
    %v1093 = vunpack.c.l.b16 %v472
    %v1094 = vunpack.c.h.b16 %v472
    %v1095 = vunpack.c.l.b16 %v473
    %v1096 = vunpack.c.h.b16 %v473
    %v1097 = vunpack.c.l.b16 %v474
    %v1098 = vunpack.c.h.b16 %v474
    %v1099 = vunpack.c.l.b16 %v475
    %v1100 = vunpack.c.h.b16 %v475
    %v1101 = vunpack.c.l.b16 %v476
    %v1102 = vunpack.c.h.b16 %v476
    %v1103 = vunpack.c.l.b16 %v477
    %v1104 = vunpack.c.h.b16 %v477
    %v1105 = vunpack.c.l.b16 %v478
    %v1106 = vunpack.c.h.b16 %v478
    %v1107 = vunpack.c.l.b16 %v479
    %v1108 = vunpack.c.h.b16 %v479
    %v1109 = vunpack.c.l.b16 %v480
    %v1110 = vunpack.c.h.b16 %v480
    %v1111 = vunpack.c.l.b16 %v481
    %v1112 = vunpack.c.h.b16 %v481
    %v1113 = vunpack.c.l.b16 %v482
    %v1114 = vunpack.c.h.b16 %v482
    %v1115 = vunpack.c.l.b16 %v483
    %v1116 = vunpack.c.h.b16 %v483
    %v1117 = vunpack.c.l.b16 %v484
    %v1118 = vunpack.c.h.b16 %v484
    %v1119 = vunpack.c.l.b16 %v485
    %v1120 = vunpack.c.h.b16 %v485
    %v1121 = vunpack.c.l.b16 %v486
    %v1122 = vunpack.c.h.b16 %v486
    %v1123 = vunpack.c.l.b16 %v487
    %v1124 = vunpack.c.h.b16 %v487
    %v1125 = vunpack.c.l.b16 %v488
    %v1126 = vunpack.c.h.b16 %v488
    %v1127 = vunpack.c.l.b16 %v489
    %v1128 = vunpack.c.h.b16 %v489
    %v1129 = vunpack.c.l.b16 %v490
    %v1130 = vunpack.c.h.b16 %v490
    %v1131 = vunpack.c.l.b16 %v491
    %v1132 = vunpack.c.h.b16 %v491
    %v1133 = vunpack.c.l.b16 %v492
    %v1134 = vunpack.c.h.b16 %v492
    %v1135 = vunpack.c.l.b16 %v493
    %v1136 = vunpack.c.h.b16 %v493
    %v1137 = vunpack.c.l.b16 %v494
    %v1138 = vunpack.c.h.b16 %v494
    %v1139 = vunpack.c.l.b16 %v495
    %v1140 = vunpack.c.h.b16 %v495
    %v1141 = vunpack.c.l.b16 %v496
    %v1142 = vunpack.c.h.b16 %v496
    %v1143 = vunpack.c.l.b16 %v497
    %v1144 = vunpack.c.h.b16 %v497
    %v1145 = vunpack.c.l.b16 %v498
    %v1146 = vunpack.c.h.b16 %v498
    %v1147 = vunpack.c.l.b16 %v499
    %v1148 = vunpack.c.h.b16 %v499
    %v1149 = vunpack.c.l.b16 %v500
    %v1150 = vunpack.c.h.b16 %v500
    %v1151 = vunpack.c.l.b16 %v501
    %v1152 = vunpack.c.h.b16 %v501
    %v1153 = vunpack.c.l.b16 %v502
    %v1154 = vunpack.c.h.b16 %v502
    %v1155 = vunpack.c.l.b16 %v503
    %v1156 = vunpack.c.h.b16 %v503
    %v1157 = vunpack.c.l.b16 %v504
    %v1158 = vunpack.c.h.b16 %v504
    %v1159 = vunpack.c.l.b16 %v505
    %v1160 = vunpack.c.h.b16 %v505
    %v1161 = vunpack.c.l.b16 %v506
    %v1162 = vunpack.c.h.b16 %v506
    %v1163 = vunpack.c.l.b16 %v507
    %v1164 = vunpack.c.h.b16 %v507
    %v1165 = vunpack.c.l.b16 %v508
    %v1166 = vunpack.c.h.b16 %v508
    %v1167 = vunpack.c.l.b16 %v509
    %v1168 = vunpack.c.h.b16 %v509
    %v1169 = vunpack.c.l.b16 %v510
    %v1170 = vunpack.c.h.b16 %v510
    %v1171 = vunpack.c.l.b16 %v511
    %v1172 = vunpack.c.h.b16 %v511
    %v1173 = vunpack.c.l.b16 %v512
    %v1174 = vunpack.c.h.b16 %v512
    %v1175 = vunpack.c.l.b16 %v513
    %v1176 = vunpack.c.h.b16 %v513
    %v1177 = vunpack.c.l.b16 %v514
    %v1178 = vunpack.c.h.b16 %v514
    %v1179 = vunpack.c.l.b16 %v515
    %v1180 = vunpack.c.h.b16 %v515
    %v1181 = vunpack.c.l.b16 %v516
    %v1182 = vunpack.c.h.b16 %v516
    %v1183 = vunpack.c.l.b16 %v517
    %v1184 = vunpack.c.h.b16 %v517
    %v1185 = vunpack.c.l.b16 %v518
    %v1186 = vunpack.c.h.b16 %v518
    %v1187 = vunpack.c.l.b16 %v519
    %v1188 = vunpack.c.h.b16 %v519
    %v1189 = vunpack.c.l.b16 %v520
    %v1190 = vunpack.c.h.b16 %v520
    %v1191 = vunpack.c.l.b16 %v521
    %v1192 = vunpack.c.h.b16 %v521
    %v1193 = vunpack.c.l.b16 %v522
    %v1194 = vunpack.c.h.b16 %v522
    %v1195 = vunpack.c.l.b16 %v523
    %v1196 = vunpack.c.h.b16 %v523
    %v1197 = vunpack.c.l.b16 %v524
    %v1198 = vunpack.c.h.b16 %v524
    %v1199 = vunpack.c.l.b16 %v525
    %v1200 = vunpack.c.h.b16 %v525
    %v1201 = vunpack.c.l.b16 %v526
    %v1202 = vunpack.c.h.b16 %v526
    %v1203 = vunpack.c.l.b16 %v527
    %v1204 = vunpack.c.h.b16 %v527
    %v1205 = vunpack.c.l.b16 %v528
    %v1206 = vunpack.c.h.b16 %v528
    %v1207 = vunpack.c.l.b16 %v529
    %v1208 = vunpack.c.h.b16 %v529
    %v1209 = vunpack.c.l.b16 %v530
    %v1210 = vunpack.c.h.b16 %v530
    %v1211 = vunpack.c.l.b16 %v531
    %v1212 = vunpack.c.h.b16 %v531
    %v1213 = vunpack.c.l.b16 %v532
    %v1214 = vunpack.c.h.b16 %v532
    %v1215 = vunpack.c.l.b16 %v533
    %v1216 = vunpack.c.h.b16 %v533
    %v1217 = vunpack.c.l.b16 %v534
    %v1218 = vunpack.c.h.b16 %v534
    %v1219 = vunpack.c.l.b16 %v535
    %v1220 = vunpack.c.h.b16 %v535
    %v1221 = vunpack.c.l.b16 %v536
    %v1222 = vunpack.c.h.b16 %v536
    %v1223 = vunpack.c.l.b16 %v537
    %v1224 = vunpack.c.h.b16 %v537
    %v1225 = vunpack.c.l.b16 %v538
    %v1226 = vunpack.c.h.b16 %v538
    %v1227 = vunpack.c.l.b16 %v539
    %v1228 = vunpack.c.h.b16 %v539
    %v1229 = vunpack.c.l.b16 %v540
    %v1230 = vunpack.c.h.b16 %v540
    %v1231 = vunpack.c.l.b16 %v541
    %v1232 = vunpack.c.h.b16 %v541
    %v1233 = vunpack.c.l.b16 %v542
    %v1234 = vunpack.c.h.b16 %v542
    %v1235 = vunpack.c.l.b16 %v543
    %v1236 = vunpack.c.h.b16 %v543
    %v1237 = vunpack.c.l.b16 %v544
    %v1238 = vunpack.c.h.b16 %v544
    %v1239 = vpack.c.b16 %v795, %v791
    %v1240 = vpack.c.b16 %v796, %v792
    %v1241 = vpack.c.b16 %v797, %v793
    %v1242 = vpack.c.b16 %v798, %v794
    %v1243 = vpack.c.b16 %v803, %v799
    %v1244 = vpack.c.b16 %v804, %v800
    %v1245 = vpack.c.b16 %v805, %v801
    %v1246 = vpack.c.b16 %v806, %v802
    %v1247 = vpack.c.b16 %v811, %v807
    %v1248 = vpack.c.b16 %v812, %v808
    %v1249 = vpack.c.b16 %v813, %v809
    %v1250 = vpack.c.b16 %v814, %v810
    %v1251 = vpack.c.b16 %v819, %v815
    %v1252 = vpack.c.b16 %v820, %v816
    %v1253 = vpack.c.b16 %v821, %v817
    %v1254 = vpack.c.b16 %v822, %v818
    %v1255 = vpack.c.b16 %v827, %v823
    %v1256 = vpack.c.b16 %v828, %v824
    %v1257 = vpack.c.b16 %v829, %v825
    %v1258 = vpack.c.b16 %v830, %v826
    %v1259 = vpack.c.b16 %v835, %v831
    %v1260 = vpack.c.b16 %v836, %v832
    %v1261 = vpack.c.b16 %v837, %v833
    %v1262 = vpack.c.b16 %v838, %v834
    %v1263 = vpack.c.b16 %v843, %v839
    %v1264 = vpack.c.b16 %v844, %v840
    %v1265 = vpack.c.b16 %v845, %v841
    %v1266 = vpack.c.b16 %v846, %v842
    %v1267 = vpack.c.b16 %v851, %v847
    %v1268 = vpack.c.b16 %v852, %v848
    %v1269 = vpack.c.b16 %v853, %v849
    %v1270 = vpack.c.b16 %v854, %v850
    %v1271 = vpack.c.b16 %v859, %v855
    %v1272 = vpack.c.b16 %v860, %v856
    %v1273 = vpack.c.b16 %v861, %v857
    %v1274 = vpack.c.b16 %v862, %v858
    %v1275 = vpack.c.b16 %v867, %v863
    %v1276 = vpack.c.b16 %v868, %v864
    %v1277 = vpack.c.b16 %v869, %v865
    %v1278 = vpack.c.b16 %v870, %v866
    %v1279 = vpack.c.b16 %v875, %v871
    %v1280 = vpack.c.b16 %v876, %v872
    %v1281 = vpack.c.b16 %v877, %v873
    %v1282 = vpack.c.b16 %v878, %v874
    %v1283 = vpack.c.b16 %v883, %v879
    %v1284 = vpack.c.b16 %v884, %v880
    %v1285 = vpack.c.b16 %v885, %v881
    %v1286 = vpack.c.b16 %v886, %v882
    %v1287 = vpack.c.b16 %v891, %v887
    %v1288 = vpack.c.b16 %v892, %v888
    %v1289 = vpack.c.b16 %v893, %v889
    %v1290 = vpack.c.b16 %v894, %v890
    %v1291 = vpack.c.b16 %v899, %v895
    %v1292 = vpack.c.b16 %v900, %v896
    %v1293 = vpack.c.b16 %v901, %v897
    %v1294 = vpack.c.b16 %v902, %v898
    %v1295 = vpack.c.b16 %v907, %v903
    %v1296 = vpack.c.b16 %v908, %v904
    %v1297 = vpack.c.b16 %v909, %v905
    %v1298 = vpack.c.b16 %v910, %v906
    %v1299 = vpack.c.b16 %v915, %v911
    %v1300 = vpack.c.b16 %v916, %v912
    %v1301 = vpack.c.b16 %v917, %v913
    %v1302 = vpack.c.b16 %v918, %v914
    %v1303 = vpack.c.b16 %v923, %v919
    %v1304 = vpack.c.b16 %v924, %v920
    %v1305 = vpack.c.b16 %v925, %v921
    %v1306 = vpack.c.b16 %v926, %v922
    %v1307 = vpack.c.b16 %v931, %v927
    %v1308 = vpack.c.b16 %v932, %v928
    %v1309 = vpack.c.b16 %v933, %v929
    %v1310 = vpack.c.b16 %v934, %v930
    %v1311 = vpack.c.b16 %v939, %v935
    %v1312 = vpack.c.b16 %v940, %v936
    %v1313 = vpack.c.b16 %v941, %v937
    %v1314 = vpack.c.b16 %v942, %v938
    %v1315 = vpack.c.b16 %v947, %v943
    %v1316 = vpack.c.b16 %v948, %v944
    %v1317 = vpack.c.b16 %v949, %v945
    %v1318 = vpack.c.b16 %v950, %v946
    %v1319 = vpack.c.b16 %v955, %v951
    %v1320 = vpack.c.b16 %v956, %v952
    %v1321 = vpack.c.b16 %v957, %v953
    %v1322 = vpack.c.b16 %v958, %v954
    %v1323 = vpack.c.b16 %v963, %v959
    %v1324 = vpack.c.b16 %v964, %v960
    %v1325 = vpack.c.b16 %v965, %v961
    %v1326 = vpack.c.b16 %v966, %v962
    %v1327 = vpack.c.b16 %v971, %v967
    %v1328 = vpack.c.b16 %v972, %v968
    %v1329 = vpack.c.b16 %v973, %v969
    %v1330 = vpack.c.b16 %v974, %v970
    %v1331 = vpack.c.b16 %v979, %v975
    %v1332 = vpack.c.b16 %v980, %v976
    %v1333 = vpack.c.b16 %v981, %v977
    %v1334 = vpack.c.b16 %v982, %v978
    %v1335 = vpack.c.b16 %v987, %v983
    %v1336 = vpack.c.b16 %v988, %v984
    %v1337 = vpack.c.b16 %v989, %v985
    %v1338 = vpack.c.b16 %v990, %v986
    %v1339 = vpack.c.b16 %v995, %v991
    %v1340 = vpack.c.b16 %v996, %v992
    %v1341 = vpack.c.b16 %v997, %v993
    %v1342 = vpack.c.b16 %v998, %v994
    %v1343 = vpack.c.b16 %v1003, %v999
    %v1344 = vpack.c.b16 %v1004, %v1000
    %v1345 = vpack.c.b16 %v1005, %v1001
    %v1346 = vpack.c.b16 %v1006, %v1002
    %v1347 = vpack.c.b16 %v1011, %v1007
    %v1348 = vpack.c.b16 %v1012, %v1008
    %v1349 = vpack.c.b16 %v1013, %v1009
    %v1350 = vpack.c.b16 %v1014, %v1010
    %v1351 = vpack.c.b16 %v1019, %v1015
    %v1352 = vpack.c.b16 %v1020, %v1016
    %v1353 = vpack.c.b16 %v1021, %v1017
    %v1354 = vpack.c.b16 %v1022, %v1018
    %v1355 = vpack.c.b16 %v1027, %v1023
    %v1356 = vpack.c.b16 %v1028, %v1024
    %v1357 = vpack.c.b16 %v1029, %v1025
    %v1358 = vpack.c.b16 %v1030, %v1026
    %v1359 = vpack.c.b16 %v1035, %v1031
    %v1360 = vpack.c.b16 %v1036, %v1032
    %v1361 = vpack.c.b16 %v1037, %v1033
    %v1362 = vpack.c.b16 %v1038, %v1034
    %v1363 = vpack.c.b16 %v1043, %v1039
    %v1364 = vpack.c.b16 %v1044, %v1040
    %v1365 = vpack.c.b16 %v1045, %v1041
    %v1366 = vpack.c.b16 %v1046, %v1042
    %v1367 = vpack.c.b16 %v1051, %v1047
    %v1368 = vpack.c.b16 %v1052, %v1048
    %v1369 = vpack.c.b16 %v1053, %v1049
    %v1370 = vpack.c.b16 %v1054, %v1050
    %v1371 = vpack.c.b16 %v1059, %v1055
    %v1372 = vpack.c.b16 %v1060, %v1056
    %v1373 = vpack.c.b16 %v1061, %v1057
    %v1374 = vpack.c.b16 %v1062, %v1058
    %v1375 = vpack.c.b16 %v1067, %v1063
    %v1376 = vpack.c.b16 %v1068, %v1064
    %v1377 = vpack.c.b16 %v1069, %v1065
    %v1378 = vpack.c.b16 %v1070, %v1066
    %v1379 = vpack.c.b16 %v1075, %v1071
    %v1380 = vpack.c.b16 %v1076, %v1072
    %v1381 = vpack.c.b16 %v1077, %v1073
    %v1382 = vpack.c.b16 %v1078, %v1074
    %v1383 = vpack.c.b16 %v1083, %v1079
    %v1384 = vpack.c.b16 %v1084, %v1080
    %v1385 = vpack.c.b16 %v1085, %v1081
    %v1386 = vpack.c.b16 %v1086, %v1082
    %v1387 = vpack.c.b16 %v1091, %v1087
    %v1388 = vpack.c.b16 %v1092, %v1088
    %v1389 = vpack.c.b16 %v1093, %v1089
    %v1390 = vpack.c.b16 %v1094, %v1090
    %v1391 = vpack.c.b16 %v1099, %v1095
    %v1392 = vpack.c.b16 %v1100, %v1096
    %v1393 = vpack.c.b16 %v1101, %v1097
    %v1394 = vpack.c.b16 %v1102, %v1098
    %v1395 = vpack.c.b16 %v1107, %v1103
    %v1396 = vpack.c.b16 %v1108, %v1104
    %v1397 = vpack.c.b16 %v1109, %v1105
    %v1398 = vpack.c.b16 %v1110, %v1106
    %v1399 = vpack.c.b16 %v1115, %v1111
    %v1400 = vpack.c.b16 %v1116, %v1112
    %v1401 = vpack.c.b16 %v1117, %v1113
    %v1402 = vpack.c.b16 %v1118, %v1114
    %v1403 = vpack.c.b16 %v1123, %v1119
    %v1404 = vpack.c.b16 %v1124, %v1120
    %v1405 = vpack.c.b16 %v1125, %v1121
    %v1406 = vpack.c.b16 %v1126, %v1122
    %v1407 = vpack.c.b16 %v1131, %v1127
    %v1408 = vpack.c.b16 %v1132, %v1128
    %v1409 = vpack.c.b16 %v1133, %v1129
    %v1410 = vpack.c.b16 %v1134, %v1130
    %v1411 = vpack.c.b16 %v1139, %v1135
    %v1412 = vpack.c.b16 %v1140, %v1136
    %v1413 = vpack.c.b16 %v1141, %v1137
    %v1414 = vpack.c.b16 %v1142, %v1138
    %v1415 = vpack.c.b16 %v1147, %v1143
    %v1416 = vpack.c.b16 %v1148, %v1144
    %v1417 = vpack.c.b16 %v1149, %v1145
    %v1418 = vpack.c.b16 %v1150, %v1146
    %v1419 = vpack.c.b16 %v1155, %v1151
    %v1420 = vpack.c.b16 %v1156, %v1152
    %v1421 = vpack.c.b16 %v1157, %v1153
    %v1422 = vpack.c.b16 %v1158, %v1154
    %v1423 = vpack.c.b16 %v1163, %v1159
    %v1424 = vpack.c.b16 %v1164, %v1160
    %v1425 = vpack.c.b16 %v1165, %v1161
    %v1426 = vpack.c.b16 %v1166, %v1162
    %v1427 = vpack.c.b16 %v1171, %v1167
    %v1428 = vpack.c.b16 %v1172, %v1168
    %v1429 = vpack.c.b16 %v1173, %v1169
    %v1430 = vpack.c.b16 %v1174, %v1170
    %v1431 = vpack.c.b16 %v1179, %v1175
    %v1432 = vpack.c.b16 %v1180, %v1176
    %v1433 = vpack.c.b16 %v1181, %v1177
    %v1434 = vpack.c.b16 %v1182, %v1178
    %v1435 = vpack.c.b16 %v1187, %v1183
    %v1436 = vpack.c.b16 %v1188, %v1184
    %v1437 = vpack.c.b16 %v1189, %v1185
    %v1438 = vpack.c.b16 %v1190, %v1186
    %v1439 = vpack.c.b16 %v1195, %v1191
    %v1440 = vpack.c.b16 %v1196, %v1192
    %v1441 = vpack.c.b16 %v1197, %v1193
    %v1442 = vpack.c.b16 %v1198, %v1194
    %v1443 = vpack.c.b16 %v1203, %v1199
    %v1444 = vpack.c.b16 %v1204, %v1200
    %v1445 = vpack.c.b16 %v1205, %v1201
    %v1446 = vpack.c.b16 %v1206, %v1202
    %v1447 = vpack.c.b16 %v1211, %v1207
    %v1448 = vpack.c.b16 %v1212, %v1208
    %v1449 = vpack.c.b16 %v1213, %v1209
    %v1450 = vpack.c.b16 %v1214, %v1210
    %v1451 = vpack.c.b16 %v1219, %v1215
    %v1452 = vpack.c.b16 %v1220, %v1216
    %v1453 = vpack.c.b16 %v1221, %v1217
    %v1454 = vpack.c.b16 %v1222, %v1218
    %v1455 = vpack.c.b16 %v1227, %v1223
    %v1456 = vpack.c.b16 %v1228, %v1224
    %v1457 = vpack.c.b16 %v1229, %v1225
    %v1458 = vpack.c.b16 %v1230, %v1226
    %v1459 = vpack.c.b16 %v1235, %v1231
    %v1460 = vpack.c.b16 %v1236, %v1232
    %v1461 = vpack.c.b16 %v1237, %v1233
    %v1462 = vpack.c.b16 %v1238, %v1234
    %1687 = vmatprep.subr.bf16.mxu0 %v1240
    %1688 = vmatpush1.bf16.msra.mxu0 %v1239
    %1689 = vmatprep.subr.bf16.mxu0 %v1244
    %1690 = vmatpush1.bf16.msra.mxu0 %v1243
    %1691 = vmatprep.subr.bf16.mxu0 %v1248
    %1692 = vmatpush1.bf16.msra.mxu0 %v1247
    %1693 = vmatprep.subr.bf16.mxu0 %v1252
    %1694 = vmatpush1.bf16.msra.mxu0 %v1251
    %1695 = vmatprep.subr.bf16.mxu0 %v1256
    %1696 = vmatpush1.bf16.msra.mxu0 %v1255
    %1697 = vmatprep.subr.bf16.mxu0 %v1260
    %1698 = vmatpush1.bf16.msra.mxu0 %v1259
    %1699 = vmatprep.subr.bf16.mxu0 %v1264
    %1700 = vmatpush1.bf16.msra.mxu0 %v1263
    %1701 = vmatprep.subr.bf16.mxu0 %v1268
    %1702 = vmatpush1.bf16.msra.mxu0 %v1267
    %1703 = vmatprep.subr.bf16.mxu0 %v1272
    %1704 = vmatpush1.bf16.msra.mxu0 %v1271
    %1705 = vmatprep.subr.bf16.mxu0 %v1276
    %1706 = vmatpush1.bf16.msra.mxu0 %v1275
    %1707 = vmatprep.subr.bf16.mxu0 %v1280
    %1708 = vmatpush1.bf16.msra.mxu0 %v1279
    %1709 = vmatprep.subr.bf16.mxu0 %v1284
    %1710 = vmatpush1.bf16.msra.mxu0 %v1283
    %1711 = vmatprep.subr.bf16.mxu0 %v1288
    %1712 = vmatpush1.bf16.msra.mxu0 %v1287
    %1713 = vmatprep.subr.bf16.mxu0 %v1292
    %1714 = vmatpush1.bf16.msra.mxu0 %v1291
    %1715 = vmatprep.subr.bf16.mxu0 %v1296
    %1716 = vmatpush1.bf16.msra.mxu0 %v1295
    %1717 = vmatprep.subr.bf16.mxu0 %v1300
    %1718 = vmatpush1.bf16.msra.mxu0 %v1299
    %1719 = vmatprep.mubr.bf16.mxu0 %v266
    %1720 = vmatmul.mubr.bf16.gmra.mrb[0].mxu0 %v265
    %v1721 = vpop.f32.mrb[0].mxu0
    %v1722 = vadd.f32 %v550, %v1721
    %v1723 = vpop.f32.mrb[0].mxu0
    %v1724 = vadd.f32 %v554, %v1723
    %v1725 = vpop.f32.mrb[0].mxu0
    %v1726 = vadd.f32 %v550, %v1725
    %v1727 = vpop.f32.mrb[0].mxu0
    %v1728 = vadd.f32 %v554, %v1727
    %1729 = vmatprep.mubr.bf16.mxu0 %v273
    %1730 = vmatmul.mubr.bf16.gmra.mrb[0].mxu0 %v272
    %v1731 = vpop.f32.mrb[0].mxu0
    %v1732 = vadd.f32 %v550, %v1731
    %v1733 = vpop.f32.mrb[0].mxu0
    %v1734 = vadd.f32 %v554, %v1733
    %v1735 = vpop.f32.mrb[0].mxu0
    %v1736 = vadd.f32 %v550, %v1735
    %v1737 = vpop.f32.mrb[0].mxu0
    %v1738 = vadd.f32 %v554, %v1737
    %1739 = vmatprep.mubr.bf16.mxu0 %v280
    %1740 = vmatmul.mubr.bf16.gmra.mrb[0].mxu0 %v279
    %v1741 = vpop.f32.mrb[0].mxu0
    %v1742 = vadd.f32 %v550, %v1741
    %v1743 = vpop.f32.mrb[0].mxu0
    %v1744 = vadd.f32 %v554, %v1743
    %v1745 = vpop.f32.mrb[0].mxu0
    %v1746 = vadd.f32 %v550, %v1745
    %v1747 = vpop.f32.mrb[0].mxu0
    %v1748 = vadd.f32 %v554, %v1747
    %1749 = vmatprep.mubr.bf16.mxu0 %v287
    %1750 = vmatmul.mubr.bf16.gmra.mrb[0].mxu0 %v286
    %v1751 = vpop.f32.mrb[0].mxu0
    %v1752 = vadd.f32 %v550, %v1751
    %v1753 = vpop.f32.mrb[0].mxu0
    %v1754 = vadd.f32 %v554, %v1753
    %v1755 = vpop.f32.mrb[0].mxu0
    %v1756 = vadd.f32 %v550, %v1755
    %v1757 = vpop.f32.mrb[0].mxu0
    %v1758 = vadd.f32 %v554, %v1757
    %1759 = vmatprep.mubr.bf16.mxu0 %v294
    %1760 = vmatmul.mubr.bf16.gmra.mrb[0].mxu0 %v293
    %v1761 = vpop.f32.mrb[0].mxu0
    %v1762 = vadd.f32 %v550, %v1761
    %v1763 = vpop.f32.mrb[0].mxu0
    %v1764 = vadd.f32 %v554, %v1763
    %v1765 = vpop.f32.mrb[0].mxu0
    %v1766 = vadd.f32 %v550, %v1765
    %v1767 = vpop.f32.mrb[0].mxu0
    %v1768 = vadd.f32 %v554, %v1767
    %1769 = vmatprep.mubr.bf16.mxu0 %v301
    %1770 = vmatmul.mubr.bf16.gmra.mrb[0].mxu0 %v300
    %v1771 = vpop.f32.mrb[0].mxu0
    %v1772 = vadd.f32 %v550, %v1771
    %v1773 = vpop.f32.mrb[0].mxu0
    %v1774 = vadd.f32 %v554, %v1773
    %v1775 = vpop.f32.mrb[0].mxu0
    %v1776 = vadd.f32 %v550, %v1775
    %v1777 = vpop.f32.mrb[0].mxu0
    %v1778 = vadd.f32 %v554, %v1777
    %1779 = vmatprep.mubr.bf16.mxu0 %v308
    %1780 = vmatmul.mubr.bf16.gmra.mrb[0].mxu0 %v307
    %v1781 = vpop.f32.mrb[0].mxu0
    %v1782 = vadd.f32 %v550, %v1781
    %v1783 = vpop.f32.mrb[0].mxu0
    %v1784 = vadd.f32 %v554, %v1783
    %v1785 = vpop.f32.mrb[0].mxu0
    %v1786 = vadd.f32 %v550, %v1785
    %v1787 = vpop.f32.mrb[0].mxu0
    %v1788 = vadd.f32 %v554, %v1787
    %1789 = vmatprep.mubr.bf16.mxu0 %v315
    %1790 = vmatmul.mubr.bf16.gmra.mrb[0].mxu0 %v314
    %v1791 = vpop.f32.mrb[0].mxu0
    %v1792 = vadd.f32 %v550, %v1791
    %v1793 = vpop.f32.mrb[0].mxu0
    %v1794 = vadd.f32 %v554, %v1793
    %v1795 = vpop.f32.mrb[0].mxu0
    %v1796 = vadd.f32 %v550, %v1795
    %v1797 = vpop.f32.mrb[0].mxu0
    %v1798 = vadd.f32 %v554, %v1797
    %1799 = vdwg.mxu0
    %1800 = vmatprep.subr.bf16.mxu0 %v1304
    %1801 = vmatpush1.bf16.msra.mxu0 %v1303
    %1802 = vmatprep.subr.bf16.mxu0 %v1308
    %1803 = vmatpush1.bf16.msra.mxu0 %v1307
    %1804 = vmatprep.subr.bf16.mxu0 %v1312
    %1805 = vmatpush1.bf16.msra.mxu0 %v1311
    %1806 = vmatprep.subr.bf16.mxu0 %v1316
    %1807 = vmatpush1.bf16.msra.mxu0 %v1315
    %1808 = vmatprep.subr.bf16.mxu0 %v1320
    %1809 = vmatpush1.bf16.msra.mxu0 %v1319
    %1810 = vmatprep.subr.bf16.mxu0 %v1324
    %1811 = vmatpush1.bf16.msra.mxu0 %v1323
    %1812 = vmatprep.subr.bf16.mxu0 %v1328
    %1813 = vmatpush1.bf16.msra.mxu0 %v1327
    %1814 = vmatprep.subr.bf16.mxu0 %v1332
    %1815 = vmatpush1.bf16.msra.mxu0 %v1331
    %1816 = vmatprep.subr.bf16.mxu0 %v1336
    %1817 = vmatpush1.bf16.msra.mxu0 %v1335
    %1818 = vmatprep.subr.bf16.mxu0 %v1340
    %1819 = vmatpush1.bf16.msra.mxu0 %v1339
    %1820 = vmatprep.subr.bf16.mxu0 %v1344
    %1821 = vmatpush1.bf16.msra.mxu0 %v1343
    %1822 = vmatprep.subr.bf16.mxu0 %v1348
    %1823 = vmatpush1.bf16.msra.mxu0 %v1347
    %1824 = vmatprep.subr.bf16.mxu0 %v1352
    %1825 = vmatpush1.bf16.msra.mxu0 %v1351
    %1826 = vmatprep.subr.bf16.mxu0 %v1356
    %1827 = vmatpush1.bf16.msra.mxu0 %v1355
    %1828 = vmatprep.subr.bf16.mxu0 %v1360
    %1829 = vmatpush1.bf16.msra.mxu0 %v1359
    %1830 = vmatprep.subr.bf16.mxu0 %v1364
    %1831 = vmatpush1.bf16.msra.mxu0 %v1363
    %1832 = vmatprep.mubr.bf16.mxu0 %v268
    %1833 = vmatmul.mubr.bf16.gmra.mrb[0].mxu0 %v267
    %v1834 = vpop.f32.mrb[0].mxu0
    %v1835 = vadd.f32 %v1722, %v1834
    %v1836 = vpop.f32.mrb[0].mxu0
    %v1837 = vadd.f32 %v1724, %v1836
    %v1838 = vpop.f32.mrb[0].mxu0
    %v1839 = vadd.f32 %v1726, %v1838
    %v1840 = vpop.f32.mrb[0].mxu0
    %v1841 = vadd.f32 %v1728, %v1840
    %1842 = vmatprep.mubr.bf16.mxu0 %v275
    %1843 = vmatmul.mubr.bf16.gmra.mrb[0].mxu0 %v274
    %v1844 = vpop.f32.mrb[0].mxu0
    %v1845 = vadd.f32 %v1732, %v1844
    %v1846 = vpop.f32.mrb[0].mxu0
    %v1847 = vadd.f32 %v1734, %v1846
    %v1848 = vpop.f32.mrb[0].mxu0
    %v1849 = vadd.f32 %v1736, %v1848
    %v1850 = vpop.f32.mrb[0].mxu0
    %v1851 = vadd.f32 %v1738, %v1850
    %1852 = vmatprep.mubr.bf16.mxu0 %v282
    %1853 = vmatmul.mubr.bf16.gmra.mrb[0].mxu0 %v281
    %v1854 = vpop.f32.mrb[0].mxu0
    %v1855 = vadd.f32 %v1742, %v1854
    %v1856 = vpop.f32.mrb[0].mxu0
    %v1857 = vadd.f32 %v1744, %v1856
    %v1858 = vpop.f32.mrb[0].mxu0
    %v1859 = vadd.f32 %v1746, %v1858
    %v1860 = vpop.f32.mrb[0].mxu0
    %v1861 = vadd.f32 %v1748, %v1860
    %1862 = vmatprep.mubr.bf16.mxu0 %v289
    %1863 = vmatmul.mubr.bf16.gmra.mrb[0].mxu0 %v288
    %v1864 = vpop.f32.mrb[0].mxu0
    %v1865 = vadd.f32 %v1752, %v1864
    %v1866 = vpop.f32.mrb[0].mxu0
    %v1867 = vadd.f32 %v1754, %v1866
    %v1868 = vpop.f32.mrb[0].mxu0
    %v1869 = vadd.f32 %v1756, %v1868
    %v1870 = vpop.f32.mrb[0].mxu0
    %v1871 = vadd.f32 %v1758, %v1870
    %1872 = vmatprep.mubr.bf16.mxu0 %v296
    %1873 = vmatmul.mubr.bf16.gmra.mrb[0].mxu0 %v295
    %v1874 = vpop.f32.mrb[0].mxu0
    %v1875 = vadd.f32 %v1762, %v1874
    %v1876 = vpop.f32.mrb[0].mxu0
    %v1877 = vadd.f32 %v1764, %v1876
    %v1878 = vpop.f32.mrb[0].mxu0
    %v1879 = vadd.f32 %v1766, %v1878
    %v1880 = vpop.f32.mrb[0].mxu0
    %v1881 = vadd.f32 %v1768, %v1880
    %1882 = vmatprep.mubr.bf16.mxu0 %v303
    %1883 = vmatmul.mubr.bf16.gmra.mrb[0].mxu0 %v302
    %v1884 = vpop.f32.mrb[0].mxu0
    %v1885 = vadd.f32 %v1772, %v1884
    %v1886 = vpop.f32.mrb[0].mxu0
    %v1887 = vadd.f32 %v1774, %v1886
    %v1888 = vpop.f32.mrb[0].mxu0
    %v1889 = vadd.f32 %v1776, %v1888
    %v1890 = vpop.f32.mrb[0].mxu0
    %v1891 = vadd.f32 %v1778, %v1890
    %1892 = vmatprep.mubr.bf16.mxu0 %v310
    %1893 = vmatmul.mubr.bf16.gmra.mrb[0].mxu0 %v309
    %v1894 = vpop.f32.mrb[0].mxu0
    %v1895 = vadd.f32 %v1782, %v1894
    %v1896 = vpop.f32.mrb[0].mxu0
    %v1897 = vadd.f32 %v1784, %v1896
    %v1898 = vpop.f32.mrb[0].mxu0
    %v1899 = vadd.f32 %v1786, %v1898
    %v1900 = vpop.f32.mrb[0].mxu0
    %v1901 = vadd.f32 %v1788, %v1900
    %1902 = vmatprep.mubr.bf16.mxu0 %v317
    %1903 = vmatmul.mubr.bf16.gmra.mrb[0].mxu0 %v316
    %v1904 = vpop.f32.mrb[0].mxu0
    %v1905 = vadd.f32 %v1792, %v1904
    %v1906 = vpop.f32.mrb[0].mxu0
    %v1907 = vadd.f32 %v1794, %v1906
    %v1908 = vpop.f32.mrb[0].mxu0
    %v1909 = vadd.f32 %v1796, %v1908
    %v1910 = vpop.f32.mrb[0].mxu0
    %v1911 = vadd.f32 %v1798, %v1910
    %1912 = vdwg.mxu0
    %1913 = vmatprep.subr.bf16.mxu0 %v1368
    %1914 = vmatpush1.bf16.msra.mxu0 %v1367
    %1915 = vmatprep.subr.bf16.mxu0 %v1372
    %1916 = vmatpush1.bf16.msra.mxu0 %v1371
    %1917 = vmatprep.subr.bf16.mxu0 %v1376
    %1918 = vmatpush1.bf16.msra.mxu0 %v1375
    %1919 = vmatprep.subr.bf16.mxu0 %v1380
    %1920 = vmatpush1.bf16.msra.mxu0 %v1379
    %1921 = vmatprep.subr.bf16.mxu0 %v1384
    %1922 = vmatpush1.bf16.msra.mxu0 %v1383
    %1923 = vmatprep.subr.bf16.mxu0 %v1388
    %1924 = vmatpush1.bf16.msra.mxu0 %v1387
    %1925 = vmatprep.subr.bf16.mxu0 %v1392
    %1926 = vmatpush1.bf16.msra.mxu0 %v1391
    %1927 = vmatprep.subr.bf16.mxu0 %v1396
    %1928 = vmatpush1.bf16.msra.mxu0 %v1395
    %1929 = vmatprep.subr.bf16.mxu0 %v1400
    %1930 = vmatpush1.bf16.msra.mxu0 %v1399
    %1931 = vmatprep.subr.bf16.mxu0 %v1404
    %1932 = vmatpush1.bf16.msra.mxu0 %v1403
    %1933 = vmatprep.subr.bf16.mxu0 %v1408
    %1934 = vmatpush1.bf16.msra.mxu0 %v1407
    %1935 = vmatprep.subr.bf16.mxu0 %v1412
    %1936 = vmatpush1.bf16.msra.mxu0 %v1411
    %1937 = vmatprep.subr.bf16.mxu0 %v1416
    %1938 = vmatpush1.bf16.msra.mxu0 %v1415
    %1939 = vmatprep.subr.bf16.mxu0 %v1420
    %1940 = vmatpush1.bf16.msra.mxu0 %v1419
    %1941 = vmatprep.subr.bf16.mxu0 %v1424
    %1942 = vmatpush1.bf16.msra.mxu0 %v1423
    %1943 = vmatprep.subr.bf16.mxu0 %v1428
    %1944 = vmatpush1.bf16.msra.mxu0 %v1427
    %1945 = vmatprep.mubr.bf16.mxu0 %v270
    %1946 = vmatmul.mubr.bf16.gmra.mrb[0].mxu0 %v269
    %v1947 = vpop.f32.mrb[0].mxu0
    %v1948 = vadd.f32 %v1835, %v1947
    %v1949 = vpop.f32.mrb[0].mxu0
    %v1950 = vadd.f32 %v1837, %v1949
    %v1951 = vpop.f32.mrb[0].mxu0
    %v1952 = vadd.f32 %v1839, %v1951
    %v1953 = vpop.f32.mrb[0].mxu0
    %v1954 = vadd.f32 %v1841, %v1953
    %1955 = vmatprep.mubr.bf16.mxu0 %v277
    %1956 = vmatmul.mubr.bf16.gmra.mrb[0].mxu0 %v276
    %v1957 = vpop.f32.mrb[0].mxu0
    %v1958 = vadd.f32 %v1845, %v1957
    %v1959 = vpop.f32.mrb[0].mxu0
    %v1960 = vadd.f32 %v1847, %v1959
    %v1961 = vpop.f32.mrb[0].mxu0
    %v1962 = vadd.f32 %v1849, %v1961
    %v1963 = vpop.f32.mrb[0].mxu0
    %v1964 = vadd.f32 %v1851, %v1963
    %1965 = vmatprep.mubr.bf16.mxu0 %v284
    %1966 = vmatmul.mubr.bf16.gmra.mrb[0].mxu0 %v283
    %v1967 = vpop.f32.mrb[0].mxu0
    %v1968 = vadd.f32 %v1855, %v1967
    %v1969 = vpop.f32.mrb[0].mxu0
    %v1970 = vadd.f32 %v1857, %v1969
    %v1971 = vpop.f32.mrb[0].mxu0
    %v1972 = vadd.f32 %v1859, %v1971
    %v1973 = vpop.f32.mrb[0].mxu0
    %v1974 = vadd.f32 %v1861, %v1973
    %1975 = vmatprep.mubr.bf16.mxu0 %v291
    %1976 = vmatmul.mubr.bf16.gmra.mrb[0].mxu0 %v290
    %v1977 = vpop.f32.mrb[0].mxu0
    %v1978 = vadd.f32 %v1865, %v1977
    %v1979 = vpop.f32.mrb[0].mxu0
    %v1980 = vadd.f32 %v1867, %v1979
    %v1981 = vpop.f32.mrb[0].mxu0
    %v1982 = vadd.f32 %v1869, %v1981
    %v1983 = vpop.f32.mrb[0].mxu0
    %v1984 = vadd.f32 %v1871, %v1983
    %1985 = vmatprep.mubr.bf16.mxu0 %v298
    %1986 = vmatmul.mubr.bf16.gmra.mrb[0].mxu0 %v297
    %v1987 = vpop.f32.mrb[0].mxu0
    %v1988 = vadd.f32 %v1875, %v1987
    %v1989 = vpop.f32.mrb[0].mxu0
    %v1990 = vadd.f32 %v1877, %v1989
    %v1991 = vpop.f32.mrb[0].mxu0
    %v1992 = vadd.f32 %v1879, %v1991
    %v1993 = vpop.f32.mrb[0].mxu0
    %v1994 = vadd.f32 %v1881, %v1993
    %1995 = vmatprep.mubr.bf16.mxu0 %v305
    %1996 = vmatmul.mubr.bf16.gmra.mrb[0].mxu0 %v304
    %v1997 = vpop.f32.mrb[0].mxu0
    %v1998 = vadd.f32 %v1885, %v1997
    %v1999 = vpop.f32.mrb[0].mxu0
    %v2000 = vadd.f32 %v1887, %v1999
    %v2001 = vpop.f32.mrb[0].mxu0
    %v2002 = vadd.f32 %v1889, %v2001
    %v2003 = vpop.f32.mrb[0].mxu0
    %v2004 = vadd.f32 %v1891, %v2003
    %2005 = vmatprep.mubr.bf16.mxu0 %v312
    %2006 = vmatmul.mubr.bf16.gmra.mrb[0].mxu0 %v311
    %v2007 = vpop.f32.mrb[0].mxu0
    %v2008 = vadd.f32 %v1895, %v2007
    %v2009 = vpop.f32.mrb[0].mxu0
    %v2010 = vadd.f32 %v1897, %v2009
    %v2011 = vpop.f32.mrb[0].mxu0
    %v2012 = vadd.f32 %v1899, %v2011
    %v2013 = vpop.f32.mrb[0].mxu0
    %v2014 = vadd.f32 %v1901, %v2013
    %2015 = vmatprep.mubr.bf16.mxu0 %v319
    %2016 = vmatmul.mubr.bf16.gmra.mrb[0].mxu0 %v318
    %v2017 = vpop.f32.mrb[0].mxu0
    %v2018 = vadd.f32 %v1905, %v2017
    %v2019 = vpop.f32.mrb[0].mxu0
    %v2020 = vadd.f32 %v1907, %v2019
    %v2021 = vpop.f32.mrb[0].mxu0
    %v2022 = vadd.f32 %v1909, %v2021
    %v2023 = vpop.f32.mrb[0].mxu0
    %v2024 = vadd.f32 %v1911, %v2023
    %2025 = vdwg.mxu0
    %2026 = vmatprep.subr.bf16.mxu0 %v1432
    %2027 = vmatpush1.bf16.msra.mxu0 %v1431
    %2028 = vmatprep.subr.bf16.mxu0 %v1436
    %2029 = vmatpush1.bf16.msra.mxu0 %v1435
    %2030 = vmatprep.subr.bf16.mxu0 %v1440
    %2031 = vmatpush1.bf16.msra.mxu0 %v1439
    %2032 = vmatprep.subr.bf16.mxu0 %v1444
    %2033 = vmatpush1.bf16.msra.mxu0 %v1443
    %2034 = vmatprep.subr.bf16.mxu0 %v1448
    %2035 = vmatpush1.bf16.msra.mxu0 %v1447
    %2036 = vmatprep.subr.bf16.mxu0 %v1452
    %2037 = vmatpush1.bf16.msra.mxu0 %v1451
    %2038 = vmatprep.subr.bf16.mxu0 %v1456
    %2039 = vmatpush1.bf16.msra.mxu0 %v1455
    %2040 = vmatprep.subr.bf16.mxu0 %v1460
    %2041 = vmatpush1.bf16.msra.mxu0 %v1459
    %2042 = vmatprep.subr.bf16.mxu0 0
    %2043 = vmatpush1.bf16.msra.mxu0 0
    %2044 = vmatprep.subr.bf16.mxu0 0
    %2045 = vmatpush1.bf16.msra.mxu0 0
    %2046 = vmatprep.subr.bf16.mxu0 0
    %2047 = vmatpush1.bf16.msra.mxu0 0
    %2048 = vmatprep.subr.bf16.mxu0 0
    %2049 = vmatpush1.bf16.msra.mxu0 0
    %2050 = vmatprep.subr.bf16.mxu0 0
    %2051 = vmatpush1.bf16.msra.mxu0 0
    %2052 = vmatprep.subr.bf16.mxu0 0
    %2053 = vmatpush1.bf16.msra.mxu0 0
    %2054 = vmatprep.subr.bf16.mxu0 0
    %2055 = vmatpush1.bf16.msra.mxu0 0
    %2056 = vmatprep.subr.bf16.mxu0 0
    %2057 = vmatpush1.bf16.msra.mxu0 0
    %2058 = vmatprep.mubr.bf16.mxu0 0
    %2059 = vmatmul.mubr.bf16.gmra.mrb[0].mxu0 %v271
    %v2060 = vpop.f32.mrb[0].mxu0
    %v2061 = vadd.f32 %v1948, %v2060
    %v2062 = vpop.f32.mrb[0].mxu0
    %v2063 = vadd.f32 %v1950, %v2062
    %v2064 = vpop.f32.mrb[0].mxu0
    %v2065 = vadd.f32 %v1952, %v2064
    %v2066 = vpop.f32.mrb[0].mxu0
    %v2067 = vadd.f32 %v1954, %v2066
    %2068 = vmatprep.mubr.bf16.mxu0 0
    %2069 = vmatmul.mubr.bf16.gmra.mrb[0].mxu0 %v278
    %v2070 = vpop.f32.mrb[0].mxu0
    %v2071 = vadd.f32 %v1958, %v2070
    %v2072 = vpop.f32.mrb[0].mxu0
    %v2073 = vadd.f32 %v1960, %v2072
    %v2074 = vpop.f32.mrb[0].mxu0
    %v2075 = vadd.f32 %v1962, %v2074
    %v2076 = vpop.f32.mrb[0].mxu0
    %v2077 = vadd.f32 %v1964, %v2076
    %2078 = vmatprep.mubr.bf16.mxu0 0
    %2079 = vmatmul.mubr.bf16.gmra.mrb[0].mxu0 %v285
    %v2080 = vpop.f32.mrb[0].mxu0
    %v2081 = vadd.f32 %v1968, %v2080
    %v2082 = vpop.f32.mrb[0].mxu0
    %v2083 = vadd.f32 %v1970, %v2082
    %v2084 = vpop.f32.mrb[0].mxu0
    %v2085 = vadd.f32 %v1972, %v2084
    %v2086 = vpop.f32.mrb[0].mxu0
    %v2087 = vadd.f32 %v1974, %v2086
    %2088 = vmatprep.mubr.bf16.mxu0 0
    %2089 = vmatmul.mubr.bf16.gmra.mrb[0].mxu0 %v292
    %v2090 = vpop.f32.mrb[0].mxu0
    %v2091 = vadd.f32 %v1978, %v2090
    %v2092 = vpop.f32.mrb[0].mxu0
    %v2093 = vadd.f32 %v1980, %v2092
    %v2094 = vpop.f32.mrb[0].mxu0
    %v2095 = vadd.f32 %v1982, %v2094
    %v2096 = vpop.f32.mrb[0].mxu0
    %v2097 = vadd.f32 %v1984, %v2096
    %2098 = vmatprep.mubr.bf16.mxu0 0
    %2099 = vmatmul.mubr.bf16.gmra.mrb[0].mxu0 %v299
    %v2100 = vpop.f32.mrb[0].mxu0
    %v2101 = vadd.f32 %v1988, %v2100
    %v2102 = vpop.f32.mrb[0].mxu0
    %v2103 = vadd.f32 %v1990, %v2102
    %v2104 = vpop.f32.mrb[0].mxu0
    %v2105 = vadd.f32 %v1992, %v2104
    %v2106 = vpop.f32.mrb[0].mxu0
    %v2107 = vadd.f32 %v1994, %v2106
    %2108 = vmatprep.mubr.bf16.mxu0 0
    %2109 = vmatmul.mubr.bf16.gmra.mrb[0].mxu0 %v306
    %v2110 = vpop.f32.mrb[0].mxu0
    %v2111 = vadd.f32 %v1998, %v2110
    %v2112 = vpop.f32.mrb[0].mxu0
    %v2113 = vadd.f32 %v2000, %v2112
    %v2114 = vpop.f32.mrb[0].mxu0
    %v2115 = vadd.f32 %v2002, %v2114
    %v2116 = vpop.f32.mrb[0].mxu0
    %v2117 = vadd.f32 %v2004, %v2116
    %2118 = vmatprep.mubr.bf16.mxu0 0
    %2119 = vmatmul.mubr.bf16.gmra.mrb[0].mxu0 %v313
    %v2120 = vpop.f32.mrb[0].mxu0
    %v2121 = vadd.f32 %v2008, %v2120
    %v2122 = vpop.f32.mrb[0].mxu0
    %v2123 = vadd.f32 %v2010, %v2122
    %v2124 = vpop.f32.mrb[0].mxu0
    %v2125 = vadd.f32 %v2012, %v2124
    %v2126 = vpop.f32.mrb[0].mxu0
    %v2127 = vadd.f32 %v2014, %v2126
    %2128 = vmatprep.mubr.bf16.mxu0 0
    %2129 = vmatmul.mubr.bf16.gmra.mrb[0].mxu0 %v320
    %v2130 = vpop.f32.mrb[0].mxu0
    %v2131 = vadd.f32 %v2018, %v2130
    %v2132 = vpop.f32.mrb[0].mxu0
    %v2133 = vadd.f32 %v2020, %v2132
    %v2134 = vpop.f32.mrb[0].mxu0
    %v2135 = vadd.f32 %v2022, %v2134
    %v2136 = vpop.f32.mrb[0].mxu0
    %v2137 = vadd.f32 %v2024, %v2136
    %2138 = vdwg.mxu0
    %2139 = vmatprep.subr.bf16.mxu0 %v1242
    %2140 = vmatpush1.bf16.msra.mxu0 %v1241
    %2141 = vmatprep.subr.bf16.mxu0 %v1246
    %2142 = vmatpush1.bf16.msra.mxu0 %v1245
    %2143 = vmatprep.subr.bf16.mxu0 %v1250
    %2144 = vmatpush1.bf16.msra.mxu0 %v1249
    %2145 = vmatprep.subr.bf16.mxu0 %v1254
    %2146 = vmatpush1.bf16.msra.mxu0 %v1253
    %2147 = vmatprep.subr.bf16.mxu0 %v1258
    %2148 = vmatpush1.bf16.msra.mxu0 %v1257
    %2149 = vmatprep.subr.bf16.mxu0 %v1262
    %2150 = vmatpush1.bf16.msra.mxu0 %v1261
    %2151 = vmatprep.subr.bf16.mxu0 %v1266
    %2152 = vmatpush1.bf16.msra.mxu0 %v1265
    %2153 = vmatprep.subr.bf16.mxu0 %v1270
    %2154 = vmatpush1.bf16.msra.mxu0 %v1269
    %2155 = vmatprep.subr.bf16.mxu0 %v1274
    %2156 = vmatpush1.bf16.msra.mxu0 %v1273
    %2157 = vmatprep.subr.bf16.mxu0 %v1278
    %2158 = vmatpush1.bf16.msra.mxu0 %v1277
    %2159 = vmatprep.subr.bf16.mxu0 %v1282
    %2160 = vmatpush1.bf16.msra.mxu0 %v1281
    %2161 = vmatprep.subr.bf16.mxu0 %v1286
    %2162 = vmatpush1.bf16.msra.mxu0 %v1285
    %2163 = vmatprep.subr.bf16.mxu0 %v1290
    %2164 = vmatpush1.bf16.msra.mxu0 %v1289
    %2165 = vmatprep.subr.bf16.mxu0 %v1294
    %2166 = vmatpush1.bf16.msra.mxu0 %v1293
    %2167 = vmatprep.subr.bf16.mxu0 %v1298
    %2168 = vmatpush1.bf16.msra.mxu0 %v1297
    %2169 = vmatprep.subr.bf16.mxu0 %v1302
    %2170 = vmatpush1.bf16.msra.mxu0 %v1301
    %2171 = vmatprep.mubr.bf16.mxu0 %v266
    %2172 = vmatmul.mubr.bf16.gmra.mrb[0].mxu0 %v265
    %v2173 = vpop.f32.mrb[0].mxu0
    %v2174 = vadd.f32 %v558, %v2173
    %v2175 = vpop.f32.mrb[0].mxu0
    %v2176 = vadd.f32 %v562, %v2175
    %v2177 = vpop.f32.mrb[0].mxu0
    %v2178 = vadd.f32 %v558, %v2177
    %v2179 = vpop.f32.mrb[0].mxu0
    %v2180 = vadd.f32 %v562, %v2179
    %2181 = vmatprep.mubr.bf16.mxu0 %v273
    %2182 = vmatmul.mubr.bf16.gmra.mrb[0].mxu0 %v272
    %v2183 = vpop.f32.mrb[0].mxu0
    %v2184 = vadd.f32 %v558, %v2183
    %v2185 = vpop.f32.mrb[0].mxu0
    %v2186 = vadd.f32 %v562, %v2185
    %v2187 = vpop.f32.mrb[0].mxu0
    %v2188 = vadd.f32 %v558, %v2187
    %v2189 = vpop.f32.mrb[0].mxu0
    %v2190 = vadd.f32 %v562, %v2189
    %2191 = vmatprep.mubr.bf16.mxu0 %v280
    %2192 = vmatmul.mubr.bf16.gmra.mrb[0].mxu0 %v279
    %v2193 = vpop.f32.mrb[0].mxu0
    %v2194 = vadd.f32 %v558, %v2193
    %v2195 = vpop.f32.mrb[0].mxu0
    %v2196 = vadd.f32 %v562, %v2195
    %v2197 = vpop.f32.mrb[0].mxu0
    %v2198 = vadd.f32 %v558, %v2197
    %v2199 = vpop.f32.mrb[0].mxu0
    %v2200 = vadd.f32 %v562, %v2199
    %2201 = vmatprep.mubr.bf16.mxu0 %v287
    %2202 = vmatmul.mubr.bf16.gmra.mrb[0].mxu0 %v286
    %v2203 = vpop.f32.mrb[0].mxu0
    %v2204 = vadd.f32 %v558, %v2203
    %v2205 = vpop.f32.mrb[0].mxu0
    %v2206 = vadd.f32 %v562, %v2205
    %v2207 = vpop.f32.mrb[0].mxu0
    %v2208 = vadd.f32 %v558, %v2207
    %v2209 = vpop.f32.mrb[0].mxu0
    %v2210 = vadd.f32 %v562, %v2209
    %2211 = vmatprep.mubr.bf16.mxu0 %v294
    %2212 = vmatmul.mubr.bf16.gmra.mrb[0].mxu0 %v293
    %v2213 = vpop.f32.mrb[0].mxu0
    %v2214 = vadd.f32 %v558, %v2213
    %v2215 = vpop.f32.mrb[0].mxu0
    %v2216 = vadd.f32 %v562, %v2215
    %v2217 = vpop.f32.mrb[0].mxu0
    %v2218 = vadd.f32 %v558, %v2217
    %v2219 = vpop.f32.mrb[0].mxu0
    %v2220 = vadd.f32 %v562, %v2219
    %2221 = vmatprep.mubr.bf16.mxu0 %v301
    %2222 = vmatmul.mubr.bf16.gmra.mrb[0].mxu0 %v300
    %v2223 = vpop.f32.mrb[0].mxu0
    %v2224 = vadd.f32 %v558, %v2223
    %v2225 = vpop.f32.mrb[0].mxu0
    %v2226 = vadd.f32 %v562, %v2225
    %v2227 = vpop.f32.mrb[0].mxu0
    %v2228 = vadd.f32 %v558, %v2227
    %v2229 = vpop.f32.mrb[0].mxu0
    %v2230 = vadd.f32 %v562, %v2229
    %2231 = vmatprep.mubr.bf16.mxu0 %v308
    %2232 = vmatmul.mubr.bf16.gmra.mrb[0].mxu0 %v307
    %v2233 = vpop.f32.mrb[0].mxu0
    %v2234 = vadd.f32 %v558, %v2233
    %v2235 = vpop.f32.mrb[0].mxu0
    %v2236 = vadd.f32 %v562, %v2235
    %v2237 = vpop.f32.mrb[0].mxu0
    %v2238 = vadd.f32 %v558, %v2237
    %v2239 = vpop.f32.mrb[0].mxu0
    %v2240 = vadd.f32 %v562, %v2239
    %2241 = vmatprep.mubr.bf16.mxu0 %v315
    %2242 = vmatmul.mubr.bf16.gmra.mrb[0].mxu0 %v314
    %v2243 = vpop.f32.mrb[0].mxu0
    %v2244 = vadd.f32 %v558, %v2243
    %v2245 = vpop.f32.mrb[0].mxu0
    %v2246 = vadd.f32 %v562, %v2245
    %v2247 = vpop.f32.mrb[0].mxu0
    %v2248 = vadd.f32 %v558, %v2247
    %v2249 = vpop.f32.mrb[0].mxu0
    %v2250 = vadd.f32 %v562, %v2249
    %2251 = vdwg.mxu0
    %2252 = vmatprep.subr.bf16.mxu0 %v1306
    %2253 = vmatpush1.bf16.msra.mxu0 %v1305
    %2254 = vmatprep.subr.bf16.mxu0 %v1310
    %2255 = vmatpush1.bf16.msra.mxu0 %v1309
    %2256 = vmatprep.subr.bf16.mxu0 %v1314
    %2257 = vmatpush1.bf16.msra.mxu0 %v1313
    %2258 = vmatprep.subr.bf16.mxu0 %v1318
    %2259 = vmatpush1.bf16.msra.mxu0 %v1317
    %2260 = vmatprep.subr.bf16.mxu0 %v1322
    %2261 = vmatpush1.bf16.msra.mxu0 %v1321
    %2262 = vmatprep.subr.bf16.mxu0 %v1326
    %2263 = vmatpush1.bf16.msra.mxu0 %v1325
    %2264 = vmatprep.subr.bf16.mxu0 %v1330
    %2265 = vmatpush1.bf16.msra.mxu0 %v1329
    %2266 = vmatprep.subr.bf16.mxu0 %v1334
    %2267 = vmatpush1.bf16.msra.mxu0 %v1333
    %2268 = vmatprep.subr.bf16.mxu0 %v1338
    %2269 = vmatpush1.bf16.msra.mxu0 %v1337
    %2270 = vmatprep.subr.bf16.mxu0 %v1342
    %2271 = vmatpush1.bf16.msra.mxu0 %v1341
    %2272 = vmatprep.subr.bf16.mxu0 %v1346
    %2273 = vmatpush1.bf16.msra.mxu0 %v1345
    %2274 = vmatprep.subr.bf16.mxu0 %v1350
    %2275 = vmatpush1.bf16.msra.mxu0 %v1349
    %2276 = vmatprep.subr.bf16.mxu0 %v1354
    %2277 = vmatpush1.bf16.msra.mxu0 %v1353
    %2278 = vmatprep.subr.bf16.mxu0 %v1358
    %2279 = vmatpush1.bf16.msra.mxu0 %v1357
    %2280 = vmatprep.subr.bf16.mxu0 %v1362
    %2281 = vmatpush1.bf16.msra.mxu0 %v1361
    %2282 = vmatprep.subr.bf16.mxu0 %v1366
    %2283 = vmatpush1.bf16.msra.mxu0 %v1365
    %2284 = vmatprep.mubr.bf16.mxu0 %v268
    %2285 = vmatmul.mubr.bf16.gmra.mrb[0].mxu0 %v267
    %v2286 = vpop.f32.mrb[0].mxu0
    %v2287 = vadd.f32 %v2174, %v2286
    %v2288 = vpop.f32.mrb[0].mxu0
    %v2289 = vadd.f32 %v2176, %v2288
    %v2290 = vpop.f32.mrb[0].mxu0
    %v2291 = vadd.f32 %v2178, %v2290
    %v2292 = vpop.f32.mrb[0].mxu0
    %v2293 = vadd.f32 %v2180, %v2292
    %2294 = vmatprep.mubr.bf16.mxu0 %v275
    %2295 = vmatmul.mubr.bf16.gmra.mrb[0].mxu0 %v274
    %v2296 = vpop.f32.mrb[0].mxu0
    %v2297 = vadd.f32 %v2184, %v2296
    %v2298 = vpop.f32.mrb[0].mxu0
    %v2299 = vadd.f32 %v2186, %v2298
    %v2300 = vpop.f32.mrb[0].mxu0
    %v2301 = vadd.f32 %v2188, %v2300
    %v2302 = vpop.f32.mrb[0].mxu0
    %v2303 = vadd.f32 %v2190, %v2302
    %2304 = vmatprep.mubr.bf16.mxu0 %v282
    %2305 = vmatmul.mubr.bf16.gmra.mrb[0].mxu0 %v281
    %v2306 = vpop.f32.mrb[0].mxu0
    %v2307 = vadd.f32 %v2194, %v2306
    %v2308 = vpop.f32.mrb[0].mxu0
    %v2309 = vadd.f32 %v2196, %v2308
    %v2310 = vpop.f32.mrb[0].mxu0
    %v2311 = vadd.f32 %v2198, %v2310
    %v2312 = vpop.f32.mrb[0].mxu0
    %v2313 = vadd.f32 %v2200, %v2312
    %2314 = vmatprep.mubr.bf16.mxu0 %v289
    %2315 = vmatmul.mubr.bf16.gmra.mrb[0].mxu0 %v288
    %v2316 = vpop.f32.mrb[0].mxu0
    %v2317 = vadd.f32 %v2204, %v2316
    %v2318 = vpop.f32.mrb[0].mxu0
    %v2319 = vadd.f32 %v2206, %v2318
    %v2320 = vpop.f32.mrb[0].mxu0
    %v2321 = vadd.f32 %v2208, %v2320
    %v2322 = vpop.f32.mrb[0].mxu0
    %v2323 = vadd.f32 %v2210, %v2322
    %2324 = vmatprep.mubr.bf16.mxu0 %v296
    %2325 = vmatmul.mubr.bf16.gmra.mrb[0].mxu0 %v295
    %v2326 = vpop.f32.mrb[0].mxu0
    %v2327 = vadd.f32 %v2214, %v2326
    %v2328 = vpop.f32.mrb[0].mxu0
    %v2329 = vadd.f32 %v2216, %v2328
    %v2330 = vpop.f32.mrb[0].mxu0
    %v2331 = vadd.f32 %v2218, %v2330
    %v2332 = vpop.f32.mrb[0].mxu0
    %v2333 = vadd.f32 %v2220, %v2332
    %2334 = vmatprep.mubr.bf16.mxu0 %v303
    %2335 = vmatmul.mubr.bf16.gmra.mrb[0].mxu0 %v302
    %v2336 = vpop.f32.mrb[0].mxu0
    %v2337 = vadd.f32 %v2224, %v2336
    %v2338 = vpop.f32.mrb[0].mxu0
    %v2339 = vadd.f32 %v2226, %v2338
    %v2340 = vpop.f32.mrb[0].mxu0
    %v2341 = vadd.f32 %v2228, %v2340
    %v2342 = vpop.f32.mrb[0].mxu0
    %v2343 = vadd.f32 %v2230, %v2342
    %2344 = vmatprep.mubr.bf16.mxu0 %v310
    %2345 = vmatmul.mubr.bf16.gmra.mrb[0].mxu0 %v309
    %v2346 = vpop.f32.mrb[0].mxu0
    %v2347 = vadd.f32 %v2234, %v2346
    %v2348 = vpop.f32.mrb[0].mxu0
    %v2349 = vadd.f32 %v2236, %v2348
    %v2350 = vpop.f32.mrb[0].mxu0
    %v2351 = vadd.f32 %v2238, %v2350
    %v2352 = vpop.f32.mrb[0].mxu0
    %v2353 = vadd.f32 %v2240, %v2352
    %2354 = vmatprep.mubr.bf16.mxu0 %v317
    %2355 = vmatmul.mubr.bf16.gmra.mrb[0].mxu0 %v316
    %v2356 = vpop.f32.mrb[0].mxu0
    %v2357 = vadd.f32 %v2244, %v2356
    %v2358 = vpop.f32.mrb[0].mxu0
    %v2359 = vadd.f32 %v2246, %v2358
    %v2360 = vpop.f32.mrb[0].mxu0
    %v2361 = vadd.f32 %v2248, %v2360
    %v2362 = vpop.f32.mrb[0].mxu0
    %v2363 = vadd.f32 %v2250, %v2362
    %2364 = vdwg.mxu0
    %2365 = vmatprep.subr.bf16.mxu0 %v1370
    %2366 = vmatpush1.bf16.msra.mxu0 %v1369
    %2367 = vmatprep.subr.bf16.mxu0 %v1374
    %2368 = vmatpush1.bf16.msra.mxu0 %v1373
    %2369 = vmatprep.subr.bf16.mxu0 %v1378
    %2370 = vmatpush1.bf16.msra.mxu0 %v1377
    %2371 = vmatprep.subr.bf16.mxu0 %v1382
    %2372 = vmatpush1.bf16.msra.mxu0 %v1381
    %2373 = vmatprep.subr.bf16.mxu0 %v1386
    %2374 = vmatpush1.bf16.msra.mxu0 %v1385
    %2375 = vmatprep.subr.bf16.mxu0 %v1390
    %2376 = vmatpush1.bf16.msra.mxu0 %v1389
    %2377 = vmatprep.subr.bf16.mxu0 %v1394
    %2378 = vmatpush1.bf16.msra.mxu0 %v1393
    %2379 = vmatprep.subr.bf16.mxu0 %v1398
    %2380 = vmatpush1.bf16.msra.mxu0 %v1397
    %2381 = vmatprep.subr.bf16.mxu0 %v1402
    %2382 = vmatpush1.bf16.msra.mxu0 %v1401
    %2383 = vmatprep.subr.bf16.mxu0 %v1406
    %2384 = vmatpush1.bf16.msra.mxu0 %v1405
    %2385 = vmatprep.subr.bf16.mxu0 %v1410
    %2386 = vmatpush1.bf16.msra.mxu0 %v1409
    %2387 = vmatprep.subr.bf16.mxu0 %v1414
    %2388 = vmatpush1.bf16.msra.mxu0 %v1413
    %2389 = vmatprep.subr.bf16.mxu0 %v1418
    %2390 = vmatpush1.bf16.msra.mxu0 %v1417
    %2391 = vmatprep.subr.bf16.mxu0 %v1422
    %2392 = vmatpush1.bf16.msra.mxu0 %v1421
    %2393 = vmatprep.subr.bf16.mxu0 %v1426
    %2394 = vmatpush1.bf16.msra.mxu0 %v1425
    %2395 = vmatprep.subr.bf16.mxu0 %v1430
    %2396 = vmatpush1.bf16.msra.mxu0 %v1429
    %2397 = vmatprep.mubr.bf16.mxu0 %v270
    %2398 = vmatmul.mubr.bf16.gmra.mrb[0].mxu0 %v269
    %v2399 = vpop.f32.mrb[0].mxu0
    %v2400 = vadd.f32 %v2287, %v2399
    %v2401 = vpop.f32.mrb[0].mxu0
    %v2402 = vadd.f32 %v2289, %v2401
    %v2403 = vpop.f32.mrb[0].mxu0
    %v2404 = vadd.f32 %v2291, %v2403
    %v2405 = vpop.f32.mrb[0].mxu0
    %v2406 = vadd.f32 %v2293, %v2405
    %2407 = vmatprep.mubr.bf16.mxu0 %v277
    %2408 = vmatmul.mubr.bf16.gmra.mrb[0].mxu0 %v276
    %v2409 = vpop.f32.mrb[0].mxu0
    %v2410 = vadd.f32 %v2297, %v2409
    %v2411 = vpop.f32.mrb[0].mxu0
    %v2412 = vadd.f32 %v2299, %v2411
    %v2413 = vpop.f32.mrb[0].mxu0
    %v2414 = vadd.f32 %v2301, %v2413
    %v2415 = vpop.f32.mrb[0].mxu0
    %v2416 = vadd.f32 %v2303, %v2415
    %2417 = vmatprep.mubr.bf16.mxu0 %v284
    %2418 = vmatmul.mubr.bf16.gmra.mrb[0].mxu0 %v283
    %v2419 = vpop.f32.mrb[0].mxu0
    %v2420 = vadd.f32 %v2307, %v2419
    %v2421 = vpop.f32.mrb[0].mxu0
    %v2422 = vadd.f32 %v2309, %v2421
    %v2423 = vpop.f32.mrb[0].mxu0
    %v2424 = vadd.f32 %v2311, %v2423
    %v2425 = vpop.f32.mrb[0].mxu0
    %v2426 = vadd.f32 %v2313, %v2425
    %2427 = vmatprep.mubr.bf16.mxu0 %v291
    %2428 = vmatmul.mubr.bf16.gmra.mrb[0].mxu0 %v290
    %v2429 = vpop.f32.mrb[0].mxu0
    %v2430 = vadd.f32 %v2317, %v2429
    %v2431 = vpop.f32.mrb[0].mxu0
    %v2432 = vadd.f32 %v2319, %v2431
    %v2433 = vpop.f32.mrb[0].mxu0
    %v2434 = vadd.f32 %v2321, %v2433
    %v2435 = vpop.f32.mrb[0].mxu0
    %v2436 = vadd.f32 %v2323, %v2435
    %2437 = vmatprep.mubr.bf16.mxu0 %v298
    %2438 = vmatmul.mubr.bf16.gmra.mrb[0].mxu0 %v297
    %v2439 = vpop.f32.mrb[0].mxu0
    %v2440 = vadd.f32 %v2327, %v2439
    %v2441 = vpop.f32.mrb[0].mxu0
    %v2442 = vadd.f32 %v2329, %v2441
    %v2443 = vpop.f32.mrb[0].mxu0
    %v2444 = vadd.f32 %v2331, %v2443
    %v2445 = vpop.f32.mrb[0].mxu0
    %v2446 = vadd.f32 %v2333, %v2445
    %2447 = vmatprep.mubr.bf16.mxu0 %v305
    %2448 = vmatmul.mubr.bf16.gmra.mrb[0].mxu0 %v304
    %v2449 = vpop.f32.mrb[0].mxu0
    %v2450 = vadd.f32 %v2337, %v2449
    %v2451 = vpop.f32.mrb[0].mxu0
    %v2452 = vadd.f32 %v2339, %v2451
    %v2453 = vpop.f32.mrb[0].mxu0
    %v2454 = vadd.f32 %v2341, %v2453
    %v2455 = vpop.f32.mrb[0].mxu0
    %v2456 = vadd.f32 %v2343, %v2455
    %2457 = vmatprep.mubr.bf16.mxu0 %v312
    %2458 = vmatmul.mubr.bf16.gmra.mrb[0].mxu0 %v311
    %v2459 = vpop.f32.mrb[0].mxu0
    %v2460 = vadd.f32 %v2347, %v2459
    %v2461 = vpop.f32.mrb[0].mxu0
    %v2462 = vadd.f32 %v2349, %v2461
    %v2463 = vpop.f32.mrb[0].mxu0
    %v2464 = vadd.f32 %v2351, %v2463
    %v2465 = vpop.f32.mrb[0].mxu0
    %v2466 = vadd.f32 %v2353, %v2465
    %2467 = vmatprep.mubr.bf16.mxu0 %v319
    %2468 = vmatmul.mubr.bf16.gmra.mrb[0].mxu0 %v318
    %v2469 = vpop.f32.mrb[0].mxu0
    %v2470 = vadd.f32 %v2357, %v2469
    %v2471 = vpop.f32.mrb[0].mxu0
    %v2472 = vadd.f32 %v2359, %v2471
    %v2473 = vpop.f32.mrb[0].mxu0
    %v2474 = vadd.f32 %v2361, %v2473
    %v2475 = vpop.f32.mrb[0].mxu0
    %v2476 = vadd.f32 %v2363, %v2475
    %2477 = vdwg.mxu0
    %2478 = vmatprep.subr.bf16.mxu0 %v1434
    %2479 = vmatpush1.bf16.msra.mxu0 %v1433
    %2480 = vmatprep.subr.bf16.mxu0 %v1438
    %2481 = vmatpush1.bf16.msra.mxu0 %v1437
    %2482 = vmatprep.subr.bf16.mxu0 %v1442
    %2483 = vmatpush1.bf16.msra.mxu0 %v1441
    %2484 = vmatprep.subr.bf16.mxu0 %v1446
    %2485 = vmatpush1.bf16.msra.mxu0 %v1445
    %2486 = vmatprep.subr.bf16.mxu0 %v1450
    %2487 = vmatpush1.bf16.msra.mxu0 %v1449
    %2488 = vmatprep.subr.bf16.mxu0 %v1454
    %2489 = vmatpush1.bf16.msra.mxu0 %v1453
    %2490 = vmatprep.subr.bf16.mxu0 %v1458
    %2491 = vmatpush1.bf16.msra.mxu0 %v1457
    %2492 = vmatprep.subr.bf16.mxu0 %v1462
    %2493 = vmatpush1.bf16.msra.mxu0 %v1461
    %2494 = vmatprep.subr.bf16.mxu0 0
    %2495 = vmatpush1.bf16.msra.mxu0 0
    %2496 = vmatprep.subr.bf16.mxu0 0
    %2497 = vmatpush1.bf16.msra.mxu0 0
    %2498 = vmatprep.subr.bf16.mxu0 0
    %2499 = vmatpush1.bf16.msra.mxu0 0
    %2500 = vmatprep.subr.bf16.mxu0 0
    %2501 = vmatpush1.bf16.msra.mxu0 0
    %2502 = vmatprep.subr.bf16.mxu0 0
    %2503 = vmatpush1.bf16.msra.mxu0 0
    %2504 = vmatprep.subr.bf16.mxu0 0
    %2505 = vmatpush1.bf16.msra.mxu0 0
    %2506 = vmatprep.subr.bf16.mxu0 0
    %2507 = vmatpush1.bf16.msra.mxu0 0
    %2508 = vmatprep.subr.bf16.mxu0 0
    %2509 = vmatpush1.bf16.msra.mxu0 0
    %2510 = vmatprep.mubr.bf16.mxu0 0
    %2511 = vmatmul.mubr.bf16.gmra.mrb[0].mxu0 %v271
    %v2512 = vpop.f32.mrb[0].mxu0
    %v2513 = vadd.f32 %v2400, %v2512
    %v2514 = vpop.f32.mrb[0].mxu0
    %v2515 = vadd.f32 %v2402, %v2514
    %v2516 = vpop.f32.mrb[0].mxu0
    %v2517 = vadd.f32 %v2404, %v2516
    %v2518 = vpop.f32.mrb[0].mxu0
    %v2519 = vadd.f32 %v2406, %v2518
    %2520 = vmatprep.mubr.bf16.mxu0 0
    %2521 = vmatmul.mubr.bf16.gmra.mrb[0].mxu0 %v278
    %v2522 = vpop.f32.mrb[0].mxu0
    %v2523 = vadd.f32 %v2410, %v2522
    %v2524 = vpop.f32.mrb[0].mxu0
    %v2525 = vadd.f32 %v2412, %v2524
    %v2526 = vpop.f32.mrb[0].mxu0
    %v2527 = vadd.f32 %v2414, %v2526
    %v2528 = vpop.f32.mrb[0].mxu0
    %v2529 = vadd.f32 %v2416, %v2528
    %2530 = vmatprep.mubr.bf16.mxu0 0
    %2531 = vmatmul.mubr.bf16.gmra.mrb[0].mxu0 %v285
    %v2532 = vpop.f32.mrb[0].mxu0
    %v2533 = vadd.f32 %v2420, %v2532
    %v2534 = vpop.f32.mrb[0].mxu0
    %v2535 = vadd.f32 %v2422, %v2534
    %v2536 = vpop.f32.mrb[0].mxu0
    %v2537 = vadd.f32 %v2424, %v2536
    %v2538 = vpop.f32.mrb[0].mxu0
    %v2539 = vadd.f32 %v2426, %v2538
    %2540 = vmatprep.mubr.bf16.mxu0 0
    %2541 = vmatmul.mubr.bf16.gmra.mrb[0].mxu0 %v292
    %v2542 = vpop.f32.mrb[0].mxu0
    %v2543 = vadd.f32 %v2430, %v2542
    %v2544 = vpop.f32.mrb[0].mxu0
    %v2545 = vadd.f32 %v2432, %v2544
    %v2546 = vpop.f32.mrb[0].mxu0
    %v2547 = vadd.f32 %v2434, %v2546
    %v2548 = vpop.f32.mrb[0].mxu0
    %v2549 = vadd.f32 %v2436, %v2548
    %2550 = vmatprep.mubr.bf16.mxu0 0
    %2551 = vmatmul.mubr.bf16.gmra.mrb[0].mxu0 %v299
    %v2552 = vpop.f32.mrb[0].mxu0
    %v2553 = vadd.f32 %v2440, %v2552
    %v2554 = vpop.f32.mrb[0].mxu0
    %v2555 = vadd.f32 %v2442, %v2554
    %v2556 = vpop.f32.mrb[0].mxu0
    %v2557 = vadd.f32 %v2444, %v2556
    %v2558 = vpop.f32.mrb[0].mxu0
    %v2559 = vadd.f32 %v2446, %v2558
    %2560 = vmatprep.mubr.bf16.mxu0 0
    %2561 = vmatmul.mubr.bf16.gmra.mrb[0].mxu0 %v306
    %v2562 = vpop.f32.mrb[0].mxu0
    %v2563 = vadd.f32 %v2450, %v2562
    %v2564 = vpop.f32.mrb[0].mxu0
    %v2565 = vadd.f32 %v2452, %v2564
    %v2566 = vpop.f32.mrb[0].mxu0
    %v2567 = vadd.f32 %v2454, %v2566
    %v2568 = vpop.f32.mrb[0].mxu0
    %v2569 = vadd.f32 %v2456, %v2568
    %2570 = vmatprep.mubr.bf16.mxu0 0
    %2571 = vmatmul.mubr.bf16.gmra.mrb[0].mxu0 %v313
    %v2572 = vpop.f32.mrb[0].mxu0
    %v2573 = vadd.f32 %v2460, %v2572
    %v2574 = vpop.f32.mrb[0].mxu0
    %v2575 = vadd.f32 %v2462, %v2574
    %v2576 = vpop.f32.mrb[0].mxu0
    %v2577 = vadd.f32 %v2464, %v2576
    %v2578 = vpop.f32.mrb[0].mxu0
    %v2579 = vadd.f32 %v2466, %v2578
    %2580 = vmatprep.mubr.bf16.mxu0 0
    %2581 = vmatmul.mubr.bf16.gmra.mrb[0].mxu0 %v320
    %v2582 = vpop.f32.mrb[0].mxu0
    %v2583 = vadd.f32 %v2470, %v2582
    %v2584 = vpop.f32.mrb[0].mxu0
    %v2585 = vadd.f32 %v2472, %v2584
    %v2586 = vpop.f32.mrb[0].mxu0
    %v2587 = vadd.f32 %v2474, %v2586
    %v2588 = vpop.f32.mrb[0].mxu0
    %v2589 = vadd.f32 %v2476, %v2588
    %2590 = vdwg.mxu0
    %v2591 = vpack.c.bf16 %v2065, %v2061
    %v2592 = vpack.c.bf16 %v2067, %v2063
    %v2593 = vpack.c.bf16 %v2517, %v2513
    %v2594 = vpack.c.bf16 %v2519, %v2515
    %v2595 = vpack.c.bf16 %v2075, %v2071
    %v2596 = vpack.c.bf16 %v2077, %v2073
    %v2597 = vpack.c.bf16 %v2527, %v2523
    %v2598 = vpack.c.bf16 %v2529, %v2525
    %v2599 = vpack.c.bf16 %v2085, %v2081
    %v2600 = vpack.c.bf16 %v2087, %v2083
    %v2601 = vpack.c.bf16 %v2537, %v2533
    %v2602 = vpack.c.bf16 %v2539, %v2535
    %v2603 = vpack.c.bf16 %v2095, %v2091
    %v2604 = vpack.c.bf16 %v2097, %v2093
    %v2605 = vpack.c.bf16 %v2547, %v2543
    %v2606 = vpack.c.bf16 %v2549, %v2545
    %v2607 = vpack.c.bf16 %v2105, %v2101
    %v2608 = vpack.c.bf16 %v2107, %v2103
    %v2609 = vpack.c.bf16 %v2557, %v2553
    %v2610 = vpack.c.bf16 %v2559, %v2555
    %v2611 = vpack.c.bf16 %v2115, %v2111
    %v2612 = vpack.c.bf16 %v2117, %v2113
    %v2613 = vpack.c.bf16 %v2567, %v2563
    %v2614 = vpack.c.bf16 %v2569, %v2565
    %v2615 = vpack.c.bf16 %v2125, %v2121
    %v2616 = vpack.c.bf16 %v2127, %v2123
    %v2617 = vpack.c.bf16 %v2577, %v2573
    %v2618 = vpack.c.bf16 %v2579, %v2575
    %v2619 = vpack.c.bf16 %v2135, %v2131
    %v2620 = vpack.c.bf16 %v2137, %v2133
    %v2621 = vpack.c.bf16 %v2587, %v2583
    %v2622 = vpack.c.bf16 %v2589, %v2585
    %v2623 = vld [vmem:[#allocation7] sm:$0xff]
    %v2624 = vld [vmem:[#allocation7 + $0x8] sm:$0xff]
    %v2625 = vld [vmem:[#allocation7 + $0x10] sm:$0xff]
    %v2626 = vld [vmem:[#allocation7 + $0x18] sm:$0xff]
    %v2627 = vld [vmem:[#allocation7 + $0x20] sm:$0xff]
    %v2628 = vld [vmem:[#allocation7 + $0x28] sm:$0xff]
    %v2629 = vld [vmem:[#allocation7 + $0x30] sm:$0xff]
    %v2630 = vld [vmem:[#allocation7 + $0x38] sm:$0xff]
    %v2631 = vld [vmem:[#allocation7 + $0x40] sm:$0xff]
    %v2632 = vld [vmem:[#allocation7 + $0x48] sm:$0xff]
    %v2633 = vld [vmem:[#allocation7 + $0x50] sm:$0xff]
    %v2634 = vld [vmem:[#allocation7 + $0x58] sm:$0xff]
    %v2635 = vld [vmem:[#allocation7 + $0x60] sm:$0xff]
    %v2636 = vld [vmem:[#allocation7 + $0x68] sm:$0xff]
    %v2637 = vld [vmem:[#allocation7 + $0x70] sm:$0xff]
    %v2638 = vld [vmem:[#allocation7 + $0x78] sm:$0xff]
    %v2639 = vld [vmem:[#allocation7 + $0x80] sm:$0xff]
    %v2640 = vld [vmem:[#allocation7 + $0x88] sm:$0xff]
    %v2641 = vld [vmem:[#allocation7 + $0x90] sm:$0xff]
    %v2642 = vld [vmem:[#allocation7 + $0x98] sm:$0xff]
    %v2643 = vld [vmem:[#allocation7 + $0xa0] sm:$0xff]
    %v2644 = vld [vmem:[#allocation7 + $0xa8] sm:$0xff]
    %v2645 = vld [vmem:[#allocation7 + $0xb0] sm:$0xff]
    %v2646 = vld [vmem:[#allocation7 + $0xb8] sm:$0xff]
    %v2647 = vld [vmem:[#allocation7 + $0xc0] sm:$0xff]
    %v2648 = vld [vmem:[#allocation7 + $0xc8] sm:$0xff]
    %v2649 = vld [vmem:[#allocation7 + $0xd0] sm:$0xff]
    %v2650 = vld [vmem:[#allocation7 + $0xd8] sm:$0xff]
    %v2651 = vld [vmem:[#allocation7 + $0xe0] sm:$0xff]
    %v2652 = vld [vmem:[#allocation7 + $0xe8] sm:$0xff]
    %v2653 = vld [vmem:[#allocation7 + $0xf0] sm:$0xff]
    %v2654 = vld [vmem:[#allocation7 + $0xf8] sm:$0xff]
    %v2655 = vld [vmem:[#allocation7 + $0x100] sm:$0xff]
    %v2656 = vld [vmem:[#allocation7 + $0x108] sm:$0xff]
    %v2657 = vld [vmem:[#allocation7 + $0x110] sm:$0xff]
    %v2658 = vld [vmem:[#allocation7 + $0x118] sm:$0xff]
    %v2659 = vld [vmem:[#allocation7 + $0x120] sm:$0xff]
    %v2660 = vld [vmem:[#allocation7 + $0x128] sm:$0xff]
    %v2661 = vld [vmem:[#allocation7 + $0x130] sm:$0xff]
    %v2662 = vld [vmem:[#allocation7 + $0x138] sm:$0xff]
    %v2663 = vld [vmem:[#allocation7 + $0x140] sm:$0xff]
    %v2664 = vld [vmem:[#allocation7 + $0x148] sm:$0xff]
    %v2665 = vld [vmem:[#allocation7 + $0x150] sm:$0xff]
    %v2666 = vld [vmem:[#allocation7 + $0x158] sm:$0xff]
    %v2667 = vld [vmem:[#allocation7 + $0x160] sm:$0xff]
    %v2668 = vld [vmem:[#allocation7 + $0x168] sm:$0xff]
    %v2669 = vld [vmem:[#allocation7 + $0x170] sm:$0xff]
    %v2670 = vld [vmem:[#allocation7 + $0x178] sm:$0xff]
    %v2671 = vld [vmem:[#allocation7 + $0x180] sm:$0xff]
    %v2672 = vld [vmem:[#allocation7 + $0x188] sm:$0xff]
    %v2673 = vld [vmem:[#allocation7 + $0x190] sm:$0xff]
    %v2674 = vld [vmem:[#allocation7 + $0x198] sm:$0xff]
    %v2675 = vld [vmem:[#allocation7 + $0x1a0] sm:$0xff]
    %v2676 = vld [vmem:[#allocation7 + $0x1a8] sm:$0xff]
    %v2677 = vld [vmem:[#allocation7 + $0x1b0] sm:$0xff]
    %v2678 = vld [vmem:[#allocation7 + $0x1b8] sm:$0xff]
    %v2679 = vld [vmem:[#allocation7 + $0x1c0] sm:$0xff]
    %v2680 = vld [vmem:[#allocation7 + $0x1c8] sm:$0xff]
    %v2681 = vld [vmem:[#allocation7 + $0x1d0] sm:$0xff]
    %v2682 = vld [vmem:[#allocation7 + $0x1d8] sm:$0xff]
    %v2683 = vld [vmem:[#allocation7 + $0x1e0] sm:$0xff]
    %v2684 = vld [vmem:[#allocation7 + $0x1e8] sm:$0xff]
    %v2685 = vld [vmem:[#allocation7 + $0x1f0] sm:$0xff]
    %v2686 = vld [vmem:[#allocation7 + $0x1f8] sm:$0xff]
    %v2687 = vld [vmem:[#allocation8] sm:$0x3]
    %v2689 = vlaneseq
    %v2690 = vshrl.u32 %v2689, 7
    %v2691 = vsub.s32 0, %v2690
    %v2692 = vrot.slane %v2687, %v2691
    %v2693 = vlaneseq
    %v2694 = vshrl.u32 %v2693, 7
    %v2695 = vsub.s32 1, %v2694
    %v2696 = vrot.slane %v2687, %v2695
    %v2763 = vunpack.c.l.b16 %v2623
    %v2764 = vunpack.c.h.b16 %v2623
    %v2765 = vunpack.c.l.b16 %v2624
    %v2766 = vunpack.c.h.b16 %v2624
    %v2767 = vunpack.c.l.b16 %v2625
    %v2768 = vunpack.c.h.b16 %v2625
    %v2769 = vunpack.c.l.b16 %v2626
    %v2770 = vunpack.c.h.b16 %v2626
    %v2771 = vunpack.c.l.b16 %v2627
    %v2772 = vunpack.c.h.b16 %v2627
    %v2773 = vunpack.c.l.b16 %v2628
    %v2774 = vunpack.c.h.b16 %v2628
    %v2775 = vunpack.c.l.b16 %v2629
    %v2776 = vunpack.c.h.b16 %v2629
    %v2777 = vunpack.c.l.b16 %v2630
    %v2778 = vunpack.c.h.b16 %v2630
    %v2779 = vunpack.c.l.b16 %v2631
    %v2780 = vunpack.c.h.b16 %v2631
    %v2781 = vunpack.c.l.b16 %v2632
    %v2782 = vunpack.c.h.b16 %v2632
    %v2783 = vunpack.c.l.b16 %v2633
    %v2784 = vunpack.c.h.b16 %v2633
    %v2785 = vunpack.c.l.b16 %v2634
    %v2786 = vunpack.c.h.b16 %v2634
    %v2787 = vunpack.c.l.b16 %v2635
    %v2788 = vunpack.c.h.b16 %v2635
    %v2789 = vunpack.c.l.b16 %v2636
    %v2790 = vunpack.c.h.b16 %v2636
    %v2791 = vunpack.c.l.b16 %v2637
    %v2792 = vunpack.c.h.b16 %v2637
    %v2793 = vunpack.c.l.b16 %v2638
    %v2794 = vunpack.c.h.b16 %v2638
    %v2795 = vunpack.c.l.b16 %v2639
    %v2796 = vunpack.c.h.b16 %v2639
    %v2797 = vunpack.c.l.b16 %v2640
    %v2798 = vunpack.c.h.b16 %v2640
    %v2799 = vunpack.c.l.b16 %v2641
    %v2800 = vunpack.c.h.b16 %v2641
    %v2801 = vunpack.c.l.b16 %v2642
    %v2802 = vunpack.c.h.b16 %v2642
    %v2803 = vunpack.c.l.b16 %v2643
    %v2804 = vunpack.c.h.b16 %v2643
    %v2805 = vunpack.c.l.b16 %v2644
    %v2806 = vunpack.c.h.b16 %v2644
    %v2807 = vunpack.c.l.b16 %v2645
    %v2808 = vunpack.c.h.b16 %v2645
    %v2809 = vunpack.c.l.b16 %v2646
    %v2810 = vunpack.c.h.b16 %v2646
    %v2811 = vunpack.c.l.b16 %v2647
    %v2812 = vunpack.c.h.b16 %v2647
    %v2813 = vunpack.c.l.b16 %v2648
    %v2814 = vunpack.c.h.b16 %v2648
    %v2815 = vunpack.c.l.b16 %v2649
    %v2816 = vunpack.c.h.b16 %v2649
    %v2817 = vunpack.c.l.b16 %v2650
    %v2818 = vunpack.c.h.b16 %v2650
    %v2819 = vunpack.c.l.b16 %v2651
    %v2820 = vunpack.c.h.b16 %v2651
    %v2821 = vunpack.c.l.b16 %v2652
    %v2822 = vunpack.c.h.b16 %v2652
    %v2823 = vunpack.c.l.b16 %v2653
    %v2824 = vunpack.c.h.b16 %v2653
    %v2825 = vunpack.c.l.b16 %v2654
    %v2826 = vunpack.c.h.b16 %v2654
    %v2827 = vunpack.c.l.b16 %v2655
    %v2828 = vunpack.c.h.b16 %v2655
    %v2829 = vunpack.c.l.b16 %v2656
    %v2830 = vunpack.c.h.b16 %v2656
    %v2831 = vunpack.c.l.b16 %v2657
    %v2832 = vunpack.c.h.b16 %v2657
    %v2833 = vunpack.c.l.b16 %v2658
    %v2834 = vunpack.c.h.b16 %v2658
    %v2835 = vunpack.c.l.b16 %v2659
    %v2836 = vunpack.c.h.b16 %v2659
    %v2837 = vunpack.c.l.b16 %v2660
    %v2838 = vunpack.c.h.b16 %v2660
    %v2839 = vunpack.c.l.b16 %v2661
    %v2840 = vunpack.c.h.b16 %v2661
    %v2841 = vunpack.c.l.b16 %v2662
    %v2842 = vunpack.c.h.b16 %v2662
    %v2843 = vunpack.c.l.b16 %v2663
    %v2844 = vunpack.c.h.b16 %v2663
    %v2845 = vunpack.c.l.b16 %v2664
    %v2846 = vunpack.c.h.b16 %v2664
    %v2847 = vunpack.c.l.b16 %v2665
    %v2848 = vunpack.c.h.b16 %v2665
    %v2849 = vunpack.c.l.b16 %v2666
    %v2850 = vunpack.c.h.b16 %v2666
    %v2851 = vunpack.c.l.b16 %v2667
    %v2852 = vunpack.c.h.b16 %v2667
    %v2853 = vunpack.c.l.b16 %v2668
    %v2854 = vunpack.c.h.b16 %v2668
    %v2855 = vunpack.c.l.b16 %v2669
    %v2856 = vunpack.c.h.b16 %v2669
    %v2857 = vunpack.c.l.b16 %v2670
    %v2858 = vunpack.c.h.b16 %v2670
    %v2859 = vunpack.c.l.b16 %v2671
    %v2860 = vunpack.c.h.b16 %v2671
    %v2861 = vunpack.c.l.b16 %v2672
    %v2862 = vunpack.c.h.b16 %v2672
    %v2863 = vunpack.c.l.b16 %v2673
    %v2864 = vunpack.c.h.b16 %v2673
    %v2865 = vunpack.c.l.b16 %v2674
    %v2866 = vunpack.c.h.b16 %v2674
    %v2867 = vunpack.c.l.b16 %v2675
    %v2868 = vunpack.c.h.b16 %v2675
    %v2869 = vunpack.c.l.b16 %v2676
    %v2870 = vunpack.c.h.b16 %v2676
    %v2871 = vunpack.c.l.b16 %v2677
    %v2872 = vunpack.c.h.b16 %v2677
    %v2873 = vunpack.c.l.b16 %v2678
    %v2874 = vunpack.c.h.b16 %v2678
    %v2875 = vunpack.c.l.b16 %v2679
    %v2876 = vunpack.c.h.b16 %v2679
    %v2877 = vunpack.c.l.b16 %v2680
    %v2878 = vunpack.c.h.b16 %v2680
    %v2879 = vunpack.c.l.b16 %v2681
    %v2880 = vunpack.c.h.b16 %v2681
    %v2881 = vunpack.c.l.b16 %v2682
    %v2882 = vunpack.c.h.b16 %v2682
    %v2883 = vunpack.c.l.b16 %v2683
    %v2884 = vunpack.c.h.b16 %v2683
    %v2885 = vunpack.c.l.b16 %v2684
    %v2886 = vunpack.c.h.b16 %v2684
    %v2887 = vunpack.c.l.b16 %v2685
    %v2888 = vunpack.c.h.b16 %v2685
    %v2889 = vunpack.c.l.b16 %v2686
    %v2890 = vunpack.c.h.b16 %v2686
    %v2891 = vpack.c.b16 %v2765, %v2763
    %v2892 = vpack.c.b16 %v2766, %v2764
    %v2893 = vpack.c.b16 %v2769, %v2767
    %v2894 = vpack.c.b16 %v2770, %v2768
    %v2895 = vpack.c.b16 %v2773, %v2771
    %v2896 = vpack.c.b16 %v2774, %v2772
    %v2897 = vpack.c.b16 %v2777, %v2775
    %v2898 = vpack.c.b16 %v2778, %v2776
    %v2899 = vpack.c.b16 %v2781, %v2779
    %v2900 = vpack.c.b16 %v2782, %v2780
    %v2901 = vpack.c.b16 %v2785, %v2783
    %v2902 = vpack.c.b16 %v2786, %v2784
    %v2903 = vpack.c.b16 %v2789, %v2787
    %v2904 = vpack.c.b16 %v2790, %v2788
    %v2905 = vpack.c.b16 %v2793, %v2791
    %v2906 = vpack.c.b16 %v2794, %v2792
    %v2907 = vpack.c.b16 %v2797, %v2795
    %v2908 = vpack.c.b16 %v2798, %v2796
    %v2909 = vpack.c.b16 %v2801, %v2799
    %v2910 = vpack.c.b16 %v2802, %v2800
    %v2911 = vpack.c.b16 %v2805, %v2803
    %v2912 = vpack.c.b16 %v2806, %v2804
    %v2913 = vpack.c.b16 %v2809, %v2807
    %v2914 = vpack.c.b16 %v2810, %v2808
    %v2915 = vpack.c.b16 %v2813, %v2811
    %v2916 = vpack.c.b16 %v2814, %v2812
    %v2917 = vpack.c.b16 %v2817, %v2815
    %v2918 = vpack.c.b16 %v2818, %v2816
    %v2919 = vpack.c.b16 %v2821, %v2819
    %v2920 = vpack.c.b16 %v2822, %v2820
    %v2921 = vpack.c.b16 %v2825, %v2823
    %v2922 = vpack.c.b16 %v2826, %v2824
    %v2923 = vpack.c.b16 %v2829, %v2827
    %v2924 = vpack.c.b16 %v2830, %v2828
    %v2925 = vpack.c.b16 %v2833, %v2831
    %v2926 = vpack.c.b16 %v2834, %v2832
    %v2927 = vpack.c.b16 %v2837, %v2835
    %v2928 = vpack.c.b16 %v2838, %v2836
    %v2929 = vpack.c.b16 %v2841, %v2839
    %v2930 = vpack.c.b16 %v2842, %v2840
    %v2931 = vpack.c.b16 %v2845, %v2843
    %v2932 = vpack.c.b16 %v2846, %v2844
    %v2933 = vpack.c.b16 %v2849, %v2847
    %v2934 = vpack.c.b16 %v2850, %v2848
    %v2935 = vpack.c.b16 %v2853, %v2851
    %v2936 = vpack.c.b16 %v2854, %v2852
    %v2937 = vpack.c.b16 %v2857, %v2855
    %v2938 = vpack.c.b16 %v2858, %v2856
    %v2939 = vpack.c.b16 %v2861, %v2859
    %v2940 = vpack.c.b16 %v2862, %v2860
    %v2941 = vpack.c.b16 %v2865, %v2863
    %v2942 = vpack.c.b16 %v2866, %v2864
    %v2943 = vpack.c.b16 %v2869, %v2867
    %v2944 = vpack.c.b16 %v2870, %v2868
    %v2945 = vpack.c.b16 %v2873, %v2871
    %v2946 = vpack.c.b16 %v2874, %v2872
    %v2947 = vpack.c.b16 %v2877, %v2875
    %v2948 = vpack.c.b16 %v2878, %v2876
    %v2949 = vpack.c.b16 %v2881, %v2879
    %v2950 = vpack.c.b16 %v2882, %v2880
    %v2951 = vpack.c.b16 %v2885, %v2883
    %v2952 = vpack.c.b16 %v2886, %v2884
    %v2953 = vpack.c.b16 %v2889, %v2887
    %v2954 = vpack.c.b16 %v2890, %v2888
    %3019 = vmatprep.subr.bf16.mxu0 %v2892
    %3020 = vmatpush1.bf16.msra.mxu0 %v2891
    %3021 = vmatprep.subr.bf16.mxu0 %v2894
    %3022 = vmatpush1.bf16.msra.mxu0 %v2893
    %3023 = vmatprep.subr.bf16.mxu0 %v2896
    %3024 = vmatpush1.bf16.msra.mxu0 %v2895
    %3025 = vmatprep.subr.bf16.mxu0 %v2898
    %3026 = vmatpush1.bf16.msra.mxu0 %v2897
    %3027 = vmatprep.subr.bf16.mxu0 %v2900
    %3028 = vmatpush1.bf16.msra.mxu0 %v2899
    %3029 = vmatprep.subr.bf16.mxu0 %v2902
    %3030 = vmatpush1.bf16.msra.mxu0 %v2901
    %3031 = vmatprep.subr.bf16.mxu0 %v2904
    %3032 = vmatpush1.bf16.msra.mxu0 %v2903
    %3033 = vmatprep.subr.bf16.mxu0 %v2906
    %3034 = vmatpush1.bf16.msra.mxu0 %v2905
    %3035 = vmatprep.subr.bf16.mxu0 %v2908
    %3036 = vmatpush1.bf16.msra.mxu0 %v2907
    %3037 = vmatprep.subr.bf16.mxu0 %v2910
    %3038 = vmatpush1.bf16.msra.mxu0 %v2909
    %3039 = vmatprep.subr.bf16.mxu0 %v2912
    %3040 = vmatpush1.bf16.msra.mxu0 %v2911
    %3041 = vmatprep.subr.bf16.mxu0 %v2914
    %3042 = vmatpush1.bf16.msra.mxu0 %v2913
    %3043 = vmatprep.subr.bf16.mxu0 %v2916
    %3044 = vmatpush1.bf16.msra.mxu0 %v2915
    %3045 = vmatprep.subr.bf16.mxu0 %v2918
    %3046 = vmatpush1.bf16.msra.mxu0 %v2917
    %3047 = vmatprep.subr.bf16.mxu0 %v2920
    %3048 = vmatpush1.bf16.msra.mxu0 %v2919
    %3049 = vmatprep.subr.bf16.mxu0 %v2922
    %3050 = vmatpush1.bf16.msra.mxu0 %v2921
    %3051 = vmatprep.mubr.bf16.mxu0 %v2592
    %3052 = vmatmul.mubr.bf16.gmra.mrb[0].mxu0 %v2591
    %v3053 = vpop.f32.mrb[0].mxu0
    %v3054 = vadd.f32 %v2692, %v3053
    %v3055 = vpop.f32.mrb[0].mxu0
    %v3056 = vadd.f32 %v2696, %v3055
    %v3057 = vpop.f32.mrb[0].mxu0
    %v3058 = vadd.f32 %v2692, %v3057
    %v3059 = vpop.f32.mrb[0].mxu0
    %v3060 = vadd.f32 %v2696, %v3059
    %3061 = vmatprep.mubr.bf16.mxu0 %v2596
    %3062 = vmatmul.mubr.bf16.gmra.mrb[0].mxu0 %v2595
    %v3063 = vpop.f32.mrb[0].mxu0
    %v3064 = vadd.f32 %v2692, %v3063
    %v3065 = vpop.f32.mrb[0].mxu0
    %v3066 = vadd.f32 %v2696, %v3065
    %v3067 = vpop.f32.mrb[0].mxu0
    %v3068 = vadd.f32 %v2692, %v3067
    %v3069 = vpop.f32.mrb[0].mxu0
    %v3070 = vadd.f32 %v2696, %v3069
    %3071 = vmatprep.mubr.bf16.mxu0 %v2600
    %3072 = vmatmul.mubr.bf16.gmra.mrb[0].mxu0 %v2599
    %v3073 = vpop.f32.mrb[0].mxu0
    %v3074 = vadd.f32 %v2692, %v3073
    %v3075 = vpop.f32.mrb[0].mxu0
    %v3076 = vadd.f32 %v2696, %v3075
    %v3077 = vpop.f32.mrb[0].mxu0
    %v3078 = vadd.f32 %v2692, %v3077
    %v3079 = vpop.f32.mrb[0].mxu0
    %v3080 = vadd.f32 %v2696, %v3079
    %3081 = vmatprep.mubr.bf16.mxu0 %v2604
    %3082 = vmatmul.mubr.bf16.gmra.mrb[0].mxu0 %v2603
    %v3083 = vpop.f32.mrb[0].mxu0
    %v3084 = vadd.f32 %v2692, %v3083
    %v3085 = vpop.f32.mrb[0].mxu0
    %v3086 = vadd.f32 %v2696, %v3085
    %v3087 = vpop.f32.mrb[0].mxu0
    %v3088 = vadd.f32 %v2692, %v3087
    %v3089 = vpop.f32.mrb[0].mxu0
    %v3090 = vadd.f32 %v2696, %v3089
    %3091 = vmatprep.mubr.bf16.mxu0 %v2608
    %3092 = vmatmul.mubr.bf16.gmra.mrb[0].mxu0 %v2607
    %v3093 = vpop.f32.mrb[0].mxu0
    %v3094 = vadd.f32 %v2692, %v3093
    %v3095 = vpop.f32.mrb[0].mxu0
    %v3096 = vadd.f32 %v2696, %v3095
    %v3097 = vpop.f32.mrb[0].mxu0
    %v3098 = vadd.f32 %v2692, %v3097
    %v3099 = vpop.f32.mrb[0].mxu0
    %v3100 = vadd.f32 %v2696, %v3099
    %3101 = vmatprep.mubr.bf16.mxu0 %v2612
    %3102 = vmatmul.mubr.bf16.gmra.mrb[0].mxu0 %v2611
    %v3103 = vpop.f32.mrb[0].mxu0
    %v3104 = vadd.f32 %v2692, %v3103
    %v3105 = vpop.f32.mrb[0].mxu0
    %v3106 = vadd.f32 %v2696, %v3105
    %v3107 = vpop.f32.mrb[0].mxu0
    %v3108 = vadd.f32 %v2692, %v3107
    %v3109 = vpop.f32.mrb[0].mxu0
    %v3110 = vadd.f32 %v2696, %v3109
    %3111 = vmatprep.mubr.bf16.mxu0 %v2616
    %3112 = vmatmul.mubr.bf16.gmra.mrb[0].mxu0 %v2615
    %v3113 = vpop.f32.mrb[0].mxu0
    %v3114 = vadd.f32 %v2692, %v3113
    %v3115 = vpop.f32.mrb[0].mxu0
    %v3116 = vadd.f32 %v2696, %v3115
    %v3117 = vpop.f32.mrb[0].mxu0
    %v3118 = vadd.f32 %v2692, %v3117
    %v3119 = vpop.f32.mrb[0].mxu0
    %v3120 = vadd.f32 %v2696, %v3119
    %3121 = vmatprep.mubr.bf16.mxu0 %v2620
    %3122 = vmatmul.mubr.bf16.gmra.mrb[0].mxu0 %v2619
    %v3123 = vpop.f32.mrb[0].mxu0
    %v3124 = vadd.f32 %v2692, %v3123
    %v3125 = vpop.f32.mrb[0].mxu0
    %v3126 = vadd.f32 %v2696, %v3125
    %v3127 = vpop.f32.mrb[0].mxu0
    %v3128 = vadd.f32 %v2692, %v3127
    %v3129 = vpop.f32.mrb[0].mxu0
    %v3130 = vadd.f32 %v2696, %v3129
    %3131 = vdwg.mxu0
    %3132 = vmatprep.subr.bf16.mxu0 %v2924
    %3133 = vmatpush1.bf16.msra.mxu0 %v2923
    %3134 = vmatprep.subr.bf16.mxu0 %v2926
    %3135 = vmatpush1.bf16.msra.mxu0 %v2925
    %3136 = vmatprep.subr.bf16.mxu0 %v2928
    %3137 = vmatpush1.bf16.msra.mxu0 %v2927
    %3138 = vmatprep.subr.bf16.mxu0 %v2930
    %3139 = vmatpush1.bf16.msra.mxu0 %v2929
    %3140 = vmatprep.subr.bf16.mxu0 %v2932
    %3141 = vmatpush1.bf16.msra.mxu0 %v2931
    %3142 = vmatprep.subr.bf16.mxu0 %v2934
    %3143 = vmatpush1.bf16.msra.mxu0 %v2933
    %3144 = vmatprep.subr.bf16.mxu0 %v2936
    %3145 = vmatpush1.bf16.msra.mxu0 %v2935
    %3146 = vmatprep.subr.bf16.mxu0 %v2938
    %3147 = vmatpush1.bf16.msra.mxu0 %v2937
    %3148 = vmatprep.subr.bf16.mxu0 %v2940
    %3149 = vmatpush1.bf16.msra.mxu0 %v2939
    %3150 = vmatprep.subr.bf16.mxu0 %v2942
    %3151 = vmatpush1.bf16.msra.mxu0 %v2941
    %3152 = vmatprep.subr.bf16.mxu0 %v2944
    %3153 = vmatpush1.bf16.msra.mxu0 %v2943
    %3154 = vmatprep.subr.bf16.mxu0 %v2946
    %3155 = vmatpush1.bf16.msra.mxu0 %v2945
    %3156 = vmatprep.subr.bf16.mxu0 %v2948
    %3157 = vmatpush1.bf16.msra.mxu0 %v2947
    %3158 = vmatprep.subr.bf16.mxu0 %v2950
    %3159 = vmatpush1.bf16.msra.mxu0 %v2949
    %3160 = vmatprep.subr.bf16.mxu0 %v2952
    %3161 = vmatpush1.bf16.msra.mxu0 %v2951
    %3162 = vmatprep.subr.bf16.mxu0 %v2954
    %3163 = vmatpush1.bf16.msra.mxu0 %v2953
    %3164 = vmatprep.mubr.bf16.mxu0 %v2594
    %3165 = vmatmul.mubr.bf16.gmra.mrb[0].mxu0 %v2593
    %v3166 = vpop.f32.mrb[0].mxu0
    %v3167 = vadd.f32 %v3054, %v3166
    %v3168 = vpop.f32.mrb[0].mxu0
    %v3169 = vadd.f32 %v3056, %v3168
    %v3170 = vpop.f32.mrb[0].mxu0
    %v3171 = vadd.f32 %v3058, %v3170
    %v3172 = vpop.f32.mrb[0].mxu0
    %v3173 = vadd.f32 %v3060, %v3172
    %3174 = vmatprep.mubr.bf16.mxu0 %v2598
    %3175 = vmatmul.mubr.bf16.gmra.mrb[0].mxu0 %v2597
    %v3176 = vpop.f32.mrb[0].mxu0
    %v3177 = vadd.f32 %v3064, %v3176
    %v3178 = vpop.f32.mrb[0].mxu0
    %v3179 = vadd.f32 %v3066, %v3178
    %v3180 = vpop.f32.mrb[0].mxu0
    %v3181 = vadd.f32 %v3068, %v3180
    %v3182 = vpop.f32.mrb[0].mxu0
    %v3183 = vadd.f32 %v3070, %v3182
    %3184 = vmatprep.mubr.bf16.mxu0 %v2602
    %3185 = vmatmul.mubr.bf16.gmra.mrb[0].mxu0 %v2601
    %v3186 = vpop.f32.mrb[0].mxu0
    %v3187 = vadd.f32 %v3074, %v3186
    %v3188 = vpop.f32.mrb[0].mxu0
    %v3189 = vadd.f32 %v3076, %v3188
    %v3190 = vpop.f32.mrb[0].mxu0
    %v3191 = vadd.f32 %v3078, %v3190
    %v3192 = vpop.f32.mrb[0].mxu0
    %v3193 = vadd.f32 %v3080, %v3192
    %3194 = vmatprep.mubr.bf16.mxu0 %v2606
    %3195 = vmatmul.mubr.bf16.gmra.mrb[0].mxu0 %v2605
    %v3196 = vpop.f32.mrb[0].mxu0
    %v3197 = vadd.f32 %v3084, %v3196
    %v3198 = vpop.f32.mrb[0].mxu0
    %v3199 = vadd.f32 %v3086, %v3198
    %v3200 = vpop.f32.mrb[0].mxu0
    %v3201 = vadd.f32 %v3088, %v3200
    %v3202 = vpop.f32.mrb[0].mxu0
    %v3203 = vadd.f32 %v3090, %v3202
    %3204 = vmatprep.mubr.bf16.mxu0 %v2610
    %3205 = vmatmul.mubr.bf16.gmra.mrb[0].mxu0 %v2609
    %v3206 = vpop.f32.mrb[0].mxu0
    %v3207 = vadd.f32 %v3094, %v3206
    %v3208 = vpop.f32.mrb[0].mxu0
    %v3209 = vadd.f32 %v3096, %v3208
    %v3210 = vpop.f32.mrb[0].mxu0
    %v3211 = vadd.f32 %v3098, %v3210
    %v3212 = vpop.f32.mrb[0].mxu0
    %v3213 = vadd.f32 %v3100, %v3212
    %3214 = vmatprep.mubr.bf16.mxu0 %v2614
    %3215 = vmatmul.mubr.bf16.gmra.mrb[0].mxu0 %v2613
    %v3216 = vpop.f32.mrb[0].mxu0
    %v3217 = vadd.f32 %v3104, %v3216
    %v3218 = vpop.f32.mrb[0].mxu0
    %v3219 = vadd.f32 %v3106, %v3218
    %v3220 = vpop.f32.mrb[0].mxu0
    %v3221 = vadd.f32 %v3108, %v3220
    %v3222 = vpop.f32.mrb[0].mxu0
    %v3223 = vadd.f32 %v3110, %v3222
    %3224 = vmatprep.mubr.bf16.mxu0 %v2618
    %3225 = vmatmul.mubr.bf16.gmra.mrb[0].mxu0 %v2617
    %v3226 = vpop.f32.mrb[0].mxu0
    %v3227 = vadd.f32 %v3114, %v3226
    %v3228 = vpop.f32.mrb[0].mxu0
    %v3229 = vadd.f32 %v3116, %v3228
    %v3230 = vpop.f32.mrb[0].mxu0
    %v3231 = vadd.f32 %v3118, %v3230
    %v3232 = vpop.f32.mrb[0].mxu0
    %v3233 = vadd.f32 %v3120, %v3232
    %3234 = vmatprep.mubr.bf16.mxu0 %v2622
    %3235 = vmatmul.mubr.bf16.gmra.mrb[0].mxu0 %v2621
    %v3236 = vpop.f32.mrb[0].mxu0
    %v3237 = vadd.f32 %v3124, %v3236
    %v3238 = vpop.f32.mrb[0].mxu0
    %v3239 = vadd.f32 %v3126, %v3238
    %v3240 = vpop.f32.mrb[0].mxu0
    %v3241 = vadd.f32 %v3128, %v3240
    %v3242 = vpop.f32.mrb[0].mxu0
    %v3243 = vadd.f32 %v3130, %v3242
    %3244 = vdwg.mxu0
    %v3245 = vpack.c.bf16 %v3171, %v3167
    %v3246 = vpack.c.bf16 %v3173, %v3169
    %v3247 = vpack.c.bf16 %v3181, %v3177
    %v3248 = vpack.c.bf16 %v3183, %v3179
    %v3249 = vpack.c.bf16 %v3191, %v3187
    %v3250 = vpack.c.bf16 %v3193, %v3189
    %v3251 = vpack.c.bf16 %v3201, %v3197
    %v3252 = vpack.c.bf16 %v3203, %v3199
    %v3253 = vpack.c.bf16 %v3211, %v3207
    %v3254 = vpack.c.bf16 %v3213, %v3209
    %v3255 = vpack.c.bf16 %v3221, %v3217
    %v3256 = vpack.c.bf16 %v3223, %v3219
    %v3257 = vpack.c.bf16 %v3231, %v3227
    %v3258 = vpack.c.bf16 %v3233, %v3229
    %v3259 = vpack.c.bf16 %v3241, %v3237
    %v3260 = vpack.c.bf16 %v3243, %v3239
    %v3261 = vld [vmem:[#allocation10] sm:$0xf]
    %v3262 = vld [vmem:[#allocation10 + $0x4] sm:$0xf]
    %v3263 = vld [vmem:[#allocation10 + $0x8] sm:$0xf]
    %v3264 = vld [vmem:[#allocation10 + $0xc] sm:$0xf]
    %v3265 = vld [vmem:[#allocation10 + $0x10] sm:$0xf]
    %v3266 = vld [vmem:[#allocation10 + $0x14] sm:$0xf]
    %v3267 = vld [vmem:[#allocation10 + $0x18] sm:$0xf]
    %v3268 = vld [vmem:[#allocation10 + $0x1c] sm:$0xf]
    %v3269 = vld [vmem:[#allocation10 + $0x20] sm:$0xf]
    %v3270 = vld [vmem:[#allocation10 + $0x24] sm:$0xf]
    %v3271 = vld [vmem:[#allocation10 + $0x28] sm:$0xf]
    %v3272 = vld [vmem:[#allocation10 + $0x2c] sm:$0xf]
    %v3273 = vld [vmem:[#allocation10 + $0x30] sm:$0xf]
    %v3274 = vld [vmem:[#allocation10 + $0x34] sm:$0xf]
    %v3275 = vld [vmem:[#allocation10 + $0x38] sm:$0xf]
    %v3276 = vld [vmem:[#allocation10 + $0x3c] sm:$0xf]
    %v3277 = vld [vmem:[#allocation10 + $0x40] sm:$0xf]
    %v3278 = vld [vmem:[#allocation10 + $0x44] sm:$0xf]
    %v3279 = vld [vmem:[#allocation10 + $0x48] sm:$0xf]
    %v3280 = vld [vmem:[#allocation10 + $0x4c] sm:$0xf]
    %v3281 = vld [vmem:[#allocation10 + $0x50] sm:$0xf]
    %v3282 = vld [vmem:[#allocation10 + $0x54] sm:$0xf]
    %v3283 = vld [vmem:[#allocation10 + $0x58] sm:$0xf]
    %v3284 = vld [vmem:[#allocation10 + $0x5c] sm:$0xf]
    %v3285 = vld [vmem:[#allocation10 + $0x60] sm:$0xf]
    %v3286 = vld [vmem:[#allocation10 + $0x64] sm:$0xf]
    %v3287 = vld [vmem:[#allocation10 + $0x68] sm:$0xf]
    %v3288 = vld [vmem:[#allocation10 + $0x6c] sm:$0xf]
    %v3289 = vld [vmem:[#allocation10 + $0x70] sm:$0xf]
    %v3290 = vld [vmem:[#allocation10 + $0x74] sm:$0xf]
    %v3291 = vld [vmem:[#allocation10 + $0x78] sm:$0xf]
    %v3292 = vld [vmem:[#allocation10 + $0x7c] sm:$0xf]
    %v3293 = vld [vmem:[%s6] sm:$0x1]
    %v3295 = vlaneseq
    %v3296 = vshrl.u32 %v3295, 7
    %v3297 = vsub.s32 0, %v3296
    %v3298 = vrot.slane %v3293, %v3297
    %v3332 = vunpack.c.l.b16 %v3261
    %v3333 = vunpack.c.l.b16 %v3262
    %v3334 = vunpack.c.l.b16 %v3263
    %v3335 = vunpack.c.l.b16 %v3264
    %v3336 = vunpack.c.l.b16 %v3265
    %v3337 = vunpack.c.l.b16 %v3266
    %v3338 = vunpack.c.l.b16 %v3267
    %v3339 = vunpack.c.l.b16 %v3268
    %v3340 = vunpack.c.l.b16 %v3269
    %v3341 = vunpack.c.l.b16 %v3270
    %v3342 = vunpack.c.l.b16 %v3271
    %v3343 = vunpack.c.l.b16 %v3272
    %v3344 = vunpack.c.l.b16 %v3273
    %v3345 = vunpack.c.l.b16 %v3274
    %v3346 = vunpack.c.l.b16 %v3275
    %v3347 = vunpack.c.l.b16 %v3276
    %v3348 = vunpack.c.l.b16 %v3277
    %v3349 = vunpack.c.l.b16 %v3278
    %v3350 = vunpack.c.l.b16 %v3279
    %v3351 = vunpack.c.l.b16 %v3280
    %v3352 = vunpack.c.l.b16 %v3281
    %v3353 = vunpack.c.l.b16 %v3282
    %v3354 = vunpack.c.l.b16 %v3283
    %v3355 = vunpack.c.l.b16 %v3284
    %v3356 = vunpack.c.l.b16 %v3285
    %v3357 = vunpack.c.l.b16 %v3286
    %v3358 = vunpack.c.l.b16 %v3287
    %v3359 = vunpack.c.l.b16 %v3288
    %v3360 = vunpack.c.l.b16 %v3289
    %v3361 = vunpack.c.l.b16 %v3290
    %v3362 = vunpack.c.l.b16 %v3291
    %v3363 = vunpack.c.l.b16 %v3292
    %v3364 = vpack.c.b16 %v3333, %v3332
    %v3365 = vpack.c.b16 %v3335, %v3334
    %v3366 = vpack.c.b16 %v3337, %v3336
    %v3367 = vpack.c.b16 %v3339, %v3338
    %v3368 = vpack.c.b16 %v3341, %v3340
    %v3369 = vpack.c.b16 %v3343, %v3342
    %v3370 = vpack.c.b16 %v3345, %v3344
    %v3371 = vpack.c.b16 %v3347, %v3346
    %v3372 = vpack.c.b16 %v3349, %v3348
    %v3373 = vpack.c.b16 %v3351, %v3350
    %v3374 = vpack.c.b16 %v3353, %v3352
    %v3375 = vpack.c.b16 %v3355, %v3354
    %v3376 = vpack.c.b16 %v3357, %v3356
    %v3377 = vpack.c.b16 %v3359, %v3358
    %v3378 = vpack.c.b16 %v3361, %v3360
    %v3379 = vpack.c.b16 %v3363, %v3362
    %3396 = vmatprep.subr.bf16.mxu0 0
    %3397 = vmatpush1.bf16.msra.mxu0 %v3364
    %3398 = vmatprep.subr.bf16.mxu0 0
    %3399 = vmatpush1.bf16.msra.mxu0 %v3365
    %3400 = vmatprep.subr.bf16.mxu0 0
    %3401 = vmatpush1.bf16.msra.mxu0 %v3366
    %3402 = vmatprep.subr.bf16.mxu0 0
    %3403 = vmatpush1.bf16.msra.mxu0 %v3367
    %3404 = vmatprep.subr.bf16.mxu0 0
    %3405 = vmatpush1.bf16.msra.mxu0 %v3368
    %3406 = vmatprep.subr.bf16.mxu0 0
    %3407 = vmatpush1.bf16.msra.mxu0 %v3369
    %3408 = vmatprep.subr.bf16.mxu0 0
    %3409 = vmatpush1.bf16.msra.mxu0 %v3370
    %3410 = vmatprep.subr.bf16.mxu0 0
    %3411 = vmatpush1.bf16.msra.mxu0 %v3371
    %3412 = vmatprep.subr.bf16.mxu0 0
    %3413 = vmatpush1.bf16.msra.mxu0 %v3372
    %3414 = vmatprep.subr.bf16.mxu0 0
    %3415 = vmatpush1.bf16.msra.mxu0 %v3373
    %3416 = vmatprep.subr.bf16.mxu0 0
    %3417 = vmatpush1.bf16.msra.mxu0 %v3374
    %3418 = vmatprep.subr.bf16.mxu0 0
    %3419 = vmatpush1.bf16.msra.mxu0 %v3375
    %3420 = vmatprep.subr.bf16.mxu0 0
    %3421 = vmatpush1.bf16.msra.mxu0 %v3376
    %3422 = vmatprep.subr.bf16.mxu0 0
    %3423 = vmatpush1.bf16.msra.mxu0 %v3377
    %3424 = vmatprep.subr.bf16.mxu0 0
    %3425 = vmatpush1.bf16.msra.mxu0 %v3378
    %3426 = vmatprep.subr.bf16.mxu0 0
    %3427 = vmatpush1.bf16.msra.mxu0 %v3379
    %3428 = vmatprep.mubr.bf16.mxu0 %v3246
    %3429 = vmatmul.mubr.bf16.gmra.mrb[0].mxu0 %v3245
    %v3430 = vpop.f32.mrb[0].mxu0
    %v3431 = vadd.f32 %v3298, %v3430
    %v3432 = vpop.f32.mrb[0].mxu0
    %v3433 = vpop.f32.mrb[0].mxu0
    %v3434 = vadd.f32 %v3298, %v3433
    %v3435 = vpop.f32.mrb[0].mxu0
    %3436 = vmatprep.mubr.bf16.mxu0 %v3248
    %3437 = vmatmul.mubr.bf16.gmra.mrb[0].mxu0 %v3247
    %v3438 = vpop.f32.mrb[0].mxu0
    %v3439 = vadd.f32 %v3298, %v3438
    %v3440 = vpop.f32.mrb[0].mxu0
    %v3441 = vpop.f32.mrb[0].mxu0
    %v3442 = vadd.f32 %v3298, %v3441
    %v3443 = vpop.f32.mrb[0].mxu0
    %3444 = vmatprep.mubr.bf16.mxu0 %v3250
    %3445 = vmatmul.mubr.bf16.gmra.mrb[0].mxu0 %v3249
    %v3446 = vpop.f32.mrb[0].mxu0
    %v3447 = vadd.f32 %v3298, %v3446
    %v3448 = vpop.f32.mrb[0].mxu0
    %v3449 = vpop.f32.mrb[0].mxu0
    %v3450 = vadd.f32 %v3298, %v3449
    %v3451 = vpop.f32.mrb[0].mxu0
    %3452 = vmatprep.mubr.bf16.mxu0 %v3252
    %3453 = vmatmul.mubr.bf16.gmra.mrb[0].mxu0 %v3251
    %v3454 = vpop.f32.mrb[0].mxu0
    %v3455 = vadd.f32 %v3298, %v3454
    %v3456 = vpop.f32.mrb[0].mxu0
    %v3457 = vpop.f32.mrb[0].mxu0
    %v3458 = vadd.f32 %v3298, %v3457
    %v3459 = vpop.f32.mrb[0].mxu0
    %3460 = vmatprep.mubr.bf16.mxu0 %v3254
    %3461 = vmatmul.mubr.bf16.gmra.mrb[0].mxu0 %v3253
    %v3462 = vpop.f32.mrb[0].mxu0
    %v3463 = vadd.f32 %v3298, %v3462
    %v3464 = vpop.f32.mrb[0].mxu0
    %v3465 = vpop.f32.mrb[0].mxu0
    %v3466 = vadd.f32 %v3298, %v3465
    %v3467 = vpop.f32.mrb[0].mxu0
    %3468 = vmatprep.mubr.bf16.mxu0 %v3256
    %3469 = vmatmul.mubr.bf16.gmra.mrb[0].mxu0 %v3255
    %v3470 = vpop.f32.mrb[0].mxu0
    %v3471 = vadd.f32 %v3298, %v3470
    %v3472 = vpop.f32.mrb[0].mxu0
    %v3473 = vpop.f32.mrb[0].mxu0
    %v3474 = vadd.f32 %v3298, %v3473
    %v3475 = vpop.f32.mrb[0].mxu0
    %3476 = vmatprep.mubr.bf16.mxu0 %v3258
    %3477 = vmatmul.mubr.bf16.gmra.mrb[0].mxu0 %v3257
    %v3478 = vpop.f32.mrb[0].mxu0
    %v3479 = vadd.f32 %v3298, %v3478
    %v3480 = vpop.f32.mrb[0].mxu0
    %v3481 = vpop.f32.mrb[0].mxu0
    %v3482 = vadd.f32 %v3298, %v3481
    %v3483 = vpop.f32.mrb[0].mxu0
    %3484 = vmatprep.mubr.bf16.mxu0 %v3260
    %3485 = vmatmul.mubr.bf16.gmra.mrb[0].mxu0 %v3259
    %v3486 = vpop.f32.mrb[0].mxu0
    %v3487 = vadd.f32 %v3298, %v3486
    %v3488 = vpop.f32.mrb[0].mxu0
    %v3489 = vpop.f32.mrb[0].mxu0
    %v3490 = vadd.f32 %v3298, %v3489
    %v3491 = vpop.f32.mrb[0].mxu0
    %3492 = vdwg.mxu0
    %v3493 = vpack.c.bf16 %v3434, %v3431
    %v3494 = vpack.c.bf16 %v3442, %v3439
    %v3495 = vpack.c.bf16 %v3450, %v3447
    %v3496 = vpack.c.bf16 %v3458, %v3455
    %v3497 = vpack.c.bf16 %v3466, %v3463
    %v3498 = vpack.c.bf16 %v3474, %v3471
    %v3499 = vpack.c.bf16 %v3482, %v3479
    %v3500 = vpack.c.bf16 %v3490, %v3487
    %v3501 = vld [vmem:[#allocation11] sm:$0xff]
    %v3502 = vld [vmem:[#allocation11 + $0x8] sm:$0xff]
    %v3503 = vld [vmem:[#allocation11 + $0x10] sm:$0xff]
    %v3504 = vld [vmem:[#allocation11 + $0x18] sm:$0xff]
    %v3505 = vld [vmem:[#allocation11 + $0x20] sm:$0xff]
    %v3506 = vld [vmem:[#allocation11 + $0x28] sm:$0xff]
    %v3507 = vld [vmem:[#allocation11 + $0x30] sm:$0xff]
    %v3508 = vld [vmem:[#allocation11 + $0x38] sm:$0xff]
    %v3509 = vld [vmem:[#allocation11 + $0x40] sm:$0xff]
    %v3510 = vld [vmem:[#allocation11 + $0x48] sm:$0xff]
    %v3511 = vld [vmem:[#allocation11 + $0x50] sm:$0xff]
    %v3512 = vld [vmem:[#allocation11 + $0x58] sm:$0xff]
    %v3513 = vld [vmem:[#allocation11 + $0x60] sm:$0xff]
    %v3514 = vld [vmem:[#allocation11 + $0x68] sm:$0xff]
    %v3515 = vld [vmem:[#allocation11 + $0x70] sm:$0xff]
    %v3516 = vld [vmem:[#allocation11 + $0x78] sm:$0xff]
    %v3517 = vld [vmem:[%s8] sm:$0x3]
    %v3519 = vlaneseq
    %v3520 = vshrl.u32 %v3519, 7
    %v3521 = vsub.s32 0, %v3520
    %v3522 = vrot.slane %v3517, %v3521
    %v3523 = vlaneseq
    %v3524 = vshrl.u32 %v3523, 7
    %v3525 = vsub.s32 1, %v3524
    %v3526 = vrot.slane %v3517, %v3525
    %v3545 = vunpack.c.l.b16 %v3501
    %v3546 = vunpack.c.h.b16 %v3501
    %v3547 = vunpack.c.l.b16 %v3502
    %v3548 = vunpack.c.h.b16 %v3502
    %v3549 = vunpack.c.l.b16 %v3503
    %v3550 = vunpack.c.h.b16 %v3503
    %v3551 = vunpack.c.l.b16 %v3504
    %v3552 = vunpack.c.h.b16 %v3504
    %v3553 = vunpack.c.l.b16 %v3505
    %v3554 = vunpack.c.h.b16 %v3505
    %v3555 = vunpack.c.l.b16 %v3506
    %v3556 = vunpack.c.h.b16 %v3506
    %v3557 = vunpack.c.l.b16 %v3507
    %v3558 = vunpack.c.h.b16 %v3507
    %v3559 = vunpack.c.l.b16 %v3508
    %v3560 = vunpack.c.h.b16 %v3508
    %v3561 = vunpack.c.l.b16 %v3509
    %v3562 = vunpack.c.h.b16 %v3509
    %v3563 = vunpack.c.l.b16 %v3510
    %v3564 = vunpack.c.h.b16 %v3510
    %v3565 = vunpack.c.l.b16 %v3511
    %v3566 = vunpack.c.h.b16 %v3511
    %v3567 = vunpack.c.l.b16 %v3512
    %v3568 = vunpack.c.h.b16 %v3512
    %v3569 = vunpack.c.l.b16 %v3513
    %v3570 = vunpack.c.h.b16 %v3513
    %v3571 = vunpack.c.l.b16 %v3514
    %v3572 = vunpack.c.h.b16 %v3514
    %v3573 = vunpack.c.l.b16 %v3515
    %v3574 = vunpack.c.h.b16 %v3515
    %v3575 = vunpack.c.l.b16 %v3516
    %v3576 = vunpack.c.h.b16 %v3516
    %v3577 = vpack.c.b16 %v3547, %v3545
    %v3578 = vpack.c.b16 %v3548, %v3546
    %v3579 = vpack.c.b16 %v3551, %v3549
    %v3580 = vpack.c.b16 %v3552, %v3550
    %v3581 = vpack.c.b16 %v3555, %v3553
    %v3582 = vpack.c.b16 %v3556, %v3554
    %v3583 = vpack.c.b16 %v3559, %v3557
    %v3584 = vpack.c.b16 %v3560, %v3558
    %v3585 = vpack.c.b16 %v3563, %v3561
    %v3586 = vpack.c.b16 %v3564, %v3562
    %v3587 = vpack.c.b16 %v3567, %v3565
    %v3588 = vpack.c.b16 %v3568, %v3566
    %v3589 = vpack.c.b16 %v3571, %v3569
    %v3590 = vpack.c.b16 %v3572, %v3570
    %v3591 = vpack.c.b16 %v3575, %v3573
    %v3592 = vpack.c.b16 %v3576, %v3574
    %3609 = vmatprep.subr.bf16.mxu0 %v3578
    %3610 = vmatpush1.bf16.msra.mxu0 %v3577
    %3611 = vmatprep.subr.bf16.mxu0 %v3580
    %3612 = vmatpush1.bf16.msra.mxu0 %v3579
    %3613 = vmatprep.subr.bf16.mxu0 %v3582
    %3614 = vmatpush1.bf16.msra.mxu0 %v3581
    %3615 = vmatprep.subr.bf16.mxu0 %v3584
    %3616 = vmatpush1.bf16.msra.mxu0 %v3583
    %3617 = vmatprep.subr.bf16.mxu0 %v3586
    %3618 = vmatpush1.bf16.msra.mxu0 %v3585
    %3619 = vmatprep.subr.bf16.mxu0 %v3588
    %3620 = vmatpush1.bf16.msra.mxu0 %v3587
    %3621 = vmatprep.subr.bf16.mxu0 %v3590
    %3622 = vmatpush1.bf16.msra.mxu0 %v3589
    %3623 = vmatprep.subr.bf16.mxu0 %v3592
    %3624 = vmatpush1.bf16.msra.mxu0 %v3591
    %3625 = vmatprep.subr.bf16.mxu0 0
    %3626 = vmatpush1.bf16.msra.mxu0 0
    %3627 = vmatprep.subr.bf16.mxu0 0
    %3628 = vmatpush1.bf16.msra.mxu0 0
    %3629 = vmatprep.subr.bf16.mxu0 0
    %3630 = vmatpush1.bf16.msra.mxu0 0
    %3631 = vmatprep.subr.bf16.mxu0 0
    %3632 = vmatpush1.bf16.msra.mxu0 0
    %3633 = vmatprep.subr.bf16.mxu0 0
    %3634 = vmatpush1.bf16.msra.mxu0 0
    %3635 = vmatprep.subr.bf16.mxu0 0
    %3636 = vmatpush1.bf16.msra.mxu0 0
    %3637 = vmatprep.subr.bf16.mxu0 0
    %3638 = vmatpush1.bf16.msra.mxu0 0
    %3639 = vmatprep.subr.bf16.mxu0 0
    %3640 = vmatpush1.bf16.msra.mxu0 0
    %3641 = vmatprep.mubr.bf16.mxu0 0
    %3642 = vmatmul.mubr.bf16.gmra.mrb[0].mxu0 %v3493
    %v3643 = vpop.f32.mrb[0].mxu0
    %v3644 = vadd.f32 %v3522, %v3643
    %v3645 = vpop.f32.mrb[0].mxu0
    %v3646 = vadd.f32 %v3526, %v3645
    %v3647 = vpop.f32.mrb[0].mxu0
    %v3648 = vadd.f32 %v3522, %v3647
    %v3649 = vpop.f32.mrb[0].mxu0
    %v3650 = vadd.f32 %v3526, %v3649
    %3651 = vmatprep.mubr.bf16.mxu0 0
    %3652 = vmatmul.mubr.bf16.gmra.mrb[0].mxu0 %v3494
    %v3653 = vpop.f32.mrb[0].mxu0
    %v3654 = vadd.f32 %v3522, %v3653
    %v3655 = vpop.f32.mrb[0].mxu0
    %v3656 = vadd.f32 %v3526, %v3655
    %v3657 = vpop.f32.mrb[0].mxu0
    %v3658 = vadd.f32 %v3522, %v3657
    %v3659 = vpop.f32.mrb[0].mxu0
    %v3660 = vadd.f32 %v3526, %v3659
    %3661 = vmatprep.mubr.bf16.mxu0 0
    %3662 = vmatmul.mubr.bf16.gmra.mrb[0].mxu0 %v3495
    %v3663 = vpop.f32.mrb[0].mxu0
    %v3664 = vadd.f32 %v3522, %v3663
    %v3665 = vpop.f32.mrb[0].mxu0
    %v3666 = vadd.f32 %v3526, %v3665
    %v3667 = vpop.f32.mrb[0].mxu0
    %v3668 = vadd.f32 %v3522, %v3667
    %v3669 = vpop.f32.mrb[0].mxu0
    %v3670 = vadd.f32 %v3526, %v3669
    %3671 = vmatprep.mubr.bf16.mxu0 0
    %3672 = vmatmul.mubr.bf16.gmra.mrb[0].mxu0 %v3496
    %v3673 = vpop.f32.mrb[0].mxu0
    %v3674 = vadd.f32 %v3522, %v3673
    %v3675 = vpop.f32.mrb[0].mxu0
    %v3676 = vadd.f32 %v3526, %v3675
    %v3677 = vpop.f32.mrb[0].mxu0
    %v3678 = vadd.f32 %v3522, %v3677
    %v3679 = vpop.f32.mrb[0].mxu0
    %v3680 = vadd.f32 %v3526, %v3679
    %3681 = vmatprep.mubr.bf16.mxu0 0
    %3682 = vmatmul.mubr.bf16.gmra.mrb[0].mxu0 %v3497
    %v3683 = vpop.f32.mrb[0].mxu0
    %v3684 = vadd.f32 %v3522, %v3683
    %v3685 = vpop.f32.mrb[0].mxu0
    %v3686 = vadd.f32 %v3526, %v3685
    %v3687 = vpop.f32.mrb[0].mxu0
    %v3688 = vadd.f32 %v3522, %v3687
    %v3689 = vpop.f32.mrb[0].mxu0
    %v3690 = vadd.f32 %v3526, %v3689
    %3691 = vmatprep.mubr.bf16.mxu0 0
    %3692 = vmatmul.mubr.bf16.gmra.mrb[0].mxu0 %v3498
    %v3693 = vpop.f32.mrb[0].mxu0
    %v3694 = vadd.f32 %v3522, %v3693
    %v3695 = vpop.f32.mrb[0].mxu0
    %v3696 = vadd.f32 %v3526, %v3695
    %v3697 = vpop.f32.mrb[0].mxu0
    %v3698 = vadd.f32 %v3522, %v3697
    %v3699 = vpop.f32.mrb[0].mxu0
    %v3700 = vadd.f32 %v3526, %v3699
    %3701 = vmatprep.mubr.bf16.mxu0 0
    %3702 = vmatmul.mubr.bf16.gmra.mrb[0].mxu0 %v3499
    %v3703 = vpop.f32.mrb[0].mxu0
    %v3704 = vadd.f32 %v3522, %v3703
    %v3705 = vpop.f32.mrb[0].mxu0
    %v3706 = vadd.f32 %v3526, %v3705
    %v3707 = vpop.f32.mrb[0].mxu0
    %v3708 = vadd.f32 %v3522, %v3707
    %v3709 = vpop.f32.mrb[0].mxu0
    %v3710 = vadd.f32 %v3526, %v3709
    %3711 = vmatprep.mubr.bf16.mxu0 0
    %3712 = vmatmul.mubr.bf16.gmra.mrb[0].mxu0 %v3500
    %v3713 = vpop.f32.mrb[0].mxu0
    %v3714 = vadd.f32 %v3522, %v3713
    %v3715 = vpop.f32.mrb[0].mxu0
    %v3716 = vadd.f32 %v3526, %v3715
    %v3717 = vpop.f32.mrb[0].mxu0
    %v3718 = vadd.f32 %v3522, %v3717
    %v3719 = vpop.f32.mrb[0].mxu0
    %v3720 = vadd.f32 %v3526, %v3719
    %3721 = vdwg.mxu0
    %v3722 = vpack.c.bf16 %v3648, %v3644
    %v3723 = vpack.c.bf16 %v3650, %v3646
    %v3724 = vpack.c.bf16 %v3658, %v3654
    %v3725 = vpack.c.bf16 %v3660, %v3656
    %v3726 = vpack.c.bf16 %v3668, %v3664
    %v3727 = vpack.c.bf16 %v3670, %v3666
    %v3728 = vpack.c.bf16 %v3678, %v3674
    %v3729 = vpack.c.bf16 %v3680, %v3676
    %v3730 = vpack.c.bf16 %v3688, %v3684
    %v3731 = vpack.c.bf16 %v3690, %v3686
    %v3732 = vpack.c.bf16 %v3698, %v3694
    %v3733 = vpack.c.bf16 %v3700, %v3696
    %v3734 = vpack.c.bf16 %v3708, %v3704
    %v3735 = vpack.c.bf16 %v3710, %v3706
    %v3736 = vpack.c.bf16 %v3718, %v3714
    %v3737 = vpack.c.bf16 %v3720, %v3716
    %v3738 = vld [vmem:[#allocation13] sm:$0xff]
    %v3739 = vld [vmem:[#allocation13 + $0x8] sm:$0xff]
    %v3740 = vld [vmem:[#allocation13 + $0x10] sm:$0xff]
    %v3741 = vld [vmem:[#allocation13 + $0x18] sm:$0xff]
    %v3742 = vld [vmem:[#allocation13 + $0x20] sm:$0xff]
    %v3743 = vld [vmem:[#allocation13 + $0x28] sm:$0xff]
    %v3744 = vld [vmem:[#allocation13 + $0x30] sm:$0xff]
    %v3745 = vld [vmem:[#allocation13 + $0x38] sm:$0xff]
    %v3746 = vld [vmem:[#allocation13 + $0x40] sm:$0xff]
    %v3747 = vld [vmem:[#allocation13 + $0x48] sm:$0xff]
    %v3748 = vld [vmem:[#allocation13 + $0x50] sm:$0xff]
    %v3749 = vld [vmem:[#allocation13 + $0x58] sm:$0xff]
    %v3750 = vld [vmem:[#allocation13 + $0x60] sm:$0xff]
    %v3751 = vld [vmem:[#allocation13 + $0x68] sm:$0xff]
    %v3752 = vld [vmem:[#allocation13 + $0x70] sm:$0xff]
    %v3753 = vld [vmem:[#allocation13 + $0x78] sm:$0xff]
    %v3754 = vld [vmem:[#allocation13 + $0x80] sm:$0xff]
    %v3755 = vld [vmem:[#allocation13 + $0x88] sm:$0xff]
    %v3756 = vld [vmem:[#allocation13 + $0x90] sm:$0xff]
    %v3757 = vld [vmem:[#allocation13 + $0x98] sm:$0xff]
    %v3758 = vld [vmem:[#allocation13 + $0xa0] sm:$0xff]
    %v3759 = vld [vmem:[#allocation13 + $0xa8] sm:$0xff]
    %v3760 = vld [vmem:[#allocation13 + $0xb0] sm:$0xff]
    %v3761 = vld [vmem:[#allocation13 + $0xb8] sm:$0xff]
    %v3762 = vld [vmem:[#allocation13 + $0xc0] sm:$0xff]
    %v3763 = vld [vmem:[#allocation13 + $0xc8] sm:$0xff]
    %v3764 = vld [vmem:[#allocation13 + $0xd0] sm:$0xff]
    %v3765 = vld [vmem:[#allocation13 + $0xd8] sm:$0xff]
    %v3766 = vld [vmem:[#allocation13 + $0xe0] sm:$0xff]
    %v3767 = vld [vmem:[#allocation13 + $0xe8] sm:$0xff]
    %v3768 = vld [vmem:[#allocation13 + $0xf0] sm:$0xff]
    %v3769 = vld [vmem:[#allocation13 + $0xf8] sm:$0xff]
    %v3770 = vld [vmem:[#allocation13 + $0x100] sm:$0xff]
    %v3771 = vld [vmem:[#allocation13 + $0x108] sm:$0xff]
    %v3772 = vld [vmem:[#allocation13 + $0x110] sm:$0xff]
    %v3773 = vld [vmem:[#allocation13 + $0x118] sm:$0xff]
    %v3774 = vld [vmem:[#allocation13 + $0x120] sm:$0xff]
    %v3775 = vld [vmem:[#allocation13 + $0x128] sm:$0xff]
    %v3776 = vld [vmem:[#allocation13 + $0x130] sm:$0xff]
    %v3777 = vld [vmem:[#allocation13 + $0x138] sm:$0xff]
    %v3778 = vld [vmem:[#allocation13 + $0x140] sm:$0xff]
    %v3779 = vld [vmem:[#allocation13 + $0x148] sm:$0xff]
    %v3780 = vld [vmem:[#allocation13 + $0x150] sm:$0xff]
    %v3781 = vld [vmem:[#allocation13 + $0x158] sm:$0xff]
    %v3782 = vld [vmem:[#allocation13 + $0x160] sm:$0xff]
    %v3783 = vld [vmem:[#allocation13 + $0x168] sm:$0xff]
    %v3784 = vld [vmem:[#allocation13 + $0x170] sm:$0xff]
    %v3785 = vld [vmem:[#allocation13 + $0x178] sm:$0xff]
    %v3786 = vld [vmem:[#allocation13 + $0x180] sm:$0xff]
    %v3787 = vld [vmem:[#allocation13 + $0x188] sm:$0xff]
    %v3788 = vld [vmem:[#allocation13 + $0x190] sm:$0xff]
    %v3789 = vld [vmem:[#allocation13 + $0x198] sm:$0xff]
    %v3790 = vld [vmem:[#allocation13 + $0x1a0] sm:$0xff]
    %v3791 = vld [vmem:[#allocation13 + $0x1a8] sm:$0xff]
    %v3792 = vld [vmem:[#allocation13 + $0x1b0] sm:$0xff]
    %v3793 = vld [vmem:[#allocation13 + $0x1b8] sm:$0xff]
    %v3794 = vld [vmem:[#allocation13 + $0x1c0] sm:$0xff]
    %v3795 = vld [vmem:[#allocation13 + $0x1c8] sm:$0xff]
    %v3796 = vld [vmem:[#allocation13 + $0x1d0] sm:$0xff]
    %v3797 = vld [vmem:[#allocation13 + $0x1d8] sm:$0xff]
    %v3798 = vld [vmem:[#allocation13 + $0x1e0] sm:$0xff]
    %v3799 = vld [vmem:[#allocation13 + $0x1e8] sm:$0xff]
    %v3800 = vld [vmem:[#allocation13 + $0x1f0] sm:$0xff]
    %v3801 = vld [vmem:[#allocation13 + $0x1f8] sm:$0xff]
    %v3802 = vld [vmem:[%s10] sm:$0xf]
    %v3804 = vlaneseq
    %v3805 = vshrl.u32 %v3804, 7
    %v3806 = vsub.s32 0, %v3805
    %v3807 = vrot.slane %v3802, %v3806
    %v3808 = vlaneseq
    %v3809 = vshrl.u32 %v3808, 7
    %v3810 = vsub.s32 1, %v3809
    %v3811 = vrot.slane %v3802, %v3810
    %v3812 = vlaneseq
    %v3813 = vshrl.u32 %v3812, 7
    %v3814 = vsub.s32 2, %v3813
    %v3815 = vrot.slane %v3802, %v3814
    %v3816 = vlaneseq
    %v3817 = vshrl.u32 %v3816, 7
    %v3818 = vsub.s32 3, %v3817
    %v3819 = vrot.slane %v3802, %v3818
    %v3888 = vunpack.c.l.b16 %v3738
    %v3889 = vunpack.c.h.b16 %v3738
    %v3890 = vunpack.c.l.b16 %v3739
    %v3891 = vunpack.c.h.b16 %v3739
    %v3892 = vunpack.c.l.b16 %v3740
    %v3893 = vunpack.c.h.b16 %v3740
    %v3894 = vunpack.c.l.b16 %v3741
    %v3895 = vunpack.c.h.b16 %v3741
    %v3896 = vunpack.c.l.b16 %v3742
    %v3897 = vunpack.c.h.b16 %v3742
    %v3898 = vunpack.c.l.b16 %v3743
    %v3899 = vunpack.c.h.b16 %v3743
    %v3900 = vunpack.c.l.b16 %v3744
    %v3901 = vunpack.c.h.b16 %v3744
    %v3902 = vunpack.c.l.b16 %v3745
    %v3903 = vunpack.c.h.b16 %v3745
    %v3904 = vunpack.c.l.b16 %v3746
    %v3905 = vunpack.c.h.b16 %v3746
    %v3906 = vunpack.c.l.b16 %v3747
    %v3907 = vunpack.c.h.b16 %v3747
    %v3908 = vunpack.c.l.b16 %v3748
    %v3909 = vunpack.c.h.b16 %v3748
    %v3910 = vunpack.c.l.b16 %v3749
    %v3911 = vunpack.c.h.b16 %v3749
    %v3912 = vunpack.c.l.b16 %v3750
    %v3913 = vunpack.c.h.b16 %v3750
    %v3914 = vunpack.c.l.b16 %v3751
    %v3915 = vunpack.c.h.b16 %v3751
    %v3916 = vunpack.c.l.b16 %v3752
    %v3917 = vunpack.c.h.b16 %v3752
    %v3918 = vunpack.c.l.b16 %v3753
    %v3919 = vunpack.c.h.b16 %v3753
    %v3920 = vunpack.c.l.b16 %v3754
    %v3921 = vunpack.c.h.b16 %v3754
    %v3922 = vunpack.c.l.b16 %v3755
    %v3923 = vunpack.c.h.b16 %v3755
    %v3924 = vunpack.c.l.b16 %v3756
    %v3925 = vunpack.c.h.b16 %v3756
    %v3926 = vunpack.c.l.b16 %v3757
    %v3927 = vunpack.c.h.b16 %v3757
    %v3928 = vunpack.c.l.b16 %v3758
    %v3929 = vunpack.c.h.b16 %v3758
    %v3930 = vunpack.c.l.b16 %v3759
    %v3931 = vunpack.c.h.b16 %v3759
    %v3932 = vunpack.c.l.b16 %v3760
    %v3933 = vunpack.c.h.b16 %v3760
    %v3934 = vunpack.c.l.b16 %v3761
    %v3935 = vunpack.c.h.b16 %v3761
    %v3936 = vunpack.c.l.b16 %v3762
    %v3937 = vunpack.c.h.b16 %v3762
    %v3938 = vunpack.c.l.b16 %v3763
    %v3939 = vunpack.c.h.b16 %v3763
    %v3940 = vunpack.c.l.b16 %v3764
    %v3941 = vunpack.c.h.b16 %v3764
    %v3942 = vunpack.c.l.b16 %v3765
    %v3943 = vunpack.c.h.b16 %v3765
    %v3944 = vunpack.c.l.b16 %v3766
    %v3945 = vunpack.c.h.b16 %v3766
    %v3946 = vunpack.c.l.b16 %v3767
    %v3947 = vunpack.c.h.b16 %v3767
    %v3948 = vunpack.c.l.b16 %v3768
    %v3949 = vunpack.c.h.b16 %v3768
    %v3950 = vunpack.c.l.b16 %v3769
    %v3951 = vunpack.c.h.b16 %v3769
    %v3952 = vunpack.c.l.b16 %v3770
    %v3953 = vunpack.c.h.b16 %v3770
    %v3954 = vunpack.c.l.b16 %v3771
    %v3955 = vunpack.c.h.b16 %v3771
    %v3956 = vunpack.c.l.b16 %v3772
    %v3957 = vunpack.c.h.b16 %v3772
    %v3958 = vunpack.c.l.b16 %v3773
    %v3959 = vunpack.c.h.b16 %v3773
    %v3960 = vunpack.c.l.b16 %v3774
    %v3961 = vunpack.c.h.b16 %v3774
    %v3962 = vunpack.c.l.b16 %v3775
    %v3963 = vunpack.c.h.b16 %v3775
    %v3964 = vunpack.c.l.b16 %v3776
    %v3965 = vunpack.c.h.b16 %v3776
    %v3966 = vunpack.c.l.b16 %v3777
    %v3967 = vunpack.c.h.b16 %v3777
    %v3968 = vunpack.c.l.b16 %v3778
    %v3969 = vunpack.c.h.b16 %v3778
    %v3970 = vunpack.c.l.b16 %v3779
    %v3971 = vunpack.c.h.b16 %v3779
    %v3972 = vunpack.c.l.b16 %v3780
    %v3973 = vunpack.c.h.b16 %v3780
    %v3974 = vunpack.c.l.b16 %v3781
    %v3975 = vunpack.c.h.b16 %v3781
    %v3976 = vunpack.c.l.b16 %v3782
    %v3977 = vunpack.c.h.b16 %v3782
    %v3978 = vunpack.c.l.b16 %v3783
    %v3979 = vunpack.c.h.b16 %v3783
    %v3980 = vunpack.c.l.b16 %v3784
    %v3981 = vunpack.c.h.b16 %v3784
    %v3982 = vunpack.c.l.b16 %v3785
    %v3983 = vunpack.c.h.b16 %v3785
    %v3984 = vunpack.c.l.b16 %v3786
    %v3985 = vunpack.c.h.b16 %v3786
    %v3986 = vunpack.c.l.b16 %v3787
    %v3987 = vunpack.c.h.b16 %v3787
    %v3988 = vunpack.c.l.b16 %v3788
    %v3989 = vunpack.c.h.b16 %v3788
    %v3990 = vunpack.c.l.b16 %v3789
    %v3991 = vunpack.c.h.b16 %v3789
    %v3992 = vunpack.c.l.b16 %v3790
    %v3993 = vunpack.c.h.b16 %v3790
    %v3994 = vunpack.c.l.b16 %v3791
    %v3995 = vunpack.c.h.b16 %v3791
    %v3996 = vunpack.c.l.b16 %v3792
    %v3997 = vunpack.c.h.b16 %v3792
    %v3998 = vunpack.c.l.b16 %v3793
    %v3999 = vunpack.c.h.b16 %v3793
    %v4000 = vunpack.c.l.b16 %v3794
    %v4001 = vunpack.c.h.b16 %v3794
    %v4002 = vunpack.c.l.b16 %v3795
    %v4003 = vunpack.c.h.b16 %v3795
    %v4004 = vunpack.c.l.b16 %v3796
    %v4005 = vunpack.c.h.b16 %v3796
    %v4006 = vunpack.c.l.b16 %v3797
    %v4007 = vunpack.c.h.b16 %v3797
    %v4008 = vunpack.c.l.b16 %v3798
    %v4009 = vunpack.c.h.b16 %v3798
    %v4010 = vunpack.c.l.b16 %v3799
    %v4011 = vunpack.c.h.b16 %v3799
    %v4012 = vunpack.c.l.b16 %v3800
    %v4013 = vunpack.c.h.b16 %v3800
    %v4014 = vunpack.c.l.b16 %v3801
    %v4015 = vunpack.c.h.b16 %v3801
    %v4016 = vpack.c.b16 %v3892, %v3888
    %v4017 = vpack.c.b16 %v3893, %v3889
    %v4018 = vpack.c.b16 %v3894, %v3890
    %v4019 = vpack.c.b16 %v3895, %v3891
    %v4020 = vpack.c.b16 %v3900, %v3896
    %v4021 = vpack.c.b16 %v3901, %v3897
    %v4022 = vpack.c.b16 %v3902, %v3898
    %v4023 = vpack.c.b16 %v3903, %v3899
    %v4024 = vpack.c.b16 %v3908, %v3904
    %v4025 = vpack.c.b16 %v3909, %v3905
    %v4026 = vpack.c.b16 %v3910, %v3906
    %v4027 = vpack.c.b16 %v3911, %v3907
    %v4028 = vpack.c.b16 %v3916, %v3912
    %v4029 = vpack.c.b16 %v3917, %v3913
    %v4030 = vpack.c.b16 %v3918, %v3914
    %v4031 = vpack.c.b16 %v3919, %v3915
    %v4032 = vpack.c.b16 %v3924, %v3920
    %v4033 = vpack.c.b16 %v3925, %v3921
    %v4034 = vpack.c.b16 %v3926, %v3922
    %v4035 = vpack.c.b16 %v3927, %v3923
    %v4036 = vpack.c.b16 %v3932, %v3928
    %v4037 = vpack.c.b16 %v3933, %v3929
    %v4038 = vpack.c.b16 %v3934, %v3930
    %v4039 = vpack.c.b16 %v3935, %v3931
    %v4040 = vpack.c.b16 %v3940, %v3936
    %v4041 = vpack.c.b16 %v3941, %v3937
    %v4042 = vpack.c.b16 %v3942, %v3938
    %v4043 = vpack.c.b16 %v3943, %v3939
    %v4044 = vpack.c.b16 %v3948, %v3944
    %v4045 = vpack.c.b16 %v3949, %v3945
    %v4046 = vpack.c.b16 %v3950, %v3946
    %v4047 = vpack.c.b16 %v3951, %v3947
    %v4048 = vpack.c.b16 %v3956, %v3952
    %v4049 = vpack.c.b16 %v3957, %v3953
    %v4050 = vpack.c.b16 %v3958, %v3954
    %v4051 = vpack.c.b16 %v3959, %v3955
    %v4052 = vpack.c.b16 %v3964, %v3960
    %v4053 = vpack.c.b16 %v3965, %v3961
    %v4054 = vpack.c.b16 %v3966, %v3962
    %v4055 = vpack.c.b16 %v3967, %v3963
    %v4056 = vpack.c.b16 %v3972, %v3968
    %v4057 = vpack.c.b16 %v3973, %v3969
    %v4058 = vpack.c.b16 %v3974, %v3970
    %v4059 = vpack.c.b16 %v3975, %v3971
    %v4060 = vpack.c.b16 %v3980, %v3976
    %v4061 = vpack.c.b16 %v3981, %v3977
    %v4062 = vpack.c.b16 %v3982, %v3978
    %v4063 = vpack.c.b16 %v3983, %v3979
    %v4064 = vpack.c.b16 %v3988, %v3984
    %v4065 = vpack.c.b16 %v3989, %v3985
    %v4066 = vpack.c.b16 %v3990, %v3986
    %v4067 = vpack.c.b16 %v3991, %v3987
    %v4068 = vpack.c.b16 %v3996, %v3992
    %v4069 = vpack.c.b16 %v3997, %v3993
    %v4070 = vpack.c.b16 %v3998, %v3994
    %v4071 = vpack.c.b16 %v3999, %v3995
    %v4072 = vpack.c.b16 %v4004, %v4000
    %v4073 = vpack.c.b16 %v4005, %v4001
    %v4074 = vpack.c.b16 %v4006, %v4002
    %v4075 = vpack.c.b16 %v4007, %v4003
    %v4076 = vpack.c.b16 %v4012, %v4008
    %v4077 = vpack.c.b16 %v4013, %v4009
    %v4078 = vpack.c.b16 %v4014, %v4010
    %v4079 = vpack.c.b16 %v4015, %v4011
    %4144 = vmatprep.subr.bf16.mxu0 %v4017
    %4145 = vmatpush1.bf16.msra.mxu0 %v4016
    %4146 = vmatprep.subr.bf16.mxu0 %v4021
    %4147 = vmatpush1.bf16.msra.mxu0 %v4020
    %4148 = vmatprep.subr.bf16.mxu0 %v4025
    %4149 = vmatpush1.bf16.msra.mxu0 %v4024
    %4150 = vmatprep.subr.bf16.mxu0 %v4029
    %4151 = vmatpush1.bf16.msra.mxu0 %v4028
    %4152 = vmatprep.subr.bf16.mxu0 %v4033
    %4153 = vmatpush1.bf16.msra.mxu0 %v4032
    %4154 = vmatprep.subr.bf16.mxu0 %v4037
    %4155 = vmatpush1.bf16.msra.mxu0 %v4036
    %4156 = vmatprep.subr.bf16.mxu0 %v4041
    %4157 = vmatpush1.bf16.msra.mxu0 %v4040
    %4158 = vmatprep.subr.bf16.mxu0 %v4045
    %4159 = vmatpush1.bf16.msra.mxu0 %v4044
    %4160 = vmatprep.subr.bf16.mxu0 %v4049
    %4161 = vmatpush1.bf16.msra.mxu0 %v4048
    %4162 = vmatprep.subr.bf16.mxu0 %v4053
    %4163 = vmatpush1.bf16.msra.mxu0 %v4052
    %4164 = vmatprep.subr.bf16.mxu0 %v4057
    %4165 = vmatpush1.bf16.msra.mxu0 %v4056
    %4166 = vmatprep.subr.bf16.mxu0 %v4061
    %4167 = vmatpush1.bf16.msra.mxu0 %v4060
    %4168 = vmatprep.subr.bf16.mxu0 %v4065
    %4169 = vmatpush1.bf16.msra.mxu0 %v4064
    %4170 = vmatprep.subr.bf16.mxu0 %v4069
    %4171 = vmatpush1.bf16.msra.mxu0 %v4068
    %4172 = vmatprep.subr.bf16.mxu0 %v4073
    %4173 = vmatpush1.bf16.msra.mxu0 %v4072
    %4174 = vmatprep.subr.bf16.mxu0 %v4077
    %4175 = vmatpush1.bf16.msra.mxu0 %v4076
    %4176 = vmatprep.mubr.bf16.mxu0 %v3723
    %4177 = vmatmul.mubr.bf16.gmra.mrb[0].mxu0 %v3722
    %v4178 = vpop.f32.mrb[0].mxu0
    %v4179 = vadd.f32 %v3807, %v4178
    %v4180 = vpop.f32.mrb[0].mxu0
    %v4181 = vadd.f32 %v3811, %v4180
    %v4182 = vpop.f32.mrb[0].mxu0
    %v4183 = vadd.f32 %v3807, %v4182
    %v4184 = vpop.f32.mrb[0].mxu0
    %v4185 = vadd.f32 %v3811, %v4184
    %4186 = vmatprep.mubr.bf16.mxu0 %v3725
    %4187 = vmatmul.mubr.bf16.gmra.mrb[0].mxu0 %v3724
    %v4188 = vpop.f32.mrb[0].mxu0
    %v4189 = vadd.f32 %v3807, %v4188
    %v4190 = vpop.f32.mrb[0].mxu0
    %v4191 = vadd.f32 %v3811, %v4190
    %v4192 = vpop.f32.mrb[0].mxu0
    %v4193 = vadd.f32 %v3807, %v4192
    %v4194 = vpop.f32.mrb[0].mxu0
    %v4195 = vadd.f32 %v3811, %v4194
    %4196 = vmatprep.mubr.bf16.mxu0 %v3727
    %4197 = vmatmul.mubr.bf16.gmra.mrb[0].mxu0 %v3726
    %v4198 = vpop.f32.mrb[0].mxu0
    %v4199 = vadd.f32 %v3807, %v4198
    %v4200 = vpop.f32.mrb[0].mxu0
    %v4201 = vadd.f32 %v3811, %v4200
    %v4202 = vpop.f32.mrb[0].mxu0
    %v4203 = vadd.f32 %v3807, %v4202
    %v4204 = vpop.f32.mrb[0].mxu0
    %v4205 = vadd.f32 %v3811, %v4204
    %4206 = vmatprep.mubr.bf16.mxu0 %v3729
    %4207 = vmatmul.mubr.bf16.gmra.mrb[0].mxu0 %v3728
    %v4208 = vpop.f32.mrb[0].mxu0
    %v4209 = vadd.f32 %v3807, %v4208
    %v4210 = vpop.f32.mrb[0].mxu0
    %v4211 = vadd.f32 %v3811, %v4210
    %v4212 = vpop.f32.mrb[0].mxu0
    %v4213 = vadd.f32 %v3807, %v4212
    %v4214 = vpop.f32.mrb[0].mxu0
    %v4215 = vadd.f32 %v3811, %v4214
    %4216 = vmatprep.mubr.bf16.mxu0 %v3731
    %4217 = vmatmul.mubr.bf16.gmra.mrb[0].mxu0 %v3730
    %v4218 = vpop.f32.mrb[0].mxu0
    %v4219 = vadd.f32 %v3807, %v4218
    %v4220 = vpop.f32.mrb[0].mxu0
    %v4221 = vadd.f32 %v3811, %v4220
    %v4222 = vpop.f32.mrb[0].mxu0
    %v4223 = vadd.f32 %v3807, %v4222
    %v4224 = vpop.f32.mrb[0].mxu0
    %v4225 = vadd.f32 %v3811, %v4224
    %4226 = vmatprep.mubr.bf16.mxu0 %v3733
    %4227 = vmatmul.mubr.bf16.gmra.mrb[0].mxu0 %v3732
    %v4228 = vpop.f32.mrb[0].mxu0
    %v4229 = vadd.f32 %v3807, %v4228
    %v4230 = vpop.f32.mrb[0].mxu0
    %v4231 = vadd.f32 %v3811, %v4230
    %v4232 = vpop.f32.mrb[0].mxu0
    %v4233 = vadd.f32 %v3807, %v4232
    %v4234 = vpop.f32.mrb[0].mxu0
    %v4235 = vadd.f32 %v3811, %v4234
    %4236 = vmatprep.mubr.bf16.mxu0 %v3735
    %4237 = vmatmul.mubr.bf16.gmra.mrb[0].mxu0 %v3734
    %v4238 = vpop.f32.mrb[0].mxu0
    %v4239 = vadd.f32 %v3807, %v4238
    %v4240 = vpop.f32.mrb[0].mxu0
    %v4241 = vadd.f32 %v3811, %v4240
    %v4242 = vpop.f32.mrb[0].mxu0
    %v4243 = vadd.f32 %v3807, %v4242
    %v4244 = vpop.f32.mrb[0].mxu0
    %v4245 = vadd.f32 %v3811, %v4244
    %4246 = vmatprep.mubr.bf16.mxu0 %v3737
    %4247 = vmatmul.mubr.bf16.gmra.mrb[0].mxu0 %v3736
    %v4248 = vpop.f32.mrb[0].mxu0
    %v4249 = vadd.f32 %v3807, %v4248
    %v4250 = vpop.f32.mrb[0].mxu0
    %v4251 = vadd.f32 %v3811, %v4250
    %v4252 = vpop.f32.mrb[0].mxu0
    %v4253 = vadd.f32 %v3807, %v4252
    %v4254 = vpop.f32.mrb[0].mxu0
    %v4255 = vadd.f32 %v3811, %v4254
    %4256 = vdwg.mxu0
    %4257 = vmatprep.subr.bf16.mxu0 %v4019
    %4258 = vmatpush1.bf16.msra.mxu0 %v4018
    %4259 = vmatprep.subr.bf16.mxu0 %v4023
    %4260 = vmatpush1.bf16.msra.mxu0 %v4022
    %4261 = vmatprep.subr.bf16.mxu0 %v4027
    %4262 = vmatpush1.bf16.msra.mxu0 %v4026
    %4263 = vmatprep.subr.bf16.mxu0 %v4031
    %4264 = vmatpush1.bf16.msra.mxu0 %v4030
    %4265 = vmatprep.subr.bf16.mxu0 %v4035
    %4266 = vmatpush1.bf16.msra.mxu0 %v4034
    %4267 = vmatprep.subr.bf16.mxu0 %v4039
    %4268 = vmatpush1.bf16.msra.mxu0 %v4038
    %4269 = vmatprep.subr.bf16.mxu0 %v4043
    %4270 = vmatpush1.bf16.msra.mxu0 %v4042
    %4271 = vmatprep.subr.bf16.mxu0 %v4047
    %4272 = vmatpush1.bf16.msra.mxu0 %v4046
    %4273 = vmatprep.subr.bf16.mxu0 %v4051
    %4274 = vmatpush1.bf16.msra.mxu0 %v4050
    %4275 = vmatprep.subr.bf16.mxu0 %v4055
    %4276 = vmatpush1.bf16.msra.mxu0 %v4054
    %4277 = vmatprep.subr.bf16.mxu0 %v4059
    %4278 = vmatpush1.bf16.msra.mxu0 %v4058
    %4279 = vmatprep.subr.bf16.mxu0 %v4063
    %4280 = vmatpush1.bf16.msra.mxu0 %v4062
    %4281 = vmatprep.subr.bf16.mxu0 %v4067
    %4282 = vmatpush1.bf16.msra.mxu0 %v4066
    %4283 = vmatprep.subr.bf16.mxu0 %v4071
    %4284 = vmatpush1.bf16.msra.mxu0 %v4070
    %4285 = vmatprep.subr.bf16.mxu0 %v4075
    %4286 = vmatpush1.bf16.msra.mxu0 %v4074
    %4287 = vmatprep.subr.bf16.mxu0 %v4079
    %4288 = vmatpush1.bf16.msra.mxu0 %v4078
    %4289 = vmatprep.mubr.bf16.mxu0 %v3723
    %4290 = vmatmul.mubr.bf16.gmra.mrb[0].mxu0 %v3722
    %v4291 = vpop.f32.mrb[0].mxu0
    %v4292 = vadd.f32 %v3815, %v4291
    %v4293 = vpop.f32.mrb[0].mxu0
    %v4294 = vadd.f32 %v3819, %v4293
    %v4295 = vpop.f32.mrb[0].mxu0
    %v4296 = vadd.f32 %v3815, %v4295
    %v4297 = vpop.f32.mrb[0].mxu0
    %v4298 = vadd.f32 %v3819, %v4297
    %4299 = vmatprep.mubr.bf16.mxu0 %v3725
    %4300 = vmatmul.mubr.bf16.gmra.mrb[0].mxu0 %v3724
    %v4301 = vpop.f32.mrb[0].mxu0
    %v4302 = vadd.f32 %v3815, %v4301
    %v4303 = vpop.f32.mrb[0].mxu0
    %v4304 = vadd.f32 %v3819, %v4303
    %v4305 = vpop.f32.mrb[0].mxu0
    %v4306 = vadd.f32 %v3815, %v4305
    %v4307 = vpop.f32.mrb[0].mxu0
    %v4308 = vadd.f32 %v3819, %v4307
    %4309 = vmatprep.mubr.bf16.mxu0 %v3727
    %4310 = vmatmul.mubr.bf16.gmra.mrb[0].mxu0 %v3726
    %v4311 = vpop.f32.mrb[0].mxu0
    %v4312 = vadd.f32 %v3815, %v4311
    %v4313 = vpop.f32.mrb[0].mxu0
    %v4314 = vadd.f32 %v3819, %v4313
    %v4315 = vpop.f32.mrb[0].mxu0
    %v4316 = vadd.f32 %v3815, %v4315
    %v4317 = vpop.f32.mrb[0].mxu0
    %v4318 = vadd.f32 %v3819, %v4317
    %4319 = vmatprep.mubr.bf16.mxu0 %v3729
    %4320 = vmatmul.mubr.bf16.gmra.mrb[0].mxu0 %v3728
    %v4321 = vpop.f32.mrb[0].mxu0
    %v4322 = vadd.f32 %v3815, %v4321
    %v4323 = vpop.f32.mrb[0].mxu0
    %v4324 = vadd.f32 %v3819, %v4323
    %v4325 = vpop.f32.mrb[0].mxu0
    %v4326 = vadd.f32 %v3815, %v4325
    %v4327 = vpop.f32.mrb[0].mxu0
    %v4328 = vadd.f32 %v3819, %v4327
    %4329 = vmatprep.mubr.bf16.mxu0 %v3731
    %4330 = vmatmul.mubr.bf16.gmra.mrb[0].mxu0 %v3730
    %v4331 = vpop.f32.mrb[0].mxu0
    %v4332 = vadd.f32 %v3815, %v4331
    %v4333 = vpop.f32.mrb[0].mxu0
    %v4334 = vadd.f32 %v3819, %v4333
    %v4335 = vpop.f32.mrb[0].mxu0
    %v4336 = vadd.f32 %v3815, %v4335
    %v4337 = vpop.f32.mrb[0].mxu0
    %v4338 = vadd.f32 %v3819, %v4337
    %4339 = vmatprep.mubr.bf16.mxu0 %v3733
    %4340 = vmatmul.mubr.bf16.gmra.mrb[0].mxu0 %v3732
    %v4341 = vpop.f32.mrb[0].mxu0
    %v4342 = vadd.f32 %v3815, %v4341
    %v4343 = vpop.f32.mrb[0].mxu0
    %v4344 = vadd.f32 %v3819, %v4343
    %v4345 = vpop.f32.mrb[0].mxu0
    %v4346 = vadd.f32 %v3815, %v4345
    %v4347 = vpop.f32.mrb[0].mxu0
    %v4348 = vadd.f32 %v3819, %v4347
    %4349 = vmatprep.mubr.bf16.mxu0 %v3735
    %4350 = vmatmul.mubr.bf16.gmra.mrb[0].mxu0 %v3734
    %v4351 = vpop.f32.mrb[0].mxu0
    %v4352 = vadd.f32 %v3815, %v4351
    %v4353 = vpop.f32.mrb[0].mxu0
    %v4354 = vadd.f32 %v3819, %v4353
    %v4355 = vpop.f32.mrb[0].mxu0
    %v4356 = vadd.f32 %v3815, %v4355
    %v4357 = vpop.f32.mrb[0].mxu0
    %v4358 = vadd.f32 %v3819, %v4357
    %4359 = vmatprep.mubr.bf16.mxu0 %v3737
    %4360 = vmatmul.mubr.bf16.gmra.mrb[0].mxu0 %v3736
    %v4361 = vpop.f32.mrb[0].mxu0
    %v4362 = vadd.f32 %v3815, %v4361
    %v4363 = vpop.f32.mrb[0].mxu0
    %v4364 = vadd.f32 %v3819, %v4363
    %v4365 = vpop.f32.mrb[0].mxu0
    %v4366 = vadd.f32 %v3815, %v4365
    %v4367 = vpop.f32.mrb[0].mxu0
    %v4368 = vadd.f32 %v3819, %v4367
    %4369 = vdwg.mxu0
    %v4370 = vpack.c.bf16 %v4183, %v4179
    %v4371 = vpack.c.bf16 %v4185, %v4181
    %v4372 = vpack.c.bf16 %v4296, %v4292
    %v4373 = vpack.c.bf16 %v4298, %v4294
    %v4374 = vpack.c.bf16 %v4193, %v4189
    %v4375 = vpack.c.bf16 %v4195, %v4191
    %v4376 = vpack.c.bf16 %v4306, %v4302
    %v4377 = vpack.c.bf16 %v4308, %v4304
    %v4378 = vpack.c.bf16 %v4203, %v4199
    %v4379 = vpack.c.bf16 %v4205, %v4201
    %v4380 = vpack.c.bf16 %v4316, %v4312
    %v4381 = vpack.c.bf16 %v4318, %v4314
    %v4382 = vpack.c.bf16 %v4213, %v4209
    %v4383 = vpack.c.bf16 %v4215, %v4211
    %v4384 = vpack.c.bf16 %v4326, %v4322
    %v4385 = vpack.c.bf16 %v4328, %v4324
    %v4386 = vpack.c.bf16 %v4223, %v4219
    %v4387 = vpack.c.bf16 %v4225, %v4221
    %v4388 = vpack.c.bf16 %v4336, %v4332
    %v4389 = vpack.c.bf16 %v4338, %v4334
    %v4390 = vpack.c.bf16 %v4233, %v4229
    %v4391 = vpack.c.bf16 %v4235, %v4231
    %v4392 = vpack.c.bf16 %v4346, %v4342
    %v4393 = vpack.c.bf16 %v4348, %v4344
    %v4394 = vpack.c.bf16 %v4243, %v4239
    %v4395 = vpack.c.bf16 %v4245, %v4241
    %v4396 = vpack.c.bf16 %v4356, %v4352
    %v4397 = vpack.c.bf16 %v4358, %v4354
    %v4398 = vpack.c.bf16 %v4253, %v4249
    %v4399 = vpack.c.bf16 %v4255, %v4251
    %v4400 = vpack.c.bf16 %v4366, %v4362
    %v4401 = vpack.c.bf16 %v4368, %v4364
    %v4402 = vld [vmem:[#allocation14] sm:$0xff]
    %v4403 = vld [vmem:[#allocation14 + $0x8] sm:$0xff]
    %v4404 = vld [vmem:[#allocation14 + $0x10] sm:$0xff]
    %v4405 = vld [vmem:[#allocation14 + $0x18] sm:$0xf]
    %v4406 = vld [vmem:[#allocation14 + $0x1c] sm:$0xff]
    %v4407 = vld [vmem:[#allocation14 + $0x24] sm:$0xff]
    %v4408 = vld [vmem:[#allocation14 + $0x2c] sm:$0xff]
    %v4409 = vld [vmem:[#allocation14 + $0x34] sm:$0xf]
    %v4410 = vld [vmem:[#allocation14 + $0x38] sm:$0xff]
    %v4411 = vld [vmem:[#allocation14 + $0x40] sm:$0xff]
    %v4412 = vld [vmem:[#allocation14 + $0x48] sm:$0xff]
    %v4413 = vld [vmem:[#allocation14 + $0x50] sm:$0xf]
    %v4414 = vld [vmem:[#allocation14 + $0x54] sm:$0xff]
    %v4415 = vld [vmem:[#allocation14 + $0x5c] sm:$0xff]
    %v4416 = vld [vmem:[#allocation14 + $0x64] sm:$0xff]
    %v4417 = vld [vmem:[#allocation14 + $0x6c] sm:$0xf]
    %v4418 = vld [vmem:[#allocation14 + $0x70] sm:$0xff]
    %v4419 = vld [vmem:[#allocation14 + $0x78] sm:$0xff]
    %v4420 = vld [vmem:[#allocation14 + $0x80] sm:$0xff]
    %v4421 = vld [vmem:[#allocation14 + $0x88] sm:$0xf]
    %v4422 = vld [vmem:[#allocation14 + $0x8c] sm:$0xff]
    %v4423 = vld [vmem:[#allocation14 + $0x94] sm:$0xff]
    %v4424 = vld [vmem:[#allocation14 + $0x9c] sm:$0xff]
    %v4425 = vld [vmem:[#allocation14 + $0xa4] sm:$0xf]
    %v4426 = vld [vmem:[#allocation14 + $0xa8] sm:$0xff]
    %v4427 = vld [vmem:[#allocation14 + $0xb0] sm:$0xff]
    %v4428 = vld [vmem:[#allocation14 + $0xb8] sm:$0xff]
    %v4429 = vld [vmem:[#allocation14 + $0xc0] sm:$0xf]
    %v4430 = vld [vmem:[#allocation14 + $0xc4] sm:$0xff]
    %v4431 = vld [vmem:[#allocation14 + $0xcc] sm:$0xff]
    %v4432 = vld [vmem:[#allocation14 + $0xd4] sm:$0xff]
    %v4433 = vld [vmem:[#allocation14 + $0xdc] sm:$0xf]
    %v4434 = vld [vmem:[#allocation14 + $0xe0] sm:$0xff]
    %v4435 = vld [vmem:[#allocation14 + $0xe8] sm:$0xff]
    %v4436 = vld [vmem:[#allocation14 + $0xf0] sm:$0xff]
    %v4437 = vld [vmem:[#allocation14 + $0xf8] sm:$0xf]
    %v4438 = vld [vmem:[#allocation14 + $0xfc] sm:$0xff]
    %v4439 = vld [vmem:[#allocation14 + $0x104] sm:$0xff]
    %v4440 = vld [vmem:[#allocation14 + $0x10c] sm:$0xff]
    %v4441 = vld [vmem:[#allocation14 + $0x114] sm:$0xf]
    %v4442 = vld [vmem:[#allocation14 + $0x118] sm:$0xff]
    %v4443 = vld [vmem:[#allocation14 + $0x120] sm:$0xff]
    %v4444 = vld [vmem:[#allocation14 + $0x128] sm:$0xff]
    %v4445 = vld [vmem:[#allocation14 + $0x130] sm:$0xf]
    %v4446 = vld [vmem:[#allocation14 + $0x134] sm:$0xff]
    %v4447 = vld [vmem:[#allocation14 + $0x13c] sm:$0xff]
    %v4448 = vld [vmem:[#allocation14 + $0x144] sm:$0xff]
    %v4449 = vld [vmem:[#allocation14 + $0x14c] sm:$0xf]
    %v4450 = vld [vmem:[#allocation14 + $0x150] sm:$0xff]
    %v4451 = vld [vmem:[#allocation14 + $0x158] sm:$0xff]
    %v4452 = vld [vmem:[#allocation14 + $0x160] sm:$0xff]
    %v4453 = vld [vmem:[#allocation14 + $0x168] sm:$0xf]
    %v4454 = vld [vmem:[#allocation14 + $0x16c] sm:$0xff]
    %v4455 = vld [vmem:[#allocation14 + $0x174] sm:$0xff]
    %v4456 = vld [vmem:[#allocation14 + $0x17c] sm:$0xff]
    %v4457 = vld [vmem:[#allocation14 + $0x184] sm:$0xf]
    %v4458 = vld [vmem:[#allocation14 + $0x188] sm:$0xff]
    %v4459 = vld [vmem:[#allocation14 + $0x190] sm:$0xff]
    %v4460 = vld [vmem:[#allocation14 + $0x198] sm:$0xff]
    %v4461 = vld [vmem:[#allocation14 + $0x1a0] sm:$0xf]
    %v4462 = vld [vmem:[#allocation14 + $0x1a4] sm:$0xff]
    %v4463 = vld [vmem:[#allocation14 + $0x1ac] sm:$0xff]
    %v4464 = vld [vmem:[#allocation14 + $0x1b4] sm:$0xff]
    %v4465 = vld [vmem:[#allocation14 + $0x1bc] sm:$0xf]
    %v4466 = vld [vmem:[#allocation14 + $0x1c0] sm:$0xff]
    %v4467 = vld [vmem:[#allocation14 + $0x1c8] sm:$0xff]
    %v4468 = vld [vmem:[#allocation14 + $0x1d0] sm:$0xff]
    %v4469 = vld [vmem:[#allocation14 + $0x1d8] sm:$0xf]
    %v4470 = vld [vmem:[#allocation14 + $0x1dc] sm:$0xff]
    %v4471 = vld [vmem:[#allocation14 + $0x1e4] sm:$0xff]
    %v4472 = vld [vmem:[#allocation14 + $0x1ec] sm:$0xff]
    %v4473 = vld [vmem:[#allocation14 + $0x1f4] sm:$0xf]
    %v4474 = vld [vmem:[#allocation14 + $0x1f8] sm:$0xff]
    %v4475 = vld [vmem:[#allocation14 + $0x200] sm:$0xff]
    %v4476 = vld [vmem:[#allocation14 + $0x208] sm:$0xff]
    %v4477 = vld [vmem:[#allocation14 + $0x210] sm:$0xf]
    %v4478 = vld [vmem:[#allocation14 + $0x214] sm:$0xff]
    %v4479 = vld [vmem:[#allocation14 + $0x21c] sm:$0xff]
    %v4480 = vld [vmem:[#allocation14 + $0x224] sm:$0xff]
    %v4481 = vld [vmem:[#allocation14 + $0x22c] sm:$0xf]
    %v4482 = vld [vmem:[#allocation14 + $0x230] sm:$0xff]
    %v4483 = vld [vmem:[#allocation14 + $0x238] sm:$0xff]
    %v4484 = vld [vmem:[#allocation14 + $0x240] sm:$0xff]
    %v4485 = vld [vmem:[#allocation14 + $0x248] sm:$0xf]
    %v4486 = vld [vmem:[#allocation14 + $0x24c] sm:$0xff]
    %v4487 = vld [vmem:[#allocation14 + $0x254] sm:$0xff]
    %v4488 = vld [vmem:[#allocation14 + $0x25c] sm:$0xff]
    %v4489 = vld [vmem:[#allocation14 + $0x264] sm:$0xf]
    %v4490 = vld [vmem:[#allocation14 + $0x268] sm:$0xff]
    %v4491 = vld [vmem:[#allocation14 + $0x270] sm:$0xff]
    %v4492 = vld [vmem:[#allocation14 + $0x278] sm:$0xff]
    %v4493 = vld [vmem:[#allocation14 + $0x280] sm:$0xf]
    %v4494 = vld [vmem:[#allocation14 + $0x284] sm:$0xff]
    %v4495 = vld [vmem:[#allocation14 + $0x28c] sm:$0xff]
    %v4496 = vld [vmem:[#allocation14 + $0x294] sm:$0xff]
    %v4497 = vld [vmem:[#allocation14 + $0x29c] sm:$0xf]
    %v4498 = vld [vmem:[#allocation14 + $0x2a0] sm:$0xff]
    %v4499 = vld [vmem:[#allocation14 + $0x2a8] sm:$0xff]
    %v4500 = vld [vmem:[#allocation14 + $0x2b0] sm:$0xff]
    %v4501 = vld [vmem:[#allocation14 + $0x2b8] sm:$0xf]
    %v4502 = vld [vmem:[#allocation14 + $0x2bc] sm:$0xff]
    %v4503 = vld [vmem:[#allocation14 + $0x2c4] sm:$0xff]
    %v4504 = vld [vmem:[#allocation14 + $0x2cc] sm:$0xff]
    %v4505 = vld [vmem:[#allocation14 + $0x2d4] sm:$0xf]
    %v4506 = vld [vmem:[#allocation14 + $0x2d8] sm:$0xff]
    %v4507 = vld [vmem:[#allocation14 + $0x2e0] sm:$0xff]
    %v4508 = vld [vmem:[#allocation14 + $0x2e8] sm:$0xff]
    %v4509 = vld [vmem:[#allocation14 + $0x2f0] sm:$0xf]
    %v4510 = vld [vmem:[#allocation14 + $0x2f4] sm:$0xff]
    %v4511 = vld [vmem:[#allocation14 + $0x2fc] sm:$0xff]
    %v4512 = vld [vmem:[#allocation14 + $0x304] sm:$0xff]
    %v4513 = vld [vmem:[#allocation14 + $0x30c] sm:$0xf]
    %v4514 = vld [vmem:[#allocation14 + $0x310] sm:$0xff]
    %v4515 = vld [vmem:[#allocation14 + $0x318] sm:$0xff]
    %v4516 = vld [vmem:[#allocation14 + $0x320] sm:$0xff]
    %v4517 = vld [vmem:[#allocation14 + $0x328] sm:$0xf]
    %v4518 = vld [vmem:[#allocation14 + $0x32c] sm:$0xff]
    %v4519 = vld [vmem:[#allocation14 + $0x334] sm:$0xff]
    %v4520 = vld [vmem:[#allocation14 + $0x33c] sm:$0xff]
    %v4521 = vld [vmem:[#allocation14 + $0x344] sm:$0xf]
    %v4522 = vld [vmem:[#allocation14 + $0x348] sm:$0xff]
    %v4523 = vld [vmem:[#allocation14 + $0x350] sm:$0xff]
    %v4524 = vld [vmem:[#allocation14 + $0x358] sm:$0xff]
    %v4525 = vld [vmem:[#allocation14 + $0x360] sm:$0xf]
    %v4526 = vld [vmem:[#allocation14 + $0x364] sm:$0xff]
    %v4527 = vld [vmem:[#allocation14 + $0x36c] sm:$0xff]
    %v4528 = vld [vmem:[#allocation14 + $0x374] sm:$0xff]
    %v4529 = vld [vmem:[#allocation14 + $0x37c] sm:$0xf]
    %v4530 = vld [vmem:[#allocation14 + $0x380] sm:$0xff]
    %v4531 = vld [vmem:[#allocation14 + $0x388] sm:$0xff]
    %v4532 = vld [vmem:[#allocation14 + $0x390] sm:$0xff]
    %v4533 = vld [vmem:[#allocation14 + $0x398] sm:$0xf]
    %v4534 = vld [vmem:[#allocation14 + $0x39c] sm:$0xff]
    %v4535 = vld [vmem:[#allocation14 + $0x3a4] sm:$0xff]
    %v4536 = vld [vmem:[#allocation14 + $0x3ac] sm:$0xff]
    %v4537 = vld [vmem:[#allocation14 + $0x3b4] sm:$0xf]
    %v4538 = vld [vmem:[#allocation14 + $0x3b8] sm:$0xff]
    %v4539 = vld [vmem:[#allocation14 + $0x3c0] sm:$0xff]
    %v4540 = vld [vmem:[#allocation14 + $0x3c8] sm:$0xff]
    %v4541 = vld [vmem:[#allocation14 + $0x3d0] sm:$0xf]
    %v4542 = vld [vmem:[#allocation14 + $0x3d4] sm:$0xff]
    %v4543 = vld [vmem:[#allocation14 + $0x3dc] sm:$0xff]
    %v4544 = vld [vmem:[#allocation14 + $0x3e4] sm:$0xff]
    %v4545 = vld [vmem:[#allocation14 + $0x3ec] sm:$0xf]
    %v4546 = vld [vmem:[#allocation14 + $0x3f0] sm:$0xff]
    %v4547 = vld [vmem:[#allocation14 + $0x3f8] sm:$0xff]
    %v4548 = vld [vmem:[#allocation14 + $0x400] sm:$0xff]
    %v4549 = vld [vmem:[#allocation14 + $0x408] sm:$0xf]
    %v4550 = vld [vmem:[#allocation14 + $0x40c] sm:$0xff]
    %v4551 = vld [vmem:[#allocation14 + $0x414] sm:$0xff]
    %v4552 = vld [vmem:[#allocation14 + $0x41c] sm:$0xff]
    %v4553 = vld [vmem:[#allocation14 + $0x424] sm:$0xf]
    %v4554 = vld [vmem:[#allocation14 + $0x428] sm:$0xff]
    %v4555 = vld [vmem:[#allocation14 + $0x430] sm:$0xff]
    %v4556 = vld [vmem:[#allocation14 + $0x438] sm:$0xff]
    %v4557 = vld [vmem:[#allocation14 + $0x440] sm:$0xf]
    %v4558 = vld [vmem:[#allocation14 + $0x444] sm:$0xff]
    %v4559 = vld [vmem:[#allocation14 + $0x44c] sm:$0xff]
    %v4560 = vld [vmem:[#allocation14 + $0x454] sm:$0xff]
    %v4561 = vld [vmem:[#allocation14 + $0x45c] sm:$0xf]
    %v4562 = vld [vmem:[#allocation14 + $0x460] sm:$0xff]
    %v4563 = vld [vmem:[#allocation14 + $0x468] sm:$0xff]
    %v4564 = vld [vmem:[#allocation14 + $0x470] sm:$0xff]
    %v4565 = vld [vmem:[#allocation14 + $0x478] sm:$0xf]
    %v4566 = vld [vmem:[#allocation14 + $0x47c] sm:$0xff]
    %v4567 = vld [vmem:[#allocation14 + $0x484] sm:$0xff]
    %v4568 = vld [vmem:[#allocation14 + $0x48c] sm:$0xff]
    %v4569 = vld [vmem:[#allocation14 + $0x494] sm:$0xf]
    %v4570 = vld [vmem:[#allocation14 + $0x498] sm:$0xff]
    %v4571 = vld [vmem:[#allocation14 + $0x4a0] sm:$0xff]
    %v4572 = vld [vmem:[#allocation14 + $0x4a8] sm:$0xff]
    %v4573 = vld [vmem:[#allocation14 + $0x4b0] sm:$0xf]
    %v4574 = vld [vmem:[#allocation14 + $0x4b4] sm:$0xff]
    %v4575 = vld [vmem:[#allocation14 + $0x4bc] sm:$0xff]
    %v4576 = vld [vmem:[#allocation14 + $0x4c4] sm:$0xff]
    %v4577 = vld [vmem:[#allocation14 + $0x4cc] sm:$0xf]
    %v4578 = vld [vmem:[#allocation14 + $0x4d0] sm:$0xff]
    %v4579 = vld [vmem:[#allocation14 + $0x4d8] sm:$0xff]
    %v4580 = vld [vmem:[#allocation14 + $0x4e0] sm:$0xff]
    %v4581 = vld [vmem:[#allocation14 + $0x4e8] sm:$0xf]
    %v4582 = vld [vmem:[#allocation14 + $0x4ec] sm:$0xff]
    %v4583 = vld [vmem:[#allocation14 + $0x4f4] sm:$0xff]
    %v4584 = vld [vmem:[#allocation14 + $0x4fc] sm:$0xff]
    %v4585 = vld [vmem:[#allocation14 + $0x504] sm:$0xf]
    %v4586 = vld [vmem:[#allocation14 + $0x508] sm:$0xff]
    %v4587 = vld [vmem:[#allocation14 + $0x510] sm:$0xff]
    %v4588 = vld [vmem:[#allocation14 + $0x518] sm:$0xff]
    %v4589 = vld [vmem:[#allocation14 + $0x520] sm:$0xf]
    %v4590 = vld [vmem:[#allocation14 + $0x524] sm:$0xff]
    %v4591 = vld [vmem:[#allocation14 + $0x52c] sm:$0xff]
    %v4592 = vld [vmem:[#allocation14 + $0x534] sm:$0xff]
    %v4593 = vld [vmem:[#allocation14 + $0x53c] sm:$0xf]
    %v4594 = vld [vmem:[#allocation14 + $0x540] sm:$0xff]
    %v4595 = vld [vmem:[#allocation14 + $0x548] sm:$0xff]
    %v4596 = vld [vmem:[#allocation14 + $0x550] sm:$0xff]
    %v4597 = vld [vmem:[#allocation14 + $0x558] sm:$0xf]
    %v4598 = vld [vmem:[#allocation14 + $0x55c] sm:$0xff]
    %v4599 = vld [vmem:[#allocation14 + $0x564] sm:$0xff]
    %v4600 = vld [vmem:[#allocation14 + $0x56c] sm:$0xff]
    %v4601 = vld [vmem:[#allocation14 + $0x574] sm:$0xf]
    %v4602 = vld [vmem:[#allocation14 + $0x578] sm:$0xff]
    %v4603 = vld [vmem:[#allocation14 + $0x580] sm:$0xff]
    %v4604 = vld [vmem:[#allocation14 + $0x588] sm:$0xff]
    %v4605 = vld [vmem:[#allocation14 + $0x590] sm:$0xf]
    %v4606 = vld [vmem:[#allocation14 + $0x594] sm:$0xff]
    %v4607 = vld [vmem:[#allocation14 + $0x59c] sm:$0xff]
    %v4608 = vld [vmem:[#allocation14 + $0x5a4] sm:$0xff]
    %v4609 = vld [vmem:[#allocation14 + $0x5ac] sm:$0xf]
    %v4610 = vld [vmem:[#allocation14 + $0x5b0] sm:$0xff]
    %v4611 = vld [vmem:[#allocation14 + $0x5b8] sm:$0xff]
    %v4612 = vld [vmem:[#allocation14 + $0x5c0] sm:$0xff]
    %v4613 = vld [vmem:[#allocation14 + $0x5c8] sm:$0xf]
    %v4614 = vld [vmem:[#allocation14 + $0x5cc] sm:$0xff]
    %v4615 = vld [vmem:[#allocation14 + $0x5d4] sm:$0xff]
    %v4616 = vld [vmem:[#allocation14 + $0x5dc] sm:$0xff]
    %v4617 = vld [vmem:[#allocation14 + $0x5e4] sm:$0xf]
    %v4618 = vld [vmem:[#allocation14 + $0x5e8] sm:$0xff]
    %v4619 = vld [vmem:[#allocation14 + $0x5f0] sm:$0xff]
    %v4620 = vld [vmem:[#allocation14 + $0x5f8] sm:$0xff]
    %v4621 = vld [vmem:[#allocation14 + $0x600] sm:$0xf]
    %v4622 = vld [vmem:[#allocation14 + $0x604] sm:$0xff]
    %v4623 = vld [vmem:[#allocation14 + $0x60c] sm:$0xff]
    %v4624 = vld [vmem:[#allocation14 + $0x614] sm:$0xff]
    %v4625 = vld [vmem:[#allocation14 + $0x61c] sm:$0xf]
    %v4626 = vld [vmem:[#allocation14 + $0x620] sm:$0xff]
    %v4627 = vld [vmem:[#allocation14 + $0x628] sm:$0xff]
    %v4628 = vld [vmem:[#allocation14 + $0x630] sm:$0xff]
    %v4629 = vld [vmem:[#allocation14 + $0x638] sm:$0xf]
    %v4630 = vld [vmem:[#allocation14 + $0x63c] sm:$0xff]
    %v4631 = vld [vmem:[#allocation14 + $0x644] sm:$0xff]
    %v4632 = vld [vmem:[#allocation14 + $0x64c] sm:$0xff]
    %v4633 = vld [vmem:[#allocation14 + $0x654] sm:$0xf]
    %v4634 = vld [vmem:[#allocation14 + $0x658] sm:$0xff]
    %v4635 = vld [vmem:[#allocation14 + $0x660] sm:$0xff]
    %v4636 = vld [vmem:[#allocation14 + $0x668] sm:$0xff]
    %v4637 = vld [vmem:[#allocation14 + $0x670] sm:$0xf]
    %v4638 = vld [vmem:[#allocation14 + $0x674] sm:$0xff]
    %v4639 = vld [vmem:[#allocation14 + $0x67c] sm:$0xff]
    %v4640 = vld [vmem:[#allocation14 + $0x684] sm:$0xff]
    %v4641 = vld [vmem:[#allocation14 + $0x68c] sm:$0xf]
    %v4642 = vld [vmem:[#allocation14 + $0x690] sm:$0xff]
    %v4643 = vld [vmem:[#allocation14 + $0x698] sm:$0xff]
    %v4644 = vld [vmem:[#allocation14 + $0x6a0] sm:$0xff]
    %v4645 = vld [vmem:[#allocation14 + $0x6a8] sm:$0xf]
    %v4646 = vld [vmem:[#allocation14 + $0x6ac] sm:$0xff]
    %v4647 = vld [vmem:[#allocation14 + $0x6b4] sm:$0xff]
    %v4648 = vld [vmem:[#allocation14 + $0x6bc] sm:$0xff]
    %v4649 = vld [vmem:[#allocation14 + $0x6c4] sm:$0xf]
    %v4650 = vld [vmem:[#allocation14 + $0x6c8] sm:$0xff]
    %v4651 = vld [vmem:[#allocation14 + $0x6d0] sm:$0xff]
    %v4652 = vld [vmem:[#allocation14 + $0x6d8] sm:$0xff]
    %v4653 = vld [vmem:[#allocation14 + $0x6e0] sm:$0xf]
    %v4654 = vld [vmem:[#allocation14 + $0x6e4] sm:$0xff]
    %v4655 = vld [vmem:[#allocation14 + $0x6ec] sm:$0xff]
    %v4656 = vld [vmem:[#allocation14 + $0x6f4] sm:$0xff]
    %v4657 = vld [vmem:[#allocation14 + $0x6fc] sm:$0xf]
    %v4658 = vld [vmem:[%s12] sm:$0xff]
    %v4660 = vlaneseq
    %v4661 = vshrl.u32 %v4660, 7
    %v4662 = vsub.s32 0, %v4661
    %v4663 = vrot.slane %v4658, %v4662
    %v4664 = vlaneseq
    %v4665 = vshrl.u32 %v4664, 7
    %v4666 = vsub.s32 1, %v4665
    %v4667 = vrot.slane %v4658, %v4666
    %v4668 = vlaneseq
    %v4669 = vshrl.u32 %v4668, 7
    %v4670 = vsub.s32 2, %v4669
    %v4671 = vrot.slane %v4658, %v4670
    %v4672 = vlaneseq
    %v4673 = vshrl.u32 %v4672, 7
    %v4674 = vsub.s32 3, %v4673
    %v4675 = vrot.slane %v4658, %v4674
    %v4676 = vlaneseq
    %v4677 = vshrl.u32 %v4676, 7
    %v4678 = vsub.s32 4, %v4677
    %v4679 = vrot.slane %v4658, %v4678
    %v4680 = vlaneseq
    %v4681 = vshrl.u32 %v4680, 7
    %v4682 = vsub.s32 5, %v4681
    %v4683 = vrot.slane %v4658, %v4682
    %v4684 = vlaneseq
    %v4685 = vshrl.u32 %v4684, 7
    %v4686 = vsub.s32 6, %v4685
    %v4687 = vrot.slane %v4658, %v4686
    %v4951 = vunpack.c.l.b16 %v4402
    %v4952 = vunpack.c.h.b16 %v4402
    %v4953 = vunpack.c.l.b16 %v4403
    %v4954 = vunpack.c.h.b16 %v4403
    %v4955 = vunpack.c.l.b16 %v4404
    %v4956 = vunpack.c.h.b16 %v4404
    %v4957 = vunpack.c.l.b16 %v4405
    %v4958 = vunpack.c.l.b16 %v4406
    %v4959 = vunpack.c.h.b16 %v4406
    %v4960 = vunpack.c.l.b16 %v4407
    %v4961 = vunpack.c.h.b16 %v4407
    %v4962 = vunpack.c.l.b16 %v4408
    %v4963 = vunpack.c.h.b16 %v4408
    %v4964 = vunpack.c.l.b16 %v4409
    %v4965 = vunpack.c.l.b16 %v4410
    %v4966 = vunpack.c.h.b16 %v4410
    %v4967 = vunpack.c.l.b16 %v4411
    %v4968 = vunpack.c.h.b16 %v4411
    %v4969 = vunpack.c.l.b16 %v4412
    %v4970 = vunpack.c.h.b16 %v4412
    %v4971 = vunpack.c.l.b16 %v4413
    %v4972 = vunpack.c.l.b16 %v4414
    %v4973 = vunpack.c.h.b16 %v4414
    %v4974 = vunpack.c.l.b16 %v4415
    %v4975 = vunpack.c.h.b16 %v4415
    %v4976 = vunpack.c.l.b16 %v4416
    %v4977 = vunpack.c.h.b16 %v4416
    %v4978 = vunpack.c.l.b16 %v4417
    %v4979 = vunpack.c.l.b16 %v4418
    %v4980 = vunpack.c.h.b16 %v4418
    %v4981 = vunpack.c.l.b16 %v4419
    %v4982 = vunpack.c.h.b16 %v4419
    %v4983 = vunpack.c.l.b16 %v4420
    %v4984 = vunpack.c.h.b16 %v4420
    %v4985 = vunpack.c.l.b16 %v4421
    %v4986 = vunpack.c.l.b16 %v4422
    %v4987 = vunpack.c.h.b16 %v4422
    %v4988 = vunpack.c.l.b16 %v4423
    %v4989 = vunpack.c.h.b16 %v4423
    %v4990 = vunpack.c.l.b16 %v4424
    %v4991 = vunpack.c.h.b16 %v4424
    %v4992 = vunpack.c.l.b16 %v4425
    %v4993 = vunpack.c.l.b16 %v4426
    %v4994 = vunpack.c.h.b16 %v4426
    %v4995 = vunpack.c.l.b16 %v4427
    %v4996 = vunpack.c.h.b16 %v4427
    %v4997 = vunpack.c.l.b16 %v4428
    %v4998 = vunpack.c.h.b16 %v4428
    %v4999 = vunpack.c.l.b16 %v4429
    %v5000 = vunpack.c.l.b16 %v4430
    %v5001 = vunpack.c.h.b16 %v4430
    %v5002 = vunpack.c.l.b16 %v4431
    %v5003 = vunpack.c.h.b16 %v4431
    %v5004 = vunpack.c.l.b16 %v4432
    %v5005 = vunpack.c.h.b16 %v4432
    %v5006 = vunpack.c.l.b16 %v4433
    %v5007 = vunpack.c.l.b16 %v4434
    %v5008 = vunpack.c.h.b16 %v4434
    %v5009 = vunpack.c.l.b16 %v4435
    %v5010 = vunpack.c.h.b16 %v4435
    %v5011 = vunpack.c.l.b16 %v4436
    %v5012 = vunpack.c.h.b16 %v4436
    %v5013 = vunpack.c.l.b16 %v4437
    %v5014 = vunpack.c.l.b16 %v4438
    %v5015 = vunpack.c.h.b16 %v4438
    %v5016 = vunpack.c.l.b16 %v4439
    %v5017 = vunpack.c.h.b16 %v4439
    %v5018 = vunpack.c.l.b16 %v4440
    %v5019 = vunpack.c.h.b16 %v4440
    %v5020 = vunpack.c.l.b16 %v4441
    %v5021 = vunpack.c.l.b16 %v4442
    %v5022 = vunpack.c.h.b16 %v4442
    %v5023 = vunpack.c.l.b16 %v4443
    %v5024 = vunpack.c.h.b16 %v4443
    %v5025 = vunpack.c.l.b16 %v4444
    %v5026 = vunpack.c.h.b16 %v4444
    %v5027 = vunpack.c.l.b16 %v4445
    %v5028 = vunpack.c.l.b16 %v4446
    %v5029 = vunpack.c.h.b16 %v4446
    %v5030 = vunpack.c.l.b16 %v4447
    %v5031 = vunpack.c.h.b16 %v4447
    %v5032 = vunpack.c.l.b16 %v4448
    %v5033 = vunpack.c.h.b16 %v4448
    %v5034 = vunpack.c.l.b16 %v4449
    %v5035 = vunpack.c.l.b16 %v4450
    %v5036 = vunpack.c.h.b16 %v4450
    %v5037 = vunpack.c.l.b16 %v4451
    %v5038 = vunpack.c.h.b16 %v4451
    %v5039 = vunpack.c.l.b16 %v4452
    %v5040 = vunpack.c.h.b16 %v4452
    %v5041 = vunpack.c.l.b16 %v4453
    %v5042 = vunpack.c.l.b16 %v4454
    %v5043 = vunpack.c.h.b16 %v4454
    %v5044 = vunpack.c.l.b16 %v4455
    %v5045 = vunpack.c.h.b16 %v4455
    %v5046 = vunpack.c.l.b16 %v4456
    %v5047 = vunpack.c.h.b16 %v4456
    %v5048 = vunpack.c.l.b16 %v4457
    %v5049 = vunpack.c.l.b16 %v4458
    %v5050 = vunpack.c.h.b16 %v4458
    %v5051 = vunpack.c.l.b16 %v4459
    %v5052 = vunpack.c.h.b16 %v4459
    %v5053 = vunpack.c.l.b16 %v4460
    %v5054 = vunpack.c.h.b16 %v4460
    %v5055 = vunpack.c.l.b16 %v4461
    %v5056 = vunpack.c.l.b16 %v4462
    %v5057 = vunpack.c.h.b16 %v4462
    %v5058 = vunpack.c.l.b16 %v4463
    %v5059 = vunpack.c.h.b16 %v4463
    %v5060 = vunpack.c.l.b16 %v4464
    %v5061 = vunpack.c.h.b16 %v4464
    %v5062 = vunpack.c.l.b16 %v4465
    %v5063 = vunpack.c.l.b16 %v4466
    %v5064 = vunpack.c.h.b16 %v4466
    %v5065 = vunpack.c.l.b16 %v4467
    %v5066 = vunpack.c.h.b16 %v4467
    %v5067 = vunpack.c.l.b16 %v4468
    %v5068 = vunpack.c.h.b16 %v4468
    %v5069 = vunpack.c.l.b16 %v4469
    %v5070 = vunpack.c.l.b16 %v4470
    %v5071 = vunpack.c.h.b16 %v4470
    %v5072 = vunpack.c.l.b16 %v4471
    %v5073 = vunpack.c.h.b16 %v4471
    %v5074 = vunpack.c.l.b16 %v4472
    %v5075 = vunpack.c.h.b16 %v4472
    %v5076 = vunpack.c.l.b16 %v4473
    %v5077 = vunpack.c.l.b16 %v4474
    %v5078 = vunpack.c.h.b16 %v4474
    %v5079 = vunpack.c.l.b16 %v4475
    %v5080 = vunpack.c.h.b16 %v4475
    %v5081 = vunpack.c.l.b16 %v4476
    %v5082 = vunpack.c.h.b16 %v4476
    %v5083 = vunpack.c.l.b16 %v4477
    %v5084 = vunpack.c.l.b16 %v4478
    %v5085 = vunpack.c.h.b16 %v4478
    %v5086 = vunpack.c.l.b16 %v4479
    %v5087 = vunpack.c.h.b16 %v4479
    %v5088 = vunpack.c.l.b16 %v4480
    %v5089 = vunpack.c.h.b16 %v4480
    %v5090 = vunpack.c.l.b16 %v4481
    %v5091 = vunpack.c.l.b16 %v4482
    %v5092 = vunpack.c.h.b16 %v4482
    %v5093 = vunpack.c.l.b16 %v4483
    %v5094 = vunpack.c.h.b16 %v4483
    %v5095 = vunpack.c.l.b16 %v4484
    %v5096 = vunpack.c.h.b16 %v4484
    %v5097 = vunpack.c.l.b16 %v4485
    %v5098 = vunpack.c.l.b16 %v4486
    %v5099 = vunpack.c.h.b16 %v4486
    %v5100 = vunpack.c.l.b16 %v4487
    %v5101 = vunpack.c.h.b16 %v4487
    %v5102 = vunpack.c.l.b16 %v4488
    %v5103 = vunpack.c.h.b16 %v4488
    %v5104 = vunpack.c.l.b16 %v4489
    %v5105 = vunpack.c.l.b16 %v4490
    %v5106 = vunpack.c.h.b16 %v4490
    %v5107 = vunpack.c.l.b16 %v4491
    %v5108 = vunpack.c.h.b16 %v4491
    %v5109 = vunpack.c.l.b16 %v4492
    %v5110 = vunpack.c.h.b16 %v4492
    %v5111 = vunpack.c.l.b16 %v4493
    %v5112 = vunpack.c.l.b16 %v4494
    %v5113 = vunpack.c.h.b16 %v4494
    %v5114 = vunpack.c.l.b16 %v4495
    %v5115 = vunpack.c.h.b16 %v4495
    %v5116 = vunpack.c.l.b16 %v4496
    %v5117 = vunpack.c.h.b16 %v4496
    %v5118 = vunpack.c.l.b16 %v4497
    %v5119 = vunpack.c.l.b16 %v4498
    %v5120 = vunpack.c.h.b16 %v4498
    %v5121 = vunpack.c.l.b16 %v4499
    %v5122 = vunpack.c.h.b16 %v4499
    %v5123 = vunpack.c.l.b16 %v4500
    %v5124 = vunpack.c.h.b16 %v4500
    %v5125 = vunpack.c.l.b16 %v4501
    %v5126 = vunpack.c.l.b16 %v4502
    %v5127 = vunpack.c.h.b16 %v4502
    %v5128 = vunpack.c.l.b16 %v4503
    %v5129 = vunpack.c.h.b16 %v4503
    %v5130 = vunpack.c.l.b16 %v4504
    %v5131 = vunpack.c.h.b16 %v4504
    %v5132 = vunpack.c.l.b16 %v4505
    %v5133 = vunpack.c.l.b16 %v4506
    %v5134 = vunpack.c.h.b16 %v4506
    %v5135 = vunpack.c.l.b16 %v4507
    %v5136 = vunpack.c.h.b16 %v4507
    %v5137 = vunpack.c.l.b16 %v4508
    %v5138 = vunpack.c.h.b16 %v4508
    %v5139 = vunpack.c.l.b16 %v4509
    %v5140 = vunpack.c.l.b16 %v4510
    %v5141 = vunpack.c.h.b16 %v4510
    %v5142 = vunpack.c.l.b16 %v4511
    %v5143 = vunpack.c.h.b16 %v4511
    %v5144 = vunpack.c.l.b16 %v4512
    %v5145 = vunpack.c.h.b16 %v4512
    %v5146 = vunpack.c.l.b16 %v4513
    %v5147 = vunpack.c.l.b16 %v4514
    %v5148 = vunpack.c.h.b16 %v4514
    %v5149 = vunpack.c.l.b16 %v4515
    %v5150 = vunpack.c.h.b16 %v4515
    %v5151 = vunpack.c.l.b16 %v4516
    %v5152 = vunpack.c.h.b16 %v4516
    %v5153 = vunpack.c.l.b16 %v4517
    %v5154 = vunpack.c.l.b16 %v4518
    %v5155 = vunpack.c.h.b16 %v4518
    %v5156 = vunpack.c.l.b16 %v4519
    %v5157 = vunpack.c.h.b16 %v4519
    %v5158 = vunpack.c.l.b16 %v4520
    %v5159 = vunpack.c.h.b16 %v4520
    %v5160 = vunpack.c.l.b16 %v4521
    %v5161 = vunpack.c.l.b16 %v4522
    %v5162 = vunpack.c.h.b16 %v4522
    %v5163 = vunpack.c.l.b16 %v4523
    %v5164 = vunpack.c.h.b16 %v4523
    %v5165 = vunpack.c.l.b16 %v4524
    %v5166 = vunpack.c.h.b16 %v4524
    %v5167 = vunpack.c.l.b16 %v4525
    %v5168 = vunpack.c.l.b16 %v4526
    %v5169 = vunpack.c.h.b16 %v4526
    %v5170 = vunpack.c.l.b16 %v4527
    %v5171 = vunpack.c.h.b16 %v4527
    %v5172 = vunpack.c.l.b16 %v4528
    %v5173 = vunpack.c.h.b16 %v4528
    %v5174 = vunpack.c.l.b16 %v4529
    %v5175 = vunpack.c.l.b16 %v4530
    %v5176 = vunpack.c.h.b16 %v4530
    %v5177 = vunpack.c.l.b16 %v4531
    %v5178 = vunpack.c.h.b16 %v4531
    %v5179 = vunpack.c.l.b16 %v4532
    %v5180 = vunpack.c.h.b16 %v4532
    %v5181 = vunpack.c.l.b16 %v4533
    %v5182 = vunpack.c.l.b16 %v4534
    %v5183 = vunpack.c.h.b16 %v4534
    %v5184 = vunpack.c.l.b16 %v4535
    %v5185 = vunpack.c.h.b16 %v4535
    %v5186 = vunpack.c.l.b16 %v4536
    %v5187 = vunpack.c.h.b16 %v4536
    %v5188 = vunpack.c.l.b16 %v4537
    %v5189 = vunpack.c.l.b16 %v4538
    %v5190 = vunpack.c.h.b16 %v4538
    %v5191 = vunpack.c.l.b16 %v4539
    %v5192 = vunpack.c.h.b16 %v4539
    %v5193 = vunpack.c.l.b16 %v4540
    %v5194 = vunpack.c.h.b16 %v4540
    %v5195 = vunpack.c.l.b16 %v4541
    %v5196 = vunpack.c.l.b16 %v4542
    %v5197 = vunpack.c.h.b16 %v4542
    %v5198 = vunpack.c.l.b16 %v4543
    %v5199 = vunpack.c.h.b16 %v4543
    %v5200 = vunpack.c.l.b16 %v4544
    %v5201 = vunpack.c.h.b16 %v4544
    %v5202 = vunpack.c.l.b16 %v4545
    %v5203 = vunpack.c.l.b16 %v4546
    %v5204 = vunpack.c.h.b16 %v4546
    %v5205 = vunpack.c.l.b16 %v4547
    %v5206 = vunpack.c.h.b16 %v4547
    %v5207 = vunpack.c.l.b16 %v4548
    %v5208 = vunpack.c.h.b16 %v4548
    %v5209 = vunpack.c.l.b16 %v4549
    %v5210 = vunpack.c.l.b16 %v4550
    %v5211 = vunpack.c.h.b16 %v4550
    %v5212 = vunpack.c.l.b16 %v4551
    %v5213 = vunpack.c.h.b16 %v4551
    %v5214 = vunpack.c.l.b16 %v4552
    %v5215 = vunpack.c.h.b16 %v4552
    %v5216 = vunpack.c.l.b16 %v4553
    %v5217 = vunpack.c.l.b16 %v4554
    %v5218 = vunpack.c.h.b16 %v4554
    %v5219 = vunpack.c.l.b16 %v4555
    %v5220 = vunpack.c.h.b16 %v4555
    %v5221 = vunpack.c.l.b16 %v4556
    %v5222 = vunpack.c.h.b16 %v4556
    %v5223 = vunpack.c.l.b16 %v4557
    %v5224 = vunpack.c.l.b16 %v4558
    %v5225 = vunpack.c.h.b16 %v4558
    %v5226 = vunpack.c.l.b16 %v4559
    %v5227 = vunpack.c.h.b16 %v4559
    %v5228 = vunpack.c.l.b16 %v4560
    %v5229 = vunpack.c.h.b16 %v4560
    %v5230 = vunpack.c.l.b16 %v4561
    %v5231 = vunpack.c.l.b16 %v4562
    %v5232 = vunpack.c.h.b16 %v4562
    %v5233 = vunpack.c.l.b16 %v4563
    %v5234 = vunpack.c.h.b16 %v4563
    %v5235 = vunpack.c.l.b16 %v4564
    %v5236 = vunpack.c.h.b16 %v4564
    %v5237 = vunpack.c.l.b16 %v4565
    %v5238 = vunpack.c.l.b16 %v4566
    %v5239 = vunpack.c.h.b16 %v4566
    %v5240 = vunpack.c.l.b16 %v4567
    %v5241 = vunpack.c.h.b16 %v4567
    %v5242 = vunpack.c.l.b16 %v4568
    %v5243 = vunpack.c.h.b16 %v4568
    %v5244 = vunpack.c.l.b16 %v4569
    %v5245 = vunpack.c.l.b16 %v4570
    %v5246 = vunpack.c.h.b16 %v4570
    %v5247 = vunpack.c.l.b16 %v4571
    %v5248 = vunpack.c.h.b16 %v4571
    %v5249 = vunpack.c.l.b16 %v4572
    %v5250 = vunpack.c.h.b16 %v4572
    %v5251 = vunpack.c.l.b16 %v4573
    %v5252 = vunpack.c.l.b16 %v4574
    %v5253 = vunpack.c.h.b16 %v4574
    %v5254 = vunpack.c.l.b16 %v4575
    %v5255 = vunpack.c.h.b16 %v4575
    %v5256 = vunpack.c.l.b16 %v4576
    %v5257 = vunpack.c.h.b16 %v4576
    %v5258 = vunpack.c.l.b16 %v4577
    %v5259 = vunpack.c.l.b16 %v4578
    %v5260 = vunpack.c.h.b16 %v4578
    %v5261 = vunpack.c.l.b16 %v4579
    %v5262 = vunpack.c.h.b16 %v4579
    %v5263 = vunpack.c.l.b16 %v4580
    %v5264 = vunpack.c.h.b16 %v4580
    %v5265 = vunpack.c.l.b16 %v4581
    %v5266 = vunpack.c.l.b16 %v4582
    %v5267 = vunpack.c.h.b16 %v4582
    %v5268 = vunpack.c.l.b16 %v4583
    %v5269 = vunpack.c.h.b16 %v4583
    %v5270 = vunpack.c.l.b16 %v4584
    %v5271 = vunpack.c.h.b16 %v4584
    %v5272 = vunpack.c.l.b16 %v4585
    %v5273 = vunpack.c.l.b16 %v4586
    %v5274 = vunpack.c.h.b16 %v4586
    %v5275 = vunpack.c.l.b16 %v4587
    %v5276 = vunpack.c.h.b16 %v4587
    %v5277 = vunpack.c.l.b16 %v4588
    %v5278 = vunpack.c.h.b16 %v4588
    %v5279 = vunpack.c.l.b16 %v4589
    %v5280 = vunpack.c.l.b16 %v4590
    %v5281 = vunpack.c.h.b16 %v4590
    %v5282 = vunpack.c.l.b16 %v4591
    %v5283 = vunpack.c.h.b16 %v4591
    %v5284 = vunpack.c.l.b16 %v4592
    %v5285 = vunpack.c.h.b16 %v4592
    %v5286 = vunpack.c.l.b16 %v4593
    %v5287 = vunpack.c.l.b16 %v4594
    %v5288 = vunpack.c.h.b16 %v4594
    %v5289 = vunpack.c.l.b16 %v4595
    %v5290 = vunpack.c.h.b16 %v4595
    %v5291 = vunpack.c.l.b16 %v4596
    %v5292 = vunpack.c.h.b16 %v4596
    %v5293 = vunpack.c.l.b16 %v4597
    %v5294 = vunpack.c.l.b16 %v4598
    %v5295 = vunpack.c.h.b16 %v4598
    %v5296 = vunpack.c.l.b16 %v4599
    %v5297 = vunpack.c.h.b16 %v4599
    %v5298 = vunpack.c.l.b16 %v4600
    %v5299 = vunpack.c.h.b16 %v4600
    %v5300 = vunpack.c.l.b16 %v4601
    %v5301 = vunpack.c.l.b16 %v4602
    %v5302 = vunpack.c.h.b16 %v4602
    %v5303 = vunpack.c.l.b16 %v4603
    %v5304 = vunpack.c.h.b16 %v4603
    %v5305 = vunpack.c.l.b16 %v4604
    %v5306 = vunpack.c.h.b16 %v4604
    %v5307 = vunpack.c.l.b16 %v4605
    %v5308 = vunpack.c.l.b16 %v4606
    %v5309 = vunpack.c.h.b16 %v4606
    %v5310 = vunpack.c.l.b16 %v4607
    %v5311 = vunpack.c.h.b16 %v4607
    %v5312 = vunpack.c.l.b16 %v4608
    %v5313 = vunpack.c.h.b16 %v4608
    %v5314 = vunpack.c.l.b16 %v4609
    %v5315 = vunpack.c.l.b16 %v4610
    %v5316 = vunpack.c.h.b16 %v4610
    %v5317 = vunpack.c.l.b16 %v4611
    %v5318 = vunpack.c.h.b16 %v4611
    %v5319 = vunpack.c.l.b16 %v4612
    %v5320 = vunpack.c.h.b16 %v4612
    %v5321 = vunpack.c.l.b16 %v4613
    %v5322 = vunpack.c.l.b16 %v4614
    %v5323 = vunpack.c.h.b16 %v4614
    %v5324 = vunpack.c.l.b16 %v4615
    %v5325 = vunpack.c.h.b16 %v4615
    %v5326 = vunpack.c.l.b16 %v4616
    %v5327 = vunpack.c.h.b16 %v4616
    %v5328 = vunpack.c.l.b16 %v4617
    %v5329 = vunpack.c.l.b16 %v4618
    %v5330 = vunpack.c.h.b16 %v4618
    %v5331 = vunpack.c.l.b16 %v4619
    %v5332 = vunpack.c.h.b16 %v4619
    %v5333 = vunpack.c.l.b16 %v4620
    %v5334 = vunpack.c.h.b16 %v4620
    %v5335 = vunpack.c.l.b16 %v4621
    %v5336 = vunpack.c.l.b16 %v4622
    %v5337 = vunpack.c.h.b16 %v4622
    %v5338 = vunpack.c.l.b16 %v4623
    %v5339 = vunpack.c.h.b16 %v4623
    %v5340 = vunpack.c.l.b16 %v4624
    %v5341 = vunpack.c.h.b16 %v4624
    %v5342 = vunpack.c.l.b16 %v4625
    %v5343 = vunpack.c.l.b16 %v4626
    %v5344 = vunpack.c.h.b16 %v4626
    %v5345 = vunpack.c.l.b16 %v4627
    %v5346 = vunpack.c.h.b16 %v4627
    %v5347 = vunpack.c.l.b16 %v4628
    %v5348 = vunpack.c.h.b16 %v4628
    %v5349 = vunpack.c.l.b16 %v4629
    %v5350 = vunpack.c.l.b16 %v4630
    %v5351 = vunpack.c.h.b16 %v4630
    %v5352 = vunpack.c.l.b16 %v4631
    %v5353 = vunpack.c.h.b16 %v4631
    %v5354 = vunpack.c.l.b16 %v4632
    %v5355 = vunpack.c.h.b16 %v4632
    %v5356 = vunpack.c.l.b16 %v4633
    %v5357 = vunpack.c.l.b16 %v4634
    %v5358 = vunpack.c.h.b16 %v4634
    %v5359 = vunpack.c.l.b16 %v4635
    %v5360 = vunpack.c.h.b16 %v4635
    %v5361 = vunpack.c.l.b16 %v4636
    %v5362 = vunpack.c.h.b16 %v4636
    %v5363 = vunpack.c.l.b16 %v4637
    %v5364 = vunpack.c.l.b16 %v4638
    %v5365 = vunpack.c.h.b16 %v4638
    %v5366 = vunpack.c.l.b16 %v4639
    %v5367 = vunpack.c.h.b16 %v4639
    %v5368 = vunpack.c.l.b16 %v4640
    %v5369 = vunpack.c.h.b16 %v4640
    %v5370 = vunpack.c.l.b16 %v4641
    %v5371 = vunpack.c.l.b16 %v4642
    %v5372 = vunpack.c.h.b16 %v4642
    %v5373 = vunpack.c.l.b16 %v4643
    %v5374 = vunpack.c.h.b16 %v4643
    %v5375 = vunpack.c.l.b16 %v4644
    %v5376 = vunpack.c.h.b16 %v4644
    %v5377 = vunpack.c.l.b16 %v4645
    %v5378 = vunpack.c.l.b16 %v4646
    %v5379 = vunpack.c.h.b16 %v4646
    %v5380 = vunpack.c.l.b16 %v4647
    %v5381 = vunpack.c.h.b16 %v4647
    %v5382 = vunpack.c.l.b16 %v4648
    %v5383 = vunpack.c.h.b16 %v4648
    %v5384 = vunpack.c.l.b16 %v4649
    %v5385 = vunpack.c.l.b16 %v4650
    %v5386 = vunpack.c.h.b16 %v4650
    %v5387 = vunpack.c.l.b16 %v4651
    %v5388 = vunpack.c.h.b16 %v4651
    %v5389 = vunpack.c.l.b16 %v4652
    %v5390 = vunpack.c.h.b16 %v4652
    %v5391 = vunpack.c.l.b16 %v4653
    %v5392 = vunpack.c.l.b16 %v4654
    %v5393 = vunpack.c.h.b16 %v4654
    %v5394 = vunpack.c.l.b16 %v4655
    %v5395 = vunpack.c.h.b16 %v4655
    %v5396 = vunpack.c.l.b16 %v4656
    %v5397 = vunpack.c.h.b16 %v4656
    %v5398 = vunpack.c.l.b16 %v4657
    %v5399 = vpack.c.b16 %v4958, %v4951
    %v5400 = vpack.c.b16 %v4959, %v4952
    %v5401 = vpack.c.b16 %v4960, %v4953
    %v5402 = vpack.c.b16 %v4961, %v4954
    %v5403 = vpack.c.b16 %v4962, %v4955
    %v5404 = vpack.c.b16 %v4963, %v4956
    %v5405 = vpack.c.b16 %v4964, %v4957
    %v5406 = vpack.c.b16 %v4972, %v4965
    %v5407 = vpack.c.b16 %v4973, %v4966
    %v5408 = vpack.c.b16 %v4974, %v4967
    %v5409 = vpack.c.b16 %v4975, %v4968
    %v5410 = vpack.c.b16 %v4976, %v4969
    %v5411 = vpack.c.b16 %v4977, %v4970
    %v5412 = vpack.c.b16 %v4978, %v4971
    %v5413 = vpack.c.b16 %v4986, %v4979
    %v5414 = vpack.c.b16 %v4987, %v4980
    %v5415 = vpack.c.b16 %v4988, %v4981
    %v5416 = vpack.c.b16 %v4989, %v4982
    %v5417 = vpack.c.b16 %v4990, %v4983
    %v5418 = vpack.c.b16 %v4991, %v4984
    %v5419 = vpack.c.b16 %v4992, %v4985
    %v5420 = vpack.c.b16 %v5000, %v4993
    %v5421 = vpack.c.b16 %v5001, %v4994
    %v5422 = vpack.c.b16 %v5002, %v4995
    %v5423 = vpack.c.b16 %v5003, %v4996
    %v5424 = vpack.c.b16 %v5004, %v4997
    %v5425 = vpack.c.b16 %v5005, %v4998
    %v5426 = vpack.c.b16 %v5006, %v4999
    %v5427 = vpack.c.b16 %v5014, %v5007
    %v5428 = vpack.c.b16 %v5015, %v5008
    %v5429 = vpack.c.b16 %v5016, %v5009
    %v5430 = vpack.c.b16 %v5017, %v5010
    %v5431 = vpack.c.b16 %v5018, %v5011
    %v5432 = vpack.c.b16 %v5019, %v5012
    %v5433 = vpack.c.b16 %v5020, %v5013
    %v5434 = vpack.c.b16 %v5028, %v5021
    %v5435 = vpack.c.b16 %v5029, %v5022
    %v5436 = vpack.c.b16 %v5030, %v5023
    %v5437 = vpack.c.b16 %v5031, %v5024
    %v5438 = vpack.c.b16 %v5032, %v5025
    %v5439 = vpack.c.b16 %v5033, %v5026
    %v5440 = vpack.c.b16 %v5034, %v5027
    %v5441 = vpack.c.b16 %v5042, %v5035
    %v5442 = vpack.c.b16 %v5043, %v5036
    %v5443 = vpack.c.b16 %v5044, %v5037
    %v5444 = vpack.c.b16 %v5045, %v5038
    %v5445 = vpack.c.b16 %v5046, %v5039
    %v5446 = vpack.c.b16 %v5047, %v5040
    %v5447 = vpack.c.b16 %v5048, %v5041
    %v5448 = vpack.c.b16 %v5056, %v5049
    %v5449 = vpack.c.b16 %v5057, %v5050
    %v5450 = vpack.c.b16 %v5058, %v5051
    %v5451 = vpack.c.b16 %v5059, %v5052
    %v5452 = vpack.c.b16 %v5060, %v5053
    %v5453 = vpack.c.b16 %v5061, %v5054
    %v5454 = vpack.c.b16 %v5062, %v5055
    %v5455 = vpack.c.b16 %v5070, %v5063
    %v5456 = vpack.c.b16 %v5071, %v5064
    %v5457 = vpack.c.b16 %v5072, %v5065
    %v5458 = vpack.c.b16 %v5073, %v5066
    %v5459 = vpack.c.b16 %v5074, %v5067
    %v5460 = vpack.c.b16 %v5075, %v5068
    %v5461 = vpack.c.b16 %v5076, %v5069
    %v5462 = vpack.c.b16 %v5084, %v5077
    %v5463 = vpack.c.b16 %v5085, %v5078
    %v5464 = vpack.c.b16 %v5086, %v5079
    %v5465 = vpack.c.b16 %v5087, %v5080
    %v5466 = vpack.c.b16 %v5088, %v5081
    %v5467 = vpack.c.b16 %v5089, %v5082
    %v5468 = vpack.c.b16 %v5090, %v5083
    %v5469 = vpack.c.b16 %v5098, %v5091
    %v5470 = vpack.c.b16 %v5099, %v5092
    %v5471 = vpack.c.b16 %v5100, %v5093
    %v5472 = vpack.c.b16 %v5101, %v5094
    %v5473 = vpack.c.b16 %v5102, %v5095
    %v5474 = vpack.c.b16 %v5103, %v5096
    %v5475 = vpack.c.b16 %v5104, %v5097
    %v5476 = vpack.c.b16 %v5112, %v5105
    %v5477 = vpack.c.b16 %v5113, %v5106
    %v5478 = vpack.c.b16 %v5114, %v5107
    %v5479 = vpack.c.b16 %v5115, %v5108
    %v5480 = vpack.c.b16 %v5116, %v5109
    %v5481 = vpack.c.b16 %v5117, %v5110
    %v5482 = vpack.c.b16 %v5118, %v5111
    %v5483 = vpack.c.b16 %v5126, %v5119
    %v5484 = vpack.c.b16 %v5127, %v5120
    %v5485 = vpack.c.b16 %v5128, %v5121
    %v5486 = vpack.c.b16 %v5129, %v5122
    %v5487 = vpack.c.b16 %v5130, %v5123
    %v5488 = vpack.c.b16 %v5131, %v5124
    %v5489 = vpack.c.b16 %v5132, %v5125
    %v5490 = vpack.c.b16 %v5140, %v5133
    %v5491 = vpack.c.b16 %v5141, %v5134
    %v5492 = vpack.c.b16 %v5142, %v5135
    %v5493 = vpack.c.b16 %v5143, %v5136
    %v5494 = vpack.c.b16 %v5144, %v5137
    %v5495 = vpack.c.b16 %v5145, %v5138
    %v5496 = vpack.c.b16 %v5146, %v5139
    %v5497 = vpack.c.b16 %v5154, %v5147
    %v5498 = vpack.c.b16 %v5155, %v5148
    %v5499 = vpack.c.b16 %v5156, %v5149
    %v5500 = vpack.c.b16 %v5157, %v5150
    %v5501 = vpack.c.b16 %v5158, %v5151
    %v5502 = vpack.c.b16 %v5159, %v5152
    %v5503 = vpack.c.b16 %v5160, %v5153
    %v5504 = vpack.c.b16 %v5168, %v5161
    %v5505 = vpack.c.b16 %v5169, %v5162
    %v5506 = vpack.c.b16 %v5170, %v5163
    %v5507 = vpack.c.b16 %v5171, %v5164
    %v5508 = vpack.c.b16 %v5172, %v5165
    %v5509 = vpack.c.b16 %v5173, %v5166
    %v5510 = vpack.c.b16 %v5174, %v5167
    %v5511 = vpack.c.b16 %v5182, %v5175
    %v5512 = vpack.c.b16 %v5183, %v5176
    %v5513 = vpack.c.b16 %v5184, %v5177
    %v5514 = vpack.c.b16 %v5185, %v5178
    %v5515 = vpack.c.b16 %v5186, %v5179
    %v5516 = vpack.c.b16 %v5187, %v5180
    %v5517 = vpack.c.b16 %v5188, %v5181
    %v5518 = vpack.c.b16 %v5196, %v5189
    %v5519 = vpack.c.b16 %v5197, %v5190
    %v5520 = vpack.c.b16 %v5198, %v5191
    %v5521 = vpack.c.b16 %v5199, %v5192
    %v5522 = vpack.c.b16 %v5200, %v5193
    %v5523 = vpack.c.b16 %v5201, %v5194
    %v5524 = vpack.c.b16 %v5202, %v5195
    %v5525 = vpack.c.b16 %v5210, %v5203
    %v5526 = vpack.c.b16 %v5211, %v5204
    %v5527 = vpack.c.b16 %v5212, %v5205
    %v5528 = vpack.c.b16 %v5213, %v5206
    %v5529 = vpack.c.b16 %v5214, %v5207
    %v5530 = vpack.c.b16 %v5215, %v5208
    %v5531 = vpack.c.b16 %v5216, %v5209
    %v5532 = vpack.c.b16 %v5224, %v5217
    %v5533 = vpack.c.b16 %v5225, %v5218
    %v5534 = vpack.c.b16 %v5226, %v5219
    %v5535 = vpack.c.b16 %v5227, %v5220
    %v5536 = vpack.c.b16 %v5228, %v5221
    %v5537 = vpack.c.b16 %v5229, %v5222
    %v5538 = vpack.c.b16 %v5230, %v5223
    %v5539 = vpack.c.b16 %v5238, %v5231
    %v5540 = vpack.c.b16 %v5239, %v5232
    %v5541 = vpack.c.b16 %v5240, %v5233
    %v5542 = vpack.c.b16 %v5241, %v5234
    %v5543 = vpack.c.b16 %v5242, %v5235
    %v5544 = vpack.c.b16 %v5243, %v5236
    %v5545 = vpack.c.b16 %v5244, %v5237
    %v5546 = vpack.c.b16 %v5252, %v5245
    %v5547 = vpack.c.b16 %v5253, %v5246
    %v5548 = vpack.c.b16 %v5254, %v5247
    %v5549 = vpack.c.b16 %v5255, %v5248
    %v5550 = vpack.c.b16 %v5256, %v5249
    %v5551 = vpack.c.b16 %v5257, %v5250
    %v5552 = vpack.c.b16 %v5258, %v5251
    %v5553 = vpack.c.b16 %v5266, %v5259
    %v5554 = vpack.c.b16 %v5267, %v5260
    %v5555 = vpack.c.b16 %v5268, %v5261
    %v5556 = vpack.c.b16 %v5269, %v5262
    %v5557 = vpack.c.b16 %v5270, %v5263
    %v5558 = vpack.c.b16 %v5271, %v5264
    %v5559 = vpack.c.b16 %v5272, %v5265
    %v5560 = vpack.c.b16 %v5280, %v5273
    %v5561 = vpack.c.b16 %v5281, %v5274
    %v5562 = vpack.c.b16 %v5282, %v5275
    %v5563 = vpack.c.b16 %v5283, %v5276
    %v5564 = vpack.c.b16 %v5284, %v5277
    %v5565 = vpack.c.b16 %v5285, %v5278
    %v5566 = vpack.c.b16 %v5286, %v5279
    %v5567 = vpack.c.b16 %v5294, %v5287
    %v5568 = vpack.c.b16 %v5295, %v5288
    %v5569 = vpack.c.b16 %v5296, %v5289
    %v5570 = vpack.c.b16 %v5297, %v5290
    %v5571 = vpack.c.b16 %v5298, %v5291
    %v5572 = vpack.c.b16 %v5299, %v5292
    %v5573 = vpack.c.b16 %v5300, %v5293
    %v5574 = vpack.c.b16 %v5308, %v5301
    %v5575 = vpack.c.b16 %v5309, %v5302
    %v5576 = vpack.c.b16 %v5310, %v5303
    %v5577 = vpack.c.b16 %v5311, %v5304
    %v5578 = vpack.c.b16 %v5312, %v5305
    %v5579 = vpack.c.b16 %v5313, %v5306
    %v5580 = vpack.c.b16 %v5314, %v5307
    %v5581 = vpack.c.b16 %v5322, %v5315
    %v5582 = vpack.c.b16 %v5323, %v5316
    %v5583 = vpack.c.b16 %v5324, %v5317
    %v5584 = vpack.c.b16 %v5325, %v5318
    %v5585 = vpack.c.b16 %v5326, %v5319
    %v5586 = vpack.c.b16 %v5327, %v5320
    %v5587 = vpack.c.b16 %v5328, %v5321
    %v5588 = vpack.c.b16 %v5336, %v5329
    %v5589 = vpack.c.b16 %v5337, %v5330
    %v5590 = vpack.c.b16 %v5338, %v5331
    %v5591 = vpack.c.b16 %v5339, %v5332
    %v5592 = vpack.c.b16 %v5340, %v5333
    %v5593 = vpack.c.b16 %v5341, %v5334
    %v5594 = vpack.c.b16 %v5342, %v5335
    %v5595 = vpack.c.b16 %v5350, %v5343
    %v5596 = vpack.c.b16 %v5351, %v5344
    %v5597 = vpack.c.b16 %v5352, %v5345
    %v5598 = vpack.c.b16 %v5353, %v5346
    %v5599 = vpack.c.b16 %v5354, %v5347
    %v5600 = vpack.c.b16 %v5355, %v5348
    %v5601 = vpack.c.b16 %v5356, %v5349
    %v5602 = vpack.c.b16 %v5364, %v5357
    %v5603 = vpack.c.b16 %v5365, %v5358
    %v5604 = vpack.c.b16 %v5366, %v5359
    %v5605 = vpack.c.b16 %v5367, %v5360
    %v5606 = vpack.c.b16 %v5368, %v5361
    %v5607 = vpack.c.b16 %v5369, %v5362
    %v5608 = vpack.c.b16 %v5370, %v5363
    %v5609 = vpack.c.b16 %v5378, %v5371
    %v5610 = vpack.c.b16 %v5379, %v5372
    %v5611 = vpack.c.b16 %v5380, %v5373
    %v5612 = vpack.c.b16 %v5381, %v5374
    %v5613 = vpack.c.b16 %v5382, %v5375
    %v5614 = vpack.c.b16 %v5383, %v5376
    %v5615 = vpack.c.b16 %v5384, %v5377
    %v5616 = vpack.c.b16 %v5392, %v5385
    %v5617 = vpack.c.b16 %v5393, %v5386
    %v5618 = vpack.c.b16 %v5394, %v5387
    %v5619 = vpack.c.b16 %v5395, %v5388
    %v5620 = vpack.c.b16 %v5396, %v5389
    %v5621 = vpack.c.b16 %v5397, %v5390
    %v5622 = vpack.c.b16 %v5398, %v5391
    %5847 = vmatprep.subr.bf16.mxu0 %v5400
    %5848 = vmatpush1.bf16.msra.mxu0 %v5399
    %5849 = vmatprep.subr.bf16.mxu0 %v5407
    %5850 = vmatpush1.bf16.msra.mxu0 %v5406
    %5851 = vmatprep.subr.bf16.mxu0 %v5414
    %5852 = vmatpush1.bf16.msra.mxu0 %v5413
    %5853 = vmatprep.subr.bf16.mxu0 %v5421
    %5854 = vmatpush1.bf16.msra.mxu0 %v5420
    %5855 = vmatprep.subr.bf16.mxu0 %v5428
    %5856 = vmatpush1.bf16.msra.mxu0 %v5427
    %5857 = vmatprep.subr.bf16.mxu0 %v5435
    %5858 = vmatpush1.bf16.msra.mxu0 %v5434
    %5859 = vmatprep.subr.bf16.mxu0 %v5442
    %5860 = vmatpush1.bf16.msra.mxu0 %v5441
    %5861 = vmatprep.subr.bf16.mxu0 %v5449
    %5862 = vmatpush1.bf16.msra.mxu0 %v5448
    %5863 = vmatprep.subr.bf16.mxu0 %v5456
    %5864 = vmatpush1.bf16.msra.mxu0 %v5455
    %5865 = vmatprep.subr.bf16.mxu0 %v5463
    %5866 = vmatpush1.bf16.msra.mxu0 %v5462
    %5867 = vmatprep.subr.bf16.mxu0 %v5470
    %5868 = vmatpush1.bf16.msra.mxu0 %v5469
    %5869 = vmatprep.subr.bf16.mxu0 %v5477
    %5870 = vmatpush1.bf16.msra.mxu0 %v5476
    %5871 = vmatprep.subr.bf16.mxu0 %v5484
    %5872 = vmatpush1.bf16.msra.mxu0 %v5483
    %5873 = vmatprep.subr.bf16.mxu0 %v5491
    %5874 = vmatpush1.bf16.msra.mxu0 %v5490
    %5875 = vmatprep.subr.bf16.mxu0 %v5498
    %5876 = vmatpush1.bf16.msra.mxu0 %v5497
    %5877 = vmatprep.subr.bf16.mxu0 %v5505
    %5878 = vmatpush1.bf16.msra.mxu0 %v5504
    %5879 = vmatprep.mubr.bf16.mxu0 %v4371
    %5880 = vmatmul.mubr.bf16.gmra.mrb[0].mxu0 %v4370
    %v5881 = vpop.f32.mrb[0].mxu0
    %v5882 = vadd.f32 %v4663, %v5881
    %v5883 = vpop.f32.mrb[0].mxu0
    %v5884 = vadd.f32 %v4667, %v5883
    %v5885 = vpop.f32.mrb[0].mxu0
    %v5886 = vadd.f32 %v4663, %v5885
    %v5887 = vpop.f32.mrb[0].mxu0
    %v5888 = vadd.f32 %v4667, %v5887
    %5889 = vmatprep.mubr.bf16.mxu0 %v4375
    %5890 = vmatmul.mubr.bf16.gmra.mrb[0].mxu0 %v4374
    %v5891 = vpop.f32.mrb[0].mxu0
    %v5892 = vadd.f32 %v4663, %v5891
    %v5893 = vpop.f32.mrb[0].mxu0
    %v5894 = vadd.f32 %v4667, %v5893
    %v5895 = vpop.f32.mrb[0].mxu0
    %v5896 = vadd.f32 %v4663, %v5895
    %v5897 = vpop.f32.mrb[0].mxu0
    %v5898 = vadd.f32 %v4667, %v5897
    %5899 = vmatprep.mubr.bf16.mxu0 %v4379
    %5900 = vmatmul.mubr.bf16.gmra.mrb[0].mxu0 %v4378
    %v5901 = vpop.f32.mrb[0].mxu0
    %v5902 = vadd.f32 %v4663, %v5901
    %v5903 = vpop.f32.mrb[0].mxu0
    %v5904 = vadd.f32 %v4667, %v5903
    %v5905 = vpop.f32.mrb[0].mxu0
    %v5906 = vadd.f32 %v4663, %v5905
    %v5907 = vpop.f32.mrb[0].mxu0
    %v5908 = vadd.f32 %v4667, %v5907
    %5909 = vmatprep.mubr.bf16.mxu0 %v4383
    %5910 = vmatmul.mubr.bf16.gmra.mrb[0].mxu0 %v4382
    %v5911 = vpop.f32.mrb[0].mxu0
    %v5912 = vadd.f32 %v4663, %v5911
    %v5913 = vpop.f32.mrb[0].mxu0
    %v5914 = vadd.f32 %v4667, %v5913
    %v5915 = vpop.f32.mrb[0].mxu0
    %v5916 = vadd.f32 %v4663, %v5915
    %v5917 = vpop.f32.mrb[0].mxu0
    %v5918 = vadd.f32 %v4667, %v5917
    %5919 = vmatprep.mubr.bf16.mxu0 %v4387
    %5920 = vmatmul.mubr.bf16.gmra.mrb[0].mxu0 %v4386
    %v5921 = vpop.f32.mrb[0].mxu0
    %v5922 = vadd.f32 %v4663, %v5921
    %v5923 = vpop.f32.mrb[0].mxu0
    %v5924 = vadd.f32 %v4667, %v5923
    %v5925 = vpop.f32.mrb[0].mxu0
    %v5926 = vadd.f32 %v4663, %v5925
    %v5927 = vpop.f32.mrb[0].mxu0
    %v5928 = vadd.f32 %v4667, %v5927
    %5929 = vmatprep.mubr.bf16.mxu0 %v4391
    %5930 = vmatmul.mubr.bf16.gmra.mrb[0].mxu0 %v4390
    %v5931 = vpop.f32.mrb[0].mxu0
    %v5932 = vadd.f32 %v4663, %v5931
    %v5933 = vpop.f32.mrb[0].mxu0
    %v5934 = vadd.f32 %v4667, %v5933
    %v5935 = vpop.f32.mrb[0].mxu0
    %v5936 = vadd.f32 %v4663, %v5935
    %v5937 = vpop.f32.mrb[0].mxu0
    %v5938 = vadd.f32 %v4667, %v5937
    %5939 = vmatprep.mubr.bf16.mxu0 %v4395
    %5940 = vmatmul.mubr.bf16.gmra.mrb[0].mxu0 %v4394
    %v5941 = vpop.f32.mrb[0].mxu0
    %v5942 = vadd.f32 %v4663, %v5941
    %v5943 = vpop.f32.mrb[0].mxu0
    %v5944 = vadd.f32 %v4667, %v5943
    %v5945 = vpop.f32.mrb[0].mxu0
    %v5946 = vadd.f32 %v4663, %v5945
    %v5947 = vpop.f32.mrb[0].mxu0
    %v5948 = vadd.f32 %v4667, %v5947
    %5949 = vmatprep.mubr.bf16.mxu0 %v4399
    %5950 = vmatmul.mubr.bf16.gmra.mrb[0].mxu0 %v4398
    %v5951 = vpop.f32.mrb[0].mxu0
    %v5952 = vadd.f32 %v4663, %v5951
    %v5953 = vpop.f32.mrb[0].mxu0
    %v5954 = vadd.f32 %v4667, %v5953
    %v5955 = vpop.f32.mrb[0].mxu0
    %v5956 = vadd.f32 %v4663, %v5955
    %v5957 = vpop.f32.mrb[0].mxu0
    %v5958 = vadd.f32 %v4667, %v5957
    %5959 = vdwg.mxu0
    %5960 = vmatprep.subr.bf16.mxu0 %v5512
    %5961 = vmatpush1.bf16.msra.mxu0 %v5511
    %5962 = vmatprep.subr.bf16.mxu0 %v5519
    %5963 = vmatpush1.bf16.msra.mxu0 %v5518
    %5964 = vmatprep.subr.bf16.mxu0 %v5526
    %5965 = vmatpush1.bf16.msra.mxu0 %v5525
    %5966 = vmatprep.subr.bf16.mxu0 %v5533
    %5967 = vmatpush1.bf16.msra.mxu0 %v5532
    %5968 = vmatprep.subr.bf16.mxu0 %v5540
    %5969 = vmatpush1.bf16.msra.mxu0 %v5539
    %5970 = vmatprep.subr.bf16.mxu0 %v5547
    %5971 = vmatpush1.bf16.msra.mxu0 %v5546
    %5972 = vmatprep.subr.bf16.mxu0 %v5554
    %5973 = vmatpush1.bf16.msra.mxu0 %v5553
    %5974 = vmatprep.subr.bf16.mxu0 %v5561
    %5975 = vmatpush1.bf16.msra.mxu0 %v5560
    %5976 = vmatprep.subr.bf16.mxu0 %v5568
    %5977 = vmatpush1.bf16.msra.mxu0 %v5567
    %5978 = vmatprep.subr.bf16.mxu0 %v5575
    %5979 = vmatpush1.bf16.msra.mxu0 %v5574
    %5980 = vmatprep.subr.bf16.mxu0 %v5582
    %5981 = vmatpush1.bf16.msra.mxu0 %v5581
    %5982 = vmatprep.subr.bf16.mxu0 %v5589
    %5983 = vmatpush1.bf16.msra.mxu0 %v5588
    %5984 = vmatprep.subr.bf16.mxu0 %v5596
    %5985 = vmatpush1.bf16.msra.mxu0 %v5595
    %5986 = vmatprep.subr.bf16.mxu0 %v5603
    %5987 = vmatpush1.bf16.msra.mxu0 %v5602
    %5988 = vmatprep.subr.bf16.mxu0 %v5610
    %5989 = vmatpush1.bf16.msra.mxu0 %v5609
    %5990 = vmatprep.subr.bf16.mxu0 %v5617
    %5991 = vmatpush1.bf16.msra.mxu0 %v5616
    %5992 = vmatprep.mubr.bf16.mxu0 %v4373
    %5993 = vmatmul.mubr.bf16.gmra.mrb[0].mxu0 %v4372
    %v5994 = vpop.f32.mrb[0].mxu0
    %v5995 = vadd.f32 %v5882, %v5994
    %v5996 = vpop.f32.mrb[0].mxu0
    %v5997 = vadd.f32 %v5884, %v5996
    %v5998 = vpop.f32.mrb[0].mxu0
    %v5999 = vadd.f32 %v5886, %v5998
    %v6000 = vpop.f32.mrb[0].mxu0
    %v6001 = vadd.f32 %v5888, %v6000
    %6002 = vmatprep.mubr.bf16.mxu0 %v4377
    %6003 = vmatmul.mubr.bf16.gmra.mrb[0].mxu0 %v4376
    %v6004 = vpop.f32.mrb[0].mxu0
    %v6005 = vadd.f32 %v5892, %v6004
    %v6006 = vpop.f32.mrb[0].mxu0
    %v6007 = vadd.f32 %v5894, %v6006
    %v6008 = vpop.f32.mrb[0].mxu0
    %v6009 = vadd.f32 %v5896, %v6008
    %v6010 = vpop.f32.mrb[0].mxu0
    %v6011 = vadd.f32 %v5898, %v6010
    %6012 = vmatprep.mubr.bf16.mxu0 %v4381
    %6013 = vmatmul.mubr.bf16.gmra.mrb[0].mxu0 %v4380
    %v6014 = vpop.f32.mrb[0].mxu0
    %v6015 = vadd.f32 %v5902, %v6014
    %v6016 = vpop.f32.mrb[0].mxu0
    %v6017 = vadd.f32 %v5904, %v6016
    %v6018 = vpop.f32.mrb[0].mxu0
    %v6019 = vadd.f32 %v5906, %v6018
    %v6020 = vpop.f32.mrb[0].mxu0
    %v6021 = vadd.f32 %v5908, %v6020
    %6022 = vmatprep.mubr.bf16.mxu0 %v4385
    %6023 = vmatmul.mubr.bf16.gmra.mrb[0].mxu0 %v4384
    %v6024 = vpop.f32.mrb[0].mxu0
    %v6025 = vadd.f32 %v5912, %v6024
    %v6026 = vpop.f32.mrb[0].mxu0
    %v6027 = vadd.f32 %v5914, %v6026
    %v6028 = vpop.f32.mrb[0].mxu0
    %v6029 = vadd.f32 %v5916, %v6028
    %v6030 = vpop.f32.mrb[0].mxu0
    %v6031 = vadd.f32 %v5918, %v6030
    %6032 = vmatprep.mubr.bf16.mxu0 %v4389
    %6033 = vmatmul.mubr.bf16.gmra.mrb[0].mxu0 %v4388
    %v6034 = vpop.f32.mrb[0].mxu0
    %v6035 = vadd.f32 %v5922, %v6034
    %v6036 = vpop.f32.mrb[0].mxu0
    %v6037 = vadd.f32 %v5924, %v6036
    %v6038 = vpop.f32.mrb[0].mxu0
    %v6039 = vadd.f32 %v5926, %v6038
    %v6040 = vpop.f32.mrb[0].mxu0
    %v6041 = vadd.f32 %v5928, %v6040
    %6042 = vmatprep.mubr.bf16.mxu0 %v4393
    %6043 = vmatmul.mubr.bf16.gmra.mrb[0].mxu0 %v4392
    %v6044 = vpop.f32.mrb[0].mxu0
    %v6045 = vadd.f32 %v5932, %v6044
    %v6046 = vpop.f32.mrb[0].mxu0
    %v6047 = vadd.f32 %v5934, %v6046
    %v6048 = vpop.f32.mrb[0].mxu0
    %v6049 = vadd.f32 %v5936, %v6048
    %v6050 = vpop.f32.mrb[0].mxu0
    %v6051 = vadd.f32 %v5938, %v6050
    %6052 = vmatprep.mubr.bf16.mxu0 %v4397
    %6053 = vmatmul.mubr.bf16.gmra.mrb[0].mxu0 %v4396
    %v6054 = vpop.f32.mrb[0].mxu0
    %v6055 = vadd.f32 %v5942, %v6054
    %v6056 = vpop.f32.mrb[0].mxu0
    %v6057 = vadd.f32 %v5944, %v6056
    %v6058 = vpop.f32.mrb[0].mxu0
    %v6059 = vadd.f32 %v5946, %v6058
    %v6060 = vpop.f32.mrb[0].mxu0
    %v6061 = vadd.f32 %v5948, %v6060
    %6062 = vmatprep.mubr.bf16.mxu0 %v4401
    %6063 = vmatmul.mubr.bf16.gmra.mrb[0].mxu0 %v4400
    %v6064 = vpop.f32.mrb[0].mxu0
    %v6065 = vadd.f32 %v5952, %v6064
    %v6066 = vpop.f32.mrb[0].mxu0
    %v6067 = vadd.f32 %v5954, %v6066
    %v6068 = vpop.f32.mrb[0].mxu0
    %v6069 = vadd.f32 %v5956, %v6068
    %v6070 = vpop.f32.mrb[0].mxu0
    %v6071 = vadd.f32 %v5958, %v6070
    %6072 = vdwg.mxu0
    %6073 = vmatprep.subr.bf16.mxu0 %v5402
    %6074 = vmatpush1.bf16.msra.mxu0 %v5401
    %6075 = vmatprep.subr.bf16.mxu0 %v5409
    %6076 = vmatpush1.bf16.msra.mxu0 %v5408
    %6077 = vmatprep.subr.bf16.mxu0 %v5416
    %6078 = vmatpush1.bf16.msra.mxu0 %v5415
    %6079 = vmatprep.subr.bf16.mxu0 %v5423
    %6080 = vmatpush1.bf16.msra.mxu0 %v5422
    %6081 = vmatprep.subr.bf16.mxu0 %v5430
    %6082 = vmatpush1.bf16.msra.mxu0 %v5429
    %6083 = vmatprep.subr.bf16.mxu0 %v5437
    %6084 = vmatpush1.bf16.msra.mxu0 %v5436
    %6085 = vmatprep.subr.bf16.mxu0 %v5444
    %6086 = vmatpush1.bf16.msra.mxu0 %v5443
    %6087 = vmatprep.subr.bf16.mxu0 %v5451
    %6088 = vmatpush1.bf16.msra.mxu0 %v5450
    %6089 = vmatprep.subr.bf16.mxu0 %v5458
    %6090 = vmatpush1.bf16.msra.mxu0 %v5457
    %6091 = vmatprep.subr.bf16.mxu0 %v5465
    %6092 = vmatpush1.bf16.msra.mxu0 %v5464
    %6093 = vmatprep.subr.bf16.mxu0 %v5472
    %6094 = vmatpush1.bf16.msra.mxu0 %v5471
    %6095 = vmatprep.subr.bf16.mxu0 %v5479
    %6096 = vmatpush1.bf16.msra.mxu0 %v5478
    %6097 = vmatprep.subr.bf16.mxu0 %v5486
    %6098 = vmatpush1.bf16.msra.mxu0 %v5485
    %6099 = vmatprep.subr.bf16.mxu0 %v5493
    %6100 = vmatpush1.bf16.msra.mxu0 %v5492
    %6101 = vmatprep.subr.bf16.mxu0 %v5500
    %6102 = vmatpush1.bf16.msra.mxu0 %v5499
    %6103 = vmatprep.subr.bf16.mxu0 %v5507
    %6104 = vmatpush1.bf16.msra.mxu0 %v5506
    %6105 = vmatprep.mubr.bf16.mxu0 %v4371
    %6106 = vmatmul.mubr.bf16.gmra.mrb[0].mxu0 %v4370
    %v6107 = vpop.f32.mrb[0].mxu0
    %v6108 = vadd.f32 %v4671, %v6107
    %v6109 = vpop.f32.mrb[0].mxu0
    %v6110 = vadd.f32 %v4675, %v6109
    %v6111 = vpop.f32.mrb[0].mxu0
    %v6112 = vadd.f32 %v4671, %v6111
    %v6113 = vpop.f32.mrb[0].mxu0
    %v6114 = vadd.f32 %v4675, %v6113
    %6115 = vmatprep.mubr.bf16.mxu0 %v4375
    %6116 = vmatmul.mubr.bf16.gmra.mrb[0].mxu0 %v4374
    %v6117 = vpop.f32.mrb[0].mxu0
    %v6118 = vadd.f32 %v4671, %v6117
    %v6119 = vpop.f32.mrb[0].mxu0
    %v6120 = vadd.f32 %v4675, %v6119
    %v6121 = vpop.f32.mrb[0].mxu0
    %v6122 = vadd.f32 %v4671, %v6121
    %v6123 = vpop.f32.mrb[0].mxu0
    %v6124 = vadd.f32 %v4675, %v6123
    %6125 = vmatprep.mubr.bf16.mxu0 %v4379
    %6126 = vmatmul.mubr.bf16.gmra.mrb[0].mxu0 %v4378
    %v6127 = vpop.f32.mrb[0].mxu0
    %v6128 = vadd.f32 %v4671, %v6127
    %v6129 = vpop.f32.mrb[0].mxu0
    %v6130 = vadd.f32 %v4675, %v6129
    %v6131 = vpop.f32.mrb[0].mxu0
    %v6132 = vadd.f32 %v4671, %v6131
    %v6133 = vpop.f32.mrb[0].mxu0
    %v6134 = vadd.f32 %v4675, %v6133
    %6135 = vmatprep.mubr.bf16.mxu0 %v4383
    %6136 = vmatmul.mubr.bf16.gmra.mrb[0].mxu0 %v4382
    %v6137 = vpop.f32.mrb[0].mxu0
    %v6138 = vadd.f32 %v4671, %v6137
    %v6139 = vpop.f32.mrb[0].mxu0
    %v6140 = vadd.f32 %v4675, %v6139
    %v6141 = vpop.f32.mrb[0].mxu0
    %v6142 = vadd.f32 %v4671, %v6141
    %v6143 = vpop.f32.mrb[0].mxu0
    %v6144 = vadd.f32 %v4675, %v6143
    %6145 = vmatprep.mubr.bf16.mxu0 %v4387
    %6146 = vmatmul.mubr.bf16.gmra.mrb[0].mxu0 %v4386
    %v6147 = vpop.f32.mrb[0].mxu0
    %v6148 = vadd.f32 %v4671, %v6147
    %v6149 = vpop.f32.mrb[0].mxu0
    %v6150 = vadd.f32 %v4675, %v6149
    %v6151 = vpop.f32.mrb[0].mxu0
    %v6152 = vadd.f32 %v4671, %v6151
    %v6153 = vpop.f32.mrb[0].mxu0
    %v6154 = vadd.f32 %v4675, %v6153
    %6155 = vmatprep.mubr.bf16.mxu0 %v4391
    %6156 = vmatmul.mubr.bf16.gmra.mrb[0].mxu0 %v4390
    %v6157 = vpop.f32.mrb[0].mxu0
    %v6158 = vadd.f32 %v4671, %v6157
    %v6159 = vpop.f32.mrb[0].mxu0
    %v6160 = vadd.f32 %v4675, %v6159
    %v6161 = vpop.f32.mrb[0].mxu0
    %v6162 = vadd.f32 %v4671, %v6161
    %v6163 = vpop.f32.mrb[0].mxu0
    %v6164 = vadd.f32 %v4675, %v6163
    %6165 = vmatprep.mubr.bf16.mxu0 %v4395
    %6166 = vmatmul.mubr.bf16.gmra.mrb[0].mxu0 %v4394
    %v6167 = vpop.f32.mrb[0].mxu0
    %v6168 = vadd.f32 %v4671, %v6167
    %v6169 = vpop.f32.mrb[0].mxu0
    %v6170 = vadd.f32 %v4675, %v6169
    %v6171 = vpop.f32.mrb[0].mxu0
    %v6172 = vadd.f32 %v4671, %v6171
    %v6173 = vpop.f32.mrb[0].mxu0
    %v6174 = vadd.f32 %v4675, %v6173
    %6175 = vmatprep.mubr.bf16.mxu0 %v4399
    %6176 = vmatmul.mubr.bf16.gmra.mrb[0].mxu0 %v4398
    %v6177 = vpop.f32.mrb[0].mxu0
    %v6178 = vadd.f32 %v4671, %v6177
    %v6179 = vpop.f32.mrb[0].mxu0
    %v6180 = vadd.f32 %v4675, %v6179
    %v6181 = vpop.f32.mrb[0].mxu0
    %v6182 = vadd.f32 %v4671, %v6181
    %v6183 = vpop.f32.mrb[0].mxu0
    %v6184 = vadd.f32 %v4675, %v6183
    %6185 = vdwg.mxu0
    %6186 = vmatprep.subr.bf16.mxu0 %v5514
    %6187 = vmatpush1.bf16.msra.mxu0 %v5513
    %6188 = vmatprep.subr.bf16.mxu0 %v5521
    %6189 = vmatpush1.bf16.msra.mxu0 %v5520
    %6190 = vmatprep.subr.bf16.mxu0 %v5528
    %6191 = vmatpush1.bf16.msra.mxu0 %v5527
    %6192 = vmatprep.subr.bf16.mxu0 %v5535
    %6193 = vmatpush1.bf16.msra.mxu0 %v5534
    %6194 = vmatprep.subr.bf16.mxu0 %v5542
    %6195 = vmatpush1.bf16.msra.mxu0 %v5541
    %6196 = vmatprep.subr.bf16.mxu0 %v5549
    %6197 = vmatpush1.bf16.msra.mxu0 %v5548
    %6198 = vmatprep.subr.bf16.mxu0 %v5556
    %6199 = vmatpush1.bf16.msra.mxu0 %v5555
    %6200 = vmatprep.subr.bf16.mxu0 %v5563
    %6201 = vmatpush1.bf16.msra.mxu0 %v5562
    %6202 = vmatprep.subr.bf16.mxu0 %v5570
    %6203 = vmatpush1.bf16.msra.mxu0 %v5569
    %6204 = vmatprep.subr.bf16.mxu0 %v5577
    %6205 = vmatpush1.bf16.msra.mxu0 %v5576
    %6206 = vmatprep.subr.bf16.mxu0 %v5584
    %6207 = vmatpush1.bf16.msra.mxu0 %v5583
    %6208 = vmatprep.subr.bf16.mxu0 %v5591
    %6209 = vmatpush1.bf16.msra.mxu0 %v5590
    %6210 = vmatprep.subr.bf16.mxu0 %v5598
    %6211 = vmatpush1.bf16.msra.mxu0 %v5597
    %6212 = vmatprep.subr.bf16.mxu0 %v5605
    %6213 = vmatpush1.bf16.msra.mxu0 %v5604
    %6214 = vmatprep.subr.bf16.mxu0 %v5612
    %6215 = vmatpush1.bf16.msra.mxu0 %v5611
    %6216 = vmatprep.subr.bf16.mxu0 %v5619
    %6217 = vmatpush1.bf16.msra.mxu0 %v5618
    %6218 = vmatprep.mubr.bf16.mxu0 %v4373
    %6219 = vmatmul.mubr.bf16.gmra.mrb[0].mxu0 %v4372
    %v6220 = vpop.f32.mrb[0].mxu0
    %v6221 = vadd.f32 %v6108, %v6220
    %v6222 = vpop.f32.mrb[0].mxu0
    %v6223 = vadd.f32 %v6110, %v6222
    %v6224 = vpop.f32.mrb[0].mxu0
    %v6225 = vadd.f32 %v6112, %v6224
    %v6226 = vpop.f32.mrb[0].mxu0
    %v6227 = vadd.f32 %v6114, %v6226
    %6228 = vmatprep.mubr.bf16.mxu0 %v4377
    %6229 = vmatmul.mubr.bf16.gmra.mrb[0].mxu0 %v4376
    %v6230 = vpop.f32.mrb[0].mxu0
    %v6231 = vadd.f32 %v6118, %v6230
    %v6232 = vpop.f32.mrb[0].mxu0
    %v6233 = vadd.f32 %v6120, %v6232
    %v6234 = vpop.f32.mrb[0].mxu0
    %v6235 = vadd.f32 %v6122, %v6234
    %v6236 = vpop.f32.mrb[0].mxu0
    %v6237 = vadd.f32 %v6124, %v6236
    %6238 = vmatprep.mubr.bf16.mxu0 %v4381
    %6239 = vmatmul.mubr.bf16.gmra.mrb[0].mxu0 %v4380
    %v6240 = vpop.f32.mrb[0].mxu0
    %v6241 = vadd.f32 %v6128, %v6240
    %v6242 = vpop.f32.mrb[0].mxu0
    %v6243 = vadd.f32 %v6130, %v6242
    %v6244 = vpop.f32.mrb[0].mxu0
    %v6245 = vadd.f32 %v6132, %v6244
    %v6246 = vpop.f32.mrb[0].mxu0
    %v6247 = vadd.f32 %v6134, %v6246
    %6248 = vmatprep.mubr.bf16.mxu0 %v4385
    %6249 = vmatmul.mubr.bf16.gmra.mrb[0].mxu0 %v4384
    %v6250 = vpop.f32.mrb[0].mxu0
    %v6251 = vadd.f32 %v6138, %v6250
    %v6252 = vpop.f32.mrb[0].mxu0
    %v6253 = vadd.f32 %v6140, %v6252
    %v6254 = vpop.f32.mrb[0].mxu0
    %v6255 = vadd.f32 %v6142, %v6254
    %v6256 = vpop.f32.mrb[0].mxu0
    %v6257 = vadd.f32 %v6144, %v6256
    %6258 = vmatprep.mubr.bf16.mxu0 %v4389
    %6259 = vmatmul.mubr.bf16.gmra.mrb[0].mxu0 %v4388
    %v6260 = vpop.f32.mrb[0].mxu0
    %v6261 = vadd.f32 %v6148, %v6260
    %v6262 = vpop.f32.mrb[0].mxu0
    %v6263 = vadd.f32 %v6150, %v6262
    %v6264 = vpop.f32.mrb[0].mxu0
    %v6265 = vadd.f32 %v6152, %v6264
    %v6266 = vpop.f32.mrb[0].mxu0
    %v6267 = vadd.f32 %v6154, %v6266
    %6268 = vmatprep.mubr.bf16.mxu0 %v4393
    %6269 = vmatmul.mubr.bf16.gmra.mrb[0].mxu0 %v4392
    %v6270 = vpop.f32.mrb[0].mxu0
    %v6271 = vadd.f32 %v6158, %v6270
    %v6272 = vpop.f32.mrb[0].mxu0
    %v6273 = vadd.f32 %v6160, %v6272
    %v6274 = vpop.f32.mrb[0].mxu0
    %v6275 = vadd.f32 %v6162, %v6274
    %v6276 = vpop.f32.mrb[0].mxu0
    %v6277 = vadd.f32 %v6164, %v6276
    %6278 = vmatprep.mubr.bf16.mxu0 %v4397
    %6279 = vmatmul.mubr.bf16.gmra.mrb[0].mxu0 %v4396
    %v6280 = vpop.f32.mrb[0].mxu0
    %v6281 = vadd.f32 %v6168, %v6280
    %v6282 = vpop.f32.mrb[0].mxu0
    %v6283 = vadd.f32 %v6170, %v6282
    %v6284 = vpop.f32.mrb[0].mxu0
    %v6285 = vadd.f32 %v6172, %v6284
    %v6286 = vpop.f32.mrb[0].mxu0
    %v6287 = vadd.f32 %v6174, %v6286
    %6288 = vmatprep.mubr.bf16.mxu0 %v4401
    %6289 = vmatmul.mubr.bf16.gmra.mrb[0].mxu0 %v4400
    %v6290 = vpop.f32.mrb[0].mxu0
    %v6291 = vadd.f32 %v6178, %v6290
    %v6292 = vpop.f32.mrb[0].mxu0
    %v6293 = vadd.f32 %v6180, %v6292
    %v6294 = vpop.f32.mrb[0].mxu0
    %v6295 = vadd.f32 %v6182, %v6294
    %v6296 = vpop.f32.mrb[0].mxu0
    %v6297 = vadd.f32 %v6184, %v6296
    %6298 = vdwg.mxu0
    %6299 = vmatprep.subr.bf16.mxu0 %v5404
    %6300 = vmatpush1.bf16.msra.mxu0 %v5403
    %6301 = vmatprep.subr.bf16.mxu0 %v5411
    %6302 = vmatpush1.bf16.msra.mxu0 %v5410
    %6303 = vmatprep.subr.bf16.mxu0 %v5418
    %6304 = vmatpush1.bf16.msra.mxu0 %v5417
    %6305 = vmatprep.subr.bf16.mxu0 %v5425
    %6306 = vmatpush1.bf16.msra.mxu0 %v5424
    %6307 = vmatprep.subr.bf16.mxu0 %v5432
    %6308 = vmatpush1.bf16.msra.mxu0 %v5431
    %6309 = vmatprep.subr.bf16.mxu0 %v5439
    %6310 = vmatpush1.bf16.msra.mxu0 %v5438
    %6311 = vmatprep.subr.bf16.mxu0 %v5446
    %6312 = vmatpush1.bf16.msra.mxu0 %v5445
    %6313 = vmatprep.subr.bf16.mxu0 %v5453
    %6314 = vmatpush1.bf16.msra.mxu0 %v5452
    %6315 = vmatprep.subr.bf16.mxu0 %v5460
    %6316 = vmatpush1.bf16.msra.mxu0 %v5459
    %6317 = vmatprep.subr.bf16.mxu0 %v5467
    %6318 = vmatpush1.bf16.msra.mxu0 %v5466
    %6319 = vmatprep.subr.bf16.mxu0 %v5474
    %6320 = vmatpush1.bf16.msra.mxu0 %v5473
    %6321 = vmatprep.subr.bf16.mxu0 %v5481
    %6322 = vmatpush1.bf16.msra.mxu0 %v5480
    %6323 = vmatprep.subr.bf16.mxu0 %v5488
    %6324 = vmatpush1.bf16.msra.mxu0 %v5487
    %6325 = vmatprep.subr.bf16.mxu0 %v5495
    %6326 = vmatpush1.bf16.msra.mxu0 %v5494
    %6327 = vmatprep.subr.bf16.mxu0 %v5502
    %6328 = vmatpush1.bf16.msra.mxu0 %v5501
    %6329 = vmatprep.subr.bf16.mxu0 %v5509
    %6330 = vmatpush1.bf16.msra.mxu0 %v5508
    %6331 = vmatprep.mubr.bf16.mxu0 %v4371
    %6332 = vmatmul.mubr.bf16.gmra.mrb[0].mxu0 %v4370
    %v6333 = vpop.f32.mrb[0].mxu0
    %v6334 = vadd.f32 %v4679, %v6333
    %v6335 = vpop.f32.mrb[0].mxu0
    %v6336 = vadd.f32 %v4683, %v6335
    %v6337 = vpop.f32.mrb[0].mxu0
    %v6338 = vadd.f32 %v4679, %v6337
    %v6339 = vpop.f32.mrb[0].mxu0
    %v6340 = vadd.f32 %v4683, %v6339
    %6341 = vmatprep.mubr.bf16.mxu0 %v4375
    %6342 = vmatmul.mubr.bf16.gmra.mrb[0].mxu0 %v4374
    %v6343 = vpop.f32.mrb[0].mxu0
    %v6344 = vadd.f32 %v4679, %v6343
    %v6345 = vpop.f32.mrb[0].mxu0
    %v6346 = vadd.f32 %v4683, %v6345
    %v6347 = vpop.f32.mrb[0].mxu0
    %v6348 = vadd.f32 %v4679, %v6347
    %v6349 = vpop.f32.mrb[0].mxu0
    %v6350 = vadd.f32 %v4683, %v6349
    %6351 = vmatprep.mubr.bf16.mxu0 %v4379
    %6352 = vmatmul.mubr.bf16.gmra.mrb[0].mxu0 %v4378
    %v6353 = vpop.f32.mrb[0].mxu0
    %v6354 = vadd.f32 %v4679, %v6353
    %v6355 = vpop.f32.mrb[0].mxu0
    %v6356 = vadd.f32 %v4683, %v6355
    %v6357 = vpop.f32.mrb[0].mxu0
    %v6358 = vadd.f32 %v4679, %v6357
    %v6359 = vpop.f32.mrb[0].mxu0
    %v6360 = vadd.f32 %v4683, %v6359
    %6361 = vmatprep.mubr.bf16.mxu0 %v4383
    %6362 = vmatmul.mubr.bf16.gmra.mrb[0].mxu0 %v4382
    %v6363 = vpop.f32.mrb[0].mxu0
    %v6364 = vadd.f32 %v4679, %v6363
    %v6365 = vpop.f32.mrb[0].mxu0
    %v6366 = vadd.f32 %v4683, %v6365
    %v6367 = vpop.f32.mrb[0].mxu0
    %v6368 = vadd.f32 %v4679, %v6367
    %v6369 = vpop.f32.mrb[0].mxu0
    %v6370 = vadd.f32 %v4683, %v6369
    %6371 = vmatprep.mubr.bf16.mxu0 %v4387
    %6372 = vmatmul.mubr.bf16.gmra.mrb[0].mxu0 %v4386
    %v6373 = vpop.f32.mrb[0].mxu0
    %v6374 = vadd.f32 %v4679, %v6373
    %v6375 = vpop.f32.mrb[0].mxu0
    %v6376 = vadd.f32 %v4683, %v6375
    %v6377 = vpop.f32.mrb[0].mxu0
    %v6378 = vadd.f32 %v4679, %v6377
    %v6379 = vpop.f32.mrb[0].mxu0
    %v6380 = vadd.f32 %v4683, %v6379
    %6381 = vmatprep.mubr.bf16.mxu0 %v4391
    %6382 = vmatmul.mubr.bf16.gmra.mrb[0].mxu0 %v4390
    %v6383 = vpop.f32.mrb[0].mxu0
    %v6384 = vadd.f32 %v4679, %v6383
    %v6385 = vpop.f32.mrb[0].mxu0
    %v6386 = vadd.f32 %v4683, %v6385
    %v6387 = vpop.f32.mrb[0].mxu0
    %v6388 = vadd.f32 %v4679, %v6387
    %v6389 = vpop.f32.mrb[0].mxu0
    %v6390 = vadd.f32 %v4683, %v6389
    %6391 = vmatprep.mubr.bf16.mxu0 %v4395
    %6392 = vmatmul.mubr.bf16.gmra.mrb[0].mxu0 %v4394
    %v6393 = vpop.f32.mrb[0].mxu0
    %v6394 = vadd.f32 %v4679, %v6393
    %v6395 = vpop.f32.mrb[0].mxu0
    %v6396 = vadd.f32 %v4683, %v6395
    %v6397 = vpop.f32.mrb[0].mxu0
    %v6398 = vadd.f32 %v4679, %v6397
    %v6399 = vpop.f32.mrb[0].mxu0
    %v6400 = vadd.f32 %v4683, %v6399
    %6401 = vmatprep.mubr.bf16.mxu0 %v4399
    %6402 = vmatmul.mubr.bf16.gmra.mrb[0].mxu0 %v4398
    %v6403 = vpop.f32.mrb[0].mxu0
    %v6404 = vadd.f32 %v4679, %v6403
    %v6405 = vpop.f32.mrb[0].mxu0
    %v6406 = vadd.f32 %v4683, %v6405
    %v6407 = vpop.f32.mrb[0].mxu0
    %v6408 = vadd.f32 %v4679, %v6407
    %v6409 = vpop.f32.mrb[0].mxu0
    %v6410 = vadd.f32 %v4683, %v6409
    %6411 = vdwg.mxu0
    %6412 = vmatprep.subr.bf16.mxu0 %v5516
    %6413 = vmatpush1.bf16.msra.mxu0 %v5515
    %6414 = vmatprep.subr.bf16.mxu0 %v5523
    %6415 = vmatpush1.bf16.msra.mxu0 %v5522
    %6416 = vmatprep.subr.bf16.mxu0 %v5530
    %6417 = vmatpush1.bf16.msra.mxu0 %v5529
    %6418 = vmatprep.subr.bf16.mxu0 %v5537
    %6419 = vmatpush1.bf16.msra.mxu0 %v5536
    %6420 = vmatprep.subr.bf16.mxu0 %v5544
    %6421 = vmatpush1.bf16.msra.mxu0 %v5543
    %6422 = vmatprep.subr.bf16.mxu0 %v5551
    %6423 = vmatpush1.bf16.msra.mxu0 %v5550
    %6424 = vmatprep.subr.bf16.mxu0 %v5558
    %6425 = vmatpush1.bf16.msra.mxu0 %v5557
    %6426 = vmatprep.subr.bf16.mxu0 %v5565
    %6427 = vmatpush1.bf16.msra.mxu0 %v5564
    %6428 = vmatprep.subr.bf16.mxu0 %v5572
    %6429 = vmatpush1.bf16.msra.mxu0 %v5571
    %6430 = vmatprep.subr.bf16.mxu0 %v5579
    %6431 = vmatpush1.bf16.msra.mxu0 %v5578
    %6432 = vmatprep.subr.bf16.mxu0 %v5586
    %6433 = vmatpush1.bf16.msra.mxu0 %v5585
    %6434 = vmatprep.subr.bf16.mxu0 %v5593
    %6435 = vmatpush1.bf16.msra.mxu0 %v5592
    %6436 = vmatprep.subr.bf16.mxu0 %v5600
    %6437 = vmatpush1.bf16.msra.mxu0 %v5599
    %6438 = vmatprep.subr.bf16.mxu0 %v5607
    %6439 = vmatpush1.bf16.msra.mxu0 %v5606
    %6440 = vmatprep.subr.bf16.mxu0 %v5614
    %6441 = vmatpush1.bf16.msra.mxu0 %v5613
    %6442 = vmatprep.subr.bf16.mxu0 %v5621
    %6443 = vmatpush1.bf16.msra.mxu0 %v5620
    %6444 = vmatprep.mubr.bf16.mxu0 %v4373
    %6445 = vmatmul.mubr.bf16.gmra.mrb[0].mxu0 %v4372
    %v6446 = vpop.f32.mrb[0].mxu0
    %v6447 = vadd.f32 %v6334, %v6446
    %v6448 = vpop.f32.mrb[0].mxu0
    %v6449 = vadd.f32 %v6336, %v6448
    %v6450 = vpop.f32.mrb[0].mxu0
    %v6451 = vadd.f32 %v6338, %v6450
    %v6452 = vpop.f32.mrb[0].mxu0
    %v6453 = vadd.f32 %v6340, %v6452
    %6454 = vmatprep.mubr.bf16.mxu0 %v4377
    %6455 = vmatmul.mubr.bf16.gmra.mrb[0].mxu0 %v4376
    %v6456 = vpop.f32.mrb[0].mxu0
    %v6457 = vadd.f32 %v6344, %v6456
    %v6458 = vpop.f32.mrb[0].mxu0
    %v6459 = vadd.f32 %v6346, %v6458
    %v6460 = vpop.f32.mrb[0].mxu0
    %v6461 = vadd.f32 %v6348, %v6460
    %v6462 = vpop.f32.mrb[0].mxu0
    %v6463 = vadd.f32 %v6350, %v6462
    %6464 = vmatprep.mubr.bf16.mxu0 %v4381
    %6465 = vmatmul.mubr.bf16.gmra.mrb[0].mxu0 %v4380
    %v6466 = vpop.f32.mrb[0].mxu0
    %v6467 = vadd.f32 %v6354, %v6466
    %v6468 = vpop.f32.mrb[0].mxu0
    %v6469 = vadd.f32 %v6356, %v6468
    %v6470 = vpop.f32.mrb[0].mxu0
    %v6471 = vadd.f32 %v6358, %v6470
    %v6472 = vpop.f32.mrb[0].mxu0
    %v6473 = vadd.f32 %v6360, %v6472
    %6474 = vmatprep.mubr.bf16.mxu0 %v4385
    %6475 = vmatmul.mubr.bf16.gmra.mrb[0].mxu0 %v4384
    %v6476 = vpop.f32.mrb[0].mxu0
    %v6477 = vadd.f32 %v6364, %v6476
    %v6478 = vpop.f32.mrb[0].mxu0
    %v6479 = vadd.f32 %v6366, %v6478
    %v6480 = vpop.f32.mrb[0].mxu0
    %v6481 = vadd.f32 %v6368, %v6480
    %v6482 = vpop.f32.mrb[0].mxu0
    %v6483 = vadd.f32 %v6370, %v6482
    %6484 = vmatprep.mubr.bf16.mxu0 %v4389
    %6485 = vmatmul.mubr.bf16.gmra.mrb[0].mxu0 %v4388
    %v6486 = vpop.f32.mrb[0].mxu0
    %v6487 = vadd.f32 %v6374, %v6486
    %v6488 = vpop.f32.mrb[0].mxu0
    %v6489 = vadd.f32 %v6376, %v6488
    %v6490 = vpop.f32.mrb[0].mxu0
    %v6491 = vadd.f32 %v6378, %v6490
    %v6492 = vpop.f32.mrb[0].mxu0
    %v6493 = vadd.f32 %v6380, %v6492
    %6494 = vmatprep.mubr.bf16.mxu0 %v4393
    %6495 = vmatmul.mubr.bf16.gmra.mrb[0].mxu0 %v4392
    %v6496 = vpop.f32.mrb[0].mxu0
    %v6497 = vadd.f32 %v6384, %v6496
    %v6498 = vpop.f32.mrb[0].mxu0
    %v6499 = vadd.f32 %v6386, %v6498
    %v6500 = vpop.f32.mrb[0].mxu0
    %v6501 = vadd.f32 %v6388, %v6500
    %v6502 = vpop.f32.mrb[0].mxu0
    %v6503 = vadd.f32 %v6390, %v6502
    %6504 = vmatprep.mubr.bf16.mxu0 %v4397
    %6505 = vmatmul.mubr.bf16.gmra.mrb[0].mxu0 %v4396
    %v6506 = vpop.f32.mrb[0].mxu0
    %v6507 = vadd.f32 %v6394, %v6506
    %v6508 = vpop.f32.mrb[0].mxu0
    %v6509 = vadd.f32 %v6396, %v6508
    %v6510 = vpop.f32.mrb[0].mxu0
    %v6511 = vadd.f32 %v6398, %v6510
    %v6512 = vpop.f32.mrb[0].mxu0
    %v6513 = vadd.f32 %v6400, %v6512
    %6514 = vmatprep.mubr.bf16.mxu0 %v4401
    %6515 = vmatmul.mubr.bf16.gmra.mrb[0].mxu0 %v4400
    %v6516 = vpop.f32.mrb[0].mxu0
    %v6517 = vadd.f32 %v6404, %v6516
    %v6518 = vpop.f32.mrb[0].mxu0
    %v6519 = vadd.f32 %v6406, %v6518
    %v6520 = vpop.f32.mrb[0].mxu0
    %v6521 = vadd.f32 %v6408, %v6520
    %v6522 = vpop.f32.mrb[0].mxu0
    %v6523 = vadd.f32 %v6410, %v6522
    %6524 = vdwg.mxu0
    %6525 = vmatprep.subr.bf16.mxu0 0
    %6526 = vmatpush1.bf16.msra.mxu0 %v5405
    %6527 = vmatprep.subr.bf16.mxu0 0
    %6528 = vmatpush1.bf16.msra.mxu0 %v5412
    %6529 = vmatprep.subr.bf16.mxu0 0
    %6530 = vmatpush1.bf16.msra.mxu0 %v5419
    %6531 = vmatprep.subr.bf16.mxu0 0
    %6532 = vmatpush1.bf16.msra.mxu0 %v5426
    %6533 = vmatprep.subr.bf16.mxu0 0
    %6534 = vmatpush1.bf16.msra.mxu0 %v5433
    %6535 = vmatprep.subr.bf16.mxu0 0
    %6536 = vmatpush1.bf16.msra.mxu0 %v5440
    %6537 = vmatprep.subr.bf16.mxu0 0
    %6538 = vmatpush1.bf16.msra.mxu0 %v5447
    %6539 = vmatprep.subr.bf16.mxu0 0
    %6540 = vmatpush1.bf16.msra.mxu0 %v5454
    %6541 = vmatprep.subr.bf16.mxu0 0
    %6542 = vmatpush1.bf16.msra.mxu0 %v5461
    %6543 = vmatprep.subr.bf16.mxu0 0
    %6544 = vmatpush1.bf16.msra.mxu0 %v5468
    %6545 = vmatprep.subr.bf16.mxu0 0
    %6546 = vmatpush1.bf16.msra.mxu0 %v5475
    %6547 = vmatprep.subr.bf16.mxu0 0
    %6548 = vmatpush1.bf16.msra.mxu0 %v5482
    %6549 = vmatprep.subr.bf16.mxu0 0
    %6550 = vmatpush1.bf16.msra.mxu0 %v5489
    %6551 = vmatprep.subr.bf16.mxu0 0
    %6552 = vmatpush1.bf16.msra.mxu0 %v5496
    %6553 = vmatprep.subr.bf16.mxu0 0
    %6554 = vmatpush1.bf16.msra.mxu0 %v5503
    %6555 = vmatprep.subr.bf16.mxu0 0
    %6556 = vmatpush1.bf16.msra.mxu0 %v5510
    %6557 = vmatprep.mubr.bf16.mxu0 %v4371
    %6558 = vmatmul.mubr.bf16.gmra.mrb[0].mxu0 %v4370
    %v6559 = vpop.f32.mrb[0].mxu0
    %v6560 = vadd.f32 %v4687, %v6559
    %v6561 = vpop.f32.mrb[0].mxu0
    %v6562 = vpop.f32.mrb[0].mxu0
    %v6563 = vadd.f32 %v4687, %v6562
    %v6564 = vpop.f32.mrb[0].mxu0
    %6565 = vmatprep.mubr.bf16.mxu0 %v4375
    %6566 = vmatmul.mubr.bf16.gmra.mrb[0].mxu0 %v4374
    %v6567 = vpop.f32.mrb[0].mxu0
    %v6568 = vadd.f32 %v4687, %v6567
    %v6569 = vpop.f32.mrb[0].mxu0
    %v6570 = vpop.f32.mrb[0].mxu0
    %v6571 = vadd.f32 %v4687, %v6570
    %v6572 = vpop.f32.mrb[0].mxu0
    %6573 = vmatprep.mubr.bf16.mxu0 %v4379
    %6574 = vmatmul.mubr.bf16.gmra.mrb[0].mxu0 %v4378
    %v6575 = vpop.f32.mrb[0].mxu0
    %v6576 = vadd.f32 %v4687, %v6575
    %v6577 = vpop.f32.mrb[0].mxu0
    %v6578 = vpop.f32.mrb[0].mxu0
    %v6579 = vadd.f32 %v4687, %v6578
    %v6580 = vpop.f32.mrb[0].mxu0
    %6581 = vmatprep.mubr.bf16.mxu0 %v4383
    %6582 = vmatmul.mubr.bf16.gmra.mrb[0].mxu0 %v4382
    %v6583 = vpop.f32.mrb[0].mxu0
    %v6584 = vadd.f32 %v4687, %v6583
    %v6585 = vpop.f32.mrb[0].mxu0
    %v6586 = vpop.f32.mrb[0].mxu0
    %v6587 = vadd.f32 %v4687, %v6586
    %v6588 = vpop.f32.mrb[0].mxu0
    %6589 = vmatprep.mubr.bf16.mxu0 %v4387
    %6590 = vmatmul.mubr.bf16.gmra.mrb[0].mxu0 %v4386
    %v6591 = vpop.f32.mrb[0].mxu0
    %v6592 = vadd.f32 %v4687, %v6591
    %v6593 = vpop.f32.mrb[0].mxu0
    %v6594 = vpop.f32.mrb[0].mxu0
    %v6595 = vadd.f32 %v4687, %v6594
    %v6596 = vpop.f32.mrb[0].mxu0
    %6597 = vmatprep.mubr.bf16.mxu0 %v4391
    %6598 = vmatmul.mubr.bf16.gmra.mrb[0].mxu0 %v4390
    %v6599 = vpop.f32.mrb[0].mxu0
    %v6600 = vadd.f32 %v4687, %v6599
    %v6601 = vpop.f32.mrb[0].mxu0
    %v6602 = vpop.f32.mrb[0].mxu0
    %v6603 = vadd.f32 %v4687, %v6602
    %v6604 = vpop.f32.mrb[0].mxu0
    %6605 = vmatprep.mubr.bf16.mxu0 %v4395
    %6606 = vmatmul.mubr.bf16.gmra.mrb[0].mxu0 %v4394
    %v6607 = vpop.f32.mrb[0].mxu0
    %v6608 = vadd.f32 %v4687, %v6607
    %v6609 = vpop.f32.mrb[0].mxu0
    %v6610 = vpop.f32.mrb[0].mxu0
    %v6611 = vadd.f32 %v4687, %v6610
    %v6612 = vpop.f32.mrb[0].mxu0
    %6613 = vmatprep.mubr.bf16.mxu0 %v4399
    %6614 = vmatmul.mubr.bf16.gmra.mrb[0].mxu0 %v4398
    %v6615 = vpop.f32.mrb[0].mxu0
    %v6616 = vadd.f32 %v4687, %v6615
    %v6617 = vpop.f32.mrb[0].mxu0
    %v6618 = vpop.f32.mrb[0].mxu0
    %v6619 = vadd.f32 %v4687, %v6618
    %v6620 = vpop.f32.mrb[0].mxu0
    %6621 = vdwg.mxu0
    %6622 = vmatprep.subr.bf16.mxu0 0
    %6623 = vmatpush1.bf16.msra.mxu0 %v5517
    %6624 = vmatprep.subr.bf16.mxu0 0
    %6625 = vmatpush1.bf16.msra.mxu0 %v5524
    %6626 = vmatprep.subr.bf16.mxu0 0
    %6627 = vmatpush1.bf16.msra.mxu0 %v5531
    %6628 = vmatprep.subr.bf16.mxu0 0
    %6629 = vmatpush1.bf16.msra.mxu0 %v5538
    %6630 = vmatprep.subr.bf16.mxu0 0
    %6631 = vmatpush1.bf16.msra.mxu0 %v5545
    %6632 = vmatprep.subr.bf16.mxu0 0
    %6633 = vmatpush1.bf16.msra.mxu0 %v5552
    %6634 = vmatprep.subr.bf16.mxu0 0
    %6635 = vmatpush1.bf16.msra.mxu0 %v5559
    %6636 = vmatprep.subr.bf16.mxu0 0
    %6637 = vmatpush1.bf16.msra.mxu0 %v5566
    %6638 = vmatprep.subr.bf16.mxu0 0
    %6639 = vmatpush1.bf16.msra.mxu0 %v5573
    %6640 = vmatprep.subr.bf16.mxu0 0
    %6641 = vmatpush1.bf16.msra.mxu0 %v5580
    %6642 = vmatprep.subr.bf16.mxu0 0
    %6643 = vmatpush1.bf16.msra.mxu0 %v5587
    %6644 = vmatprep.subr.bf16.mxu0 0
    %6645 = vmatpush1.bf16.msra.mxu0 %v5594
    %6646 = vmatprep.subr.bf16.mxu0 0
    %6647 = vmatpush1.bf16.msra.mxu0 %v5601
    %6648 = vmatprep.subr.bf16.mxu0 0
    %6649 = vmatpush1.bf16.msra.mxu0 %v5608
    %6650 = vmatprep.subr.bf16.mxu0 0
    %6651 = vmatpush1.bf16.msra.mxu0 %v5615
    %6652 = vmatprep.subr.bf16.mxu0 0
    %6653 = vmatpush1.bf16.msra.mxu0 %v5622
    %6654 = vmatprep.mubr.bf16.mxu0 %v4373
    %6655 = vmatmul.mubr.bf16.gmra.mrb[0].mxu0 %v4372
    %v6656 = vpop.f32.mrb[0].mxu0
    %v6657 = vadd.f32 %v6560, %v6656
    %v6658 = vpop.f32.mrb[0].mxu0
    %v6659 = vpop.f32.mrb[0].mxu0
    %v6660 = vadd.f32 %v6563, %v6659
    %v6661 = vpop.f32.mrb[0].mxu0
    %6662 = vmatprep.mubr.bf16.mxu0 %v4377
    %6663 = vmatmul.mubr.bf16.gmra.mrb[0].mxu0 %v4376
    %v6664 = vpop.f32.mrb[0].mxu0
    %v6665 = vadd.f32 %v6568, %v6664
    %v6666 = vpop.f32.mrb[0].mxu0
    %v6667 = vpop.f32.mrb[0].mxu0
    %v6668 = vadd.f32 %v6571, %v6667
    %v6669 = vpop.f32.mrb[0].mxu0
    %6670 = vmatprep.mubr.bf16.mxu0 %v4381
    %6671 = vmatmul.mubr.bf16.gmra.mrb[0].mxu0 %v4380
    %v6672 = vpop.f32.mrb[0].mxu0
    %v6673 = vadd.f32 %v6576, %v6672
    %v6674 = vpop.f32.mrb[0].mxu0
    %v6675 = vpop.f32.mrb[0].mxu0
    %v6676 = vadd.f32 %v6579, %v6675
    %v6677 = vpop.f32.mrb[0].mxu0
    %6678 = vmatprep.mubr.bf16.mxu0 %v4385
    %6679 = vmatmul.mubr.bf16.gmra.mrb[0].mxu0 %v4384
    %v6680 = vpop.f32.mrb[0].mxu0
    %v6681 = vadd.f32 %v6584, %v6680
    %v6682 = vpop.f32.mrb[0].mxu0
    %v6683 = vpop.f32.mrb[0].mxu0
    %v6684 = vadd.f32 %v6587, %v6683
    %v6685 = vpop.f32.mrb[0].mxu0
    %6686 = vmatprep.mubr.bf16.mxu0 %v4389
    %6687 = vmatmul.mubr.bf16.gmra.mrb[0].mxu0 %v4388
    %v6688 = vpop.f32.mrb[0].mxu0
    %v6689 = vadd.f32 %v6592, %v6688
    %v6690 = vpop.f32.mrb[0].mxu0
    %v6691 = vpop.f32.mrb[0].mxu0
    %v6692 = vadd.f32 %v6595, %v6691
    %v6693 = vpop.f32.mrb[0].mxu0
    %6694 = vmatprep.mubr.bf16.mxu0 %v4393
    %6695 = vmatmul.mubr.bf16.gmra.mrb[0].mxu0 %v4392
    %v6696 = vpop.f32.mrb[0].mxu0
    %v6697 = vadd.f32 %v6600, %v6696
    %v6698 = vpop.f32.mrb[0].mxu0
    %v6699 = vpop.f32.mrb[0].mxu0
    %v6700 = vadd.f32 %v6603, %v6699
    %v6701 = vpop.f32.mrb[0].mxu0
    %6702 = vmatprep.mubr.bf16.mxu0 %v4397
    %6703 = vmatmul.mubr.bf16.gmra.mrb[0].mxu0 %v4396
    %v6704 = vpop.f32.mrb[0].mxu0
    %v6705 = vadd.f32 %v6608, %v6704
    %v6706 = vpop.f32.mrb[0].mxu0
    %v6707 = vpop.f32.mrb[0].mxu0
    %v6708 = vadd.f32 %v6611, %v6707
    %v6709 = vpop.f32.mrb[0].mxu0
    %6710 = vmatprep.mubr.bf16.mxu0 %v4401
    %6711 = vmatmul.mubr.bf16.gmra.mrb[0].mxu0 %v4400
    %v6712 = vpop.f32.mrb[0].mxu0
    %v6713 = vadd.f32 %v6616, %v6712
    %v6714 = vpop.f32.mrb[0].mxu0
    %v6715 = vpop.f32.mrb[0].mxu0
    %v6716 = vadd.f32 %v6619, %v6715
    %v6717 = vpop.f32.mrb[0].mxu0
    %6718 = vdwg.mxu0
    %v6719 = vsub.f32 %v153, %v5995
    %v6720 = vsub.f32 %v154, %v5997
    %v6721 = vsub.f32 %v155, %v6221
    %v6722 = vsub.f32 %v156, %v6223
    %v6723 = vsub.f32 %v157, %v6447
    %v6724 = vsub.f32 %v158, %v6449
    %v6725 = vsub.f32 %v159, %v6657
    %v6726 = vsub.f32 %v160, %v5999
    %v6727 = vsub.f32 %v161, %v6001
    %v6728 = vsub.f32 %v162, %v6225
    %v6729 = vsub.f32 %v163, %v6227
    %v6730 = vsub.f32 %v164, %v6451
    %v6731 = vsub.f32 %v165, %v6453
    %v6732 = vsub.f32 %v166, %v6660
    %v6733 = vsub.f32 %v167, %v6005
    %v6734 = vsub.f32 %v168, %v6007
    %v6735 = vsub.f32 %v169, %v6231
    %v6736 = vsub.f32 %v170, %v6233
    %v6737 = vsub.f32 %v171, %v6457
    %v6738 = vsub.f32 %v172, %v6459
    %v6739 = vsub.f32 %v173, %v6665
    %v6740 = vsub.f32 %v174, %v6009
    %v6741 = vsub.f32 %v175, %v6011
    %v6742 = vsub.f32 %v176, %v6235
    %v6743 = vsub.f32 %v177, %v6237
    %v6744 = vsub.f32 %v178, %v6461
    %v6745 = vsub.f32 %v179, %v6463
    %v6746 = vsub.f32 %v180, %v6668
    %v6747 = vsub.f32 %v181, %v6015
    %v6748 = vsub.f32 %v182, %v6017
    %v6749 = vsub.f32 %v183, %v6241
    %v6750 = vsub.f32 %v184, %v6243
    %v6751 = vsub.f32 %v185, %v6467
    %v6752 = vsub.f32 %v186, %v6469
    %v6753 = vsub.f32 %v187, %v6673
    %v6754 = vsub.f32 %v188, %v6019
    %v6755 = vsub.f32 %v189, %v6021
    %v6756 = vsub.f32 %v190, %v6245
    %v6757 = vsub.f32 %v191, %v6247
    %v6758 = vsub.f32 %v192, %v6471
    %v6759 = vsub.f32 %v193, %v6473
    %v6760 = vsub.f32 %v194, %v6676
    %v6761 = vsub.f32 %v195, %v6025
    %v6762 = vsub.f32 %v196, %v6027
    %v6763 = vsub.f32 %v197, %v6251
    %v6764 = vsub.f32 %v198, %v6253
    %v6765 = vsub.f32 %v199, %v6477
    %v6766 = vsub.f32 %v200, %v6479
    %v6767 = vsub.f32 %v201, %v6681
    %v6768 = vsub.f32 %v202, %v6029
    %v6769 = vsub.f32 %v203, %v6031
    %v6770 = vsub.f32 %v204, %v6255
    %v6771 = vsub.f32 %v205, %v6257
    %v6772 = vsub.f32 %v206, %v6481
    %v6773 = vsub.f32 %v207, %v6483
    %v6774 = vsub.f32 %v208, %v6684
    %v6775 = vsub.f32 %v209, %v6035
    %v6776 = vsub.f32 %v210, %v6037
    %v6777 = vsub.f32 %v211, %v6261
    %v6778 = vsub.f32 %v212, %v6263
    %v6779 = vsub.f32 %v213, %v6487
    %v6780 = vsub.f32 %v214, %v6489
    %v6781 = vsub.f32 %v215, %v6689
    %v6782 = vsub.f32 %v216, %v6039
    %v6783 = vsub.f32 %v217, %v6041
    %v6784 = vsub.f32 %v218, %v6265
    %v6785 = vsub.f32 %v219, %v6267
    %v6786 = vsub.f32 %v220, %v6491
    %v6787 = vsub.f32 %v221, %v6493
    %v6788 = vsub.f32 %v222, %v6692
    %v6789 = vsub.f32 %v223, %v6045
    %v6790 = vsub.f32 %v224, %v6047
    %v6791 = vsub.f32 %v225, %v6271
    %v6792 = vsub.f32 %v226, %v6273
    %v6793 = vsub.f32 %v227, %v6497
    %v6794 = vsub.f32 %v228, %v6499
    %v6795 = vsub.f32 %v229, %v6697
    %v6796 = vsub.f32 %v230, %v6049
    %v6797 = vsub.f32 %v231, %v6051
    %v6798 = vsub.f32 %v232, %v6275
    %v6799 = vsub.f32 %v233, %v6277
    %v6800 = vsub.f32 %v234, %v6501
    %v6801 = vsub.f32 %v235, %v6503
    %v6802 = vsub.f32 %v236, %v6700
    %v6803 = vsub.f32 %v237, %v6055
    %v6804 = vsub.f32 %v238, %v6057
    %v6805 = vsub.f32 %v239, %v6281
    %v6806 = vsub.f32 %v240, %v6283
    %v6807 = vsub.f32 %v241, %v6507
    %v6808 = vsub.f32 %v242, %v6509
    %v6809 = vsub.f32 %v243, %v6705
    %v6810 = vsub.f32 %v244, %v6059
    %v6811 = vsub.f32 %v245, %v6061
    %v6812 = vsub.f32 %v246, %v6285
    %v6813 = vsub.f32 %v247, %v6287
    %v6814 = vsub.f32 %v248, %v6511
    %v6815 = vsub.f32 %v249, %v6513
    %v6816 = vsub.f32 %v250, %v6708
    %v6817 = vsub.f32 %v251, %v6065
    %v6818 = vsub.f32 %v252, %v6067
    %v6819 = vsub.f32 %v253, %v6291
    %v6820 = vsub.f32 %v254, %v6293
    %v6821 = vsub.f32 %v255, %v6517
    %v6822 = vsub.f32 %v256, %v6519
    %v6823 = vsub.f32 %v257, %v6713
    %v6824 = vsub.f32 %v258, %v6069
    %v6825 = vsub.f32 %v259, %v6071
    %v6826 = vsub.f32 %v260, %v6295
    %v6827 = vsub.f32 %v261, %v6297
    %v6828 = vsub.f32 %v262, %v6521
    %v6829 = vsub.f32 %v263, %v6523
    %v6830 = vsub.f32 %v264, %v6716
    %v6831 = vmul.f32 %v6719, %v6719
    %v6832 = vmul.f32 %v6720, %v6720
    %v6833 = vmul.f32 %v6721, %v6721
    %v6834 = vmul.f32 %v6722, %v6722
    %v6835 = vmul.f32 %v6723, %v6723
    %v6836 = vmul.f32 %v6724, %v6724
    %v6837 = vmul.f32 %v6725, %v6725
    %v6838 = vmul.f32 %v6726, %v6726
    %v6839 = vmul.f32 %v6727, %v6727
    %v6840 = vmul.f32 %v6728, %v6728
    %v6841 = vmul.f32 %v6729, %v6729
    %v6842 = vmul.f32 %v6730, %v6730
    %v6843 = vmul.f32 %v6731, %v6731
    %v6844 = vmul.f32 %v6732, %v6732
    %v6845 = vmul.f32 %v6733, %v6733
    %v6846 = vmul.f32 %v6734, %v6734
    %v6847 = vmul.f32 %v6735, %v6735
    %v6848 = vmul.f32 %v6736, %v6736
    %v6849 = vmul.f32 %v6737, %v6737
    %v6850 = vmul.f32 %v6738, %v6738
    %v6851 = vmul.f32 %v6739, %v6739
    %v6852 = vmul.f32 %v6740, %v6740
    %v6853 = vmul.f32 %v6741, %v6741
    %v6854 = vmul.f32 %v6742, %v6742
    %v6855 = vmul.f32 %v6743, %v6743
    %v6856 = vmul.f32 %v6744, %v6744
    %v6857 = vmul.f32 %v6745, %v6745
    %v6858 = vmul.f32 %v6746, %v6746
    %v6859 = vmul.f32 %v6747, %v6747
    %v6860 = vmul.f32 %v6748, %v6748
    %v6861 = vmul.f32 %v6749, %v6749
    %v6862 = vmul.f32 %v6750, %v6750
    %v6863 = vmul.f32 %v6751, %v6751
    %v6864 = vmul.f32 %v6752, %v6752
    %v6865 = vmul.f32 %v6753, %v6753
    %v6866 = vmul.f32 %v6754, %v6754
    %v6867 = vmul.f32 %v6755, %v6755
    %v6868 = vmul.f32 %v6756, %v6756
    %v6869 = vmul.f32 %v6757, %v6757
    %v6870 = vmul.f32 %v6758, %v6758
    %v6871 = vmul.f32 %v6759, %v6759
    %v6872 = vmul.f32 %v6760, %v6760
    %v6873 = vmul.f32 %v6761, %v6761
    %v6874 = vmul.f32 %v6762, %v6762
    %v6875 = vmul.f32 %v6763, %v6763
    %v6876 = vmul.f32 %v6764, %v6764
    %v6877 = vmul.f32 %v6765, %v6765
    %v6878 = vmul.f32 %v6766, %v6766
    %v6879 = vmul.f32 %v6767, %v6767
    %v6880 = vmul.f32 %v6768, %v6768
    %v6881 = vmul.f32 %v6769, %v6769
    %v6882 = vmul.f32 %v6770, %v6770
    %v6883 = vmul.f32 %v6771, %v6771
    %v6884 = vmul.f32 %v6772, %v6772
    %v6885 = vmul.f32 %v6773, %v6773
    %v6886 = vmul.f32 %v6774, %v6774
    %v6887 = vmul.f32 %v6775, %v6775
    %v6888 = vmul.f32 %v6776, %v6776
    %v6889 = vmul.f32 %v6777, %v6777
    %v6890 = vmul.f32 %v6778, %v6778
    %v6891 = vmul.f32 %v6779, %v6779
    %v6892 = vmul.f32 %v6780, %v6780
    %v6893 = vmul.f32 %v6781, %v6781
    %v6894 = vmul.f32 %v6782, %v6782
    %v6895 = vmul.f32 %v6783, %v6783
    %v6896 = vmul.f32 %v6784, %v6784
    %v6897 = vmul.f32 %v6785, %v6785
    %v6898 = vmul.f32 %v6786, %v6786
    %v6899 = vmul.f32 %v6787, %v6787
    %v6900 = vmul.f32 %v6788, %v6788
    %v6901 = vmul.f32 %v6789, %v6789
    %v6902 = vmul.f32 %v6790, %v6790
    %v6903 = vmul.f32 %v6791, %v6791
    %v6904 = vmul.f32 %v6792, %v6792
    %v6905 = vmul.f32 %v6793, %v6793
    %v6906 = vmul.f32 %v6794, %v6794
    %v6907 = vmul.f32 %v6795, %v6795
    %v6908 = vmul.f32 %v6796, %v6796
    %v6909 = vmul.f32 %v6797, %v6797
    %v6910 = vmul.f32 %v6798, %v6798
    %v6911 = vmul.f32 %v6799, %v6799
    %v6912 = vmul.f32 %v6800, %v6800
    %v6913 = vmul.f32 %v6801, %v6801
    %v6914 = vmul.f32 %v6802, %v6802
    %v6915 = vmul.f32 %v6803, %v6803
    %v6916 = vmul.f32 %v6804, %v6804
    %v6917 = vmul.f32 %v6805, %v6805
    %v6918 = vmul.f32 %v6806, %v6806
    %v6919 = vmul.f32 %v6807, %v6807
    %v6920 = vmul.f32 %v6808, %v6808
    %v6921 = vmul.f32 %v6809, %v6809
    %v6922 = vmul.f32 %v6810, %v6810
    %v6923 = vmul.f32 %v6811, %v6811
    %v6924 = vmul.f32 %v6812, %v6812
    %v6925 = vmul.f32 %v6813, %v6813
    %v6926 = vmul.f32 %v6814, %v6814
    %v6927 = vmul.f32 %v6815, %v6815
    %v6928 = vmul.f32 %v6816, %v6816
    %v6929 = vmul.f32 %v6817, %v6817
    %v6930 = vmul.f32 %v6818, %v6818
    %v6931 = vmul.f32 %v6819, %v6819
    %v6932 = vmul.f32 %v6820, %v6820
    %v6933 = vmul.f32 %v6821, %v6821
    %v6934 = vmul.f32 %v6822, %v6822
    %v6935 = vmul.f32 %v6823, %v6823
    %v6936 = vmul.f32 %v6824, %v6824
    %v6937 = vmul.f32 %v6825, %v6825
    %v6938 = vmul.f32 %v6826, %v6826
    %v6939 = vmul.f32 %v6827, %v6827
    %v6940 = vmul.f32 %v6828, %v6828
    %v6941 = vmul.f32 %v6829, %v6829
    %v6942 = vmul.f32 %v6830, %v6830
    %v6943 = vlaneseq
    %v6944 = vshrl.u32 %v6943, 7
    %v6945 = vadd.s32 %v6944, 8
    %v6946 = vadd.s32 %v6944, 16
    %v6947 = vadd.s32 %v6944, 24
    %v6948 = vadd.s32 %v6944, 32
    %v6949 = vadd.s32 %v6944, 40
    %v6950 = vadd.s32 %v6944, 48
    %v6951 = vadd.s32 %v6944, 56
    %v6952 = vadd.s32 %v6944, 64
    %v6953 = vadd.s32 %v6944, 72
    %v6954 = vadd.s32 %v6944, 80
    %v6955 = vadd.s32 %v6944, 88
    %v6956 = vadd.s32 %v6944, 96
    %v6957 = vadd.s32 %v6944, 104
    %v6958 = vadd.s32 %v6944, 112
    %v6959 = vadd.s32 %v6944, 120
    %s6960 = smul.u32 0, 128
    %v6961 = vstv %s6960
    %v6962 = vadd.s32 %v6944, %v6961
    %v6963 = vadd.s32 %v6945, %v6961
    %v6964 = vadd.s32 %v6946, %v6961
    %v6965 = vadd.s32 %v6947, %v6961
    %v6966 = vadd.s32 %v6948, %v6961
    %v6967 = vadd.s32 %v6949, %v6961
    %v6968 = vadd.s32 %v6950, %v6961
    %v6969 = vadd.s32 %v6951, %v6961
    %v6970 = vadd.s32 %v6952, %v6961
    %v6971 = vadd.s32 %v6953, %v6961
    %v6972 = vadd.s32 %v6954, %v6961
    %v6973 = vadd.s32 %v6955, %v6961
    %v6974 = vadd.s32 %v6956, %v6961
    %v6975 = vadd.s32 %v6957, %v6961
    %v6976 = vadd.s32 %v6958, %v6961
    %v6977 = vadd.s32 %v6959, %v6961
    %vm6978 = vcmp.lt.s32.totalorder %v6962, 8
    %vm6979 = vcmp.lt.s32.totalorder %v6963, 8
    %vm6980 = vcmp.lt.s32.totalorder %v6964, 8
    %vm6981 = vcmp.lt.s32.totalorder %v6965, 8
    %vm6982 = vcmp.lt.s32.totalorder %v6966, 8
    %vm6983 = vcmp.lt.s32.totalorder %v6967, 8
    %vm6984 = vcmp.lt.s32.totalorder %v6968, 8
    %vm6985 = vcmp.lt.s32.totalorder %v6969, 8
    %vm6986 = vcmp.lt.s32.totalorder %v6970, 8
    %vm6987 = vcmp.lt.s32.totalorder %v6971, 8
    %vm6988 = vcmp.lt.s32.totalorder %v6972, 8
    %vm6989 = vcmp.lt.s32.totalorder %v6973, 8
    %vm6990 = vcmp.lt.s32.totalorder %v6974, 8
    %vm6991 = vcmp.lt.s32.totalorder %v6975, 8
    %vm6992 = vcmp.lt.s32.totalorder %v6976, 8
    %vm6993 = vcmp.lt.s32.totalorder %v6977, 8
    %v6994 = vsel %vm6978, 1, 0
    %v6995 = vsel %vm6979, 1, 0
    %v6996 = vsel %vm6980, 1, 0
    %v6997 = vsel %vm6981, 1, 0
    %v6998 = vsel %vm6982, 1, 0
    %v6999 = vsel %vm6983, 1, 0
    %v7000 = vsel %vm6984, 1, 0
    %v7001 = vsel %vm6985, 1, 0
    %v7002 = vsel %vm6986, 1, 0
    %v7003 = vsel %vm6987, 1, 0
    %v7004 = vsel %vm6988, 1, 0
    %v7005 = vsel %vm6989, 1, 0
    %v7006 = vsel %vm6990, 1, 0
    %v7007 = vsel %vm6991, 1, 0
    %v7008 = vsel %vm6992, 1, 0
    %v7009 = vsel %vm6993, 1, 0
    %vm7010 = vcmp.eq.s32.totalorder %v6994, 1
    %vm7011 = vcmp.eq.s32.totalorder %v6995, 1
    %vm7012 = vcmp.eq.s32.totalorder %v6996, 1
    %vm7013 = vcmp.eq.s32.totalorder %v6997, 1
    %vm7014 = vcmp.eq.s32.totalorder %v6998, 1
    %vm7015 = vcmp.eq.s32.totalorder %v6999, 1
    %vm7016 = vcmp.eq.s32.totalorder %v7000, 1
    %vm7017 = vcmp.eq.s32.totalorder %v7001, 1
    %vm7018 = vcmp.eq.s32.totalorder %v7002, 1
    %vm7019 = vcmp.eq.s32.totalorder %v7003, 1
    %vm7020 = vcmp.eq.s32.totalorder %v7004, 1
    %vm7021 = vcmp.eq.s32.totalorder %v7005, 1
    %vm7022 = vcmp.eq.s32.totalorder %v7006, 1
    %vm7023 = vcmp.eq.s32.totalorder %v7007, 1
    %vm7024 = vcmp.eq.s32.totalorder %v7008, 1
    %vm7025 = vcmp.eq.s32.totalorder %v7009, 1
    %v7026 = vsel %vm7010, %v6831, 0.0
    %v7027 = vsel %vm7010, %v6832, 0.0
    %v7028 = vsel %vm7010, %v6833, 0.0
    %v7029 = vsel %vm7010, %v6834, 0.0
    %v7030 = vsel %vm7010, %v6835, 0.0
    %v7031 = vsel %vm7010, %v6836, 0.0
    %v7032 = vsel %vm7010, %v6837, 0.0
    %v7033 = vsel %vm7011, %v6838, 0.0
    %v7034 = vsel %vm7011, %v6839, 0.0
    %v7035 = vsel %vm7011, %v6840, 0.0
    %v7036 = vsel %vm7011, %v6841, 0.0
    %v7037 = vsel %vm7011, %v6842, 0.0
    %v7038 = vsel %vm7011, %v6843, 0.0
    %v7039 = vsel %vm7011, %v6844, 0.0
    %v7040 = vsel %vm7012, %v6845, 0.0
    %v7041 = vsel %vm7012, %v6846, 0.0
    %v7042 = vsel %vm7012, %v6847, 0.0
    %v7043 = vsel %vm7012, %v6848, 0.0
    %v7044 = vsel %vm7012, %v6849, 0.0
    %v7045 = vsel %vm7012, %v6850, 0.0
    %v7046 = vsel %vm7012, %v6851, 0.0
    %v7047 = vsel %vm7013, %v6852, 0.0
    %v7048 = vsel %vm7013, %v6853, 0.0
    %v7049 = vsel %vm7013, %v6854, 0.0
    %v7050 = vsel %vm7013, %v6855, 0.0
    %v7051 = vsel %vm7013, %v6856, 0.0
    %v7052 = vsel %vm7013, %v6857, 0.0
    %v7053 = vsel %vm7013, %v6858, 0.0
    %v7054 = vsel %vm7014, %v6859, 0.0
    %v7055 = vsel %vm7014, %v6860, 0.0
    %v7056 = vsel %vm7014, %v6861, 0.0
    %v7057 = vsel %vm7014, %v6862, 0.0
    %v7058 = vsel %vm7014, %v6863, 0.0
    %v7059 = vsel %vm7014, %v6864, 0.0
    %v7060 = vsel %vm7014, %v6865, 0.0
    %v7061 = vsel %vm7015, %v6866, 0.0
    %v7062 = vsel %vm7015, %v6867, 0.0
    %v7063 = vsel %vm7015, %v6868, 0.0
    %v7064 = vsel %vm7015, %v6869, 0.0
    %v7065 = vsel %vm7015, %v6870, 0.0
    %v7066 = vsel %vm7015, %v6871, 0.0
    %v7067 = vsel %vm7015, %v6872, 0.0
    %v7068 = vsel %vm7016, %v6873, 0.0
    %v7069 = vsel %vm7016, %v6874, 0.0
    %v7070 = vsel %vm7016, %v6875, 0.0
    %v7071 = vsel %vm7016, %v6876, 0.0
    %v7072 = vsel %vm7016, %v6877, 0.0
    %v7073 = vsel %vm7016, %v6878, 0.0
    %v7074 = vsel %vm7016, %v6879, 0.0
    %v7075 = vsel %vm7017, %v6880, 0.0
    %v7076 = vsel %vm7017, %v6881, 0.0
    %v7077 = vsel %vm7017, %v6882, 0.0
    %v7078 = vsel %vm7017, %v6883, 0.0
    %v7079 = vsel %vm7017, %v6884, 0.0
    %v7080 = vsel %vm7017, %v6885, 0.0
    %v7081 = vsel %vm7017, %v6886, 0.0
    %v7082 = vsel %vm7018, %v6887, 0.0
    %v7083 = vsel %vm7018, %v6888, 0.0
    %v7084 = vsel %vm7018, %v6889, 0.0
    %v7085 = vsel %vm7018, %v6890, 0.0
    %v7086 = vsel %vm7018, %v6891, 0.0
    %v7087 = vsel %vm7018, %v6892, 0.0
    %v7088 = vsel %vm7018, %v6893, 0.0
    %v7089 = vsel %vm7019, %v6894, 0.0
    %v7090 = vsel %vm7019, %v6895, 0.0
    %v7091 = vsel %vm7019, %v6896, 0.0
    %v7092 = vsel %vm7019, %v6897, 0.0
    %v7093 = vsel %vm7019, %v6898, 0.0
    %v7094 = vsel %vm7019, %v6899, 0.0
    %v7095 = vsel %vm7019, %v6900, 0.0
    %v7096 = vsel %vm7020, %v6901, 0.0
    %v7097 = vsel %vm7020, %v6902, 0.0
    %v7098 = vsel %vm7020, %v6903, 0.0
    %v7099 = vsel %vm7020, %v6904, 0.0
    %v7100 = vsel %vm7020, %v6905, 0.0
    %v7101 = vsel %vm7020, %v6906, 0.0
    %v7102 = vsel %vm7020, %v6907, 0.0
    %v7103 = vsel %vm7021, %v6908, 0.0
    %v7104 = vsel %vm7021, %v6909, 0.0
    %v7105 = vsel %vm7021, %v6910, 0.0
    %v7106 = vsel %vm7021, %v6911, 0.0
    %v7107 = vsel %vm7021, %v6912, 0.0
    %v7108 = vsel %vm7021, %v6913, 0.0
    %v7109 = vsel %vm7021, %v6914, 0.0
    %v7110 = vsel %vm7022, %v6915, 0.0
    %v7111 = vsel %vm7022, %v6916, 0.0
    %v7112 = vsel %vm7022, %v6917, 0.0
    %v7113 = vsel %vm7022, %v6918, 0.0
    %v7114 = vsel %vm7022, %v6919, 0.0
    %v7115 = vsel %vm7022, %v6920, 0.0
    %v7116 = vsel %vm7022, %v6921, 0.0
    %v7117 = vsel %vm7023, %v6922, 0.0
    %v7118 = vsel %vm7023, %v6923, 0.0
    %v7119 = vsel %vm7023, %v6924, 0.0
    %v7120 = vsel %vm7023, %v6925, 0.0
    %v7121 = vsel %vm7023, %v6926, 0.0
    %v7122 = vsel %vm7023, %v6927, 0.0
    %v7123 = vsel %vm7023, %v6928, 0.0
    %v7124 = vsel %vm7024, %v6929, 0.0
    %v7125 = vsel %vm7024, %v6930, 0.0
    %v7126 = vsel %vm7024, %v6931, 0.0
    %v7127 = vsel %vm7024, %v6932, 0.0
    %v7128 = vsel %vm7024, %v6933, 0.0
    %v7129 = vsel %vm7024, %v6934, 0.0
    %v7130 = vsel %vm7024, %v6935, 0.0
    %v7131 = vsel %vm7025, %v6936, 0.0
    %v7132 = vsel %vm7025, %v6937, 0.0
    %v7133 = vsel %vm7025, %v6938, 0.0
    %v7134 = vsel %vm7025, %v6939, 0.0
    %v7135 = vsel %vm7025, %v6940, 0.0
    %v7136 = vsel %vm7025, %v6941, 0.0
    %v7137 = vsel %vm7025, %v6942, 0.0
    %v7138 = vadd.f32 %v7026, %v7033
    %v7139 = vadd.f32 %v7138, %v7040
    %v7140 = vadd.f32 %v7139, %v7047
    %v7141 = vadd.f32 %v7140, %v7054
    %v7142 = vadd.f32 %v7141, %v7061
    %v7143 = vadd.f32 %v7142, %v7068
    %v7144 = vadd.f32 %v7143, %v7075
    %v7145 = vadd.f32 %v7144, %v7082
    %v7146 = vadd.f32 %v7145, %v7089
    %v7147 = vadd.f32 %v7146, %v7096
    %v7148 = vadd.f32 %v7147, %v7103
    %v7149 = vadd.f32 %v7148, %v7110
    %v7150 = vadd.f32 %v7149, %v7117
    %v7151 = vadd.f32 %v7150, %v7124
    %v7152 = vadd.f32 %v7151, %v7131
    %v7153 = vrot.slane %v7152, 4
    %v7154 = vadd.f32 %v7152, %v7153
    %v7155 = vrot.slane %v7154, 2
    %v7156 = vadd.f32 %v7154, %v7155
    %v7157 = vrot.slane %v7156, 1
    %v7158 = vadd.f32 %v7156, %v7157
    %v7159 = vadd.f32 %v7027, %v7034
    %v7160 = vadd.f32 %v7159, %v7041
    %v7161 = vadd.f32 %v7160, %v7048
    %v7162 = vadd.f32 %v7161, %v7055
    %v7163 = vadd.f32 %v7162, %v7062
    %v7164 = vadd.f32 %v7163, %v7069
    %v7165 = vadd.f32 %v7164, %v7076
    %v7166 = vadd.f32 %v7165, %v7083
    %v7167 = vadd.f32 %v7166, %v7090
    %v7168 = vadd.f32 %v7167, %v7097
    %v7169 = vadd.f32 %v7168, %v7104
    %v7170 = vadd.f32 %v7169, %v7111
    %v7171 = vadd.f32 %v7170, %v7118
    %v7172 = vadd.f32 %v7171, %v7125
    %v7173 = vadd.f32 %v7172, %v7132
    %v7174 = vrot.slane %v7173, 4
    %v7175 = vadd.f32 %v7173, %v7174
    %v7176 = vrot.slane %v7175, 2
    %v7177 = vadd.f32 %v7175, %v7176
    %v7178 = vrot.slane %v7177, 1
    %v7179 = vadd.f32 %v7177, %v7178
    %v7180 = vadd.f32 %v7028, %v7035
    %v7181 = vadd.f32 %v7180, %v7042
    %v7182 = vadd.f32 %v7181, %v7049
    %v7183 = vadd.f32 %v7182, %v7056
    %v7184 = vadd.f32 %v7183, %v7063
    %v7185 = vadd.f32 %v7184, %v7070
    %v7186 = vadd.f32 %v7185, %v7077
    %v7187 = vadd.f32 %v7186, %v7084
    %v7188 = vadd.f32 %v7187, %v7091
    %v7189 = vadd.f32 %v7188, %v7098
    %v7190 = vadd.f32 %v7189, %v7105
    %v7191 = vadd.f32 %v7190, %v7112
    %v7192 = vadd.f32 %v7191, %v7119
    %v7193 = vadd.f32 %v7192, %v7126
    %v7194 = vadd.f32 %v7193, %v7133
    %v7195 = vrot.slane %v7194, 4
    %v7196 = vadd.f32 %v7194, %v7195
    %v7197 = vrot.slane %v7196, 2
    %v7198 = vadd.f32 %v7196, %v7197
    %v7199 = vrot.slane %v7198, 1
    %v7200 = vadd.f32 %v7198, %v7199
    %v7201 = vadd.f32 %v7029, %v7036
    %v7202 = vadd.f32 %v7201, %v7043
    %v7203 = vadd.f32 %v7202, %v7050
    %v7204 = vadd.f32 %v7203, %v7057
    %v7205 = vadd.f32 %v7204, %v7064
    %v7206 = vadd.f32 %v7205, %v7071
    %v7207 = vadd.f32 %v7206, %v7078
    %v7208 = vadd.f32 %v7207, %v7085
    %v7209 = vadd.f32 %v7208, %v7092
    %v7210 = vadd.f32 %v7209, %v7099
    %v7211 = vadd.f32 %v7210, %v7106
    %v7212 = vadd.f32 %v7211, %v7113
    %v7213 = vadd.f32 %v7212, %v7120
    %v7214 = vadd.f32 %v7213, %v7127
    %v7215 = vadd.f32 %v7214, %v7134
    %v7216 = vrot.slane %v7215, 4
    %v7217 = vadd.f32 %v7215, %v7216
    %v7218 = vrot.slane %v7217, 2
    %v7219 = vadd.f32 %v7217, %v7218
    %v7220 = vrot.slane %v7219, 1
    %v7221 = vadd.f32 %v7219, %v7220
    %v7222 = vadd.f32 %v7030, %v7037
    %v7223 = vadd.f32 %v7222, %v7044
    %v7224 = vadd.f32 %v7223, %v7051
    %v7225 = vadd.f32 %v7224, %v7058
    %v7226 = vadd.f32 %v7225, %v7065
    %v7227 = vadd.f32 %v7226, %v7072
    %v7228 = vadd.f32 %v7227, %v7079
    %v7229 = vadd.f32 %v7228, %v7086
    %v7230 = vadd.f32 %v7229, %v7093
    %v7231 = vadd.f32 %v7230, %v7100
    %v7232 = vadd.f32 %v7231, %v7107
    %v7233 = vadd.f32 %v7232, %v7114
    %v7234 = vadd.f32 %v7233, %v7121
    %v7235 = vadd.f32 %v7234, %v7128
    %v7236 = vadd.f32 %v7235, %v7135
    %v7237 = vrot.slane %v7236, 4
    %v7238 = vadd.f32 %v7236, %v7237
    %v7239 = vrot.slane %v7238, 2
    %v7240 = vadd.f32 %v7238, %v7239
    %v7241 = vrot.slane %v7240, 1
    %v7242 = vadd.f32 %v7240, %v7241
    %v7243 = vadd.f32 %v7031, %v7038
    %v7244 = vadd.f32 %v7243, %v7045
    %v7245 = vadd.f32 %v7244, %v7052
    %v7246 = vadd.f32 %v7245, %v7059
    %v7247 = vadd.f32 %v7246, %v7066
    %v7248 = vadd.f32 %v7247, %v7073
    %v7249 = vadd.f32 %v7248, %v7080
    %v7250 = vadd.f32 %v7249, %v7087
    %v7251 = vadd.f32 %v7250, %v7094
    %v7252 = vadd.f32 %v7251, %v7101
    %v7253 = vadd.f32 %v7252, %v7108
    %v7254 = vadd.f32 %v7253, %v7115
    %v7255 = vadd.f32 %v7254, %v7122
    %v7256 = vadd.f32 %v7255, %v7129
    %v7257 = vadd.f32 %v7256, %v7136
    %v7258 = vrot.slane %v7257, 4
    %v7259 = vadd.f32 %v7257, %v7258
    %v7260 = vrot.slane %v7259, 2
    %v7261 = vadd.f32 %v7259, %v7260
    %v7262 = vrot.slane %v7261, 1
    %v7263 = vadd.f32 %v7261, %v7262
    %v7264 = vadd.f32 %v7032, %v7039
    %v7265 = vadd.f32 %v7264, %v7046
    %v7266 = vadd.f32 %v7265, %v7053
    %v7267 = vadd.f32 %v7266, %v7060
    %v7268 = vadd.f32 %v7267, %v7067
    %v7269 = vadd.f32 %v7268, %v7074
    %v7270 = vadd.f32 %v7269, %v7081
    %v7271 = vadd.f32 %v7270, %v7088
    %v7272 = vadd.f32 %v7271, %v7095
    %v7273 = vadd.f32 %v7272, %v7102
    %v7274 = vadd.f32 %v7273, %v7109
    %v7275 = vadd.f32 %v7274, %v7116
    %v7276 = vadd.f32 %v7275, %v7123
    %v7277 = vadd.f32 %v7276, %v7130
    %v7278 = vadd.f32 %v7277, %v7137
    %v7279 = vrot.slane %v7278, 4
    %v7280 = vadd.f32 %v7278, %v7279
    %v7281 = vrot.slane %v7280, 2
    %v7282 = vadd.f32 %v7280, %v7281
    %v7283 = vrot.slane %v7282, 1
    %v7284 = vadd.f32 %v7282, %v7283
    %v7285 = vadd.f32 %v7158, %v7179
    %v7286 = vadd.f32 %v7285, %v7200
    %v7287 = vadd.f32 %v7286, %v7221
    %v7288 = vadd.f32 %v7287, %v7242
    %v7289 = vadd.f32 %v7288, %v7263
    %v7290 = vadd.f32 %v7289, %v7284
    %7291 = vst [vmem:[#allocation16] sm:$0x1] %v7290
    // Predicated region
    $region86: #{tpu_custom_call.1} parent=1 // pred_check
      _
    $region87: #{tpu_custom_call.1} parent=1 // pred_check_branch
      %7293 = sbr.rel (0) target = $region89
    $region88: #{tpu_custom_call.1} parent=1 // pred_region
      %s7295 = ssub.s32 16, 16
      %7296 = vsyncadd [#allocation4], %s7295
      %s7298 = sshll.u32 [#allocation16], 4
      %s7299 = int_to_ptr.vmem [resolvable:$true] %s7298
      %7301 = dma.vmem_to_hbm [thread:$0]  %s7299, 16, %s13, [#allocation4]
    $region89: #{tpu_custom_call.1} parent=1 // pred_fallthru
      _
    // Predicated region
    $region90: #{tpu_custom_call.1} parent=1 // pred_check
      _
    $region91: #{tpu_custom_call.1} parent=1 // pred_check_branch
      %7303 = sbr.rel (0) target = $region93
    $region92: #{tpu_custom_call.1} parent=1 // pred_region
      %7304 = dma.done [#allocation4], 16
    $region93: #{tpu_custom_call.1} parent=1 // pred_fallthru
      _
    %7305 = vsyncpa [#allocation3], 1
    %7306 = vsyncpa [#allocation6], 1
    %7307 = vsyncpa [#allocation9], 1
    %7308 = vsyncpa [#allocation12], 1
    %7309 = vsyncpa [#allocation15], 1
    %7310 = vsyncpa [#allocation4], 1

</llo_original>
